<compile_context>
chip_gen: v6e
topology: v6e:2x2x1
jax: 0.10.0
libtpu: 0.0.40
codegen_flags: <defaults>
</compile_context>

<pallas_src>
import functools

import jax
import jax.numpy as jnp
from jax.experimental import pallas as pl
from jax.experimental.pallas import tpu as pltpu


def basic_block_kernel(x_ref, w1_ref, w2_ref, b1_ref, b2_ref, out_ref,
                       x_stage, mid_stage, acc_ref, *, H, W, C_pad, G):
    """One batch element per grid step.

    x_ref     : (1, H*W, C_pad) f32   flattened NHWC input (channel-padded)
    w*_ref    : (9, C_pad, C_pad) bf16 folded conv weights, tap = (ky+1)*3+(kx+1)
    b*_ref    : (1, C_pad) f32        folded BatchNorm bias
    out_ref   : (1, H*W, C_pad) f32
    x_stage   : (H*W + 2G, C_pad) f32 VMEM staging (G zero guard rows each side)
    mid_stage : (H*W + 2G, C_pad) f32 VMEM staging for relu(bn1(conv1))
    acc_ref   : (H*W, C_pad) f32      VMEM accumulator
    """
    HW = H * W

    # Zero the guard strips every step (cheap: a few vregs) so dy=+-1 taps read
    # zeros.  Re-done per step on purpose: safe under megacore grid sharding.
    zeros_guard = jnp.zeros((G, C_pad), jnp.float32)
    x_stage[pl.ds(0, G), :] = zeros_guard
    x_stage[pl.ds(G + HW, G), :] = zeros_guard
    mid_stage[pl.ds(0, G), :] = zeros_guard
    mid_stage[pl.ds(G + HW, G), :] = zeros_guard

    # Stage the activation (aligned store; G is a multiple of 8).
    x_stage[pl.ds(G, HW), :] = x_ref[0]

    taps = [(ky, kx) for ky in (-1, 0, 1) for kx in (-1, 0, 1)]

    def conv3x3_bn(src_stage, w_ref, b_ref):
        # Accumulator starts at the folded BN bias (scale already in weights).
        acc_ref[...] = jnp.broadcast_to(b_ref[...], (HW, C_pad))
        for t, (ky, kx) in enumerate(taps):
            d = ky * W + kx
            patch = src_stage[pl.ds(G + d, HW), :]          # (HW, C_pad) f32
            if kx != 0:
                # Column-validity mask: rows whose dx shift crossed an image
                # row boundary must contribute zero.  dy bounds are handled by
                # the zero guard rows.
                col = jax.lax.broadcasted_iota(jnp.int32, (HW, C_pad), 0) % W
                ok = (col >= 1) if kx == -1 else (col <= W - 2)
                patch = jnp.where(ok, patch, 0.0)
            acc_ref[...] += jnp.dot(patch.astype(jnp.bfloat16), w_ref[t],
                                    preferred_element_type=jnp.float32)

    # conv1 -> bn1 (folded) -> relu, staged for conv2
    conv3x3_bn(x_stage, w1_ref, b1_ref)
    mid_stage[pl.ds(G, HW), :] = jnp.maximum(acc_ref[...], 0.0)

    # conv2 -> bn2 (folded) -> + identity -> relu
    conv3x3_bn(mid_stage, w2_ref, b2_ref)
    out_ref[0] = jnp.maximum(acc_ref[...] + x_ref[0], 0.0).astype(out_ref.dtype)


def _fold_bn(gamma, beta, mean, var, eps):
    scale = gamma / jnp.sqrt(var + eps)
    bias = beta - mean * scale
    return scale, bias


def basic_block_pallas(x_nchw, w1_oihw, w2_oihw, bn1, bn2, eps=1e-5):
    """BasicBlock forward (stride=1, inplanes == planes, no downsample)."""
    N, C, H, W = x_nchw.shape
    if w1_oihw.shape != (C, C, 3, 3) or w2_oihw.shape != (C, C, 3, 3):
        raise ValueError("identity-residual BasicBlock requires inplanes == planes, stride=1")

    s1, b1 = _fold_bn(*bn1, eps)
    s2, b2 = _fold_bn(*bn2, eps)

    LANES = 128
    C_pad = ((C + LANES - 1) // LANES) * LANES
    HW = H * W
    G = ((W + 8) // 8) * 8            # zero-guard rows: >= W+1 and 8-aligned

    # Activations: NCHW -> flat (N, H*W, C_pad) f32 (channel-padded only; the
    # spatial halo is handled inside the kernel -> no host-side spatial pad).
    x = jnp.transpose(x_nchw.astype(jnp.float32), (0, 2, 3, 1)).reshape(N, HW, C)
    x = jnp.pad(x, ((0, 0), (0, 0), (0, C_pad - C)))

    # Weights: fold BN scale per out-channel, OIHW -> (9, Cin_pad, Cout_pad) bf16.
    def prep_w(w, scale):
        w = w.astype(jnp.float32) * scale[:, None, None, None]
        w = jnp.transpose(w, (2, 3, 1, 0)).reshape(9, C, C)   # (kh,kw,in,out)
        w = jnp.pad(w, ((0, 0), (0, C_pad - C), (0, C_pad - C)))
        return w.astype(jnp.bfloat16)

    w1p = prep_w(w1_oihw, s1)
    w2p = prep_w(w2_oihw, s2)
    b1p = jnp.pad(b1.astype(jnp.float32), (0, C_pad - C)).reshape(1, C_pad)
    b2p = jnp.pad(b2.astype(jnp.float32), (0, C_pad - C)).reshape(1, C_pad)

    kernel = functools.partial(basic_block_kernel, H=H, W=W, C_pad=C_pad, G=G)

    out_flat = pl.pallas_call(
        kernel,
        out_shape=jax.ShapeDtypeStruct((N, HW, C_pad), jnp.float32),
        grid_spec=pltpu.PrefetchScalarGridSpec(
            num_scalar_prefetch=0,
            grid=(N,),
            in_specs=[
                pl.BlockSpec((1, HW, C_pad), lambda n: (n, 0, 0)),
                pl.BlockSpec((9, C_pad, C_pad), lambda n: (0, 0, 0)),
                pl.BlockSpec((9, C_pad, C_pad), lambda n: (0, 0, 0)),
                pl.BlockSpec((1, C_pad), lambda n: (0, 0)),
                pl.BlockSpec((1, C_pad), lambda n: (0, 0)),
            ],
            out_specs=pl.BlockSpec((1, HW, C_pad), lambda n: (n, 0, 0)),
            scratch_shapes=[
                pltpu.VMEM((HW + 2 * G, C_pad), jnp.float32),   # x staging
                pltpu.VMEM((HW + 2 * G, C_pad), jnp.float32),   # conv1-out staging
                pltpu.VMEM((HW, C_pad), jnp.float32),           # accumulator
            ],
        ),
        compiler_params=pltpu.CompilerParams(
            dimension_semantics=("parallel",),
            vmem_limit_bytes=32 * 1024 * 1024,
        ),
    )(x, w1p, w2p, b1p, b2p)

    out = out_flat[:, :, :C].reshape(N, H, W, C)
    return jnp.transpose(out, (0, 3, 1, 2))


def basic_block_reference_f32(x, w1, w2, bn1, bn2, eps=1e-5):
    """Pure-f32 reference mirroring the PyTorch forward (NCHW / OIHW)."""
    g1, be1, m1, v1 = bn1
    g2, be2, m2, v2 = bn2
    s1 = (g1 / jnp.sqrt(v1 + eps)).reshape(1, -1, 1, 1)
    b1 = (be1 - m1 * g1 / jnp.sqrt(v1 + eps)).reshape(1, -1, 1, 1)
    s2 = (g2 / jnp.sqrt(v2 + eps)).reshape(1, -1, 1, 1)
    b2 = (be2 - m2 * g2 / jnp.sqrt(v2 + eps)).reshape(1, -1, 1, 1)
    dn = ("NCHW", "OIHW", "NCHW")
    out = jax.lax.conv_general_dilated(x, w1, (1, 1), [(1, 1), (1, 1)],
                                       dimension_numbers=dn)
    out = jnp.maximum(out * s1 + b1, 0.0)
    out = jax.lax.conv_general_dilated(out, w2, (1, 1), [(1, 1), (1, 1)],
                                       dimension_numbers=dn)
    out = out * s2 + b2
    return jnp.maximum(out + x, 0.0)


def basic_block_reference_matched(x, w1, w2, bn1, bn2, eps=1e-5):
    """Numerics-matched reference: folded BN, bf16 matmul operands, f32 acc."""
    s1, b1 = _fold_bn(*bn1, eps)
    s2, b2 = _fold_bn(*bn2, eps)
    w1b = (w1 * s1[:, None, None, None]).astype(jnp.bfloat16)
    w2b = (w2 * s2[:, None, None, None]).astype(jnp.bfloat16)
    dn = ("NCHW", "OIHW", "NCHW")
    out = jax.lax.conv_general_dilated(
        x.astype(jnp.bfloat16), w1b, (1, 1), [(1, 1), (1, 1)],
        dimension_numbers=dn, preferred_element_type=jnp.float32)
    out = jnp.maximum(out + b1.reshape(1, -1, 1, 1), 0.0)
    out = jax.lax.conv_general_dilated(
        out.astype(jnp.bfloat16), w2b, (1, 1), [(1, 1), (1, 1)],
        dimension_numbers=dn, preferred_element_type=jnp.float32)
    out = out + b2.reshape(1, -1, 1, 1)
    return jnp.maximum(out + x, 0.0)


if __name__ == "__main__":
    # BasicBlock(inplanes=4, planes=4, stride=1): identity residual path.
    N, C, H, W = 2, 4, 16, 16

    key = jax.random.PRNGKey(0)
    kx, kw1, kw2, kg1, kb1, km1, kv1, kg2, kb2, km2, kv2 = jax.random.split(key, 11)

    x = jax.random.normal(kx, (N, C, H, W), jnp.float32)

    # conv3x3 weights, PyTorch OIHW layout, bias=False
    w1 = jax.random.normal(kw1, (C, C, 3, 3), jnp.float32) * 0.1
    w2 = jax.random.normal(kw2, (C, C, 3, 3), jnp.float32) * 0.1

    # BatchNorm2d params (gamma, beta, running_mean, running_var)
    bn1 = (jax.random.uniform(kg1, (C,), jnp.float32, 0.5, 1.5),
           jax.random.normal(kb1, (C,), jnp.float32) * 0.1,
           jax.random.normal(km1, (C,), jnp.float32) * 0.1,
           jax.random.uniform(kv1, (C,), jnp.float32, 0.5, 1.5))
    bn2 = (jax.random.uniform(kg2, (C,), jnp.float32, 0.5, 1.5),
           jax.random.normal(kb2, (C,), jnp.float32) * 0.1,
           jax.random.normal(km2, (C,), jnp.float32) * 0.1,
           jax.random.uniform(kv2, (C,), jnp.float32, 0.5, 1.5))

    out = jax.block_until_ready(basic_block_pallas(x, w1, w2, bn1, bn2))

    # Tight check against a reference with identical numerics (bf16 matmul
    # operands, f32 accumulation, folded BN).
    ref_matched = jax.block_until_ready(
        basic_block_reference_matched(x, w1, w2, bn1, bn2))
    if not jnp.allclose(out, ref_matched, atol=1e-3, rtol=1e-3):
        err = float(jnp.max(jnp.abs(out - ref_matched)))
        raise AssertionError(f"mismatch vs bf16-matched reference, max abs err = {err}")

    # Loose sanity check against the pure-f32 module semantics (bf16 MXU
    # operands introduce ~1e-2-scale rounding).
    ref_f32 = jax.block_until_ready(
        basic_block_reference_f32(x, w1, w2, bn1, bn2))
    if not jnp.allclose(out, ref_f32, atol=2.5e-1, rtol=5e-2):
        err = float(jnp.max(jnp.abs(out - ref_f32)))
        raise AssertionError(f"mismatch vs f32 reference, max abs err = {err}")

    print("KERNEL_OK")
</pallas_src>

<mosaic_0001>
module attributes {stable_mosaic.version = 11 : i64} {
  func.func @basic_block_kernel(%arg0: i32, %arg1: memref<1x256x128xf32, #tpu.memory_space<vmem>>, %arg2: memref<9x128x128xbf16, #tpu.memory_space<vmem>>, %arg3: memref<9x128x128xbf16, #tpu.memory_space<vmem>>, %arg4: memref<1x128xf32, #tpu.memory_space<vmem>>, %arg5: memref<1x128xf32, #tpu.memory_space<vmem>>, %arg6: memref<1x256x128xf32, #tpu.memory_space<vmem>>, %arg7: memref<304x128xf32, #tpu.memory_space<vmem>>, %arg8: memref<304x128xf32, #tpu.memory_space<vmem>>, %arg9: memref<256x128xf32, #tpu.memory_space<vmem>>) attributes {dimension_semantics = [#tpu.dimension_semantics<parallel>], iteration_bounds = array<i64: 2>, scalar_prefetch = 0 : i64, scratch_operands = 3 : i64, tpu.core_type = #tpu.core_type<tc>, window_params = [{transform_indices = @transform_0, window_bounds = array<i64: 1, 256, 128>}, {pipeline_mode = #tpu.pipeline_mode<synchronous>, transform_indices = @transform_1, window_bounds = array<i64: 9, 128, 128>}, {pipeline_mode = #tpu.pipeline_mode<synchronous>, transform_indices = @transform_2, window_bounds = array<i64: 9, 128, 128>}, {pipeline_mode = #tpu.pipeline_mode<synchronous>, transform_indices = @transform_3, window_bounds = array<i64: 1, 128>}, {pipeline_mode = #tpu.pipeline_mode<synchronous>, transform_indices = @transform_4, window_bounds = array<i64: 1, 128>}, {transform_indices = @transform_5, window_bounds = array<i64: 1, 256, 128>}]} {
    %cst = arith.constant 0.000000e+00 : f32
    %0 = vector.broadcast %cst : f32 to vector<24x128xf32>
    %c0 = arith.constant 0 : index
    %c0_0 = arith.constant 0 : index
    %1 = vector.load %arg7[%c0, %c0_0] : memref<304x128xf32, #tpu.memory_space<vmem>>, vector<24x128xf32>
    tpu.vector_store %arg7[%c0, %c0_0], %0 {strides = array<i32>} : memref<304x128xf32, #tpu.memory_space<vmem>>, vector<24x128xf32>,
    %c280 = arith.constant 280 : index
    %c0_1 = arith.constant 0 : index
    %2 = vector.load %arg7[%c280, %c0_1] : memref<304x128xf32, #tpu.memory_space<vmem>>, vector<24x128xf32>
    tpu.vector_store %arg7[%c280, %c0_1], %0 {strides = array<i32>} : memref<304x128xf32, #tpu.memory_space<vmem>>, vector<24x128xf32>,
    %c0_2 = arith.constant 0 : index
    %c0_3 = arith.constant 0 : index
    %3 = vector.load %arg8[%c0_2, %c0_3] : memref<304x128xf32, #tpu.memory_space<vmem>>, vector<24x128xf32>
    tpu.vector_store %arg8[%c0_2, %c0_3], %0 {strides = array<i32>} : memref<304x128xf32, #tpu.memory_space<vmem>>, vector<24x128xf32>,
    %c280_4 = arith.constant 280 : index
    %c0_5 = arith.constant 0 : index
    %4 = vector.load %arg8[%c280_4, %c0_5] : memref<304x128xf32, #tpu.memory_space<vmem>>, vector<24x128xf32>
    tpu.vector_store %arg8[%c280_4, %c0_5], %0 {strides = array<i32>} : memref<304x128xf32, #tpu.memory_space<vmem>>, vector<24x128xf32>,
    %c0_6 = arith.constant 0 : index
    %c0_7 = arith.constant 0 : index
    %c0_8 = arith.constant 0 : index
    %5 = vector.load %arg1[%c0_6, %c0_7, %c0_8] : memref<1x256x128xf32, #tpu.memory_space<vmem>>, vector<1x256x128xf32>
    %6 = vector.shape_cast %5 : vector<1x256x128xf32> to vector<256x128xf32>
    %c24 = arith.constant 24 : index
    %c0_9 = arith.constant 0 : index
    %7 = vector.load %arg7[%c24, %c0_9] : memref<304x128xf32, #tpu.memory_space<vmem>>, vector<256x128xf32>
    tpu.vector_store %arg7[%c24, %c0_9], %6 {strides = array<i32>} : memref<304x128xf32, #tpu.memory_space<vmem>>, vector<256x128xf32>,
    %c0_10 = arith.constant 0 : index
    %c0_11 = arith.constant 0 : index
    %8 = vector.load %arg4[%c0_10, %c0_11] : memref<1x128xf32, #tpu.memory_space<vmem>>, vector<1x128xf32>
    %9 = vector.shape_cast %8 : vector<1x128xf32> to vector<1x128xf32>
    %10 = vector.broadcast %9 : vector<1x128xf32> to vector<256x128xf32>
    %c0_12 = arith.constant 0 : index
    %c0_13 = arith.constant 0 : index
    %11 = vector.load %arg9[%c0_12, %c0_13] : memref<256x128xf32, #tpu.memory_space<vmem>>, vector<256x128xf32>
    tpu.vector_store %arg9[%c0_12, %c0_13], %10 {strides = array<i32>} : memref<256x128xf32, #tpu.memory_space<vmem>>, vector<256x128xf32>,
    %c7 = arith.constant 7 : index
    %c0_14 = arith.constant 0 : index
    %12 = vector.load %arg7[%c7, %c0_14] : memref<304x128xf32, #tpu.memory_space<vmem>>, vector<256x128xf32>
    %13 = tpu.iota {dimensions = array<i32: 0>} : vector<256x128xi32>
    %c16_i32 = arith.constant 16 : i32
    %c0_i32 = arith.constant 0 : i32
    %14 = arith.cmpi eq, %c16_i32, %c0_i32 : i32
    %c1_i32 = arith.constant 1 : i32
    %15 = arith.select %14, %c1_i32, %c16_i32 : i32
    %16 = vector.broadcast %15 : i32 to vector<256x128xi32>
    %17 = arith.remsi %13, %16 : vector<256x128xi32>
    %c0_i32_15 = arith.constant 0 : i32
    %18 = vector.broadcast %c0_i32_15 : i32 to vector<256x128xi32>
    %19 = arith.cmpi ne, %17, %18 : vector<256x128xi32>
    %c0_i32_16 = arith.constant 0 : i32
    %20 = vector.broadcast %c0_i32_16 : i32 to vector<256x128xi32>
    %21 = arith.cmpi slt, %17, %20 : vector<256x128xi32>
    %c0_i32_17 = arith.constant 0 : i32
    %22 = arith.cmpi slt, %15, %c0_i32_17 : i32
    %23 = vector.broadcast %22 : i1 to vector<256x128xi1>
    %24 = vector.broadcast %23 : vector<256x128xi1> to vector<256x128xi1>
    %25 = arith.xori %21, %24 : vector<256x128xi1>
    %26 = arith.andi %25, %19 : vector<256x128xi1>
    %27 = vector.broadcast %15 : i32 to vector<256x128xi32>
    %28 = arith.addi %17, %27 : vector<256x128xi32>
    %29 = arith.select %26, %28, %17 : vector<256x128xi1>, vector<256x128xi32>
    %c1_i32_18 = arith.constant 1 : i32
    %30 = vector.broadcast %c1_i32_18 : i32 to vector<256x128xi32>
    %31 = arith.cmpi sge, %29, %30 : vector<256x128xi32>
    %cst_19 = arith.constant 0.000000e+00 : f32
    %32 = vector.broadcast %cst_19 : f32 to vector<256x128xf32>
    %33 = arith.select %31, %12, %32 : vector<256x128xi1>, vector<256x128xf32>
    %c0_20 = arith.constant 0 : index
    %c0_21 = arith.constant 0 : index
    %34 = vector.load %arg9[%c0_20, %c0_21] : memref<256x128xf32, #tpu.memory_space<vmem>>, vector<256x128xf32>
    %35 = arith.truncf %33 : vector<256x128xf32> to vector<256x128xbf16>
    %c0_22 = arith.constant 0 : index
    %c0_23 = arith.constant 0 : index
    %c0_24 = arith.constant 0 : index
    %36 = vector.load %arg2[%c0_22, %c0_23, %c0_24] : memref<9x128x128xbf16, #tpu.memory_space<vmem>>, vector<1x128x128xbf16>
    %37 = vector.shape_cast %36 : vector<1x128x128xbf16> to vector<128x128xbf16>
    %cst_25 = arith.constant dense<0.000000e+00> : vector<256x128xf32>
    %38 = tpu.matmul %35, %37, %cst_25 {dimension_numbers = #tpu.dot_dimension_numbers<[1], [0], [0], [1], [0, 0, 1, 1], [], []>} : vector<256x128xbf16>, vector<128x128xbf16>, vector<256x128xf32> -> vector<256x128xf32>
    %39 = arith.addf %34, %38 : vector<256x128xf32>
    %c0_26 = arith.constant 0 : index
    %c0_27 = arith.constant 0 : index
    %40 = vector.load %arg9[%c0_26, %c0_27] : memref<256x128xf32, #tpu.memory_space<vmem>>, vector<256x128xf32>
    tpu.vector_store %arg9[%c0_26, %c0_27], %39 {strides = array<i32>} : memref<256x128xf32, #tpu.memory_space<vmem>>, vector<256x128xf32>,
    %c8 = arith.constant 8 : index
    %c0_28 = arith.constant 0 : index
    %41 = vector.load %arg7[%c8, %c0_28] : memref<304x128xf32, #tpu.memory_space<vmem>>, vector<256x128xf32>
    %c0_29 = arith.constant 0 : index
    %c0_30 = arith.constant 0 : index
    %42 = vector.load %arg9[%c0_29, %c0_30] : memref<256x128xf32, #tpu.memory_space<vmem>>, vector<256x128xf32>
    %43 = arith.truncf %41 : vector<256x128xf32> to vector<256x128xbf16>
    %c1 = arith.constant 1 : index
    %c0_31 = arith.constant 0 : index
    %c0_32 = arith.constant 0 : index
    %44 = vector.load %arg2[%c1, %c0_31, %c0_32] : memref<9x128x128xbf16, #tpu.memory_space<vmem>>, vector<1x128x128xbf16>
    %45 = vector.shape_cast %44 : vector<1x128x128xbf16> to vector<128x128xbf16>
    %cst_33 = arith.constant dense<0.000000e+00> : vector<256x128xf32>
    %46 = tpu.matmul %43, %45, %cst_33 {dimension_numbers = #tpu.dot_dimension_numbers<[1], [0], [0], [1], [0, 0, 1, 1], [], []>} : vector<256x128xbf16>, vector<128x128xbf16>, vector<256x128xf32> -> vector<256x128xf32>
    %47 = arith.addf %42, %46 : vector<256x128xf32>
    %c0_34 = arith.constant 0 : index
    %c0_35 = arith.constant 0 : index
    %48 = vector.load %arg9[%c0_34, %c0_35] : memref<256x128xf32, #tpu.memory_space<vmem>>, vector<256x128xf32>
    tpu.vector_store %arg9[%c0_34, %c0_35], %47 {strides = array<i32>} : memref<256x128xf32, #tpu.memory_space<vmem>>, vector<256x128xf32>,
    %c9 = arith.constant 9 : index
    %c0_36 = arith.constant 0 : index
    %49 = vector.load %arg7[%c9, %c0_36] : memref<304x128xf32, #tpu.memory_space<vmem>>, vector<256x128xf32>
    %50 = tpu.iota {dimensions = array<i32: 0>} : vector<256x128xi32>
    %c16_i32_37 = arith.constant 16 : i32
    %c0_i32_38 = arith.constant 0 : i32
    %51 = arith.cmpi eq, %c16_i32_37, %c0_i32_38 : i32
    %c1_i32_39 = arith.constant 1 : i32
    %52 = arith.select %51, %c1_i32_39, %c16_i32_37 : i32
    %53 = vector.broadcast %52 : i32 to vector<256x128xi32>
    %54 = arith.remsi %50, %53 : vector<256x128xi32>
    %c0_i32_40 = arith.constant 0 : i32
    %55 = vector.broadcast %c0_i32_40 : i32 to vector<256x128xi32>
    %56 = arith.cmpi ne, %54, %55 : vector<256x128xi32>
    %c0_i32_41 = arith.constant 0 : i32
    %57 = vector.broadcast %c0_i32_41 : i32 to vector<256x128xi32>
    %58 = arith.cmpi slt, %54, %57 : vector<256x128xi32>
    %c0_i32_42 = arith.constant 0 : i32
    %59 = arith.cmpi slt, %52, %c0_i32_42 : i32
    %60 = vector.broadcast %59 : i1 to vector<256x128xi1>
    %61 = vector.broadcast %60 : vector<256x128xi1> to vector<256x128xi1>
    %62 = arith.xori %58, %61 : vector<256x128xi1>
    %63 = arith.andi %62, %56 : vector<256x128xi1>
    %64 = vector.broadcast %52 : i32 to vector<256x128xi32>
    %65 = arith.addi %54, %64 : vector<256x128xi32>
    %66 = arith.select %63, %65, %54 : vector<256x128xi1>, vector<256x128xi32>
    %c14_i32 = arith.constant 14 : i32
    %67 = vector.broadcast %c14_i32 : i32 to vector<256x128xi32>
    %68 = arith.cmpi sle, %66, %67 : vector<256x128xi32>
    %cst_43 = arith.constant 0.000000e+00 : f32
    %69 = vector.broadcast %cst_43 : f32 to vector<256x128xf32>
    %70 = arith.select %68, %49, %69 : vector<256x128xi1>, vector<256x128xf32>
    %c0_44 = arith.constant 0 : index
    %c0_45 = arith.constant 0 : index
    %71 = vector.load %arg9[%c0_44, %c0_45] : memref<256x128xf32, #tpu.memory_space<vmem>>, vector<256x128xf32>
    %72 = arith.truncf %70 : vector<256x128xf32> to vector<256x128xbf16>
    %c2 = arith.constant 2 : index
    %c0_46 = arith.constant 0 : index
    %c0_47 = arith.constant 0 : index
    %73 = vector.load %arg2[%c2, %c0_46, %c0_47] : memref<9x128x128xbf16, #tpu.memory_space<vmem>>, vector<1x128x128xbf16>
    %74 = vector.shape_cast %73 : vector<1x128x128xbf16> to vector<128x128xbf16>
    %cst_48 = arith.constant dense<0.000000e+00> : vector<256x128xf32>
    %75 = tpu.matmul %72, %74, %cst_48 {dimension_numbers = #tpu.dot_dimension_numbers<[1], [0], [0], [1], [0, 0, 1, 1], [], []>} : vector<256x128xbf16>, vector<128x128xbf16>, vector<256x128xf32> -> vector<256x128xf32>
    %76 = arith.addf %71, %75 : vector<256x128xf32>
    %c0_49 = arith.constant 0 : index
    %c0_50 = arith.constant 0 : index
    %77 = vector.load %arg9[%c0_49, %c0_50] : memref<256x128xf32, #tpu.memory_space<vmem>>, vector<256x128xf32>
    tpu.vector_store %arg9[%c0_49, %c0_50], %76 {strides = array<i32>} : memref<256x128xf32, #tpu.memory_space<vmem>>, vector<256x128xf32>,
    %c23 = arith.constant 23 : index
    %c0_51 = arith.constant 0 : index
    %78 = vector.load %arg7[%c23, %c0_51] : memref<304x128xf32, #tpu.memory_space<vmem>>, vector<256x128xf32>
    %79 = tpu.iota {dimensions = array<i32: 0>} : vector<256x128xi32>
    %c16_i32_52 = arith.constant 16 : i32
    %c0_i32_53 = arith.constant 0 : i32
    %80 = arith.cmpi eq, %c16_i32_52, %c0_i32_53 : i32
    %c1_i32_54 = arith.constant 1 : i32
    %81 = arith.select %80, %c1_i32_54, %c16_i32_52 : i32
    %82 = vector.broadcast %81 : i32 to vector<256x128xi32>
    %83 = arith.remsi %79, %82 : vector<256x128xi32>
    %c0_i32_55 = arith.constant 0 : i32
    %84 = vector.broadcast %c0_i32_55 : i32 to vector<256x128xi32>
    %85 = arith.cmpi ne, %83, %84 : vector<256x128xi32>
    %c0_i32_56 = arith.constant 0 : i32
    %86 = vector.broadcast %c0_i32_56 : i32 to vector<256x128xi32>
    %87 = arith.cmpi slt, %83, %86 : vector<256x128xi32>
    %c0_i32_57 = arith.constant 0 : i32
    %88 = arith.cmpi slt, %81, %c0_i32_57 : i32
    %89 = vector.broadcast %88 : i1 to vector<256x128xi1>
    %90 = vector.broadcast %89 : vector<256x128xi1> to vector<256x128xi1>
    %91 = arith.xori %87, %90 : vector<256x128xi1>
    %92 = arith.andi %91, %85 : vector<256x128xi1>
    %93 = vector.broadcast %81 : i32 to vector<256x128xi32>
    %94 = arith.addi %83, %93 : vector<256x128xi32>
    %95 = arith.select %92, %94, %83 : vector<256x128xi1>, vector<256x128xi32>
    %c1_i32_58 = arith.constant 1 : i32
    %96 = vector.broadcast %c1_i32_58 : i32 to vector<256x128xi32>
    %97 = arith.cmpi sge, %95, %96 : vector<256x128xi32>
    %cst_59 = arith.constant 0.000000e+00 : f32
    %98 = vector.broadcast %cst_59 : f32 to vector<256x128xf32>
    %99 = arith.select %97, %78, %98 : vector<256x128xi1>, vector<256x128xf32>
    %c0_60 = arith.constant 0 : index
    %c0_61 = arith.constant 0 : index
    %100 = vector.load %arg9[%c0_60, %c0_61] : memref<256x128xf32, #tpu.memory_space<vmem>>, vector<256x128xf32>
    %101 = arith.truncf %99 : vector<256x128xf32> to vector<256x128xbf16>
    %c3 = arith.constant 3 : index
    %c0_62 = arith.constant 0 : index
    %c0_63 = arith.constant 0 : index
    %102 = vector.load %arg2[%c3, %c0_62, %c0_63] : memref<9x128x128xbf16, #tpu.memory_space<vmem>>, vector<1x128x128xbf16>
    %103 = vector.shape_cast %102 : vector<1x128x128xbf16> to vector<128x128xbf16>
    %cst_64 = arith.constant dense<0.000000e+00> : vector<256x128xf32>
    %104 = tpu.matmul %101, %103, %cst_64 {dimension_numbers = #tpu.dot_dimension_numbers<[1], [0], [0], [1], [0, 0, 1, 1], [], []>} : vector<256x128xbf16>, vector<128x128xbf16>, vector<256x128xf32> -> vector<256x128xf32>
    %105 = arith.addf %100, %104 : vector<256x128xf32>
    %c0_65 = arith.constant 0 : index
    %c0_66 = arith.constant 0 : index
    %106 = vector.load %arg9[%c0_65, %c0_66] : memref<256x128xf32, #tpu.memory_space<vmem>>, vector<256x128xf32>
    tpu.vector_store %arg9[%c0_65, %c0_66], %105 {strides = array<i32>} : memref<256x128xf32, #tpu.memory_space<vmem>>, vector<256x128xf32>,
    %c24_67 = arith.constant 24 : index
    %c0_68 = arith.constant 0 : index
    %107 = vector.load %arg7[%c24_67, %c0_68] : memref<304x128xf32, #tpu.memory_space<vmem>>, vector<256x128xf32>
    %c0_69 = arith.constant 0 : index
    %c0_70 = arith.constant 0 : index
    %108 = vector.load %arg9[%c0_69, %c0_70] : memref<256x128xf32, #tpu.memory_space<vmem>>, vector<256x128xf32>
    %109 = arith.truncf %107 : vector<256x128xf32> to vector<256x128xbf16>
    %c4 = arith.constant 4 : index
    %c0_71 = arith.constant 0 : index
    %c0_72 = arith.constant 0 : index
    %110 = vector.load %arg2[%c4, %c0_71, %c0_72] : memref<9x128x128xbf16, #tpu.memory_space<vmem>>, vector<1x128x128xbf16>
    %111 = vector.shape_cast %110 : vector<1x128x128xbf16> to vector<128x128xbf16>
    %cst_73 = arith.constant dense<0.000000e+00> : vector<256x128xf32>
    %112 = tpu.matmul %109, %111, %cst_73 {dimension_numbers = #tpu.dot_dimension_numbers<[1], [0], [0], [1], [0, 0, 1, 1], [], []>} : vector<256x128xbf16>, vector<128x128xbf16>, vector<256x128xf32> -> vector<256x128xf32>
    %113 = arith.addf %108, %112 : vector<256x128xf32>
    %c0_74 = arith.constant 0 : index
    %c0_75 = arith.constant 0 : index
    %114 = vector.load %arg9[%c0_74, %c0_75] : memref<256x128xf32, #tpu.memory_space<vmem>>, vector<256x128xf32>
    tpu.vector_store %arg9[%c0_74, %c0_75], %113 {strides = array<i32>} : memref<256x128xf32, #tpu.memory_space<vmem>>, vector<256x128xf32>,
    %c25 = arith.constant 25 : index
    %c0_76 = arith.constant 0 : index
    %115 = vector.load %arg7[%c25, %c0_76] : memref<304x128xf32, #tpu.memory_space<vmem>>, vector<256x128xf32>
    %116 = tpu.iota {dimensions = array<i32: 0>} : vector<256x128xi32>
    %c16_i32_77 = arith.constant 16 : i32
    %c0_i32_78 = arith.constant 0 : i32
    %117 = arith.cmpi eq, %c16_i32_77, %c0_i32_78 : i32
    %c1_i32_79 = arith.constant 1 : i32
    %118 = arith.select %117, %c1_i32_79, %c16_i32_77 : i32
    %119 = vector.broadcast %118 : i32 to vector<256x128xi32>
    %120 = arith.remsi %116, %119 : vector<256x128xi32>
    %c0_i32_80 = arith.constant 0 : i32
    %121 = vector.broadcast %c0_i32_80 : i32 to vector<256x128xi32>
    %122 = arith.cmpi ne, %120, %121 : vector<256x128xi32>
    %c0_i32_81 = arith.constant 0 : i32
    %123 = vector.broadcast %c0_i32_81 : i32 to vector<256x128xi32>
    %124 = arith.cmpi slt, %120, %123 : vector<256x128xi32>
    %c0_i32_82 = arith.constant 0 : i32
    %125 = arith.cmpi slt, %118, %c0_i32_82 : i32
    %126 = vector.broadcast %125 : i1 to vector<256x128xi1>
    %127 = vector.broadcast %126 : vector<256x128xi1> to vector<256x128xi1>
    %128 = arith.xori %124, %127 : vector<256x128xi1>
    %129 = arith.andi %128, %122 : vector<256x128xi1>
    %130 = vector.broadcast %118 : i32 to vector<256x128xi32>
    %131 = arith.addi %120, %130 : vector<256x128xi32>
    %132 = arith.select %129, %131, %120 : vector<256x128xi1>, vector<256x128xi32>
    %c14_i32_83 = arith.constant 14 : i32
    %133 = vector.broadcast %c14_i32_83 : i32 to vector<256x128xi32>
    %134 = arith.cmpi sle, %132, %133 : vector<256x128xi32>
    %cst_84 = arith.constant 0.000000e+00 : f32
    %135 = vector.broadcast %cst_84 : f32 to vector<256x128xf32>
    %136 = arith.select %134, %115, %135 : vector<256x128xi1>, vector<256x128xf32>
    %c0_85 = arith.constant 0 : index
    %c0_86 = arith.constant 0 : index
    %137 = vector.load %arg9[%c0_85, %c0_86] : memref<256x128xf32, #tpu.memory_space<vmem>>, vector<256x128xf32>
    %138 = arith.truncf %136 : vector<256x128xf32> to vector<256x128xbf16>
    %c5 = arith.constant 5 : index
    %c0_87 = arith.constant 0 : index
    %c0_88 = arith.constant 0 : index
    %139 = vector.load %arg2[%c5, %c0_87, %c0_88] : memref<9x128x128xbf16, #tpu.memory_space<vmem>>, vector<1x128x128xbf16>
    %140 = vector.shape_cast %139 : vector<1x128x128xbf16> to vector<128x128xbf16>
    %cst_89 = arith.constant dense<0.000000e+00> : vector<256x128xf32>
    %141 = tpu.matmul %138, %140, %cst_89 {dimension_numbers = #tpu.dot_dimension_numbers<[1], [0], [0], [1], [0, 0, 1, 1], [], []>} : vector<256x128xbf16>, vector<128x128xbf16>, vector<256x128xf32> -> vector<256x128xf32>
    %142 = arith.addf %137, %141 : vector<256x128xf32>
    %c0_90 = arith.constant 0 : index
    %c0_91 = arith.constant 0 : index
    %143 = vector.load %arg9[%c0_90, %c0_91] : memref<256x128xf32, #tpu.memory_space<vmem>>, vector<256x128xf32>
    tpu.vector_store %arg9[%c0_90, %c0_91], %142 {strides = array<i32>} : memref<256x128xf32, #tpu.memory_space<vmem>>, vector<256x128xf32>,
    %c39 = arith.constant 39 : index
    %c0_92 = arith.constant 0 : index
    %144 = vector.load %arg7[%c39, %c0_92] : memref<304x128xf32, #tpu.memory_space<vmem>>, vector<256x128xf32>
    %145 = tpu.iota {dimensions = array<i32: 0>} : vector<256x128xi32>
    %c16_i32_93 = arith.constant 16 : i32
    %c0_i32_94 = arith.constant 0 : i32
    %146 = arith.cmpi eq, %c16_i32_93, %c0_i32_94 : i32
    %c1_i32_95 = arith.constant 1 : i32
    %147 = arith.select %146, %c1_i32_95, %c16_i32_93 : i32
    %148 = vector.broadcast %147 : i32 to vector<256x128xi32>
    %149 = arith.remsi %145, %148 : vector<256x128xi32>
    %c0_i32_96 = arith.constant 0 : i32
    %150 = vector.broadcast %c0_i32_96 : i32 to vector<256x128xi32>
    %151 = arith.cmpi ne, %149, %150 : vector<256x128xi32>
    %c0_i32_97 = arith.constant 0 : i32
    %152 = vector.broadcast %c0_i32_97 : i32 to vector<256x128xi32>
    %153 = arith.cmpi slt, %149, %152 : vector<256x128xi32>
    %c0_i32_98 = arith.constant 0 : i32
    %154 = arith.cmpi slt, %147, %c0_i32_98 : i32
    %155 = vector.broadcast %154 : i1 to vector<256x128xi1>
    %156 = vector.broadcast %155 : vector<256x128xi1> to vector<256x128xi1>
    %157 = arith.xori %153, %156 : vector<256x128xi1>
    %158 = arith.andi %157, %151 : vector<256x128xi1>
    %159 = vector.broadcast %147 : i32 to vector<256x128xi32>
    %160 = arith.addi %149, %159 : vector<256x128xi32>
    %161 = arith.select %158, %160, %149 : vector<256x128xi1>, vector<256x128xi32>
    %c1_i32_99 = arith.constant 1 : i32
    %162 = vector.broadcast %c1_i32_99 : i32 to vector<256x128xi32>
    %163 = arith.cmpi sge, %161, %162 : vector<256x128xi32>
    %cst_100 = arith.constant 0.000000e+00 : f32
    %164 = vector.broadcast %cst_100 : f32 to vector<256x128xf32>
    %165 = arith.select %163, %144, %164 : vector<256x128xi1>, vector<256x128xf32>
    %c0_101 = arith.constant 0 : index
    %c0_102 = arith.constant 0 : index
    %166 = vector.load %arg9[%c0_101, %c0_102] : memref<256x128xf32, #tpu.memory_space<vmem>>, vector<256x128xf32>
    %167 = arith.truncf %165 : vector<256x128xf32> to vector<256x128xbf16>
    %c6 = arith.constant 6 : index
    %c0_103 = arith.constant 0 : index
    %c0_104 = arith.constant 0 : index
    %168 = vector.load %arg2[%c6, %c0_103, %c0_104] : memref<9x128x128xbf16, #tpu.memory_space<vmem>>, vector<1x128x128xbf16>
    %169 = vector.shape_cast %168 : vector<1x128x128xbf16> to vector<128x128xbf16>
    %cst_105 = arith.constant dense<0.000000e+00> : vector<256x128xf32>
    %170 = tpu.matmul %167, %169, %cst_105 {dimension_numbers = #tpu.dot_dimension_numbers<[1], [0], [0], [1], [0, 0, 1, 1], [], []>} : vector<256x128xbf16>, vector<128x128xbf16>, vector<256x128xf32> -> vector<256x128xf32>
    %171 = arith.addf %166, %170 : vector<256x128xf32>
    %c0_106 = arith.constant 0 : index
    %c0_107 = arith.constant 0 : index
    %172 = vector.load %arg9[%c0_106, %c0_107] : memref<256x128xf32, #tpu.memory_space<vmem>>, vector<256x128xf32>
    tpu.vector_store %arg9[%c0_106, %c0_107], %171 {strides = array<i32>} : memref<256x128xf32, #tpu.memory_space<vmem>>, vector<256x128xf32>,
    %c40 = arith.constant 40 : index
    %c0_108 = arith.constant 0 : index
    %173 = vector.load %arg7[%c40, %c0_108] : memref<304x128xf32, #tpu.memory_space<vmem>>, vector<256x128xf32>
    %c0_109 = arith.constant 0 : index
    %c0_110 = arith.constant 0 : index
    %174 = vector.load %arg9[%c0_109, %c0_110] : memref<256x128xf32, #tpu.memory_space<vmem>>, vector<256x128xf32>
    %175 = arith.truncf %173 : vector<256x128xf32> to vector<256x128xbf16>
    %c7_111 = arith.constant 7 : index
    %c0_112 = arith.constant 0 : index
    %c0_113 = arith.constant 0 : index
    %176 = vector.load %arg2[%c7_111, %c0_112, %c0_113] : memref<9x128x128xbf16, #tpu.memory_space<vmem>>, vector<1x128x128xbf16>
    %177 = vector.shape_cast %176 : vector<1x128x128xbf16> to vector<128x128xbf16>
    %cst_114 = arith.constant dense<0.000000e+00> : vector<256x128xf32>
    %178 = tpu.matmul %175, %177, %cst_114 {dimension_numbers = #tpu.dot_dimension_numbers<[1], [0], [0], [1], [0, 0, 1, 1], [], []>} : vector<256x128xbf16>, vector<128x128xbf16>, vector<256x128xf32> -> vector<256x128xf32>
    %179 = arith.addf %174, %178 : vector<256x128xf32>
    %c0_115 = arith.constant 0 : index
    %c0_116 = arith.constant 0 : index
    %180 = vector.load %arg9[%c0_115, %c0_116] : memref<256x128xf32, #tpu.memory_space<vmem>>, vector<256x128xf32>
    tpu.vector_store %arg9[%c0_115, %c0_116], %179 {strides = array<i32>} : memref<256x128xf32, #tpu.memory_space<vmem>>, vector<256x128xf32>,
    %c41 = arith.constant 41 : index
    %c0_117 = arith.constant 0 : index
    %181 = vector.load %arg7[%c41, %c0_117] : memref<304x128xf32, #tpu.memory_space<vmem>>, vector<256x128xf32>
    %182 = tpu.iota {dimensions = array<i32: 0>} : vector<256x128xi32>
    %c16_i32_118 = arith.constant 16 : i32
    %c0_i32_119 = arith.constant 0 : i32
    %183 = arith.cmpi eq, %c16_i32_118, %c0_i32_119 : i32
    %c1_i32_120 = arith.constant 1 : i32
    %184 = arith.select %183, %c1_i32_120, %c16_i32_118 : i32
    %185 = vector.broadcast %184 : i32 to vector<256x128xi32>
    %186 = arith.remsi %182, %185 : vector<256x128xi32>
    %c0_i32_121 = arith.constant 0 : i32
    %187 = vector.broadcast %c0_i32_121 : i32 to vector<256x128xi32>
    %188 = arith.cmpi ne, %186, %187 : vector<256x128xi32>
    %c0_i32_122 = arith.constant 0 : i32
    %189 = vector.broadcast %c0_i32_122 : i32 to vector<256x128xi32>
    %190 = arith.cmpi slt, %186, %189 : vector<256x128xi32>
    %c0_i32_123 = arith.constant 0 : i32
    %191 = arith.cmpi slt, %184, %c0_i32_123 : i32
    %192 = vector.broadcast %191 : i1 to vector<256x128xi1>
    %193 = vector.broadcast %192 : vector<256x128xi1> to vector<256x128xi1>
    %194 = arith.xori %190, %193 : vector<256x128xi1>
    %195 = arith.andi %194, %188 : vector<256x128xi1>
    %196 = vector.broadcast %184 : i32 to vector<256x128xi32>
    %197 = arith.addi %186, %196 : vector<256x128xi32>
    %198 = arith.select %195, %197, %186 : vector<256x128xi1>, vector<256x128xi32>
    %c14_i32_124 = arith.constant 14 : i32
    %199 = vector.broadcast %c14_i32_124 : i32 to vector<256x128xi32>
    %200 = arith.cmpi sle, %198, %199 : vector<256x128xi32>
    %cst_125 = arith.constant 0.000000e+00 : f32
    %201 = vector.broadcast %cst_125 : f32 to vector<256x128xf32>
    %202 = arith.select %200, %181, %201 : vector<256x128xi1>, vector<256x128xf32>
    %c0_126 = arith.constant 0 : index
    %c0_127 = arith.constant 0 : index
    %203 = vector.load %arg9[%c0_126, %c0_127] : memref<256x128xf32, #tpu.memory_space<vmem>>, vector<256x128xf32>
    %204 = arith.truncf %202 : vector<256x128xf32> to vector<256x128xbf16>
    %c8_128 = arith.constant 8 : index
    %c0_129 = arith.constant 0 : index
    %c0_130 = arith.constant 0 : index
    %205 = vector.load %arg2[%c8_128, %c0_129, %c0_130] : memref<9x128x128xbf16, #tpu.memory_space<vmem>>, vector<1x128x128xbf16>
    %206 = vector.shape_cast %205 : vector<1x128x128xbf16> to vector<128x128xbf16>
    %cst_131 = arith.constant dense<0.000000e+00> : vector<256x128xf32>
    %207 = tpu.matmul %204, %206, %cst_131 {dimension_numbers = #tpu.dot_dimension_numbers<[1], [0], [0], [1], [0, 0, 1, 1], [], []>} : vector<256x128xbf16>, vector<128x128xbf16>, vector<256x128xf32> -> vector<256x128xf32>
    %208 = arith.addf %203, %207 : vector<256x128xf32>
    %c0_132 = arith.constant 0 : index
    %c0_133 = arith.constant 0 : index
    %209 = vector.load %arg9[%c0_132, %c0_133] : memref<256x128xf32, #tpu.memory_space<vmem>>, vector<256x128xf32>
    tpu.vector_store %arg9[%c0_132, %c0_133], %208 {strides = array<i32>} : memref<256x128xf32, #tpu.memory_space<vmem>>, vector<256x128xf32>,
    %c0_134 = arith.constant 0 : index
    %c0_135 = arith.constant 0 : index
    %210 = vector.load %arg9[%c0_134, %c0_135] : memref<256x128xf32, #tpu.memory_space<vmem>>, vector<256x128xf32>
    %cst_136 = arith.constant 0.000000e+00 : f32
    %211 = vector.broadcast %cst_136 : f32 to vector<256x128xf32>
    %212 = arith.maximumf %210, %211 : vector<256x128xf32>
    %c24_137 = arith.constant 24 : index
    %c0_138 = arith.constant 0 : index
    %213 = vector.load %arg8[%c24_137, %c0_138] : memref<304x128xf32, #tpu.memory_space<vmem>>, vector<256x128xf32>
    tpu.vector_store %arg8[%c24_137, %c0_138], %212 {strides = array<i32>} : memref<304x128xf32, #tpu.memory_space<vmem>>, vector<256x128xf32>,
    %c0_139 = arith.constant 0 : index
    %c0_140 = arith.constant 0 : index
    %214 = vector.load %arg5[%c0_139, %c0_140] : memref<1x128xf32, #tpu.memory_space<vmem>>, vector<1x128xf32>
    %215 = vector.shape_cast %214 : vector<1x128xf32> to vector<1x128xf32>
    %216 = vector.broadcast %215 : vector<1x128xf32> to vector<256x128xf32>
    %c0_141 = arith.constant 0 : index
    %c0_142 = arith.constant 0 : index
    %217 = vector.load %arg9[%c0_141, %c0_142] : memref<256x128xf32, #tpu.memory_space<vmem>>, vector<256x128xf32>
    tpu.vector_store %arg9[%c0_141, %c0_142], %216 {strides = array<i32>} : memref<256x128xf32, #tpu.memory_space<vmem>>, vector<256x128xf32>,
    %c7_143 = arith.constant 7 : index
    %c0_144 = arith.constant 0 : index
    %218 = vector.load %arg8[%c7_143, %c0_144] : memref<304x128xf32, #tpu.memory_space<vmem>>, vector<256x128xf32>
    %219 = tpu.iota {dimensions = array<i32: 0>} : vector<256x128xi32>
    %c16_i32_145 = arith.constant 16 : i32
    %c0_i32_146 = arith.constant 0 : i32
    %220 = arith.cmpi eq, %c16_i32_145, %c0_i32_146 : i32
    %c1_i32_147 = arith.constant 1 : i32
    %221 = arith.select %220, %c1_i32_147, %c16_i32_145 : i32
    %222 = vector.broadcast %221 : i32 to vector<256x128xi32>
    %223 = arith.remsi %219, %222 : vector<256x128xi32>
    %c0_i32_148 = arith.constant 0 : i32
    %224 = vector.broadcast %c0_i32_148 : i32 to vector<256x128xi32>
    %225 = arith.cmpi ne, %223, %224 : vector<256x128xi32>
    %c0_i32_149 = arith.constant 0 : i32
    %226 = vector.broadcast %c0_i32_149 : i32 to vector<256x128xi32>
    %227 = arith.cmpi slt, %223, %226 : vector<256x128xi32>
    %c0_i32_150 = arith.constant 0 : i32
    %228 = arith.cmpi slt, %221, %c0_i32_150 : i32
    %229 = vector.broadcast %228 : i1 to vector<256x128xi1>
    %230 = vector.broadcast %229 : vector<256x128xi1> to vector<256x128xi1>
    %231 = arith.xori %227, %230 : vector<256x128xi1>
    %232 = arith.andi %231, %225 : vector<256x128xi1>
    %233 = vector.broadcast %221 : i32 to vector<256x128xi32>
    %234 = arith.addi %223, %233 : vector<256x128xi32>
    %235 = arith.select %232, %234, %223 : vector<256x128xi1>, vector<256x128xi32>
    %c1_i32_151 = arith.constant 1 : i32
    %236 = vector.broadcast %c1_i32_151 : i32 to vector<256x128xi32>
    %237 = arith.cmpi sge, %235, %236 : vector<256x128xi32>
    %cst_152 = arith.constant 0.000000e+00 : f32
    %238 = vector.broadcast %cst_152 : f32 to vector<256x128xf32>
    %239 = arith.select %237, %218, %238 : vector<256x128xi1>, vector<256x128xf32>
    %c0_153 = arith.constant 0 : index
    %c0_154 = arith.constant 0 : index
    %240 = vector.load %arg9[%c0_153, %c0_154] : memref<256x128xf32, #tpu.memory_space<vmem>>, vector<256x128xf32>
    %241 = arith.truncf %239 : vector<256x128xf32> to vector<256x128xbf16>
    %c0_155 = arith.constant 0 : index
    %c0_156 = arith.constant 0 : index
    %c0_157 = arith.constant 0 : index
    %242 = vector.load %arg3[%c0_155, %c0_156, %c0_157] : memref<9x128x128xbf16, #tpu.memory_space<vmem>>, vector<1x128x128xbf16>
    %243 = vector.shape_cast %242 : vector<1x128x128xbf16> to vector<128x128xbf16>
    %cst_158 = arith.constant dense<0.000000e+00> : vector<256x128xf32>
    %244 = tpu.matmul %241, %243, %cst_158 {dimension_numbers = #tpu.dot_dimension_numbers<[1], [0], [0], [1], [0, 0, 1, 1], [], []>} : vector<256x128xbf16>, vector<128x128xbf16>, vector<256x128xf32> -> vector<256x128xf32>
    %245 = arith.addf %240, %244 : vector<256x128xf32>
    %c0_159 = arith.constant 0 : index
    %c0_160 = arith.constant 0 : index
    %246 = vector.load %arg9[%c0_159, %c0_160] : memref<256x128xf32, #tpu.memory_space<vmem>>, vector<256x128xf32>
    tpu.vector_store %arg9[%c0_159, %c0_160], %245 {strides = array<i32>} : memref<256x128xf32, #tpu.memory_space<vmem>>, vector<256x128xf32>,
    %c8_161 = arith.constant 8 : index
    %c0_162 = arith.constant 0 : index
    %247 = vector.load %arg8[%c8_161, %c0_162] : memref<304x128xf32, #tpu.memory_space<vmem>>, vector<256x128xf32>
    %c0_163 = arith.constant 0 : index
    %c0_164 = arith.constant 0 : index
    %248 = vector.load %arg9[%c0_163, %c0_164] : memref<256x128xf32, #tpu.memory_space<vmem>>, vector<256x128xf32>
    %249 = arith.truncf %247 : vector<256x128xf32> to vector<256x128xbf16>
    %c1_165 = arith.constant 1 : index
    %c0_166 = arith.constant 0 : index
    %c0_167 = arith.constant 0 : index
    %250 = vector.load %arg3[%c1_165, %c0_166, %c0_167] : memref<9x128x128xbf16, #tpu.memory_space<vmem>>, vector<1x128x128xbf16>
    %251 = vector.shape_cast %250 : vector<1x128x128xbf16> to vector<128x128xbf16>
    %cst_168 = arith.constant dense<0.000000e+00> : vector<256x128xf32>
    %252 = tpu.matmul %249, %251, %cst_168 {dimension_numbers = #tpu.dot_dimension_numbers<[1], [0], [0], [1], [0, 0, 1, 1], [], []>} : vector<256x128xbf16>, vector<128x128xbf16>, vector<256x128xf32> -> vector<256x128xf32>
    %253 = arith.addf %248, %252 : vector<256x128xf32>
    %c0_169 = arith.constant 0 : index
    %c0_170 = arith.constant 0 : index
    %254 = vector.load %arg9[%c0_169, %c0_170] : memref<256x128xf32, #tpu.memory_space<vmem>>, vector<256x128xf32>
    tpu.vector_store %arg9[%c0_169, %c0_170], %253 {strides = array<i32>} : memref<256x128xf32, #tpu.memory_space<vmem>>, vector<256x128xf32>,
    %c9_171 = arith.constant 9 : index
    %c0_172 = arith.constant 0 : index
    %255 = vector.load %arg8[%c9_171, %c0_172] : memref<304x128xf32, #tpu.memory_space<vmem>>, vector<256x128xf32>
    %256 = tpu.iota {dimensions = array<i32: 0>} : vector<256x128xi32>
    %c16_i32_173 = arith.constant 16 : i32
    %c0_i32_174 = arith.constant 0 : i32
    %257 = arith.cmpi eq, %c16_i32_173, %c0_i32_174 : i32
    %c1_i32_175 = arith.constant 1 : i32
    %258 = arith.select %257, %c1_i32_175, %c16_i32_173 : i32
    %259 = vector.broadcast %258 : i32 to vector<256x128xi32>
    %260 = arith.remsi %256, %259 : vector<256x128xi32>
    %c0_i32_176 = arith.constant 0 : i32
    %261 = vector.broadcast %c0_i32_176 : i32 to vector<256x128xi32>
    %262 = arith.cmpi ne, %260, %261 : vector<256x128xi32>
    %c0_i32_177 = arith.constant 0 : i32
    %263 = vector.broadcast %c0_i32_177 : i32 to vector<256x128xi32>
    %264 = arith.cmpi slt, %260, %263 : vector<256x128xi32>
    %c0_i32_178 = arith.constant 0 : i32
    %265 = arith.cmpi slt, %258, %c0_i32_178 : i32
    %266 = vector.broadcast %265 : i1 to vector<256x128xi1>
    %267 = vector.broadcast %266 : vector<256x128xi1> to vector<256x128xi1>
    %268 = arith.xori %264, %267 : vector<256x128xi1>
    %269 = arith.andi %268, %262 : vector<256x128xi1>
    %270 = vector.broadcast %258 : i32 to vector<256x128xi32>
    %271 = arith.addi %260, %270 : vector<256x128xi32>
    %272 = arith.select %269, %271, %260 : vector<256x128xi1>, vector<256x128xi32>
    %c14_i32_179 = arith.constant 14 : i32
    %273 = vector.broadcast %c14_i32_179 : i32 to vector<256x128xi32>
    %274 = arith.cmpi sle, %272, %273 : vector<256x128xi32>
    %cst_180 = arith.constant 0.000000e+00 : f32
    %275 = vector.broadcast %cst_180 : f32 to vector<256x128xf32>
    %276 = arith.select %274, %255, %275 : vector<256x128xi1>, vector<256x128xf32>
    %c0_181 = arith.constant 0 : index
    %c0_182 = arith.constant 0 : index
    %277 = vector.load %arg9[%c0_181, %c0_182] : memref<256x128xf32, #tpu.memory_space<vmem>>, vector<256x128xf32>
    %278 = arith.truncf %276 : vector<256x128xf32> to vector<256x128xbf16>
    %c2_183 = arith.constant 2 : index
    %c0_184 = arith.constant 0 : index
    %c0_185 = arith.constant 0 : index
    %279 = vector.load %arg3[%c2_183, %c0_184, %c0_185] : memref<9x128x128xbf16, #tpu.memory_space<vmem>>, vector<1x128x128xbf16>
    %280 = vector.shape_cast %279 : vector<1x128x128xbf16> to vector<128x128xbf16>
    %cst_186 = arith.constant dense<0.000000e+00> : vector<256x128xf32>
    %281 = tpu.matmul %278, %280, %cst_186 {dimension_numbers = #tpu.dot_dimension_numbers<[1], [0], [0], [1], [0, 0, 1, 1], [], []>} : vector<256x128xbf16>, vector<128x128xbf16>, vector<256x128xf32> -> vector<256x128xf32>
    %282 = arith.addf %277, %281 : vector<256x128xf32>
    %c0_187 = arith.constant 0 : index
    %c0_188 = arith.constant 0 : index
    %283 = vector.load %arg9[%c0_187, %c0_188] : memref<256x128xf32, #tpu.memory_space<vmem>>, vector<256x128xf32>
    tpu.vector_store %arg9[%c0_187, %c0_188], %282 {strides = array<i32>} : memref<256x128xf32, #tpu.memory_space<vmem>>, vector<256x128xf32>,
    %c23_189 = arith.constant 23 : index
    %c0_190 = arith.constant 0 : index
    %284 = vector.load %arg8[%c23_189, %c0_190] : memref<304x128xf32, #tpu.memory_space<vmem>>, vector<256x128xf32>
    %285 = tpu.iota {dimensions = array<i32: 0>} : vector<256x128xi32>
    %c16_i32_191 = arith.constant 16 : i32
    %c0_i32_192 = arith.constant 0 : i32
    %286 = arith.cmpi eq, %c16_i32_191, %c0_i32_192 : i32
    %c1_i32_193 = arith.constant 1 : i32
    %287 = arith.select %286, %c1_i32_193, %c16_i32_191 : i32
    %288 = vector.broadcast %287 : i32 to vector<256x128xi32>
    %289 = arith.remsi %285, %288 : vector<256x128xi32>
    %c0_i32_194 = arith.constant 0 : i32
    %290 = vector.broadcast %c0_i32_194 : i32 to vector<256x128xi32>
    %291 = arith.cmpi ne, %289, %290 : vector<256x128xi32>
    %c0_i32_195 = arith.constant 0 : i32
    %292 = vector.broadcast %c0_i32_195 : i32 to vector<256x128xi32>
    %293 = arith.cmpi slt, %289, %292 : vector<256x128xi32>
    %c0_i32_196 = arith.constant 0 : i32
    %294 = arith.cmpi slt, %287, %c0_i32_196 : i32
    %295 = vector.broadcast %294 : i1 to vector<256x128xi1>
    %296 = vector.broadcast %295 : vector<256x128xi1> to vector<256x128xi1>
    %297 = arith.xori %293, %296 : vector<256x128xi1>
    %298 = arith.andi %297, %291 : vector<256x128xi1>
    %299 = vector.broadcast %287 : i32 to vector<256x128xi32>
    %300 = arith.addi %289, %299 : vector<256x128xi32>
    %301 = arith.select %298, %300, %289 : vector<256x128xi1>, vector<256x128xi32>
    %c1_i32_197 = arith.constant 1 : i32
    %302 = vector.broadcast %c1_i32_197 : i32 to vector<256x128xi32>
    %303 = arith.cmpi sge, %301, %302 : vector<256x128xi32>
    %cst_198 = arith.constant 0.000000e+00 : f32
    %304 = vector.broadcast %cst_198 : f32 to vector<256x128xf32>
    %305 = arith.select %303, %284, %304 : vector<256x128xi1>, vector<256x128xf32>
    %c0_199 = arith.constant 0 : index
    %c0_200 = arith.constant 0 : index
    %306 = vector.load %arg9[%c0_199, %c0_200] : memref<256x128xf32, #tpu.memory_space<vmem>>, vector<256x128xf32>
    %307 = arith.truncf %305 : vector<256x128xf32> to vector<256x128xbf16>
    %c3_201 = arith.constant 3 : index
    %c0_202 = arith.constant 0 : index
    %c0_203 = arith.constant 0 : index
    %308 = vector.load %arg3[%c3_201, %c0_202, %c0_203] : memref<9x128x128xbf16, #tpu.memory_space<vmem>>, vector<1x128x128xbf16>
    %309 = vector.shape_cast %308 : vector<1x128x128xbf16> to vector<128x128xbf16>
    %cst_204 = arith.constant dense<0.000000e+00> : vector<256x128xf32>
    %310 = tpu.matmul %307, %309, %cst_204 {dimension_numbers = #tpu.dot_dimension_numbers<[1], [0], [0], [1], [0, 0, 1, 1], [], []>} : vector<256x128xbf16>, vector<128x128xbf16>, vector<256x128xf32> -> vector<256x128xf32>
    %311 = arith.addf %306, %310 : vector<256x128xf32>
    %c0_205 = arith.constant 0 : index
    %c0_206 = arith.constant 0 : index
    %312 = vector.load %arg9[%c0_205, %c0_206] : memref<256x128xf32, #tpu.memory_space<vmem>>, vector<256x128xf32>
    tpu.vector_store %arg9[%c0_205, %c0_206], %311 {strides = array<i32>} : memref<256x128xf32, #tpu.memory_space<vmem>>, vector<256x128xf32>,
    %c24_207 = arith.constant 24 : index
    %c0_208 = arith.constant 0 : index
    %313 = vector.load %arg8[%c24_207, %c0_208] : memref<304x128xf32, #tpu.memory_space<vmem>>, vector<256x128xf32>
    %c0_209 = arith.constant 0 : index
    %c0_210 = arith.constant 0 : index
    %314 = vector.load %arg9[%c0_209, %c0_210] : memref<256x128xf32, #tpu.memory_space<vmem>>, vector<256x128xf32>
    %315 = arith.truncf %313 : vector<256x128xf32> to vector<256x128xbf16>
    %c4_211 = arith.constant 4 : index
    %c0_212 = arith.constant 0 : index
    %c0_213 = arith.constant 0 : index
    %316 = vector.load %arg3[%c4_211, %c0_212, %c0_213] : memref<9x128x128xbf16, #tpu.memory_space<vmem>>, vector<1x128x128xbf16>
    %317 = vector.shape_cast %316 : vector<1x128x128xbf16> to vector<128x128xbf16>
    %cst_214 = arith.constant dense<0.000000e+00> : vector<256x128xf32>
    %318 = tpu.matmul %315, %317, %cst_214 {dimension_numbers = #tpu.dot_dimension_numbers<[1], [0], [0], [1], [0, 0, 1, 1], [], []>} : vector<256x128xbf16>, vector<128x128xbf16>, vector<256x128xf32> -> vector<256x128xf32>
    %319 = arith.addf %314, %318 : vector<256x128xf32>
    %c0_215 = arith.constant 0 : index
    %c0_216 = arith.constant 0 : index
    %320 = vector.load %arg9[%c0_215, %c0_216] : memref<256x128xf32, #tpu.memory_space<vmem>>, vector<256x128xf32>
    tpu.vector_store %arg9[%c0_215, %c0_216], %319 {strides = array<i32>} : memref<256x128xf32, #tpu.memory_space<vmem>>, vector<256x128xf32>,
    %c25_217 = arith.constant 25 : index
    %c0_218 = arith.constant 0 : index
    %321 = vector.load %arg8[%c25_217, %c0_218] : memref<304x128xf32, #tpu.memory_space<vmem>>, vector<256x128xf32>
    %322 = tpu.iota {dimensions = array<i32: 0>} : vector<256x128xi32>
    %c16_i32_219 = arith.constant 16 : i32
    %c0_i32_220 = arith.constant 0 : i32
    %323 = arith.cmpi eq, %c16_i32_219, %c0_i32_220 : i32
    %c1_i32_221 = arith.constant 1 : i32
    %324 = arith.select %323, %c1_i32_221, %c16_i32_219 : i32
    %325 = vector.broadcast %324 : i32 to vector<256x128xi32>
    %326 = arith.remsi %322, %325 : vector<256x128xi32>
    %c0_i32_222 = arith.constant 0 : i32
    %327 = vector.broadcast %c0_i32_222 : i32 to vector<256x128xi32>
    %328 = arith.cmpi ne, %326, %327 : vector<256x128xi32>
    %c0_i32_223 = arith.constant 0 : i32
    %329 = vector.broadcast %c0_i32_223 : i32 to vector<256x128xi32>
    %330 = arith.cmpi slt, %326, %329 : vector<256x128xi32>
    %c0_i32_224 = arith.constant 0 : i32
    %331 = arith.cmpi slt, %324, %c0_i32_224 : i32
    %332 = vector.broadcast %331 : i1 to vector<256x128xi1>
    %333 = vector.broadcast %332 : vector<256x128xi1> to vector<256x128xi1>
    %334 = arith.xori %330, %333 : vector<256x128xi1>
    %335 = arith.andi %334, %328 : vector<256x128xi1>
    %336 = vector.broadcast %324 : i32 to vector<256x128xi32>
    %337 = arith.addi %326, %336 : vector<256x128xi32>
    %338 = arith.select %335, %337, %326 : vector<256x128xi1>, vector<256x128xi32>
    %c14_i32_225 = arith.constant 14 : i32
    %339 = vector.broadcast %c14_i32_225 : i32 to vector<256x128xi32>
    %340 = arith.cmpi sle, %338, %339 : vector<256x128xi32>
    %cst_226 = arith.constant 0.000000e+00 : f32
    %341 = vector.broadcast %cst_226 : f32 to vector<256x128xf32>
    %342 = arith.select %340, %321, %341 : vector<256x128xi1>, vector<256x128xf32>
    %c0_227 = arith.constant 0 : index
    %c0_228 = arith.constant 0 : index
    %343 = vector.load %arg9[%c0_227, %c0_228] : memref<256x128xf32, #tpu.memory_space<vmem>>, vector<256x128xf32>
    %344 = arith.truncf %342 : vector<256x128xf32> to vector<256x128xbf16>
    %c5_229 = arith.constant 5 : index
    %c0_230 = arith.constant 0 : index
    %c0_231 = arith.constant 0 : index
    %345 = vector.load %arg3[%c5_229, %c0_230, %c0_231] : memref<9x128x128xbf16, #tpu.memory_space<vmem>>, vector<1x128x128xbf16>
    %346 = vector.shape_cast %345 : vector<1x128x128xbf16> to vector<128x128xbf16>
    %cst_232 = arith.constant dense<0.000000e+00> : vector<256x128xf32>
    %347 = tpu.matmul %344, %346, %cst_232 {dimension_numbers = #tpu.dot_dimension_numbers<[1], [0], [0], [1], [0, 0, 1, 1], [], []>} : vector<256x128xbf16>, vector<128x128xbf16>, vector<256x128xf32> -> vector<256x128xf32>
    %348 = arith.addf %343, %347 : vector<256x128xf32>
    %c0_233 = arith.constant 0 : index
    %c0_234 = arith.constant 0 : index
    %349 = vector.load %arg9[%c0_233, %c0_234] : memref<256x128xf32, #tpu.memory_space<vmem>>, vector<256x128xf32>
    tpu.vector_store %arg9[%c0_233, %c0_234], %348 {strides = array<i32>} : memref<256x128xf32, #tpu.memory_space<vmem>>, vector<256x128xf32>,
    %c39_235 = arith.constant 39 : index
    %c0_236 = arith.constant 0 : index
    %350 = vector.load %arg8[%c39_235, %c0_236] : memref<304x128xf32, #tpu.memory_space<vmem>>, vector<256x128xf32>
    %351 = tpu.iota {dimensions = array<i32: 0>} : vector<256x128xi32>
    %c16_i32_237 = arith.constant 16 : i32
    %c0_i32_238 = arith.constant 0 : i32
    %352 = arith.cmpi eq, %c16_i32_237, %c0_i32_238 : i32
    %c1_i32_239 = arith.constant 1 : i32
    %353 = arith.select %352, %c1_i32_239, %c16_i32_237 : i32
    %354 = vector.broadcast %353 : i32 to vector<256x128xi32>
    %355 = arith.remsi %351, %354 : vector<256x128xi32>
    %c0_i32_240 = arith.constant 0 : i32
    %356 = vector.broadcast %c0_i32_240 : i32 to vector<256x128xi32>
    %357 = arith.cmpi ne, %355, %356 : vector<256x128xi32>
    %c0_i32_241 = arith.constant 0 : i32
    %358 = vector.broadcast %c0_i32_241 : i32 to vector<256x128xi32>
    %359 = arith.cmpi slt, %355, %358 : vector<256x128xi32>
    %c0_i32_242 = arith.constant 0 : i32
    %360 = arith.cmpi slt, %353, %c0_i32_242 : i32
    %361 = vector.broadcast %360 : i1 to vector<256x128xi1>
    %362 = vector.broadcast %361 : vector<256x128xi1> to vector<256x128xi1>
    %363 = arith.xori %359, %362 : vector<256x128xi1>
    %364 = arith.andi %363, %357 : vector<256x128xi1>
    %365 = vector.broadcast %353 : i32 to vector<256x128xi32>
    %366 = arith.addi %355, %365 : vector<256x128xi32>
    %367 = arith.select %364, %366, %355 : vector<256x128xi1>, vector<256x128xi32>
    %c1_i32_243 = arith.constant 1 : i32
    %368 = vector.broadcast %c1_i32_243 : i32 to vector<256x128xi32>
    %369 = arith.cmpi sge, %367, %368 : vector<256x128xi32>
    %cst_244 = arith.constant 0.000000e+00 : f32
    %370 = vector.broadcast %cst_244 : f32 to vector<256x128xf32>
    %371 = arith.select %369, %350, %370 : vector<256x128xi1>, vector<256x128xf32>
    %c0_245 = arith.constant 0 : index
    %c0_246 = arith.constant 0 : index
    %372 = vector.load %arg9[%c0_245, %c0_246] : memref<256x128xf32, #tpu.memory_space<vmem>>, vector<256x128xf32>
    %373 = arith.truncf %371 : vector<256x128xf32> to vector<256x128xbf16>
    %c6_247 = arith.constant 6 : index
    %c0_248 = arith.constant 0 : index
    %c0_249 = arith.constant 0 : index
    %374 = vector.load %arg3[%c6_247, %c0_248, %c0_249] : memref<9x128x128xbf16, #tpu.memory_space<vmem>>, vector<1x128x128xbf16>
    %375 = vector.shape_cast %374 : vector<1x128x128xbf16> to vector<128x128xbf16>
    %cst_250 = arith.constant dense<0.000000e+00> : vector<256x128xf32>
    %376 = tpu.matmul %373, %375, %cst_250 {dimension_numbers = #tpu.dot_dimension_numbers<[1], [0], [0], [1], [0, 0, 1, 1], [], []>} : vector<256x128xbf16>, vector<128x128xbf16>, vector<256x128xf32> -> vector<256x128xf32>
    %377 = arith.addf %372, %376 : vector<256x128xf32>
    %c0_251 = arith.constant 0 : index
    %c0_252 = arith.constant 0 : index
    %378 = vector.load %arg9[%c0_251, %c0_252] : memref<256x128xf32, #tpu.memory_space<vmem>>, vector<256x128xf32>
    tpu.vector_store %arg9[%c0_251, %c0_252], %377 {strides = array<i32>} : memref<256x128xf32, #tpu.memory_space<vmem>>, vector<256x128xf32>,
    %c40_253 = arith.constant 40 : index
    %c0_254 = arith.constant 0 : index
    %379 = vector.load %arg8[%c40_253, %c0_254] : memref<304x128xf32, #tpu.memory_space<vmem>>, vector<256x128xf32>
    %c0_255 = arith.constant 0 : index
    %c0_256 = arith.constant 0 : index
    %380 = vector.load %arg9[%c0_255, %c0_256] : memref<256x128xf32, #tpu.memory_space<vmem>>, vector<256x128xf32>
    %381 = arith.truncf %379 : vector<256x128xf32> to vector<256x128xbf16>
    %c7_257 = arith.constant 7 : index
    %c0_258 = arith.constant 0 : index
    %c0_259 = arith.constant 0 : index
    %382 = vector.load %arg3[%c7_257, %c0_258, %c0_259] : memref<9x128x128xbf16, #tpu.memory_space<vmem>>, vector<1x128x128xbf16>
    %383 = vector.shape_cast %382 : vector<1x128x128xbf16> to vector<128x128xbf16>
    %cst_260 = arith.constant dense<0.000000e+00> : vector<256x128xf32>
    %384 = tpu.matmul %381, %383, %cst_260 {dimension_numbers = #tpu.dot_dimension_numbers<[1], [0], [0], [1], [0, 0, 1, 1], [], []>} : vector<256x128xbf16>, vector<128x128xbf16>, vector<256x128xf32> -> vector<256x128xf32>
    %385 = arith.addf %380, %384 : vector<256x128xf32>
    %c0_261 = arith.constant 0 : index
    %c0_262 = arith.constant 0 : index
    %386 = vector.load %arg9[%c0_261, %c0_262] : memref<256x128xf32, #tpu.memory_space<vmem>>, vector<256x128xf32>
    tpu.vector_store %arg9[%c0_261, %c0_262], %385 {strides = array<i32>} : memref<256x128xf32, #tpu.memory_space<vmem>>, vector<256x128xf32>,
    %c41_263 = arith.constant 41 : index
    %c0_264 = arith.constant 0 : index
    %387 = vector.load %arg8[%c41_263, %c0_264] : memref<304x128xf32, #tpu.memory_space<vmem>>, vector<256x128xf32>
    %388 = tpu.iota {dimensions = array<i32: 0>} : vector<256x128xi32>
    %c16_i32_265 = arith.constant 16 : i32
    %c0_i32_266 = arith.constant 0 : i32
    %389 = arith.cmpi eq, %c16_i32_265, %c0_i32_266 : i32
    %c1_i32_267 = arith.constant 1 : i32
    %390 = arith.select %389, %c1_i32_267, %c16_i32_265 : i32
    %391 = vector.broadcast %390 : i32 to vector<256x128xi32>
    %392 = arith.remsi %388, %391 : vector<256x128xi32>
    %c0_i32_268 = arith.constant 0 : i32
    %393 = vector.broadcast %c0_i32_268 : i32 to vector<256x128xi32>
    %394 = arith.cmpi ne, %392, %393 : vector<256x128xi32>
    %c0_i32_269 = arith.constant 0 : i32
    %395 = vector.broadcast %c0_i32_269 : i32 to vector<256x128xi32>
    %396 = arith.cmpi slt, %392, %395 : vector<256x128xi32>
    %c0_i32_270 = arith.constant 0 : i32
    %397 = arith.cmpi slt, %390, %c0_i32_270 : i32
    %398 = vector.broadcast %397 : i1 to vector<256x128xi1>
    %399 = vector.broadcast %398 : vector<256x128xi1> to vector<256x128xi1>
    %400 = arith.xori %396, %399 : vector<256x128xi1>
    %401 = arith.andi %400, %394 : vector<256x128xi1>
    %402 = vector.broadcast %390 : i32 to vector<256x128xi32>
    %403 = arith.addi %392, %402 : vector<256x128xi32>
    %404 = arith.select %401, %403, %392 : vector<256x128xi1>, vector<256x128xi32>
    %c14_i32_271 = arith.constant 14 : i32
    %405 = vector.broadcast %c14_i32_271 : i32 to vector<256x128xi32>
    %406 = arith.cmpi sle, %404, %405 : vector<256x128xi32>
    %cst_272 = arith.constant 0.000000e+00 : f32
    %407 = vector.broadcast %cst_272 : f32 to vector<256x128xf32>
    %408 = arith.select %406, %387, %407 : vector<256x128xi1>, vector<256x128xf32>
    %c0_273 = arith.constant 0 : index
    %c0_274 = arith.constant 0 : index
    %409 = vector.load %arg9[%c0_273, %c0_274] : memref<256x128xf32, #tpu.memory_space<vmem>>, vector<256x128xf32>
    %410 = arith.truncf %408 : vector<256x128xf32> to vector<256x128xbf16>
    %c8_275 = arith.constant 8 : index
    %c0_276 = arith.constant 0 : index
    %c0_277 = arith.constant 0 : index
    %411 = vector.load %arg3[%c8_275, %c0_276, %c0_277] : memref<9x128x128xbf16, #tpu.memory_space<vmem>>, vector<1x128x128xbf16>
    %412 = vector.shape_cast %411 : vector<1x128x128xbf16> to vector<128x128xbf16>
    %cst_278 = arith.constant dense<0.000000e+00> : vector<256x128xf32>
    %413 = tpu.matmul %410, %412, %cst_278 {dimension_numbers = #tpu.dot_dimension_numbers<[1], [0], [0], [1], [0, 0, 1, 1], [], []>} : vector<256x128xbf16>, vector<128x128xbf16>, vector<256x128xf32> -> vector<256x128xf32>
    %414 = arith.addf %409, %413 : vector<256x128xf32>
    %c0_279 = arith.constant 0 : index
    %c0_280 = arith.constant 0 : index
    %415 = vector.load %arg9[%c0_279, %c0_280] : memref<256x128xf32, #tpu.memory_space<vmem>>, vector<256x128xf32>
    tpu.vector_store %arg9[%c0_279, %c0_280], %414 {strides = array<i32>} : memref<256x128xf32, #tpu.memory_space<vmem>>, vector<256x128xf32>,
    %c0_281 = arith.constant 0 : index
    %c0_282 = arith.constant 0 : index
    %416 = vector.load %arg9[%c0_281, %c0_282] : memref<256x128xf32, #tpu.memory_space<vmem>>, vector<256x128xf32>
    %c0_283 = arith.constant 0 : index
    %c0_284 = arith.constant 0 : index
    %c0_285 = arith.constant 0 : index
    %417 = vector.load %arg1[%c0_283, %c0_284, %c0_285] : memref<1x256x128xf32, #tpu.memory_space<vmem>>, vector<1x256x128xf32>
    %418 = vector.shape_cast %417 : vector<1x256x128xf32> to vector<256x128xf32>
    %419 = arith.addf %416, %418 : vector<256x128xf32>
    %cst_286 = arith.constant 0.000000e+00 : f32
    %420 = vector.broadcast %cst_286 : f32 to vector<256x128xf32>
    %421 = arith.maximumf %419, %420 : vector<256x128xf32>
    %c0_287 = arith.constant 0 : index
    %c0_288 = arith.constant 0 : index
    %c0_289 = arith.constant 0 : index
    %422 = vector.load %arg6[%c0_287, %c0_288, %c0_289] : memref<1x256x128xf32, #tpu.memory_space<vmem>>, vector<1x256x128xf32>
    %423 = vector.shape_cast %422 : vector<1x256x128xf32> to vector<256x128xf32>
    %424 = vector.shape_cast %421 : vector<256x128xf32> to vector<1x256x128xf32>
    tpu.vector_store %arg6[%c0_287, %c0_288, %c0_289], %424 {strides = array<i32>} : memref<1x256x128xf32, #tpu.memory_space<vmem>>, vector<1x256x128xf32>,
    return
  }
  func.func @transform_0(%arg0: i32) -> (i32, i32, i32) {
    %c0_i32 = arith.constant 0 : i32
    %c0_i32_0 = arith.constant 0 : i32
    %c0_i32_1 = arith.constant 0 : i32
    return %arg0, %c0_i32, %c0_i32_0 : i32, i32, i32
  }
  func.func @transform_1(%arg0: i32) -> (i32, i32, i32) {
    %c0_i32 = arith.constant 0 : i32
    %c0_i32_0 = arith.constant 0 : i32
    %c0_i32_1 = arith.constant 0 : i32
    %c0_i32_2 = arith.constant 0 : i32
    return %c0_i32, %c0_i32_0, %c0_i32_1 : i32, i32, i32
  }
  func.func @transform_2(%arg0: i32) -> (i32, i32, i32) {
    %c0_i32 = arith.constant 0 : i32
    %c0_i32_0 = arith.constant 0 : i32
    %c0_i32_1 = arith.constant 0 : i32
    %c0_i32_2 = arith.constant 0 : i32
    return %c0_i32, %c0_i32_0, %c0_i32_1 : i32, i32, i32
  }
  func.func @transform_3(%arg0: i32) -> (i32, i32) {
    %c0_i32 = arith.constant 0 : i32
    %c0_i32_0 = arith.constant 0 : i32
    %c0_i32_1 = arith.constant 0 : i32
    return %c0_i32, %c0_i32_0 : i32, i32
  }
  func.func @transform_4(%arg0: i32) -> (i32, i32) {
    %c0_i32 = arith.constant 0 : i32
    %c0_i32_0 = arith.constant 0 : i32
    %c0_i32_1 = arith.constant 0 : i32
    return %c0_i32, %c0_i32_0 : i32, i32
  }
  func.func @transform_5(%arg0: i32) -> (i32, i32, i32) {
    %c0_i32 = arith.constant 0 : i32
    %c0_i32_0 = arith.constant 0 : i32
    %c0_i32_1 = arith.constant 0 : i32
    return %arg0, %c0_i32, %c0_i32_0 : i32, i32, i32
  }
}

</mosaic_0001>

<llo_original>
// kernel: tpu_custom_call.1
$region0: #{tpu_custom_call.1}
  #allocation0 [shape = 'u32[]', space=smem, size = 0x4, offset = 0x4, fixed_abs, tag = 'smem constant byte address 0x4 - core index']
  #allocation1 [shape = 'u32[144,128]{1,0:T(1,128)}', space=vmem, size = 0x12000, scoped, tag = 'internal scratch']
  #allocation2 [shape = 'f32[304,128]{1,0:T(8,128)}', space=vmem, size = 0x26000, scoped, tag = 'scratch operand']
  #allocation3 [shape = 'f32[304,128]{1,0:T(8,128)}', space=vmem, size = 0x26000, scoped, tag = 'scratch operand']
  #allocation4 [shape = 'f32[256,128]{1,0:T(8,128)}', space=vmem, size = 0x20000, scoped, tag = 'scratch operand']
  %s0 = inlined_call_operand.hbm [shape: f32[2,256,128], index: 0, kind: input, shape index: {}]
  %s1 = inlined_call_operand.hbm [shape: bf16[9,128,128], index: 1, kind: input, shape index: {}]
  %s2 = inlined_call_operand.hbm [shape: bf16[9,128,128], index: 2, kind: input, shape index: {}]
  %s3 = inlined_call_operand.vmem [shape: f32[1,128], index: 3, kind: input, shape index: {}]
  %s4 = inlined_call_operand.vmem [shape: f32[1,128], index: 4, kind: input, shape index: {}]
  %s5 = inlined_call_operand.hbm [shape: f32[2,256,128], index: 5, kind: output, shape index: {}]
  %s6 = sld [smem:[#allocation0]]
  $region65: #{tpu_custom_call.1} parent=0
    _
  %s8 = ssub.s32 1, %s6
  %s9 = scalar_select 0, %s8, %s6
  $region1: #{tpu_custom_call.1} parent=0
    #allocation5 [shape = 'u8[262144]{0}', space=vmem, size = 0x40000, scoped, tag = 'input window, operand 0']
    #allocation6 [shape = 's32[2]{0}', space=sflag, size = 0x8, scoped, tag = 'scoped memory for tpu_custom_call.1']
    #allocation7 [shape = 's32[2]{0}', space=sflag, size = 0x8, scoped, tag = 'scoped memory for tpu_custom_call.1']
    #allocation8 [shape = 'u8[294912]{0}', space=vmem, size = 0x48000, scoped, tag = 'input window, operand 1, single buffered']
    #allocation9 [shape = 's32[1]{0}', space=sflag, size = 0x4, scoped, tag = 'scoped memory for tpu_custom_call.1']
    #allocation10 [shape = 'u8[294912]{0}', space=vmem, size = 0x48000, scoped, tag = 'input window, operand 2, single buffered']
    #allocation11 [shape = 'u8[262144]{0}', space=vmem, size = 0x40000, scoped, tag = 'output window, operand 0']
    %10 = vsyncpa [#allocation6], 0
    %s11 = scalar_lea.sflag [#allocation6], 1
    %12 = vsyncpa %s11, 0
    %13 = vsyncpa [#allocation9], 0
    %14 = vsyncpa [#allocation7], 0
    %s15 = scalar_lea.sflag [#allocation7], 1
    %16 = vsyncpa %s15, 0
    loop: start=0, step=1, limit=4
    $region2: #{tpu_custom_call.1} parent=1 // loop_pre_header
      _
    $region3: #{tpu_custom_call.1} parent=1 // loop_header
      %s18 = sphi 0, %s22
      %p19 = scmp.ge.s32.totalorder %s18, 4
      %s28 = sphi 0, %s30
      %s31 = sphi 0, %s28
      %s32 = sphi 0, %s31
      %s48 = sphi 0, %s32
      %s52 = sphi 0, %s52
      %s54 = sphi 0, %s52
      %s55 = sphi 0, %s54
      %s69 = sphi 0, %s55
      %s73 = sphi 0, %s73
      %s75 = sphi 0, %s73
      %s76 = sphi 0, %s75
      %s90 = sphi 0, %s76
      %s94 = sphi 0, %s94
      %s96 = sphi 0, %s94
      %s97 = sphi 0, %s96
      %s111 = sphi 0, %s97
      %s115 = sphi 0, %s115
      %s117 = sphi 0, %s115
      %s118 = sphi 0, %s117
      %s132 = sphi 0, %s118
      %s138 = sphi 0, %s140
      %s141 = sphi 0, %s138
      %s142 = sphi 0, %s141
      %s158 = sphi 0, %s142
    $region4: #{tpu_custom_call.1} parent=1 // loop_header_branch
      %21 = sbr.rel (%p19) target = $region8
    $region5: #{tpu_custom_call.1} parent=1 // loop_body
      %s23 = ssub.s32 %s18, 1
      %s24 = ssub.s32 %s18, 2
      %s25 = sadd.s32 %s18, 1
      %s26 = ssub.s32 %s18, %s25
      %p27 = scmp.eq.s32.totalorder %s26, 0
      %s29 = sadd.s32 %s28, 1
      %s30 = scalar_select %p27, %s28, %s29
      %p33 = pneg %p27
      %p34 = scmp.eq.s32.totalorder %s18, 1
      %p35 = por %p33, %p34
      %p36 = scmp.ne.s32.totalorder %s28, %s31
      %p37 = scmp.eq.s32.totalorder %s18, 0
      %p38 = por %p36, %p37
      %p39 = scmp.ne.s32.totalorder %s28, %s31
      %p40 = scmp.eq.s32.totalorder %s23, 1
      %p41 = por %p39, %p40
      %p42 = scmp.ne.s32.totalorder %s31, %s32
      %p43 = scmp.eq.s32.totalorder %s23, 0
      %p44 = por %p42, %p43
      %p45 = scmp.ne.s32.totalorder %s31, %s32
      %p46 = scmp.eq.s32.totalorder %s24, 1
      %p47 = por %p45, %p46
      %p49 = scmp.ne.s32.totalorder %s32, %s48
      %p50 = scmp.eq.s32.totalorder %s24, 0
      %p51 = por %p49, %p50
      %s53 = sadd.s32 %s52, 1
      %p56 = scmp.eq.s32.totalorder %s18, 1
      %p57 = scmp.ne.s32.totalorder %s52, %s54
      %p58 = scmp.eq.s32.totalorder %s18, 0
      %p59 = por %p57, %p58
      %p60 = scmp.ne.s32.totalorder %s52, %s54
      %p61 = scmp.eq.s32.totalorder %s23, 1
      %p62 = por %p60, %p61
      %p63 = scmp.ne.s32.totalorder %s54, %s55
      %p64 = scmp.eq.s32.totalorder %s23, 0
      %p65 = por %p63, %p64
      %p66 = scmp.ne.s32.totalorder %s54, %s55
      %p67 = scmp.eq.s32.totalorder %s24, 1
      %p68 = por %p66, %p67
      %p70 = scmp.ne.s32.totalorder %s55, %s69
      %p71 = scmp.eq.s32.totalorder %s24, 0
      %p72 = por %p70, %p71
      %s74 = sadd.s32 %s73, 1
      %p77 = scmp.eq.s32.totalorder %s18, 1
      %p78 = scmp.ne.s32.totalorder %s73, %s75
      %p79 = scmp.eq.s32.totalorder %s18, 0
      %p80 = por %p78, %p79
      %p81 = scmp.ne.s32.totalorder %s73, %s75
      %p82 = scmp.eq.s32.totalorder %s23, 1
      %p83 = por %p81, %p82
      %p84 = scmp.ne.s32.totalorder %s75, %s76
      %p85 = scmp.eq.s32.totalorder %s23, 0
      %p86 = por %p84, %p85
      %p87 = scmp.ne.s32.totalorder %s75, %s76
      %p88 = scmp.eq.s32.totalorder %s24, 1
      %p89 = por %p87, %p88
      %p91 = scmp.ne.s32.totalorder %s76, %s90
      %p92 = scmp.eq.s32.totalorder %s24, 0
      %p93 = por %p91, %p92
      %s95 = sadd.s32 %s94, 1
      %p98 = scmp.eq.s32.totalorder %s18, 1
      %p99 = scmp.ne.s32.totalorder %s94, %s96
      %p100 = scmp.eq.s32.totalorder %s18, 0
      %p101 = por %p99, %p100
      %p102 = scmp.ne.s32.totalorder %s94, %s96
      %p103 = scmp.eq.s32.totalorder %s23, 1
      %p104 = por %p102, %p103
      %p105 = scmp.ne.s32.totalorder %s96, %s97
      %p106 = scmp.eq.s32.totalorder %s23, 0
      %p107 = por %p105, %p106
      %p108 = scmp.ne.s32.totalorder %s96, %s97
      %p109 = scmp.eq.s32.totalorder %s24, 1
      %p110 = por %p108, %p109
      %p112 = scmp.ne.s32.totalorder %s97, %s111
      %p113 = scmp.eq.s32.totalorder %s24, 0
      %p114 = por %p112, %p113
      %s116 = sadd.s32 %s115, 1
      %p119 = scmp.eq.s32.totalorder %s18, 1
      %p120 = scmp.ne.s32.totalorder %s115, %s117
      %p121 = scmp.eq.s32.totalorder %s18, 0
      %p122 = por %p120, %p121
      %p123 = scmp.ne.s32.totalorder %s115, %s117
      %p124 = scmp.eq.s32.totalorder %s23, 1
      %p125 = por %p123, %p124
      %p126 = scmp.ne.s32.totalorder %s117, %s118
      %p127 = scmp.eq.s32.totalorder %s23, 0
      %p128 = por %p126, %p127
      %p129 = scmp.ne.s32.totalorder %s117, %s118
      %p130 = scmp.eq.s32.totalorder %s24, 1
      %p131 = por %p129, %p130
      %p133 = scmp.ne.s32.totalorder %s118, %s132
      %p134 = scmp.eq.s32.totalorder %s24, 0
      %p135 = por %p133, %p134
      %s136 = ssub.s32 %s18, %s25
      %p137 = scmp.eq.s32.totalorder %s136, 0
      %s139 = sadd.s32 %s138, 1
      %s140 = scalar_select %p137, %s138, %s139
      %p143 = pneg %p137
      %p144 = scmp.eq.s32.totalorder %s18, 1
      %p145 = por %p143, %p144
      %p146 = scmp.ne.s32.totalorder %s138, %s141
      %p147 = scmp.eq.s32.totalorder %s18, 0
      %p148 = por %p146, %p147
      %p149 = scmp.ne.s32.totalorder %s138, %s141
      %p150 = scmp.eq.s32.totalorder %s23, 1
      %p151 = por %p149, %p150
      %p152 = scmp.ne.s32.totalorder %s141, %s142
      %p153 = scmp.eq.s32.totalorder %s23, 0
      %p154 = por %p152, %p153
      %p155 = scmp.ne.s32.totalorder %s141, %s142
      %p156 = scmp.eq.s32.totalorder %s24, 1
      %p157 = por %p155, %p156
      %p159 = scmp.ne.s32.totalorder %s142, %s158
      %p160 = scmp.eq.s32.totalorder %s24, 0
      %p161 = por %p159, %p160
      %p162 = scmp.le.s32.totalorder 1, %s18
      %p163 = scmp.lt.s32.totalorder %s18, 3
      %p164 = pnand %p162, %p163
      %p165 = pneg %p164
      // Predicated region
      $region9: #{tpu_custom_call.1} parent=5 // pred_check
        _
      $region10: #{tpu_custom_call.1} parent=5 // pred_check_branch
        %167 = sbr.rel (%p164) target = $region12
      $region11: #{tpu_custom_call.1} parent=5 // pred_region
        %s168 = ssub.s32 %s18, 1
        // Predicated region
        $region13: #{tpu_custom_call.1} parent=11 // pred_check
          %p169 = pneg %p65
        $region14: #{tpu_custom_call.1} parent=11 // pred_check_branch
          %171 = sbr.rel (%p169) target = $region16
        $region15: #{tpu_custom_call.1} parent=11 // pred_region
          %s173 = ssub.s32 9216, 9216
          %174 = vsyncadd [#allocation9], %s173
          %s175 = sshll.u32 [#allocation8], 4
          %s176 = int_to_ptr.vmem [resolvable:$true] %s175
          %181 = dma.hbm_to_vmem [thread:$0]  %s1, 9216, %s176, [#allocation9], 64, 64, 4
        $region16: #{tpu_custom_call.1} parent=11 // pred_fallthru
          _
        // Predicated region
        $region17: #{tpu_custom_call.1} parent=11 // pred_check
          %p182 = pneg %p86
        $region18: #{tpu_custom_call.1} parent=11 // pred_check_branch
          %184 = sbr.rel (%p182) target = $region20
        $region19: #{tpu_custom_call.1} parent=11 // pred_region
          %s186 = ssub.s32 9216, 9216
          %187 = vsyncadd [#allocation9], %s186
          %s188 = sshll.u32 [#allocation10], 4
          %s189 = int_to_ptr.vmem [resolvable:$true] %s188
          %194 = dma.hbm_to_vmem [thread:$0]  %s2, 9216, %s189, [#allocation9], 64, 64, 4
        $region20: #{tpu_custom_call.1} parent=11 // pred_fallthru
          _
        // Predicated region
        $region21: #{tpu_custom_call.1} parent=11 // pred_check
          %p195 = pneg %p107
        $region22: #{tpu_custom_call.1} parent=11 // pred_check_branch
          %197 = sbr.rel (%p195) target = $region24
        $region23: #{tpu_custom_call.1} parent=11 // pred_region
          _
        $region24: #{tpu_custom_call.1} parent=11 // pred_fallthru
          _
        // Predicated region
        $region25: #{tpu_custom_call.1} parent=11 // pred_check
          %p198 = pneg %p128
        $region26: #{tpu_custom_call.1} parent=11 // pred_check_branch
          %200 = sbr.rel (%p198) target = $region28
        $region27: #{tpu_custom_call.1} parent=11 // pred_region
          _
        $region28: #{tpu_custom_call.1} parent=11 // pred_fallthru
          _
      $region12: #{tpu_custom_call.1} parent=5 // pred_fallthru
        _
      %p201 = scmp.lt.s32.totalorder %s18, 2
      // Predicated region
      $region29: #{tpu_custom_call.1} parent=5 // pred_check
        %p202 = pneg %p201
      $region30: #{tpu_custom_call.1} parent=5 // pred_check_branch
        %204 = sbr.rel (%p202) target = $region32
      $region31: #{tpu_custom_call.1} parent=5 // pred_region
        // Predicated region
        $region33: #{tpu_custom_call.1} parent=31 // pred_check
          %p205 = pneg %p38
        $region34: #{tpu_custom_call.1} parent=31 // pred_check_branch
          %207 = sbr.rel (%p205) target = $region36
        $region35: #{tpu_custom_call.1} parent=31 // pred_region
          %s208 = sand.u32 %s28, 1
          %s209 = scalar_lea.sflag [#allocation6], %s208
          %s210 = sand.u32 %s28, 1
          %s211 = smul.addr %s210, 256
          %s212 = scalar_lea.vmem [#allocation5], %s211
          %s214 = ssub.s32 4096, 4096
          %215 = vsyncadd %s209, %s214
          %s216 = smul.addr %s18, 32
          %s217 = smul.addr %s216, 128
          %s218 = scalar_lea.hbm %s0, %s217
          %s219 = sshll.u32 %s212, 4
          %s220 = int_to_ptr.vmem [resolvable:$true] %s219
          %225 = dma.hbm_to_vmem [thread:$0]  %s218, 4096, %s220, %s209, 128, 128, 8
        $region36: #{tpu_custom_call.1} parent=31 // pred_fallthru
          _
      $region32: #{tpu_custom_call.1} parent=5 // pred_fallthru
        _
      %p226 = scmp.le.s32.totalorder 1, %s18
      %p227 = scmp.lt.s32.totalorder %s18, 3
      %p228 = pnand %p226, %p227
      %p229 = pneg %p228
      // Predicated region
      $region37: #{tpu_custom_call.1} parent=5 // pred_check
        _
      $region38: #{tpu_custom_call.1} parent=5 // pred_check_branch
        %231 = sbr.rel (%p228) target = $region40
      $region39: #{tpu_custom_call.1} parent=5 // pred_region
        %s232 = ssub.s32 %s18, 1
        %s233 = sand.u32 %s31, 1
        %s234 = scalar_lea.sflag [#allocation6], %s233
        %s235 = sand.u32 %s31, 1
        %s236 = smul.addr %s235, 256
        %s237 = scalar_lea.vmem [#allocation5], %s236
        // Predicated region
        $region41: #{tpu_custom_call.1} parent=39 // pred_check
          %p238 = pneg %p44
        $region42: #{tpu_custom_call.1} parent=39 // pred_check_branch
          %240 = sbr.rel (%p238) target = $region44
        $region43: #{tpu_custom_call.1} parent=39 // pred_region
          %241 = dma.done %s234, 4096
        $region44: #{tpu_custom_call.1} parent=39 // pred_fallthru
          _
        // Predicated region
        $region45: #{tpu_custom_call.1} parent=39 // pred_check
          %p242 = pneg %p65
        $region46: #{tpu_custom_call.1} parent=39 // pred_check_branch
          %244 = sbr.rel (%p242) target = $region48
        $region47: #{tpu_custom_call.1} parent=39 // pred_region
          %245 = dma.done [#allocation9], 9216
        $region48: #{tpu_custom_call.1} parent=39 // pred_fallthru
          _
        // Predicated region
        $region49: #{tpu_custom_call.1} parent=39 // pred_check
          %p246 = pneg %p86
        $region50: #{tpu_custom_call.1} parent=39 // pred_check_branch
          %248 = sbr.rel (%p246) target = $region52
        $region51: #{tpu_custom_call.1} parent=39 // pred_region
          %249 = dma.done [#allocation9], 9216
        $region52: #{tpu_custom_call.1} parent=39 // pred_fallthru
          _
        %s250 = sand.u32 %s31, 1
        %s251 = scalar_lea.sflag [#allocation6], %s250
        %s252 = sand.u32 %s31, 1
        %s253 = smul.addr %s252, 256
        %s254 = scalar_lea.vmem [#allocation5], %s253
        %p255 = pneg %p44
        %p256 = pneg %p41
        %p257 = pneg %p65
        %p258 = pneg %p62
        %p259 = pneg %p86
        %p260 = pneg %p83
        %p261 = pneg %p107
        %p262 = pneg %p104
        %p263 = pneg %p128
        %p264 = pneg %p125
        %p265 = pneg %p154
        %p266 = pneg %p151
        %s267 = sand.u32 %s141, 1
        %s268 = scalar_lea.sflag [#allocation7], %s267
        %s269 = sand.u32 %s141, 1
        %s270 = smul.addr %s269, 256
        %s271 = scalar_lea.vmem [#allocation11], %s270
        %273 = vst [vmem:[#allocation2] sm:$0xff] 0.0
        %274 = vst [vmem:[#allocation2 + $0x8] sm:$0xff] 0.0
        %275 = vst [vmem:[#allocation2 + $0x10] sm:$0xff] 0.0
        %276 = vst [vmem:[#allocation2 + $0x118] sm:$0xff] 0.0
        %277 = vst [vmem:[#allocation2 + $0x120] sm:$0xff] 0.0
        %278 = vst [vmem:[#allocation2 + $0x128] sm:$0xff] 0.0
        %279 = vst [vmem:[#allocation3] sm:$0xff] 0.0
        %280 = vst [vmem:[#allocation3 + $0x8] sm:$0xff] 0.0
        %281 = vst [vmem:[#allocation3 + $0x10] sm:$0xff] 0.0
        %282 = vst [vmem:[#allocation3 + $0x118] sm:$0xff] 0.0
        %283 = vst [vmem:[#allocation3 + $0x120] sm:$0xff] 0.0
        %284 = vst [vmem:[#allocation3 + $0x128] sm:$0xff] 0.0
        %v285 = vld [vmem:[%s237] sm:$0xff]
        %v286 = vld [vmem:[%s237 + $0x8] sm:$0xff]
        %v287 = vld [vmem:[%s237 + $0x10] sm:$0xff]
        %v288 = vld [vmem:[%s237 + $0x18] sm:$0xff]
        %v289 = vld [vmem:[%s237 + $0x20] sm:$0xff]
        %v290 = vld [vmem:[%s237 + $0x28] sm:$0xff]
        %v291 = vld [vmem:[%s237 + $0x30] sm:$0xff]
        %v292 = vld [vmem:[%s237 + $0x38] sm:$0xff]
        %v293 = vld [vmem:[%s237 + $0x40] sm:$0xff]
        %v294 = vld [vmem:[%s237 + $0x48] sm:$0xff]
        %v295 = vld [vmem:[%s237 + $0x50] sm:$0xff]
        %v296 = vld [vmem:[%s237 + $0x58] sm:$0xff]
        %v297 = vld [vmem:[%s237 + $0x60] sm:$0xff]
        %v298 = vld [vmem:[%s237 + $0x68] sm:$0xff]
        %v299 = vld [vmem:[%s237 + $0x70] sm:$0xff]
        %v300 = vld [vmem:[%s237 + $0x78] sm:$0xff]
        %v301 = vld [vmem:[%s237 + $0x80] sm:$0xff]
        %v302 = vld [vmem:[%s237 + $0x88] sm:$0xff]
        %v303 = vld [vmem:[%s237 + $0x90] sm:$0xff]
        %v304 = vld [vmem:[%s237 + $0x98] sm:$0xff]
        %v305 = vld [vmem:[%s237 + $0xa0] sm:$0xff]
        %v306 = vld [vmem:[%s237 + $0xa8] sm:$0xff]
        %v307 = vld [vmem:[%s237 + $0xb0] sm:$0xff]
        %v308 = vld [vmem:[%s237 + $0xb8] sm:$0xff]
        %v309 = vld [vmem:[%s237 + $0xc0] sm:$0xff]
        %v310 = vld [vmem:[%s237 + $0xc8] sm:$0xff]
        %v311 = vld [vmem:[%s237 + $0xd0] sm:$0xff]
        %v312 = vld [vmem:[%s237 + $0xd8] sm:$0xff]
        %v313 = vld [vmem:[%s237 + $0xe0] sm:$0xff]
        %v314 = vld [vmem:[%s237 + $0xe8] sm:$0xff]
        %v315 = vld [vmem:[%s237 + $0xf0] sm:$0xff]
        %v316 = vld [vmem:[%s237 + $0xf8] sm:$0xff]
        %317 = vst [vmem:[#allocation2 + $0x18] sm:$0xff] %v285
        %318 = vst [vmem:[#allocation2 + $0x20] sm:$0xff] %v286
        %319 = vst [vmem:[#allocation2 + $0x28] sm:$0xff] %v287
        %320 = vst [vmem:[#allocation2 + $0x30] sm:$0xff] %v288
        %321 = vst [vmem:[#allocation2 + $0x38] sm:$0xff] %v289
        %322 = vst [vmem:[#allocation2 + $0x40] sm:$0xff] %v290
        %323 = vst [vmem:[#allocation2 + $0x48] sm:$0xff] %v291
        %324 = vst [vmem:[#allocation2 + $0x50] sm:$0xff] %v292
        %325 = vst [vmem:[#allocation2 + $0x58] sm:$0xff] %v293
        %326 = vst [vmem:[#allocation2 + $0x60] sm:$0xff] %v294
        %327 = vst [vmem:[#allocation2 + $0x68] sm:$0xff] %v295
        %328 = vst [vmem:[#allocation2 + $0x70] sm:$0xff] %v296
        %329 = vst [vmem:[#allocation2 + $0x78] sm:$0xff] %v297
        %330 = vst [vmem:[#allocation2 + $0x80] sm:$0xff] %v298
        %331 = vst [vmem:[#allocation2 + $0x88] sm:$0xff] %v299
        %332 = vst [vmem:[#allocation2 + $0x90] sm:$0xff] %v300
        %333 = vst [vmem:[#allocation2 + $0x98] sm:$0xff] %v301
        %334 = vst [vmem:[#allocation2 + $0xa0] sm:$0xff] %v302
        %335 = vst [vmem:[#allocation2 + $0xa8] sm:$0xff] %v303
        %336 = vst [vmem:[#allocation2 + $0xb0] sm:$0xff] %v304
        %337 = vst [vmem:[#allocation2 + $0xb8] sm:$0xff] %v305
        %338 = vst [vmem:[#allocation2 + $0xc0] sm:$0xff] %v306
        %339 = vst [vmem:[#allocation2 + $0xc8] sm:$0xff] %v307
        %340 = vst [vmem:[#allocation2 + $0xd0] sm:$0xff] %v308
        %341 = vst [vmem:[#allocation2 + $0xd8] sm:$0xff] %v309
        %342 = vst [vmem:[#allocation2 + $0xe0] sm:$0xff] %v310
        %343 = vst [vmem:[#allocation2 + $0xe8] sm:$0xff] %v311
        %344 = vst [vmem:[#allocation2 + $0xf0] sm:$0xff] %v312
        %345 = vst [vmem:[#allocation2 + $0xf8] sm:$0xff] %v313
        %346 = vst [vmem:[#allocation2 + $0x100] sm:$0xff] %v314
        %347 = vst [vmem:[#allocation2 + $0x108] sm:$0xff] %v315
        %348 = vst [vmem:[#allocation2 + $0x110] sm:$0xff] %v316
        %v349 = vld [vmem:[%s3] sm:$0x1]
        %v351 = vlaneseq
        %v352 = vshrl.u32 %v351, 7
        %v353 = vsub.s32 0, %v352
        %v354 = vrot.slane %v349, %v353
        %356 = vst [vmem:[#allocation4] sm:$0xff] %v354
        %357 = vst [vmem:[#allocation4 + $0x8] sm:$0xff] %v354
        %358 = vst [vmem:[#allocation4 + $0x10] sm:$0xff] %v354
        %359 = vst [vmem:[#allocation4 + $0x18] sm:$0xff] %v354
        %360 = vst [vmem:[#allocation4 + $0x20] sm:$0xff] %v354
        %361 = vst [vmem:[#allocation4 + $0x28] sm:$0xff] %v354
        %362 = vst [vmem:[#allocation4 + $0x30] sm:$0xff] %v354
        %363 = vst [vmem:[#allocation4 + $0x38] sm:$0xff] %v354
        %364 = vst [vmem:[#allocation4 + $0x40] sm:$0xff] %v354
        %365 = vst [vmem:[#allocation4 + $0x48] sm:$0xff] %v354
        %366 = vst [vmem:[#allocation4 + $0x50] sm:$0xff] %v354
        %367 = vst [vmem:[#allocation4 + $0x58] sm:$0xff] %v354
        %368 = vst [vmem:[#allocation4 + $0x60] sm:$0xff] %v354
        %369 = vst [vmem:[#allocation4 + $0x68] sm:$0xff] %v354
        %370 = vst [vmem:[#allocation4 + $0x70] sm:$0xff] %v354
        %371 = vst [vmem:[#allocation4 + $0x78] sm:$0xff] %v354
        %372 = vst [vmem:[#allocation4 + $0x80] sm:$0xff] %v354
        %373 = vst [vmem:[#allocation4 + $0x88] sm:$0xff] %v354
        %374 = vst [vmem:[#allocation4 + $0x90] sm:$0xff] %v354
        %375 = vst [vmem:[#allocation4 + $0x98] sm:$0xff] %v354
        %376 = vst [vmem:[#allocation4 + $0xa0] sm:$0xff] %v354
        %377 = vst [vmem:[#allocation4 + $0xa8] sm:$0xff] %v354
        %378 = vst [vmem:[#allocation4 + $0xb0] sm:$0xff] %v354
        %379 = vst [vmem:[#allocation4 + $0xb8] sm:$0xff] %v354
        %380 = vst [vmem:[#allocation4 + $0xc0] sm:$0xff] %v354
        %381 = vst [vmem:[#allocation4 + $0xc8] sm:$0xff] %v354
        %382 = vst [vmem:[#allocation4 + $0xd0] sm:$0xff] %v354
        %383 = vst [vmem:[#allocation4 + $0xd8] sm:$0xff] %v354
        %384 = vst [vmem:[#allocation4 + $0xe0] sm:$0xff] %v354
        %385 = vst [vmem:[#allocation4 + $0xe8] sm:$0xff] %v354
        %386 = vst [vmem:[#allocation4 + $0xf0] sm:$0xff] %v354
        %387 = vst [vmem:[#allocation4 + $0xf8] sm:$0xff] %v354
        %v388 = vld [vmem:[#allocation2 + $0x7] sm:$0xff]
        %v389 = vld [vmem:[#allocation2 + $0xf] sm:$0xff]
        %v390 = vld [vmem:[#allocation2 + $0x17] sm:$0xff]
        %v391 = vld [vmem:[#allocation2 + $0x1f] sm:$0xff]
        %v392 = vld [vmem:[#allocation2 + $0x27] sm:$0xff]
        %v393 = vld [vmem:[#allocation2 + $0x2f] sm:$0xff]
        %v394 = vld [vmem:[#allocation2 + $0x37] sm:$0xff]
        %v395 = vld [vmem:[#allocation2 + $0x3f] sm:$0xff]
        %v396 = vld [vmem:[#allocation2 + $0x47] sm:$0xff]
        %v397 = vld [vmem:[#allocation2 + $0x4f] sm:$0xff]
        %v398 = vld [vmem:[#allocation2 + $0x57] sm:$0xff]
        %v399 = vld [vmem:[#allocation2 + $0x5f] sm:$0xff]
        %v400 = vld [vmem:[#allocation2 + $0x67] sm:$0xff]
        %v401 = vld [vmem:[#allocation2 + $0x6f] sm:$0xff]
        %v402 = vld [vmem:[#allocation2 + $0x77] sm:$0xff]
        %v403 = vld [vmem:[#allocation2 + $0x7f] sm:$0xff]
        %v404 = vld [vmem:[#allocation2 + $0x87] sm:$0xff]
        %v405 = vld [vmem:[#allocation2 + $0x8f] sm:$0xff]
        %v406 = vld [vmem:[#allocation2 + $0x97] sm:$0xff]
        %v407 = vld [vmem:[#allocation2 + $0x9f] sm:$0xff]
        %v408 = vld [vmem:[#allocation2 + $0xa7] sm:$0xff]
        %v409 = vld [vmem:[#allocation2 + $0xaf] sm:$0xff]
        %v410 = vld [vmem:[#allocation2 + $0xb7] sm:$0xff]
        %v411 = vld [vmem:[#allocation2 + $0xbf] sm:$0xff]
        %v412 = vld [vmem:[#allocation2 + $0xc7] sm:$0xff]
        %v413 = vld [vmem:[#allocation2 + $0xcf] sm:$0xff]
        %v414 = vld [vmem:[#allocation2 + $0xd7] sm:$0xff]
        %v415 = vld [vmem:[#allocation2 + $0xdf] sm:$0xff]
        %v416 = vld [vmem:[#allocation2 + $0xe7] sm:$0xff]
        %v417 = vld [vmem:[#allocation2 + $0xef] sm:$0xff]
        %v418 = vld [vmem:[#allocation2 + $0xf7] sm:$0xff]
        %v419 = vld [vmem:[#allocation2 + $0xff] sm:$0xff]
        %v420 = vlaneseq
        %v421 = vshrl.u32 %v420, 7
        %v422 = vadd.s32 %v421, 8
        %v423 = vadd.s32 %v421, 16
        %v424 = vadd.s32 %v421, 24
        %v425 = vadd.s32 %v421, 32
        %v426 = vadd.s32 %v421, 40
        %v427 = vadd.s32 %v421, 48
        %v428 = vadd.s32 %v421, 56
        %v429 = vadd.s32 %v421, 64
        %v430 = vadd.s32 %v421, 72
        %v431 = vadd.s32 %v421, 80
        %v432 = vadd.s32 %v421, 88
        %v433 = vadd.s32 %v421, 96
        %v434 = vadd.s32 %v421, 104
        %v435 = vadd.s32 %v421, 112
        %v436 = vadd.s32 %v421, 120
        %v437 = vadd.s32 %v421, 128
        %v438 = vadd.s32 %v421, 136
        %v439 = vadd.s32 %v421, 144
        %v440 = vadd.s32 %v421, 152
        %v441 = vadd.s32 %v421, 160
        %v442 = vadd.s32 %v421, 168
        %v443 = vadd.s32 %v421, 176
        %v444 = vadd.s32 %v421, 184
        %v445 = vadd.s32 %v421, 192
        %v446 = vadd.s32 %v421, 200
        %v447 = vadd.s32 %v421, 208
        %v448 = vadd.s32 %v421, 216
        %v449 = vadd.s32 %v421, 224
        %v450 = vadd.s32 %v421, 232
        %v451 = vadd.s32 %v421, 240
        %v452 = vadd.s32 %v421, 248
        %vm453 = vcmp.lt.s32.totalorder %v421, 0
        %v454 = vsub.s32 0, %v421
        %v455 = vsel %vm453, %v454, %v421
        %v456 = vshrl.u32 %v455, 4
        %v457 = vand.u32 %v455, 15
        %v458 = vsub.s32 0, %v457
        %v459 = vsel %vm453, %v458, %v457
        %vm460 = vcmp.lt.s32.totalorder %v422, 0
        %v461 = vsub.s32 0, %v422
        %v462 = vsel %vm460, %v461, %v422
        %v463 = vshrl.u32 %v462, 4
        %v464 = vand.u32 %v462, 15
        %v465 = vsub.s32 0, %v464
        %v466 = vsel %vm460, %v465, %v464
        %vm467 = vcmp.lt.s32.totalorder %v423, 0
        %v468 = vsub.s32 0, %v423
        %v469 = vsel %vm467, %v468, %v423
        %v470 = vshrl.u32 %v469, 4
        %v471 = vand.u32 %v469, 15
        %v472 = vsub.s32 0, %v471
        %v473 = vsel %vm467, %v472, %v471
        %vm474 = vcmp.lt.s32.totalorder %v424, 0
        %v475 = vsub.s32 0, %v424
        %v476 = vsel %vm474, %v475, %v424
        %v477 = vshrl.u32 %v476, 4
        %v478 = vand.u32 %v476, 15
        %v479 = vsub.s32 0, %v478
        %v480 = vsel %vm474, %v479, %v478
        %vm481 = vcmp.lt.s32.totalorder %v425, 0
        %v482 = vsub.s32 0, %v425
        %v483 = vsel %vm481, %v482, %v425
        %v484 = vshrl.u32 %v483, 4
        %v485 = vand.u32 %v483, 15
        %v486 = vsub.s32 0, %v485
        %v487 = vsel %vm481, %v486, %v485
        %vm488 = vcmp.lt.s32.totalorder %v426, 0
        %v489 = vsub.s32 0, %v426
        %v490 = vsel %vm488, %v489, %v426
        %v491 = vshrl.u32 %v490, 4
        %v492 = vand.u32 %v490, 15
        %v493 = vsub.s32 0, %v492
        %v494 = vsel %vm488, %v493, %v492
        %vm495 = vcmp.lt.s32.totalorder %v427, 0
        %v496 = vsub.s32 0, %v427
        %v497 = vsel %vm495, %v496, %v427
        %v498 = vshrl.u32 %v497, 4
        %v499 = vand.u32 %v497, 15
        %v500 = vsub.s32 0, %v499
        %v501 = vsel %vm495, %v500, %v499
        %vm502 = vcmp.lt.s32.totalorder %v428, 0
        %v503 = vsub.s32 0, %v428
        %v504 = vsel %vm502, %v503, %v428
        %v505 = vshrl.u32 %v504, 4
        %v506 = vand.u32 %v504, 15
        %v507 = vsub.s32 0, %v506
        %v508 = vsel %vm502, %v507, %v506
        %vm509 = vcmp.lt.s32.totalorder %v429, 0
        %v510 = vsub.s32 0, %v429
        %v511 = vsel %vm509, %v510, %v429
        %v512 = vshrl.u32 %v511, 4
        %v513 = vand.u32 %v511, 15
        %v514 = vsub.s32 0, %v513
        %v515 = vsel %vm509, %v514, %v513
        %vm516 = vcmp.lt.s32.totalorder %v430, 0
        %v517 = vsub.s32 0, %v430
        %v518 = vsel %vm516, %v517, %v430
        %v519 = vshrl.u32 %v518, 4
        %v520 = vand.u32 %v518, 15
        %v521 = vsub.s32 0, %v520
        %v522 = vsel %vm516, %v521, %v520
        %vm523 = vcmp.lt.s32.totalorder %v431, 0
        %v524 = vsub.s32 0, %v431
        %v525 = vsel %vm523, %v524, %v431
        %v526 = vshrl.u32 %v525, 4
        %v527 = vand.u32 %v525, 15
        %v528 = vsub.s32 0, %v527
        %v529 = vsel %vm523, %v528, %v527
        %vm530 = vcmp.lt.s32.totalorder %v432, 0
        %v531 = vsub.s32 0, %v432
        %v532 = vsel %vm530, %v531, %v432
        %v533 = vshrl.u32 %v532, 4
        %v534 = vand.u32 %v532, 15
        %v535 = vsub.s32 0, %v534
        %v536 = vsel %vm530, %v535, %v534
        %vm537 = vcmp.lt.s32.totalorder %v433, 0
        %v538 = vsub.s32 0, %v433
        %v539 = vsel %vm537, %v538, %v433
        %v540 = vshrl.u32 %v539, 4
        %v541 = vand.u32 %v539, 15
        %v542 = vsub.s32 0, %v541
        %v543 = vsel %vm537, %v542, %v541
        %vm544 = vcmp.lt.s32.totalorder %v434, 0
        %v545 = vsub.s32 0, %v434
        %v546 = vsel %vm544, %v545, %v434
        %v547 = vshrl.u32 %v546, 4
        %v548 = vand.u32 %v546, 15
        %v549 = vsub.s32 0, %v548
        %v550 = vsel %vm544, %v549, %v548
        %vm551 = vcmp.lt.s32.totalorder %v435, 0
        %v552 = vsub.s32 0, %v435
        %v553 = vsel %vm551, %v552, %v435
        %v554 = vshrl.u32 %v553, 4
        %v555 = vand.u32 %v553, 15
        %v556 = vsub.s32 0, %v555
        %v557 = vsel %vm551, %v556, %v555
        %vm558 = vcmp.lt.s32.totalorder %v436, 0
        %v559 = vsub.s32 0, %v436
        %v560 = vsel %vm558, %v559, %v436
        %v561 = vshrl.u32 %v560, 4
        %v562 = vand.u32 %v560, 15
        %v563 = vsub.s32 0, %v562
        %v564 = vsel %vm558, %v563, %v562
        %vm565 = vcmp.lt.s32.totalorder %v437, 0
        %v566 = vsub.s32 0, %v437
        %v567 = vsel %vm565, %v566, %v437
        %v568 = vshrl.u32 %v567, 4
        %v569 = vand.u32 %v567, 15
        %v570 = vsub.s32 0, %v569
        %v571 = vsel %vm565, %v570, %v569
        %vm572 = vcmp.lt.s32.totalorder %v438, 0
        %v573 = vsub.s32 0, %v438
        %v574 = vsel %vm572, %v573, %v438
        %v575 = vshrl.u32 %v574, 4
        %v576 = vand.u32 %v574, 15
        %v577 = vsub.s32 0, %v576
        %v578 = vsel %vm572, %v577, %v576
        %vm579 = vcmp.lt.s32.totalorder %v439, 0
        %v580 = vsub.s32 0, %v439
        %v581 = vsel %vm579, %v580, %v439
        %v582 = vshrl.u32 %v581, 4
        %v583 = vand.u32 %v581, 15
        %v584 = vsub.s32 0, %v583
        %v585 = vsel %vm579, %v584, %v583
        %vm586 = vcmp.lt.s32.totalorder %v440, 0
        %v587 = vsub.s32 0, %v440
        %v588 = vsel %vm586, %v587, %v440
        %v589 = vshrl.u32 %v588, 4
        %v590 = vand.u32 %v588, 15
        %v591 = vsub.s32 0, %v590
        %v592 = vsel %vm586, %v591, %v590
        %vm593 = vcmp.lt.s32.totalorder %v441, 0
        %v594 = vsub.s32 0, %v441
        %v595 = vsel %vm593, %v594, %v441
        %v596 = vshrl.u32 %v595, 4
        %v597 = vand.u32 %v595, 15
        %v598 = vsub.s32 0, %v597
        %v599 = vsel %vm593, %v598, %v597
        %vm600 = vcmp.lt.s32.totalorder %v442, 0
        %v601 = vsub.s32 0, %v442
        %v602 = vsel %vm600, %v601, %v442
        %v603 = vshrl.u32 %v602, 4
        %v604 = vand.u32 %v602, 15
        %v605 = vsub.s32 0, %v604
        %v606 = vsel %vm600, %v605, %v604
        %vm607 = vcmp.lt.s32.totalorder %v443, 0
        %v608 = vsub.s32 0, %v443
        %v609 = vsel %vm607, %v608, %v443
        %v610 = vshrl.u32 %v609, 4
        %v611 = vand.u32 %v609, 15
        %v612 = vsub.s32 0, %v611
        %v613 = vsel %vm607, %v612, %v611
        %vm614 = vcmp.lt.s32.totalorder %v444, 0
        %v615 = vsub.s32 0, %v444
        %v616 = vsel %vm614, %v615, %v444
        %v617 = vshrl.u32 %v616, 4
        %v618 = vand.u32 %v616, 15
        %v619 = vsub.s32 0, %v618
        %v620 = vsel %vm614, %v619, %v618
        %vm621 = vcmp.lt.s32.totalorder %v445, 0
        %v622 = vsub.s32 0, %v445
        %v623 = vsel %vm621, %v622, %v445
        %v624 = vshrl.u32 %v623, 4
        %v625 = vand.u32 %v623, 15
        %v626 = vsub.s32 0, %v625
        %v627 = vsel %vm621, %v626, %v625
        %vm628 = vcmp.lt.s32.totalorder %v446, 0
        %v629 = vsub.s32 0, %v446
        %v630 = vsel %vm628, %v629, %v446
        %v631 = vshrl.u32 %v630, 4
        %v632 = vand.u32 %v630, 15
        %v633 = vsub.s32 0, %v632
        %v634 = vsel %vm628, %v633, %v632
        %vm635 = vcmp.lt.s32.totalorder %v447, 0
        %v636 = vsub.s32 0, %v447
        %v637 = vsel %vm635, %v636, %v447
        %v638 = vshrl.u32 %v637, 4
        %v639 = vand.u32 %v637, 15
        %v640 = vsub.s32 0, %v639
        %v641 = vsel %vm635, %v640, %v639
        %vm642 = vcmp.lt.s32.totalorder %v448, 0
        %v643 = vsub.s32 0, %v448
        %v644 = vsel %vm642, %v643, %v448
        %v645 = vshrl.u32 %v644, 4
        %v646 = vand.u32 %v644, 15
        %v647 = vsub.s32 0, %v646
        %v648 = vsel %vm642, %v647, %v646
        %vm649 = vcmp.lt.s32.totalorder %v449, 0
        %v650 = vsub.s32 0, %v449
        %v651 = vsel %vm649, %v650, %v449
        %v652 = vshrl.u32 %v651, 4
        %v653 = vand.u32 %v651, 15
        %v654 = vsub.s32 0, %v653
        %v655 = vsel %vm649, %v654, %v653
        %vm656 = vcmp.lt.s32.totalorder %v450, 0
        %v657 = vsub.s32 0, %v450
        %v658 = vsel %vm656, %v657, %v450
        %v659 = vshrl.u32 %v658, 4
        %v660 = vand.u32 %v658, 15
        %v661 = vsub.s32 0, %v660
        %v662 = vsel %vm656, %v661, %v660
        %vm663 = vcmp.lt.s32.totalorder %v451, 0
        %v664 = vsub.s32 0, %v451
        %v665 = vsel %vm663, %v664, %v451
        %v666 = vshrl.u32 %v665, 4
        %v667 = vand.u32 %v665, 15
        %v668 = vsub.s32 0, %v667
        %v669 = vsel %vm663, %v668, %v667
        %vm670 = vcmp.lt.s32.totalorder %v452, 0
        %v671 = vsub.s32 0, %v452
        %v672 = vsel %vm670, %v671, %v452
        %v673 = vshrl.u32 %v672, 4
        %v674 = vand.u32 %v672, 15
        %v675 = vsub.s32 0, %v674
        %v676 = vsel %vm670, %v675, %v674
        %vm677 = vcmp.ne.s32.totalorder %v459, 0
        %vm678 = vcmp.ne.s32.totalorder %v466, 0
        %vm679 = vcmp.ne.s32.totalorder %v473, 0
        %vm680 = vcmp.ne.s32.totalorder %v480, 0
        %vm681 = vcmp.ne.s32.totalorder %v487, 0
        %vm682 = vcmp.ne.s32.totalorder %v494, 0
        %vm683 = vcmp.ne.s32.totalorder %v501, 0
        %vm684 = vcmp.ne.s32.totalorder %v508, 0
        %vm685 = vcmp.ne.s32.totalorder %v515, 0
        %vm686 = vcmp.ne.s32.totalorder %v522, 0
        %vm687 = vcmp.ne.s32.totalorder %v529, 0
        %vm688 = vcmp.ne.s32.totalorder %v536, 0
        %vm689 = vcmp.ne.s32.totalorder %v543, 0
        %vm690 = vcmp.ne.s32.totalorder %v550, 0
        %vm691 = vcmp.ne.s32.totalorder %v557, 0
        %vm692 = vcmp.ne.s32.totalorder %v564, 0
        %vm693 = vcmp.ne.s32.totalorder %v571, 0
        %vm694 = vcmp.ne.s32.totalorder %v578, 0
        %vm695 = vcmp.ne.s32.totalorder %v585, 0
        %vm696 = vcmp.ne.s32.totalorder %v592, 0
        %vm697 = vcmp.ne.s32.totalorder %v599, 0
        %vm698 = vcmp.ne.s32.totalorder %v606, 0
        %vm699 = vcmp.ne.s32.totalorder %v613, 0
        %vm700 = vcmp.ne.s32.totalorder %v620, 0
        %vm701 = vcmp.ne.s32.totalorder %v627, 0
        %vm702 = vcmp.ne.s32.totalorder %v634, 0
        %vm703 = vcmp.ne.s32.totalorder %v641, 0
        %vm704 = vcmp.ne.s32.totalorder %v648, 0
        %vm705 = vcmp.ne.s32.totalorder %v655, 0
        %vm706 = vcmp.ne.s32.totalorder %v662, 0
        %vm707 = vcmp.ne.s32.totalorder %v669, 0
        %vm708 = vcmp.ne.s32.totalorder %v676, 0
        %vm709 = vcmp.lt.s32.totalorder %v459, 0
        %vm710 = vcmp.lt.s32.totalorder %v466, 0
        %vm711 = vcmp.lt.s32.totalorder %v473, 0
        %vm712 = vcmp.lt.s32.totalorder %v480, 0
        %vm713 = vcmp.lt.s32.totalorder %v487, 0
        %vm714 = vcmp.lt.s32.totalorder %v494, 0
        %vm715 = vcmp.lt.s32.totalorder %v501, 0
        %vm716 = vcmp.lt.s32.totalorder %v508, 0
        %vm717 = vcmp.lt.s32.totalorder %v515, 0
        %vm718 = vcmp.lt.s32.totalorder %v522, 0
        %vm719 = vcmp.lt.s32.totalorder %v529, 0
        %vm720 = vcmp.lt.s32.totalorder %v536, 0
        %vm721 = vcmp.lt.s32.totalorder %v543, 0
        %vm722 = vcmp.lt.s32.totalorder %v550, 0
        %vm723 = vcmp.lt.s32.totalorder %v557, 0
        %vm724 = vcmp.lt.s32.totalorder %v564, 0
        %vm725 = vcmp.lt.s32.totalorder %v571, 0
        %vm726 = vcmp.lt.s32.totalorder %v578, 0
        %vm727 = vcmp.lt.s32.totalorder %v585, 0
        %vm728 = vcmp.lt.s32.totalorder %v592, 0
        %vm729 = vcmp.lt.s32.totalorder %v599, 0
        %vm730 = vcmp.lt.s32.totalorder %v606, 0
        %vm731 = vcmp.lt.s32.totalorder %v613, 0
        %vm732 = vcmp.lt.s32.totalorder %v620, 0
        %vm733 = vcmp.lt.s32.totalorder %v627, 0
        %vm734 = vcmp.lt.s32.totalorder %v634, 0
        %vm735 = vcmp.lt.s32.totalorder %v641, 0
        %vm736 = vcmp.lt.s32.totalorder %v648, 0
        %vm737 = vcmp.lt.s32.totalorder %v655, 0
        %vm738 = vcmp.lt.s32.totalorder %v662, 0
        %vm739 = vcmp.lt.s32.totalorder %v669, 0
        %vm740 = vcmp.lt.s32.totalorder %v676, 0
        %vm741 = vmand %vm709, %vm677
        %vm742 = vmand %vm710, %vm678
        %vm743 = vmand %vm711, %vm679
        %vm744 = vmand %vm712, %vm680
        %vm745 = vmand %vm713, %vm681
        %vm746 = vmand %vm714, %vm682
        %vm747 = vmand %vm715, %vm683
        %vm748 = vmand %vm716, %vm684
        %vm749 = vmand %vm717, %vm685
        %vm750 = vmand %vm718, %vm686
        %vm751 = vmand %vm719, %vm687
        %vm752 = vmand %vm720, %vm688
        %vm753 = vmand %vm721, %vm689
        %vm754 = vmand %vm722, %vm690
        %vm755 = vmand %vm723, %vm691
        %vm756 = vmand %vm724, %vm692
        %vm757 = vmand %vm725, %vm693
        %vm758 = vmand %vm726, %vm694
        %vm759 = vmand %vm727, %vm695
        %vm760 = vmand %vm728, %vm696
        %vm761 = vmand %vm729, %vm697
        %vm762 = vmand %vm730, %vm698
        %vm763 = vmand %vm731, %vm699
        %vm764 = vmand %vm732, %vm700
        %vm765 = vmand %vm733, %vm701
        %vm766 = vmand %vm734, %vm702
        %vm767 = vmand %vm735, %vm703
        %vm768 = vmand %vm736, %vm704
        %vm769 = vmand %vm737, %vm705
        %vm770 = vmand %vm738, %vm706
        %vm771 = vmand %vm739, %vm707
        %vm772 = vmand %vm740, %vm708
        %v773 = vadd.s32 %v459, 16
        %v774 = vadd.s32 %v466, 16
        %v775 = vadd.s32 %v473, 16
        %v776 = vadd.s32 %v480, 16
        %v777 = vadd.s32 %v487, 16
        %v778 = vadd.s32 %v494, 16
        %v779 = vadd.s32 %v501, 16
        %v780 = vadd.s32 %v508, 16
        %v781 = vadd.s32 %v515, 16
        %v782 = vadd.s32 %v522, 16
        %v783 = vadd.s32 %v529, 16
        %v784 = vadd.s32 %v536, 16
        %v785 = vadd.s32 %v543, 16
        %v786 = vadd.s32 %v550, 16
        %v787 = vadd.s32 %v557, 16
        %v788 = vadd.s32 %v564, 16
        %v789 = vadd.s32 %v571, 16
        %v790 = vadd.s32 %v578, 16
        %v791 = vadd.s32 %v585, 16
        %v792 = vadd.s32 %v592, 16
        %v793 = vadd.s32 %v599, 16
        %v794 = vadd.s32 %v606, 16
        %v795 = vadd.s32 %v613, 16
        %v796 = vadd.s32 %v620, 16
        %v797 = vadd.s32 %v627, 16
        %v798 = vadd.s32 %v634, 16
        %v799 = vadd.s32 %v641, 16
        %v800 = vadd.s32 %v648, 16
        %v801 = vadd.s32 %v655, 16
        %v802 = vadd.s32 %v662, 16
        %v803 = vadd.s32 %v669, 16
        %v804 = vadd.s32 %v676, 16
        %v805 = vsel %vm741, %v773, %v459
        %v806 = vsel %vm742, %v774, %v466
        %v807 = vsel %vm743, %v775, %v473
        %v808 = vsel %vm744, %v776, %v480
        %v809 = vsel %vm745, %v777, %v487
        %v810 = vsel %vm746, %v778, %v494
        %v811 = vsel %vm747, %v779, %v501
        %v812 = vsel %vm748, %v780, %v508
        %v813 = vsel %vm749, %v781, %v515
        %v814 = vsel %vm750, %v782, %v522
        %v815 = vsel %vm751, %v783, %v529
        %v816 = vsel %vm752, %v784, %v536
        %v817 = vsel %vm753, %v785, %v543
        %v818 = vsel %vm754, %v786, %v550
        %v819 = vsel %vm755, %v787, %v557
        %v820 = vsel %vm756, %v788, %v564
        %v821 = vsel %vm757, %v789, %v571
        %v822 = vsel %vm758, %v790, %v578
        %v823 = vsel %vm759, %v791, %v585
        %v824 = vsel %vm760, %v792, %v592
        %v825 = vsel %vm761, %v793, %v599
        %v826 = vsel %vm762, %v794, %v606
        %v827 = vsel %vm763, %v795, %v613
        %v828 = vsel %vm764, %v796, %v620
        %v829 = vsel %vm765, %v797, %v627
        %v830 = vsel %vm766, %v798, %v634
        %v831 = vsel %vm767, %v799, %v641
        %v832 = vsel %vm768, %v800, %v648
        %v833 = vsel %vm769, %v801, %v655
        %v834 = vsel %vm770, %v802, %v662
        %v835 = vsel %vm771, %v803, %v669
        %v836 = vsel %vm772, %v804, %v676
        %vm837 = vcmp.ge.s32.totalorder %v805, 1
        %vm838 = vcmp.ge.s32.totalorder %v806, 1
        %vm839 = vcmp.ge.s32.totalorder %v807, 1
        %vm840 = vcmp.ge.s32.totalorder %v808, 1
        %vm841 = vcmp.ge.s32.totalorder %v809, 1
        %vm842 = vcmp.ge.s32.totalorder %v810, 1
        %vm843 = vcmp.ge.s32.totalorder %v811, 1
        %vm844 = vcmp.ge.s32.totalorder %v812, 1
        %vm845 = vcmp.ge.s32.totalorder %v813, 1
        %vm846 = vcmp.ge.s32.totalorder %v814, 1
        %vm847 = vcmp.ge.s32.totalorder %v815, 1
        %vm848 = vcmp.ge.s32.totalorder %v816, 1
        %vm849 = vcmp.ge.s32.totalorder %v817, 1
        %vm850 = vcmp.ge.s32.totalorder %v818, 1
        %vm851 = vcmp.ge.s32.totalorder %v819, 1
        %vm852 = vcmp.ge.s32.totalorder %v820, 1
        %vm853 = vcmp.ge.s32.totalorder %v821, 1
        %vm854 = vcmp.ge.s32.totalorder %v822, 1
        %vm855 = vcmp.ge.s32.totalorder %v823, 1
        %vm856 = vcmp.ge.s32.totalorder %v824, 1
        %vm857 = vcmp.ge.s32.totalorder %v825, 1
        %vm858 = vcmp.ge.s32.totalorder %v826, 1
        %vm859 = vcmp.ge.s32.totalorder %v827, 1
        %vm860 = vcmp.ge.s32.totalorder %v828, 1
        %vm861 = vcmp.ge.s32.totalorder %v829, 1
        %vm862 = vcmp.ge.s32.totalorder %v830, 1
        %vm863 = vcmp.ge.s32.totalorder %v831, 1
        %vm864 = vcmp.ge.s32.totalorder %v832, 1
        %vm865 = vcmp.ge.s32.totalorder %v833, 1
        %vm866 = vcmp.ge.s32.totalorder %v834, 1
        %vm867 = vcmp.ge.s32.totalorder %v835, 1
        %vm868 = vcmp.ge.s32.totalorder %v836, 1
        %v869 = vsel %vm837, %v388, 0.0
        %v870 = vsel %vm838, %v389, 0.0
        %v871 = vsel %vm839, %v390, 0.0
        %v872 = vsel %vm840, %v391, 0.0
        %v873 = vsel %vm841, %v392, 0.0
        %v874 = vsel %vm842, %v393, 0.0
        %v875 = vsel %vm843, %v394, 0.0
        %v876 = vsel %vm844, %v395, 0.0
        %v877 = vsel %vm845, %v396, 0.0
        %v878 = vsel %vm846, %v397, 0.0
        %v879 = vsel %vm847, %v398, 0.0
        %v880 = vsel %vm848, %v399, 0.0
        %v881 = vsel %vm849, %v400, 0.0
        %v882 = vsel %vm850, %v401, 0.0
        %v883 = vsel %vm851, %v402, 0.0
        %v884 = vsel %vm852, %v403, 0.0
        %v885 = vsel %vm853, %v404, 0.0
        %v886 = vsel %vm854, %v405, 0.0
        %v887 = vsel %vm855, %v406, 0.0
        %v888 = vsel %vm856, %v407, 0.0
        %v889 = vsel %vm857, %v408, 0.0
        %v890 = vsel %vm858, %v409, 0.0
        %v891 = vsel %vm859, %v410, 0.0
        %v892 = vsel %vm860, %v411, 0.0
        %v893 = vsel %vm861, %v412, 0.0
        %v894 = vsel %vm862, %v413, 0.0
        %v895 = vsel %vm863, %v414, 0.0
        %v896 = vsel %vm864, %v415, 0.0
        %v897 = vsel %vm865, %v416, 0.0
        %v898 = vsel %vm866, %v417, 0.0
        %v899 = vsel %vm867, %v418, 0.0
        %v900 = vsel %vm868, %v419, 0.0
        %v901 = vld [vmem:[#allocation4] sm:$0xff]
        %v902 = vld [vmem:[#allocation4 + $0x8] sm:$0xff]
        %v903 = vld [vmem:[#allocation4 + $0x10] sm:$0xff]
        %v904 = vld [vmem:[#allocation4 + $0x18] sm:$0xff]
        %v905 = vld [vmem:[#allocation4 + $0x20] sm:$0xff]
        %v906 = vld [vmem:[#allocation4 + $0x28] sm:$0xff]
        %v907 = vld [vmem:[#allocation4 + $0x30] sm:$0xff]
        %v908 = vld [vmem:[#allocation4 + $0x38] sm:$0xff]
        %v909 = vld [vmem:[#allocation4 + $0x40] sm:$0xff]
        %v910 = vld [vmem:[#allocation4 + $0x48] sm:$0xff]
        %v911 = vld [vmem:[#allocation4 + $0x50] sm:$0xff]
        %v912 = vld [vmem:[#allocation4 + $0x58] sm:$0xff]
        %v913 = vld [vmem:[#allocation4 + $0x60] sm:$0xff]
        %v914 = vld [vmem:[#allocation4 + $0x68] sm:$0xff]
        %v915 = vld [vmem:[#allocation4 + $0x70] sm:$0xff]
        %v916 = vld [vmem:[#allocation4 + $0x78] sm:$0xff]
        %v917 = vld [vmem:[#allocation4 + $0x80] sm:$0xff]
        %v918 = vld [vmem:[#allocation4 + $0x88] sm:$0xff]
        %v919 = vld [vmem:[#allocation4 + $0x90] sm:$0xff]
        %v920 = vld [vmem:[#allocation4 + $0x98] sm:$0xff]
        %v921 = vld [vmem:[#allocation4 + $0xa0] sm:$0xff]
        %v922 = vld [vmem:[#allocation4 + $0xa8] sm:$0xff]
        %v923 = vld [vmem:[#allocation4 + $0xb0] sm:$0xff]
        %v924 = vld [vmem:[#allocation4 + $0xb8] sm:$0xff]
        %v925 = vld [vmem:[#allocation4 + $0xc0] sm:$0xff]
        %v926 = vld [vmem:[#allocation4 + $0xc8] sm:$0xff]
        %v927 = vld [vmem:[#allocation4 + $0xd0] sm:$0xff]
        %v928 = vld [vmem:[#allocation4 + $0xd8] sm:$0xff]
        %v929 = vld [vmem:[#allocation4 + $0xe0] sm:$0xff]
        %v930 = vld [vmem:[#allocation4 + $0xe8] sm:$0xff]
        %v931 = vld [vmem:[#allocation4 + $0xf0] sm:$0xff]
        %v932 = vld [vmem:[#allocation4 + $0xf8] sm:$0xff]
        %v933 = vpack.c.bf16 %v870, %v869
        %v934 = vpack.c.bf16 %v872, %v871
        %v935 = vpack.c.bf16 %v874, %v873
        %v936 = vpack.c.bf16 %v876, %v875
        %v937 = vpack.c.bf16 %v878, %v877
        %v938 = vpack.c.bf16 %v880, %v879
        %v939 = vpack.c.bf16 %v882, %v881
        %v940 = vpack.c.bf16 %v884, %v883
        %v941 = vpack.c.bf16 %v886, %v885
        %v942 = vpack.c.bf16 %v888, %v887
        %v943 = vpack.c.bf16 %v890, %v889
        %v944 = vpack.c.bf16 %v892, %v891
        %v945 = vpack.c.bf16 %v894, %v893
        %v946 = vpack.c.bf16 %v896, %v895
        %v947 = vpack.c.bf16 %v898, %v897
        %v948 = vpack.c.bf16 %v900, %v899
        %v949 = vld [vmem:[#allocation8] sm:$0xf]
        %v950 = vld [vmem:[#allocation8 + $0x4] sm:$0xf]
        %v951 = vld [vmem:[#allocation8 + $0x8] sm:$0xf]
        %v952 = vld [vmem:[#allocation8 + $0xc] sm:$0xf]
        %v953 = vld [vmem:[#allocation8 + $0x10] sm:$0xf]
        %v954 = vld [vmem:[#allocation8 + $0x14] sm:$0xf]
        %v955 = vld [vmem:[#allocation8 + $0x18] sm:$0xf]
        %v956 = vld [vmem:[#allocation8 + $0x1c] sm:$0xf]
        %v957 = vld [vmem:[#allocation8 + $0x20] sm:$0xf]
        %v958 = vld [vmem:[#allocation8 + $0x24] sm:$0xf]
        %v959 = vld [vmem:[#allocation8 + $0x28] sm:$0xf]
        %v960 = vld [vmem:[#allocation8 + $0x2c] sm:$0xf]
        %v961 = vld [vmem:[#allocation8 + $0x30] sm:$0xf]
        %v962 = vld [vmem:[#allocation8 + $0x34] sm:$0xf]
        %v963 = vld [vmem:[#allocation8 + $0x38] sm:$0xf]
        %v964 = vld [vmem:[#allocation8 + $0x3c] sm:$0xf]
        %v981 = vunpack.c.l.b16 %v949
        %v982 = vunpack.c.l.b16 %v950
        %v983 = vunpack.c.l.b16 %v951
        %v984 = vunpack.c.l.b16 %v952
        %v985 = vunpack.c.l.b16 %v953
        %v986 = vunpack.c.l.b16 %v954
        %v987 = vunpack.c.l.b16 %v955
        %v988 = vunpack.c.l.b16 %v956
        %v989 = vunpack.c.l.b16 %v957
        %v990 = vunpack.c.l.b16 %v958
        %v991 = vunpack.c.l.b16 %v959
        %v992 = vunpack.c.l.b16 %v960
        %v993 = vunpack.c.l.b16 %v961
        %v994 = vunpack.c.l.b16 %v962
        %v995 = vunpack.c.l.b16 %v963
        %v996 = vunpack.c.l.b16 %v964
        %v997 = vpack.c.b16 %v982, %v981
        %v998 = vpack.c.b16 %v984, %v983
        %v999 = vpack.c.b16 %v986, %v985
        %v1000 = vpack.c.b16 %v988, %v987
        %v1001 = vpack.c.b16 %v990, %v989
        %v1002 = vpack.c.b16 %v992, %v991
        %v1003 = vpack.c.b16 %v994, %v993
        %v1004 = vpack.c.b16 %v996, %v995
        %1013 = vmatprep.subr.bf16.mxu0 0
        %1014 = vmatpush1.bf16.msra.mxu0 %v1004
        %1015 = vmatprep.subr.bf16.mxu0 0
        %1016 = vmatpush1.bf16.msra.mxu0 %v1003
        %1017 = vmatprep.subr.bf16.mxu0 0
        %1018 = vmatpush1.bf16.msra.mxu0 %v1002
        %1019 = vmatprep.subr.bf16.mxu0 0
        %1020 = vmatpush1.bf16.msra.mxu0 %v1001
        %1021 = vmatprep.subr.bf16.mxu0 0
        %1022 = vmatpush1.bf16.msra.mxu0 %v1000
        %1023 = vmatprep.subr.bf16.mxu0 0
        %1024 = vmatpush1.bf16.msra.mxu0 %v999
        %1025 = vmatprep.subr.bf16.mxu0 0
        %1026 = vmatpush1.bf16.msra.mxu0 %v998
        %1027 = vmatprep.subr.bf16.mxu0 0
        %1028 = vmatpush1.bf16.msra.mxu0 %v997
        %1029 = vmatprep.subr.bf16.mxu0 0
        %1030 = vmatpush2.bf16.msra.mxu0 0
        %1031 = vmatprep.subr.bf16.mxu0 0
        %1032 = vmatpush2.bf16.msra.mxu0 0
        %1033 = vmatprep.subr.bf16.mxu0 0
        %1034 = vmatpush2.bf16.msra.mxu0 0
        %1035 = vmatprep.subr.bf16.mxu0 0
        %1036 = vmatpush2.bf16.msra.mxu0 0
        %1037 = vmatprep.subr.bf16.mxu0 0
        %1038 = vmatpush2.bf16.msra.mxu0 0
        %1039 = vmatprep.subr.bf16.mxu0 0
        %1040 = vmatpush2.bf16.msra.mxu0 0
        %1041 = vmatprep.subr.bf16.mxu0 0
        %1042 = vmatpush2.bf16.msra.mxu0 0
        %1043 = vmatprep.subr.bf16.mxu0 0
        %1044 = vmatpush2.bf16.msra.mxu0 0
        %1045 = vmatprep.mubr.bf16.mxu0 0
        %1046 = vmatmul.mubr.bf16.gmra.mxu0 %v933
        %v1047 = vpop.f32.mrf.mxu0
        %v1048 = vadd.f32 0.0, %v1047
        %v1049 = vpop.f32.mrf.mxu0
        %v1050 = vpop.f32.mrf.mxu0
        %v1051 = vadd.f32 0.0, %v1050
        %v1052 = vpop.f32.mrf.mxu0
        %1053 = vmatprep.mubr.bf16.mxu0 0
        %1054 = vmatmul.mubr.bf16.gmra.mxu0 %v934
        %v1055 = vpop.f32.mrf.mxu0
        %v1056 = vadd.f32 0.0, %v1055
        %v1057 = vpop.f32.mrf.mxu0
        %v1058 = vpop.f32.mrf.mxu0
        %v1059 = vadd.f32 0.0, %v1058
        %v1060 = vpop.f32.mrf.mxu0
        %1061 = vmatprep.mubr.bf16.mxu0 0
        %1062 = vmatmul.mubr.bf16.gmra.mxu0 %v935
        %v1063 = vpop.f32.mrf.mxu0
        %v1064 = vadd.f32 0.0, %v1063
        %v1065 = vpop.f32.mrf.mxu0
        %v1066 = vpop.f32.mrf.mxu0
        %v1067 = vadd.f32 0.0, %v1066
        %v1068 = vpop.f32.mrf.mxu0
        %1069 = vmatprep.mubr.bf16.mxu0 0
        %1070 = vmatmul.mubr.bf16.gmra.mxu0 %v936
        %v1071 = vpop.f32.mrf.mxu0
        %v1072 = vadd.f32 0.0, %v1071
        %v1073 = vpop.f32.mrf.mxu0
        %v1074 = vpop.f32.mrf.mxu0
        %v1075 = vadd.f32 0.0, %v1074
        %v1076 = vpop.f32.mrf.mxu0
        %1077 = vmatprep.mubr.bf16.mxu0 0
        %1078 = vmatmul.mubr.bf16.gmra.mxu0 %v937
        %v1079 = vpop.f32.mrf.mxu0
        %v1080 = vadd.f32 0.0, %v1079
        %v1081 = vpop.f32.mrf.mxu0
        %v1082 = vpop.f32.mrf.mxu0
        %v1083 = vadd.f32 0.0, %v1082
        %v1084 = vpop.f32.mrf.mxu0
        %1085 = vmatprep.mubr.bf16.mxu0 0
        %1086 = vmatmul.mubr.bf16.gmra.mxu0 %v938
        %v1087 = vpop.f32.mrf.mxu0
        %v1088 = vadd.f32 0.0, %v1087
        %v1089 = vpop.f32.mrf.mxu0
        %v1090 = vpop.f32.mrf.mxu0
        %v1091 = vadd.f32 0.0, %v1090
        %v1092 = vpop.f32.mrf.mxu0
        %1093 = vmatprep.mubr.bf16.mxu0 0
        %1094 = vmatmul.mubr.bf16.gmra.mxu0 %v939
        %v1095 = vpop.f32.mrf.mxu0
        %v1096 = vadd.f32 0.0, %v1095
        %v1097 = vpop.f32.mrf.mxu0
        %v1098 = vpop.f32.mrf.mxu0
        %v1099 = vadd.f32 0.0, %v1098
        %v1100 = vpop.f32.mrf.mxu0
        %1101 = vmatprep.mubr.bf16.mxu0 0
        %1102 = vmatmul.mubr.bf16.gmra.mxu0 %v940
        %v1103 = vpop.f32.mrf.mxu0
        %v1104 = vadd.f32 0.0, %v1103
        %v1105 = vpop.f32.mrf.mxu0
        %v1106 = vpop.f32.mrf.mxu0
        %v1107 = vadd.f32 0.0, %v1106
        %v1108 = vpop.f32.mrf.mxu0
        %1109 = vmatprep.mubr.bf16.mxu0 0
        %1110 = vmatmul.mubr.bf16.gmra.mxu0 %v941
        %v1111 = vpop.f32.mrf.mxu0
        %v1112 = vadd.f32 0.0, %v1111
        %v1113 = vpop.f32.mrf.mxu0
        %v1114 = vpop.f32.mrf.mxu0
        %v1115 = vadd.f32 0.0, %v1114
        %v1116 = vpop.f32.mrf.mxu0
        %1117 = vmatprep.mubr.bf16.mxu0 0
        %1118 = vmatmul.mubr.bf16.gmra.mxu0 %v942
        %v1119 = vpop.f32.mrf.mxu0
        %v1120 = vadd.f32 0.0, %v1119
        %v1121 = vpop.f32.mrf.mxu0
        %v1122 = vpop.f32.mrf.mxu0
        %v1123 = vadd.f32 0.0, %v1122
        %v1124 = vpop.f32.mrf.mxu0
        %1125 = vmatprep.mubr.bf16.mxu0 0
        %1126 = vmatmul.mubr.bf16.gmra.mxu0 %v943
        %v1127 = vpop.f32.mrf.mxu0
        %v1128 = vadd.f32 0.0, %v1127
        %v1129 = vpop.f32.mrf.mxu0
        %v1130 = vpop.f32.mrf.mxu0
        %v1131 = vadd.f32 0.0, %v1130
        %v1132 = vpop.f32.mrf.mxu0
        %1133 = vmatprep.mubr.bf16.mxu0 0
        %1134 = vmatmul.mubr.bf16.gmra.mxu0 %v944
        %v1135 = vpop.f32.mrf.mxu0
        %v1136 = vadd.f32 0.0, %v1135
        %v1137 = vpop.f32.mrf.mxu0
        %v1138 = vpop.f32.mrf.mxu0
        %v1139 = vadd.f32 0.0, %v1138
        %v1140 = vpop.f32.mrf.mxu0
        %1141 = vmatprep.mubr.bf16.mxu0 0
        %1142 = vmatmul.mubr.bf16.gmra.mxu0 %v945
        %v1143 = vpop.f32.mrf.mxu0
        %v1144 = vadd.f32 0.0, %v1143
        %v1145 = vpop.f32.mrf.mxu0
        %v1146 = vpop.f32.mrf.mxu0
        %v1147 = vadd.f32 0.0, %v1146
        %v1148 = vpop.f32.mrf.mxu0
        %1149 = vmatprep.mubr.bf16.mxu0 0
        %1150 = vmatmul.mubr.bf16.gmra.mxu0 %v946
        %v1151 = vpop.f32.mrf.mxu0
        %v1152 = vadd.f32 0.0, %v1151
        %v1153 = vpop.f32.mrf.mxu0
        %v1154 = vpop.f32.mrf.mxu0
        %v1155 = vadd.f32 0.0, %v1154
        %v1156 = vpop.f32.mrf.mxu0
        %1157 = vmatprep.mubr.bf16.mxu0 0
        %1158 = vmatmul.mubr.bf16.gmra.mxu0 %v947
        %v1159 = vpop.f32.mrf.mxu0
        %v1160 = vadd.f32 0.0, %v1159
        %v1161 = vpop.f32.mrf.mxu0
        %v1162 = vpop.f32.mrf.mxu0
        %v1163 = vadd.f32 0.0, %v1162
        %v1164 = vpop.f32.mrf.mxu0
        %1165 = vmatprep.mubr.bf16.mxu0 0
        %1166 = vmatmul.mubr.bf16.gmra.mxu0 %v948
        %v1167 = vpop.f32.mrf.mxu0
        %v1168 = vadd.f32 0.0, %v1167
        %v1169 = vpop.f32.mrf.mxu0
        %v1170 = vpop.f32.mrf.mxu0
        %v1171 = vadd.f32 0.0, %v1170
        %v1172 = vpop.f32.mrf.mxu0
        %1173 = vdwg.mxu0
        %v1174 = vadd.f32 %v901, %v1048
        %v1175 = vadd.f32 %v902, %v1051
        %v1176 = vadd.f32 %v903, %v1056
        %v1177 = vadd.f32 %v904, %v1059
        %v1178 = vadd.f32 %v905, %v1064
        %v1179 = vadd.f32 %v906, %v1067
        %v1180 = vadd.f32 %v907, %v1072
        %v1181 = vadd.f32 %v908, %v1075
        %v1182 = vadd.f32 %v909, %v1080
        %v1183 = vadd.f32 %v910, %v1083
        %v1184 = vadd.f32 %v911, %v1088
        %v1185 = vadd.f32 %v912, %v1091
        %v1186 = vadd.f32 %v913, %v1096
        %v1187 = vadd.f32 %v914, %v1099
        %v1188 = vadd.f32 %v915, %v1104
        %v1189 = vadd.f32 %v916, %v1107
        %v1190 = vadd.f32 %v917, %v1112
        %v1191 = vadd.f32 %v918, %v1115
        %v1192 = vadd.f32 %v919, %v1120
        %v1193 = vadd.f32 %v920, %v1123
        %v1194 = vadd.f32 %v921, %v1128
        %v1195 = vadd.f32 %v922, %v1131
        %v1196 = vadd.f32 %v923, %v1136
        %v1197 = vadd.f32 %v924, %v1139
        %v1198 = vadd.f32 %v925, %v1144
        %v1199 = vadd.f32 %v926, %v1147
        %v1200 = vadd.f32 %v927, %v1152
        %v1201 = vadd.f32 %v928, %v1155
        %v1202 = vadd.f32 %v929, %v1160
        %v1203 = vadd.f32 %v930, %v1163
        %v1204 = vadd.f32 %v931, %v1168
        %v1205 = vadd.f32 %v932, %v1171
        %1206 = vst [vmem:[#allocation4] sm:$0xff] %v1174
        %1207 = vst [vmem:[#allocation4 + $0x8] sm:$0xff] %v1175
        %1208 = vst [vmem:[#allocation4 + $0x10] sm:$0xff] %v1176
        %1209 = vst [vmem:[#allocation4 + $0x18] sm:$0xff] %v1177
        %1210 = vst [vmem:[#allocation4 + $0x20] sm:$0xff] %v1178
        %1211 = vst [vmem:[#allocation4 + $0x28] sm:$0xff] %v1179
        %1212 = vst [vmem:[#allocation4 + $0x30] sm:$0xff] %v1180
        %1213 = vst [vmem:[#allocation4 + $0x38] sm:$0xff] %v1181
        %1214 = vst [vmem:[#allocation4 + $0x40] sm:$0xff] %v1182
        %1215 = vst [vmem:[#allocation4 + $0x48] sm:$0xff] %v1183
        %1216 = vst [vmem:[#allocation4 + $0x50] sm:$0xff] %v1184
        %1217 = vst [vmem:[#allocation4 + $0x58] sm:$0xff] %v1185
        %1218 = vst [vmem:[#allocation4 + $0x60] sm:$0xff] %v1186
        %1219 = vst [vmem:[#allocation4 + $0x68] sm:$0xff] %v1187
        %1220 = vst [vmem:[#allocation4 + $0x70] sm:$0xff] %v1188
        %1221 = vst [vmem:[#allocation4 + $0x78] sm:$0xff] %v1189
        %1222 = vst [vmem:[#allocation4 + $0x80] sm:$0xff] %v1190
        %1223 = vst [vmem:[#allocation4 + $0x88] sm:$0xff] %v1191
        %1224 = vst [vmem:[#allocation4 + $0x90] sm:$0xff] %v1192
        %1225 = vst [vmem:[#allocation4 + $0x98] sm:$0xff] %v1193
        %1226 = vst [vmem:[#allocation4 + $0xa0] sm:$0xff] %v1194
        %1227 = vst [vmem:[#allocation4 + $0xa8] sm:$0xff] %v1195
        %1228 = vst [vmem:[#allocation4 + $0xb0] sm:$0xff] %v1196
        %1229 = vst [vmem:[#allocation4 + $0xb8] sm:$0xff] %v1197
        %1230 = vst [vmem:[#allocation4 + $0xc0] sm:$0xff] %v1198
        %1231 = vst [vmem:[#allocation4 + $0xc8] sm:$0xff] %v1199
        %1232 = vst [vmem:[#allocation4 + $0xd0] sm:$0xff] %v1200
        %1233 = vst [vmem:[#allocation4 + $0xd8] sm:$0xff] %v1201
        %1234 = vst [vmem:[#allocation4 + $0xe0] sm:$0xff] %v1202
        %1235 = vst [vmem:[#allocation4 + $0xe8] sm:$0xff] %v1203
        %1236 = vst [vmem:[#allocation4 + $0xf0] sm:$0xff] %v1204
        %1237 = vst [vmem:[#allocation4 + $0xf8] sm:$0xff] %v1205
        %v1238 = vld [vmem:[#allocation2 + $0x8] sm:$0xff]
        %v1239 = vld [vmem:[#allocation2 + $0x10] sm:$0xff]
        %v1240 = vld [vmem:[#allocation2 + $0x18] sm:$0xff]
        %v1241 = vld [vmem:[#allocation2 + $0x20] sm:$0xff]
        %v1242 = vld [vmem:[#allocation2 + $0x28] sm:$0xff]
        %v1243 = vld [vmem:[#allocation2 + $0x30] sm:$0xff]
        %v1244 = vld [vmem:[#allocation2 + $0x38] sm:$0xff]
        %v1245 = vld [vmem:[#allocation2 + $0x40] sm:$0xff]
        %v1246 = vld [vmem:[#allocation2 + $0x48] sm:$0xff]
        %v1247 = vld [vmem:[#allocation2 + $0x50] sm:$0xff]
        %v1248 = vld [vmem:[#allocation2 + $0x58] sm:$0xff]
        %v1249 = vld [vmem:[#allocation2 + $0x60] sm:$0xff]
        %v1250 = vld [vmem:[#allocation2 + $0x68] sm:$0xff]
        %v1251 = vld [vmem:[#allocation2 + $0x70] sm:$0xff]
        %v1252 = vld [vmem:[#allocation2 + $0x78] sm:$0xff]
        %v1253 = vld [vmem:[#allocation2 + $0x80] sm:$0xff]
        %v1254 = vld [vmem:[#allocation2 + $0x88] sm:$0xff]
        %v1255 = vld [vmem:[#allocation2 + $0x90] sm:$0xff]
        %v1256 = vld [vmem:[#allocation2 + $0x98] sm:$0xff]
        %v1257 = vld [vmem:[#allocation2 + $0xa0] sm:$0xff]
        %v1258 = vld [vmem:[#allocation2 + $0xa8] sm:$0xff]
        %v1259 = vld [vmem:[#allocation2 + $0xb0] sm:$0xff]
        %v1260 = vld [vmem:[#allocation2 + $0xb8] sm:$0xff]
        %v1261 = vld [vmem:[#allocation2 + $0xc0] sm:$0xff]
        %v1262 = vld [vmem:[#allocation2 + $0xc8] sm:$0xff]
        %v1263 = vld [vmem:[#allocation2 + $0xd0] sm:$0xff]
        %v1264 = vld [vmem:[#allocation2 + $0xd8] sm:$0xff]
        %v1265 = vld [vmem:[#allocation2 + $0xe0] sm:$0xff]
        %v1266 = vld [vmem:[#allocation2 + $0xe8] sm:$0xff]
        %v1267 = vld [vmem:[#allocation2 + $0xf0] sm:$0xff]
        %v1268 = vld [vmem:[#allocation2 + $0xf8] sm:$0xff]
        %v1269 = vld [vmem:[#allocation2 + $0x100] sm:$0xff]
        %v1270 = vld [vmem:[#allocation4] sm:$0xff]
        %v1271 = vld [vmem:[#allocation4 + $0x8] sm:$0xff]
        %v1272 = vld [vmem:[#allocation4 + $0x10] sm:$0xff]
        %v1273 = vld [vmem:[#allocation4 + $0x18] sm:$0xff]
        %v1274 = vld [vmem:[#allocation4 + $0x20] sm:$0xff]
        %v1275 = vld [vmem:[#allocation4 + $0x28] sm:$0xff]
        %v1276 = vld [vmem:[#allocation4 + $0x30] sm:$0xff]
        %v1277 = vld [vmem:[#allocation4 + $0x38] sm:$0xff]
        %v1278 = vld [vmem:[#allocation4 + $0x40] sm:$0xff]
        %v1279 = vld [vmem:[#allocation4 + $0x48] sm:$0xff]
        %v1280 = vld [vmem:[#allocation4 + $0x50] sm:$0xff]
        %v1281 = vld [vmem:[#allocation4 + $0x58] sm:$0xff]
        %v1282 = vld [vmem:[#allocation4 + $0x60] sm:$0xff]
        %v1283 = vld [vmem:[#allocation4 + $0x68] sm:$0xff]
        %v1284 = vld [vmem:[#allocation4 + $0x70] sm:$0xff]
        %v1285 = vld [vmem:[#allocation4 + $0x78] sm:$0xff]
        %v1286 = vld [vmem:[#allocation4 + $0x80] sm:$0xff]
        %v1287 = vld [vmem:[#allocation4 + $0x88] sm:$0xff]
        %v1288 = vld [vmem:[#allocation4 + $0x90] sm:$0xff]
        %v1289 = vld [vmem:[#allocation4 + $0x98] sm:$0xff]
        %v1290 = vld [vmem:[#allocation4 + $0xa0] sm:$0xff]
        %v1291 = vld [vmem:[#allocation4 + $0xa8] sm:$0xff]
        %v1292 = vld [vmem:[#allocation4 + $0xb0] sm:$0xff]
        %v1293 = vld [vmem:[#allocation4 + $0xb8] sm:$0xff]
        %v1294 = vld [vmem:[#allocation4 + $0xc0] sm:$0xff]
        %v1295 = vld [vmem:[#allocation4 + $0xc8] sm:$0xff]
        %v1296 = vld [vmem:[#allocation4 + $0xd0] sm:$0xff]
        %v1297 = vld [vmem:[#allocation4 + $0xd8] sm:$0xff]
        %v1298 = vld [vmem:[#allocation4 + $0xe0] sm:$0xff]
        %v1299 = vld [vmem:[#allocation4 + $0xe8] sm:$0xff]
        %v1300 = vld [vmem:[#allocation4 + $0xf0] sm:$0xff]
        %v1301 = vld [vmem:[#allocation4 + $0xf8] sm:$0xff]
        %v1302 = vpack.c.bf16 %v1239, %v1238
        %v1303 = vpack.c.bf16 %v1241, %v1240
        %v1304 = vpack.c.bf16 %v1243, %v1242
        %v1305 = vpack.c.bf16 %v1245, %v1244
        %v1306 = vpack.c.bf16 %v1247, %v1246
        %v1307 = vpack.c.bf16 %v1249, %v1248
        %v1308 = vpack.c.bf16 %v1251, %v1250
        %v1309 = vpack.c.bf16 %v1253, %v1252
        %v1310 = vpack.c.bf16 %v1255, %v1254
        %v1311 = vpack.c.bf16 %v1257, %v1256
        %v1312 = vpack.c.bf16 %v1259, %v1258
        %v1313 = vpack.c.bf16 %v1261, %v1260
        %v1314 = vpack.c.bf16 %v1263, %v1262
        %v1315 = vpack.c.bf16 %v1265, %v1264
        %v1316 = vpack.c.bf16 %v1267, %v1266
        %v1317 = vpack.c.bf16 %v1269, %v1268
        %s1318 = scalar_lea.vmem [#allocation8], 64
        %v1319 = vld [vmem:[%s1318] sm:$0xf]
        %v1320 = vld [vmem:[%s1318 + $0x4] sm:$0xf]
        %v1321 = vld [vmem:[%s1318 + $0x8] sm:$0xf]
        %v1322 = vld [vmem:[%s1318 + $0xc] sm:$0xf]
        %v1323 = vld [vmem:[%s1318 + $0x10] sm:$0xf]
        %v1324 = vld [vmem:[%s1318 + $0x14] sm:$0xf]
        %v1325 = vld [vmem:[%s1318 + $0x18] sm:$0xf]
        %v1326 = vld [vmem:[%s1318 + $0x1c] sm:$0xf]
        %v1327 = vld [vmem:[%s1318 + $0x20] sm:$0xf]
        %v1328 = vld [vmem:[%s1318 + $0x24] sm:$0xf]
        %v1329 = vld [vmem:[%s1318 + $0x28] sm:$0xf]
        %v1330 = vld [vmem:[%s1318 + $0x2c] sm:$0xf]
        %v1331 = vld [vmem:[%s1318 + $0x30] sm:$0xf]
        %v1332 = vld [vmem:[%s1318 + $0x34] sm:$0xf]
        %v1333 = vld [vmem:[%s1318 + $0x38] sm:$0xf]
        %v1334 = vld [vmem:[%s1318 + $0x3c] sm:$0xf]
        %v1351 = vunpack.c.l.b16 %v1319
        %v1352 = vunpack.c.l.b16 %v1320
        %v1353 = vunpack.c.l.b16 %v1321
        %v1354 = vunpack.c.l.b16 %v1322
        %v1355 = vunpack.c.l.b16 %v1323
        %v1356 = vunpack.c.l.b16 %v1324
        %v1357 = vunpack.c.l.b16 %v1325
        %v1358 = vunpack.c.l.b16 %v1326
        %v1359 = vunpack.c.l.b16 %v1327
        %v1360 = vunpack.c.l.b16 %v1328
        %v1361 = vunpack.c.l.b16 %v1329
        %v1362 = vunpack.c.l.b16 %v1330
        %v1363 = vunpack.c.l.b16 %v1331
        %v1364 = vunpack.c.l.b16 %v1332
        %v1365 = vunpack.c.l.b16 %v1333
        %v1366 = vunpack.c.l.b16 %v1334
        %v1367 = vpack.c.b16 %v1352, %v1351
        %v1368 = vpack.c.b16 %v1354, %v1353
        %v1369 = vpack.c.b16 %v1356, %v1355
        %v1370 = vpack.c.b16 %v1358, %v1357
        %v1371 = vpack.c.b16 %v1360, %v1359
        %v1372 = vpack.c.b16 %v1362, %v1361
        %v1373 = vpack.c.b16 %v1364, %v1363
        %v1374 = vpack.c.b16 %v1366, %v1365
        %1383 = vmatprep.subr.bf16.mxu0 0
        %1384 = vmatpush1.bf16.msra.mxu0 %v1374
        %1385 = vmatprep.subr.bf16.mxu0 0
        %1386 = vmatpush1.bf16.msra.mxu0 %v1373
        %1387 = vmatprep.subr.bf16.mxu0 0
        %1388 = vmatpush1.bf16.msra.mxu0 %v1372
        %1389 = vmatprep.subr.bf16.mxu0 0
        %1390 = vmatpush1.bf16.msra.mxu0 %v1371
        %1391 = vmatprep.subr.bf16.mxu0 0
        %1392 = vmatpush1.bf16.msra.mxu0 %v1370
        %1393 = vmatprep.subr.bf16.mxu0 0
        %1394 = vmatpush1.bf16.msra.mxu0 %v1369
        %1395 = vmatprep.subr.bf16.mxu0 0
        %1396 = vmatpush1.bf16.msra.mxu0 %v1368
        %1397 = vmatprep.subr.bf16.mxu0 0
        %1398 = vmatpush1.bf16.msra.mxu0 %v1367
        %1399 = vmatprep.subr.bf16.mxu0 0
        %1400 = vmatpush2.bf16.msra.mxu0 0
        %1401 = vmatprep.subr.bf16.mxu0 0
        %1402 = vmatpush2.bf16.msra.mxu0 0
        %1403 = vmatprep.subr.bf16.mxu0 0
        %1404 = vmatpush2.bf16.msra.mxu0 0
        %1405 = vmatprep.subr.bf16.mxu0 0
        %1406 = vmatpush2.bf16.msra.mxu0 0
        %1407 = vmatprep.subr.bf16.mxu0 0
        %1408 = vmatpush2.bf16.msra.mxu0 0
        %1409 = vmatprep.subr.bf16.mxu0 0
        %1410 = vmatpush2.bf16.msra.mxu0 0
        %1411 = vmatprep.subr.bf16.mxu0 0
        %1412 = vmatpush2.bf16.msra.mxu0 0
        %1413 = vmatprep.subr.bf16.mxu0 0
        %1414 = vmatpush2.bf16.msra.mxu0 0
        %1415 = vmatprep.mubr.bf16.mxu0 0
        %1416 = vmatmul.mubr.bf16.gmra.mxu0 %v1302
        %v1417 = vpop.f32.mrf.mxu0
        %v1418 = vadd.f32 0.0, %v1417
        %v1419 = vpop.f32.mrf.mxu0
        %v1420 = vpop.f32.mrf.mxu0
        %v1421 = vadd.f32 0.0, %v1420
        %v1422 = vpop.f32.mrf.mxu0
        %1423 = vmatprep.mubr.bf16.mxu0 0
        %1424 = vmatmul.mubr.bf16.gmra.mxu0 %v1303
        %v1425 = vpop.f32.mrf.mxu0
        %v1426 = vadd.f32 0.0, %v1425
        %v1427 = vpop.f32.mrf.mxu0
        %v1428 = vpop.f32.mrf.mxu0
        %v1429 = vadd.f32 0.0, %v1428
        %v1430 = vpop.f32.mrf.mxu0
        %1431 = vmatprep.mubr.bf16.mxu0 0
        %1432 = vmatmul.mubr.bf16.gmra.mxu0 %v1304
        %v1433 = vpop.f32.mrf.mxu0
        %v1434 = vadd.f32 0.0, %v1433
        %v1435 = vpop.f32.mrf.mxu0
        %v1436 = vpop.f32.mrf.mxu0
        %v1437 = vadd.f32 0.0, %v1436
        %v1438 = vpop.f32.mrf.mxu0
        %1439 = vmatprep.mubr.bf16.mxu0 0
        %1440 = vmatmul.mubr.bf16.gmra.mxu0 %v1305
        %v1441 = vpop.f32.mrf.mxu0
        %v1442 = vadd.f32 0.0, %v1441
        %v1443 = vpop.f32.mrf.mxu0
        %v1444 = vpop.f32.mrf.mxu0
        %v1445 = vadd.f32 0.0, %v1444
        %v1446 = vpop.f32.mrf.mxu0
        %1447 = vmatprep.mubr.bf16.mxu0 0
        %1448 = vmatmul.mubr.bf16.gmra.mxu0 %v1306
        %v1449 = vpop.f32.mrf.mxu0
        %v1450 = vadd.f32 0.0, %v1449
        %v1451 = vpop.f32.mrf.mxu0
        %v1452 = vpop.f32.mrf.mxu0
        %v1453 = vadd.f32 0.0, %v1452
        %v1454 = vpop.f32.mrf.mxu0
        %1455 = vmatprep.mubr.bf16.mxu0 0
        %1456 = vmatmul.mubr.bf16.gmra.mxu0 %v1307
        %v1457 = vpop.f32.mrf.mxu0
        %v1458 = vadd.f32 0.0, %v1457
        %v1459 = vpop.f32.mrf.mxu0
        %v1460 = vpop.f32.mrf.mxu0
        %v1461 = vadd.f32 0.0, %v1460
        %v1462 = vpop.f32.mrf.mxu0
        %1463 = vmatprep.mubr.bf16.mxu0 0
        %1464 = vmatmul.mubr.bf16.gmra.mxu0 %v1308
        %v1465 = vpop.f32.mrf.mxu0
        %v1466 = vadd.f32 0.0, %v1465
        %v1467 = vpop.f32.mrf.mxu0
        %v1468 = vpop.f32.mrf.mxu0
        %v1469 = vadd.f32 0.0, %v1468
        %v1470 = vpop.f32.mrf.mxu0
        %1471 = vmatprep.mubr.bf16.mxu0 0
        %1472 = vmatmul.mubr.bf16.gmra.mxu0 %v1309
        %v1473 = vpop.f32.mrf.mxu0
        %v1474 = vadd.f32 0.0, %v1473
        %v1475 = vpop.f32.mrf.mxu0
        %v1476 = vpop.f32.mrf.mxu0
        %v1477 = vadd.f32 0.0, %v1476
        %v1478 = vpop.f32.mrf.mxu0
        %1479 = vmatprep.mubr.bf16.mxu0 0
        %1480 = vmatmul.mubr.bf16.gmra.mxu0 %v1310
        %v1481 = vpop.f32.mrf.mxu0
        %v1482 = vadd.f32 0.0, %v1481
        %v1483 = vpop.f32.mrf.mxu0
        %v1484 = vpop.f32.mrf.mxu0
        %v1485 = vadd.f32 0.0, %v1484
        %v1486 = vpop.f32.mrf.mxu0
        %1487 = vmatprep.mubr.bf16.mxu0 0
        %1488 = vmatmul.mubr.bf16.gmra.mxu0 %v1311
        %v1489 = vpop.f32.mrf.mxu0
        %v1490 = vadd.f32 0.0, %v1489
        %v1491 = vpop.f32.mrf.mxu0
        %v1492 = vpop.f32.mrf.mxu0
        %v1493 = vadd.f32 0.0, %v1492
        %v1494 = vpop.f32.mrf.mxu0
        %1495 = vmatprep.mubr.bf16.mxu0 0
        %1496 = vmatmul.mubr.bf16.gmra.mxu0 %v1312
        %v1497 = vpop.f32.mrf.mxu0
        %v1498 = vadd.f32 0.0, %v1497
        %v1499 = vpop.f32.mrf.mxu0
        %v1500 = vpop.f32.mrf.mxu0
        %v1501 = vadd.f32 0.0, %v1500
        %v1502 = vpop.f32.mrf.mxu0
        %1503 = vmatprep.mubr.bf16.mxu0 0
        %1504 = vmatmul.mubr.bf16.gmra.mxu0 %v1313
        %v1505 = vpop.f32.mrf.mxu0
        %v1506 = vadd.f32 0.0, %v1505
        %v1507 = vpop.f32.mrf.mxu0
        %v1508 = vpop.f32.mrf.mxu0
        %v1509 = vadd.f32 0.0, %v1508
        %v1510 = vpop.f32.mrf.mxu0
        %1511 = vmatprep.mubr.bf16.mxu0 0
        %1512 = vmatmul.mubr.bf16.gmra.mxu0 %v1314
        %v1513 = vpop.f32.mrf.mxu0
        %v1514 = vadd.f32 0.0, %v1513
        %v1515 = vpop.f32.mrf.mxu0
        %v1516 = vpop.f32.mrf.mxu0
        %v1517 = vadd.f32 0.0, %v1516
        %v1518 = vpop.f32.mrf.mxu0
        %1519 = vmatprep.mubr.bf16.mxu0 0
        %1520 = vmatmul.mubr.bf16.gmra.mxu0 %v1315
        %v1521 = vpop.f32.mrf.mxu0
        %v1522 = vadd.f32 0.0, %v1521
        %v1523 = vpop.f32.mrf.mxu0
        %v1524 = vpop.f32.mrf.mxu0
        %v1525 = vadd.f32 0.0, %v1524
        %v1526 = vpop.f32.mrf.mxu0
        %1527 = vmatprep.mubr.bf16.mxu0 0
        %1528 = vmatmul.mubr.bf16.gmra.mxu0 %v1316
        %v1529 = vpop.f32.mrf.mxu0
        %v1530 = vadd.f32 0.0, %v1529
        %v1531 = vpop.f32.mrf.mxu0
        %v1532 = vpop.f32.mrf.mxu0
        %v1533 = vadd.f32 0.0, %v1532
        %v1534 = vpop.f32.mrf.mxu0
        %1535 = vmatprep.mubr.bf16.mxu0 0
        %1536 = vmatmul.mubr.bf16.gmra.mxu0 %v1317
        %v1537 = vpop.f32.mrf.mxu0
        %v1538 = vadd.f32 0.0, %v1537
        %v1539 = vpop.f32.mrf.mxu0
        %v1540 = vpop.f32.mrf.mxu0
        %v1541 = vadd.f32 0.0, %v1540
        %v1542 = vpop.f32.mrf.mxu0
        %1543 = vdwg.mxu0
        %v1544 = vadd.f32 %v1270, %v1418
        %v1545 = vadd.f32 %v1271, %v1421
        %v1546 = vadd.f32 %v1272, %v1426
        %v1547 = vadd.f32 %v1273, %v1429
        %v1548 = vadd.f32 %v1274, %v1434
        %v1549 = vadd.f32 %v1275, %v1437
        %v1550 = vadd.f32 %v1276, %v1442
        %v1551 = vadd.f32 %v1277, %v1445
        %v1552 = vadd.f32 %v1278, %v1450
        %v1553 = vadd.f32 %v1279, %v1453
        %v1554 = vadd.f32 %v1280, %v1458
        %v1555 = vadd.f32 %v1281, %v1461
        %v1556 = vadd.f32 %v1282, %v1466
        %v1557 = vadd.f32 %v1283, %v1469
        %v1558 = vadd.f32 %v1284, %v1474
        %v1559 = vadd.f32 %v1285, %v1477
        %v1560 = vadd.f32 %v1286, %v1482
        %v1561 = vadd.f32 %v1287, %v1485
        %v1562 = vadd.f32 %v1288, %v1490
        %v1563 = vadd.f32 %v1289, %v1493
        %v1564 = vadd.f32 %v1290, %v1498
        %v1565 = vadd.f32 %v1291, %v1501
        %v1566 = vadd.f32 %v1292, %v1506
        %v1567 = vadd.f32 %v1293, %v1509
        %v1568 = vadd.f32 %v1294, %v1514
        %v1569 = vadd.f32 %v1295, %v1517
        %v1570 = vadd.f32 %v1296, %v1522
        %v1571 = vadd.f32 %v1297, %v1525
        %v1572 = vadd.f32 %v1298, %v1530
        %v1573 = vadd.f32 %v1299, %v1533
        %v1574 = vadd.f32 %v1300, %v1538
        %v1575 = vadd.f32 %v1301, %v1541
        %1576 = vst [vmem:[#allocation4] sm:$0xff] %v1544
        %1577 = vst [vmem:[#allocation4 + $0x8] sm:$0xff] %v1545
        %1578 = vst [vmem:[#allocation4 + $0x10] sm:$0xff] %v1546
        %1579 = vst [vmem:[#allocation4 + $0x18] sm:$0xff] %v1547
        %1580 = vst [vmem:[#allocation4 + $0x20] sm:$0xff] %v1548
        %1581 = vst [vmem:[#allocation4 + $0x28] sm:$0xff] %v1549
        %1582 = vst [vmem:[#allocation4 + $0x30] sm:$0xff] %v1550
        %1583 = vst [vmem:[#allocation4 + $0x38] sm:$0xff] %v1551
        %1584 = vst [vmem:[#allocation4 + $0x40] sm:$0xff] %v1552
        %1585 = vst [vmem:[#allocation4 + $0x48] sm:$0xff] %v1553
        %1586 = vst [vmem:[#allocation4 + $0x50] sm:$0xff] %v1554
        %1587 = vst [vmem:[#allocation4 + $0x58] sm:$0xff] %v1555
        %1588 = vst [vmem:[#allocation4 + $0x60] sm:$0xff] %v1556
        %1589 = vst [vmem:[#allocation4 + $0x68] sm:$0xff] %v1557
        %1590 = vst [vmem:[#allocation4 + $0x70] sm:$0xff] %v1558
        %1591 = vst [vmem:[#allocation4 + $0x78] sm:$0xff] %v1559
        %1592 = vst [vmem:[#allocation4 + $0x80] sm:$0xff] %v1560
        %1593 = vst [vmem:[#allocation4 + $0x88] sm:$0xff] %v1561
        %1594 = vst [vmem:[#allocation4 + $0x90] sm:$0xff] %v1562
        %1595 = vst [vmem:[#allocation4 + $0x98] sm:$0xff] %v1563
        %1596 = vst [vmem:[#allocation4 + $0xa0] sm:$0xff] %v1564
        %1597 = vst [vmem:[#allocation4 + $0xa8] sm:$0xff] %v1565
        %1598 = vst [vmem:[#allocation4 + $0xb0] sm:$0xff] %v1566
        %1599 = vst [vmem:[#allocation4 + $0xb8] sm:$0xff] %v1567
        %1600 = vst [vmem:[#allocation4 + $0xc0] sm:$0xff] %v1568
        %1601 = vst [vmem:[#allocation4 + $0xc8] sm:$0xff] %v1569
        %1602 = vst [vmem:[#allocation4 + $0xd0] sm:$0xff] %v1570
        %1603 = vst [vmem:[#allocation4 + $0xd8] sm:$0xff] %v1571
        %1604 = vst [vmem:[#allocation4 + $0xe0] sm:$0xff] %v1572
        %1605 = vst [vmem:[#allocation4 + $0xe8] sm:$0xff] %v1573
        %1606 = vst [vmem:[#allocation4 + $0xf0] sm:$0xff] %v1574
        %1607 = vst [vmem:[#allocation4 + $0xf8] sm:$0xff] %v1575
        %v1608 = vld [vmem:[#allocation2 + $0x9] sm:$0xff]
        %v1609 = vld [vmem:[#allocation2 + $0x11] sm:$0xff]
        %v1610 = vld [vmem:[#allocation2 + $0x19] sm:$0xff]
        %v1611 = vld [vmem:[#allocation2 + $0x21] sm:$0xff]
        %v1612 = vld [vmem:[#allocation2 + $0x29] sm:$0xff]
        %v1613 = vld [vmem:[#allocation2 + $0x31] sm:$0xff]
        %v1614 = vld [vmem:[#allocation2 + $0x39] sm:$0xff]
        %v1615 = vld [vmem:[#allocation2 + $0x41] sm:$0xff]
        %v1616 = vld [vmem:[#allocation2 + $0x49] sm:$0xff]
        %v1617 = vld [vmem:[#allocation2 + $0x51] sm:$0xff]
        %v1618 = vld [vmem:[#allocation2 + $0x59] sm:$0xff]
        %v1619 = vld [vmem:[#allocation2 + $0x61] sm:$0xff]
        %v1620 = vld [vmem:[#allocation2 + $0x69] sm:$0xff]
        %v1621 = vld [vmem:[#allocation2 + $0x71] sm:$0xff]
        %v1622 = vld [vmem:[#allocation2 + $0x79] sm:$0xff]
        %v1623 = vld [vmem:[#allocation2 + $0x81] sm:$0xff]
        %v1624 = vld [vmem:[#allocation2 + $0x89] sm:$0xff]
        %v1625 = vld [vmem:[#allocation2 + $0x91] sm:$0xff]
        %v1626 = vld [vmem:[#allocation2 + $0x99] sm:$0xff]
        %v1627 = vld [vmem:[#allocation2 + $0xa1] sm:$0xff]
        %v1628 = vld [vmem:[#allocation2 + $0xa9] sm:$0xff]
        %v1629 = vld [vmem:[#allocation2 + $0xb1] sm:$0xff]
        %v1630 = vld [vmem:[#allocation2 + $0xb9] sm:$0xff]
        %v1631 = vld [vmem:[#allocation2 + $0xc1] sm:$0xff]
        %v1632 = vld [vmem:[#allocation2 + $0xc9] sm:$0xff]
        %v1633 = vld [vmem:[#allocation2 + $0xd1] sm:$0xff]
        %v1634 = vld [vmem:[#allocation2 + $0xd9] sm:$0xff]
        %v1635 = vld [vmem:[#allocation2 + $0xe1] sm:$0xff]
        %v1636 = vld [vmem:[#allocation2 + $0xe9] sm:$0xff]
        %v1637 = vld [vmem:[#allocation2 + $0xf1] sm:$0xff]
        %v1638 = vld [vmem:[#allocation2 + $0xf9] sm:$0xff]
        %v1639 = vld [vmem:[#allocation2 + $0x101] sm:$0xff]
        %vm1640 = vcmp.le.s32.totalorder %v805, 14
        %vm1641 = vcmp.le.s32.totalorder %v806, 14
        %vm1642 = vcmp.le.s32.totalorder %v807, 14
        %vm1643 = vcmp.le.s32.totalorder %v808, 14
        %vm1644 = vcmp.le.s32.totalorder %v809, 14
        %vm1645 = vcmp.le.s32.totalorder %v810, 14
        %vm1646 = vcmp.le.s32.totalorder %v811, 14
        %vm1647 = vcmp.le.s32.totalorder %v812, 14
        %vm1648 = vcmp.le.s32.totalorder %v813, 14
        %vm1649 = vcmp.le.s32.totalorder %v814, 14
        %vm1650 = vcmp.le.s32.totalorder %v815, 14
        %vm1651 = vcmp.le.s32.totalorder %v816, 14
        %vm1652 = vcmp.le.s32.totalorder %v817, 14
        %vm1653 = vcmp.le.s32.totalorder %v818, 14
        %vm1654 = vcmp.le.s32.totalorder %v819, 14
        %vm1655 = vcmp.le.s32.totalorder %v820, 14
        %vm1656 = vcmp.le.s32.totalorder %v821, 14
        %vm1657 = vcmp.le.s32.totalorder %v822, 14
        %vm1658 = vcmp.le.s32.totalorder %v823, 14
        %vm1659 = vcmp.le.s32.totalorder %v824, 14
        %vm1660 = vcmp.le.s32.totalorder %v825, 14
        %vm1661 = vcmp.le.s32.totalorder %v826, 14
        %vm1662 = vcmp.le.s32.totalorder %v827, 14
        %vm1663 = vcmp.le.s32.totalorder %v828, 14
        %vm1664 = vcmp.le.s32.totalorder %v829, 14
        %vm1665 = vcmp.le.s32.totalorder %v830, 14
        %vm1666 = vcmp.le.s32.totalorder %v831, 14
        %vm1667 = vcmp.le.s32.totalorder %v832, 14
        %vm1668 = vcmp.le.s32.totalorder %v833, 14
        %vm1669 = vcmp.le.s32.totalorder %v834, 14
        %vm1670 = vcmp.le.s32.totalorder %v835, 14
        %vm1671 = vcmp.le.s32.totalorder %v836, 14
        %v1672 = vsel %vm1640, %v1608, 0.0
        %v1673 = vsel %vm1641, %v1609, 0.0
        %v1674 = vsel %vm1642, %v1610, 0.0
        %v1675 = vsel %vm1643, %v1611, 0.0
        %v1676 = vsel %vm1644, %v1612, 0.0
        %v1677 = vsel %vm1645, %v1613, 0.0
        %v1678 = vsel %vm1646, %v1614, 0.0
        %v1679 = vsel %vm1647, %v1615, 0.0
        %v1680 = vsel %vm1648, %v1616, 0.0
        %v1681 = vsel %vm1649, %v1617, 0.0
        %v1682 = vsel %vm1650, %v1618, 0.0
        %v1683 = vsel %vm1651, %v1619, 0.0
        %v1684 = vsel %vm1652, %v1620, 0.0
        %v1685 = vsel %vm1653, %v1621, 0.0
        %v1686 = vsel %vm1654, %v1622, 0.0
        %v1687 = vsel %vm1655, %v1623, 0.0
        %v1688 = vsel %vm1656, %v1624, 0.0
        %v1689 = vsel %vm1657, %v1625, 0.0
        %v1690 = vsel %vm1658, %v1626, 0.0
        %v1691 = vsel %vm1659, %v1627, 0.0
        %v1692 = vsel %vm1660, %v1628, 0.0
        %v1693 = vsel %vm1661, %v1629, 0.0
        %v1694 = vsel %vm1662, %v1630, 0.0
        %v1695 = vsel %vm1663, %v1631, 0.0
        %v1696 = vsel %vm1664, %v1632, 0.0
        %v1697 = vsel %vm1665, %v1633, 0.0
        %v1698 = vsel %vm1666, %v1634, 0.0
        %v1699 = vsel %vm1667, %v1635, 0.0
        %v1700 = vsel %vm1668, %v1636, 0.0
        %v1701 = vsel %vm1669, %v1637, 0.0
        %v1702 = vsel %vm1670, %v1638, 0.0
        %v1703 = vsel %vm1671, %v1639, 0.0
        %v1704 = vld [vmem:[#allocation4] sm:$0xff]
        %v1705 = vld [vmem:[#allocation4 + $0x8] sm:$0xff]
        %v1706 = vld [vmem:[#allocation4 + $0x10] sm:$0xff]
        %v1707 = vld [vmem:[#allocation4 + $0x18] sm:$0xff]
        %v1708 = vld [vmem:[#allocation4 + $0x20] sm:$0xff]
        %v1709 = vld [vmem:[#allocation4 + $0x28] sm:$0xff]
        %v1710 = vld [vmem:[#allocation4 + $0x30] sm:$0xff]
        %v1711 = vld [vmem:[#allocation4 + $0x38] sm:$0xff]
        %v1712 = vld [vmem:[#allocation4 + $0x40] sm:$0xff]
        %v1713 = vld [vmem:[#allocation4 + $0x48] sm:$0xff]
        %v1714 = vld [vmem:[#allocation4 + $0x50] sm:$0xff]
        %v1715 = vld [vmem:[#allocation4 + $0x58] sm:$0xff]
        %v1716 = vld [vmem:[#allocation4 + $0x60] sm:$0xff]
        %v1717 = vld [vmem:[#allocation4 + $0x68] sm:$0xff]
        %v1718 = vld [vmem:[#allocation4 + $0x70] sm:$0xff]
        %v1719 = vld [vmem:[#allocation4 + $0x78] sm:$0xff]
        %v1720 = vld [vmem:[#allocation4 + $0x80] sm:$0xff]
        %v1721 = vld [vmem:[#allocation4 + $0x88] sm:$0xff]
        %v1722 = vld [vmem:[#allocation4 + $0x90] sm:$0xff]
        %v1723 = vld [vmem:[#allocation4 + $0x98] sm:$0xff]
        %v1724 = vld [vmem:[#allocation4 + $0xa0] sm:$0xff]
        %v1725 = vld [vmem:[#allocation4 + $0xa8] sm:$0xff]
        %v1726 = vld [vmem:[#allocation4 + $0xb0] sm:$0xff]
        %v1727 = vld [vmem:[#allocation4 + $0xb8] sm:$0xff]
        %v1728 = vld [vmem:[#allocation4 + $0xc0] sm:$0xff]
        %v1729 = vld [vmem:[#allocation4 + $0xc8] sm:$0xff]
        %v1730 = vld [vmem:[#allocation4 + $0xd0] sm:$0xff]
        %v1731 = vld [vmem:[#allocation4 + $0xd8] sm:$0xff]
        %v1732 = vld [vmem:[#allocation4 + $0xe0] sm:$0xff]
        %v1733 = vld [vmem:[#allocation4 + $0xe8] sm:$0xff]
        %v1734 = vld [vmem:[#allocation4 + $0xf0] sm:$0xff]
        %v1735 = vld [vmem:[#allocation4 + $0xf8] sm:$0xff]
        %v1736 = vpack.c.bf16 %v1673, %v1672
        %v1737 = vpack.c.bf16 %v1675, %v1674
        %v1738 = vpack.c.bf16 %v1677, %v1676
        %v1739 = vpack.c.bf16 %v1679, %v1678
        %v1740 = vpack.c.bf16 %v1681, %v1680
        %v1741 = vpack.c.bf16 %v1683, %v1682
        %v1742 = vpack.c.bf16 %v1685, %v1684
        %v1743 = vpack.c.bf16 %v1687, %v1686
        %v1744 = vpack.c.bf16 %v1689, %v1688
        %v1745 = vpack.c.bf16 %v1691, %v1690
        %v1746 = vpack.c.bf16 %v1693, %v1692
        %v1747 = vpack.c.bf16 %v1695, %v1694
        %v1748 = vpack.c.bf16 %v1697, %v1696
        %v1749 = vpack.c.bf16 %v1699, %v1698
        %v1750 = vpack.c.bf16 %v1701, %v1700
        %v1751 = vpack.c.bf16 %v1703, %v1702
        %s1752 = scalar_lea.vmem [#allocation8], 128
        %v1753 = vld [vmem:[%s1752] sm:$0xf]
        %v1754 = vld [vmem:[%s1752 + $0x4] sm:$0xf]
        %v1755 = vld [vmem:[%s1752 + $0x8] sm:$0xf]
        %v1756 = vld [vmem:[%s1752 + $0xc] sm:$0xf]
        %v1757 = vld [vmem:[%s1752 + $0x10] sm:$0xf]
        %v1758 = vld [vmem:[%s1752 + $0x14] sm:$0xf]
        %v1759 = vld [vmem:[%s1752 + $0x18] sm:$0xf]
        %v1760 = vld [vmem:[%s1752 + $0x1c] sm:$0xf]
        %v1761 = vld [vmem:[%s1752 + $0x20] sm:$0xf]
        %v1762 = vld [vmem:[%s1752 + $0x24] sm:$0xf]
        %v1763 = vld [vmem:[%s1752 + $0x28] sm:$0xf]
        %v1764 = vld [vmem:[%s1752 + $0x2c] sm:$0xf]
        %v1765 = vld [vmem:[%s1752 + $0x30] sm:$0xf]
        %v1766 = vld [vmem:[%s1752 + $0x34] sm:$0xf]
        %v1767 = vld [vmem:[%s1752 + $0x38] sm:$0xf]
        %v1768 = vld [vmem:[%s1752 + $0x3c] sm:$0xf]
        %v1785 = vunpack.c.l.b16 %v1753
        %v1786 = vunpack.c.l.b16 %v1754
        %v1787 = vunpack.c.l.b16 %v1755
        %v1788 = vunpack.c.l.b16 %v1756
        %v1789 = vunpack.c.l.b16 %v1757
        %v1790 = vunpack.c.l.b16 %v1758
        %v1791 = vunpack.c.l.b16 %v1759
        %v1792 = vunpack.c.l.b16 %v1760
        %v1793 = vunpack.c.l.b16 %v1761
        %v1794 = vunpack.c.l.b16 %v1762
        %v1795 = vunpack.c.l.b16 %v1763
        %v1796 = vunpack.c.l.b16 %v1764
        %v1797 = vunpack.c.l.b16 %v1765
        %v1798 = vunpack.c.l.b16 %v1766
        %v1799 = vunpack.c.l.b16 %v1767
        %v1800 = vunpack.c.l.b16 %v1768
        %v1801 = vpack.c.b16 %v1786, %v1785
        %v1802 = vpack.c.b16 %v1788, %v1787
        %v1803 = vpack.c.b16 %v1790, %v1789
        %v1804 = vpack.c.b16 %v1792, %v1791
        %v1805 = vpack.c.b16 %v1794, %v1793
        %v1806 = vpack.c.b16 %v1796, %v1795
        %v1807 = vpack.c.b16 %v1798, %v1797
        %v1808 = vpack.c.b16 %v1800, %v1799
        %1817 = vmatprep.subr.bf16.mxu0 0
        %1818 = vmatpush1.bf16.msra.mxu0 %v1808
        %1819 = vmatprep.subr.bf16.mxu0 0
        %1820 = vmatpush1.bf16.msra.mxu0 %v1807
        %1821 = vmatprep.subr.bf16.mxu0 0
        %1822 = vmatpush1.bf16.msra.mxu0 %v1806
        %1823 = vmatprep.subr.bf16.mxu0 0
        %1824 = vmatpush1.bf16.msra.mxu0 %v1805
        %1825 = vmatprep.subr.bf16.mxu0 0
        %1826 = vmatpush1.bf16.msra.mxu0 %v1804
        %1827 = vmatprep.subr.bf16.mxu0 0
        %1828 = vmatpush1.bf16.msra.mxu0 %v1803
        %1829 = vmatprep.subr.bf16.mxu0 0
        %1830 = vmatpush1.bf16.msra.mxu0 %v1802
        %1831 = vmatprep.subr.bf16.mxu0 0
        %1832 = vmatpush1.bf16.msra.mxu0 %v1801
        %1833 = vmatprep.subr.bf16.mxu0 0
        %1834 = vmatpush2.bf16.msra.mxu0 0
        %1835 = vmatprep.subr.bf16.mxu0 0
        %1836 = vmatpush2.bf16.msra.mxu0 0
        %1837 = vmatprep.subr.bf16.mxu0 0
        %1838 = vmatpush2.bf16.msra.mxu0 0
        %1839 = vmatprep.subr.bf16.mxu0 0
        %1840 = vmatpush2.bf16.msra.mxu0 0
        %1841 = vmatprep.subr.bf16.mxu0 0
        %1842 = vmatpush2.bf16.msra.mxu0 0
        %1843 = vmatprep.subr.bf16.mxu0 0
        %1844 = vmatpush2.bf16.msra.mxu0 0
        %1845 = vmatprep.subr.bf16.mxu0 0
        %1846 = vmatpush2.bf16.msra.mxu0 0
        %1847 = vmatprep.subr.bf16.mxu0 0
        %1848 = vmatpush2.bf16.msra.mxu0 0
        %1849 = vmatprep.mubr.bf16.mxu0 0
        %1850 = vmatmul.mubr.bf16.gmra.mxu0 %v1736
        %v1851 = vpop.f32.mrf.mxu0
        %v1852 = vadd.f32 0.0, %v1851
        %v1853 = vpop.f32.mrf.mxu0
        %v1854 = vpop.f32.mrf.mxu0
        %v1855 = vadd.f32 0.0, %v1854
        %v1856 = vpop.f32.mrf.mxu0
        %1857 = vmatprep.mubr.bf16.mxu0 0
        %1858 = vmatmul.mubr.bf16.gmra.mxu0 %v1737
        %v1859 = vpop.f32.mrf.mxu0
        %v1860 = vadd.f32 0.0, %v1859
        %v1861 = vpop.f32.mrf.mxu0
        %v1862 = vpop.f32.mrf.mxu0
        %v1863 = vadd.f32 0.0, %v1862
        %v1864 = vpop.f32.mrf.mxu0
        %1865 = vmatprep.mubr.bf16.mxu0 0
        %1866 = vmatmul.mubr.bf16.gmra.mxu0 %v1738
        %v1867 = vpop.f32.mrf.mxu0
        %v1868 = vadd.f32 0.0, %v1867
        %v1869 = vpop.f32.mrf.mxu0
        %v1870 = vpop.f32.mrf.mxu0
        %v1871 = vadd.f32 0.0, %v1870
        %v1872 = vpop.f32.mrf.mxu0
        %1873 = vmatprep.mubr.bf16.mxu0 0
        %1874 = vmatmul.mubr.bf16.gmra.mxu0 %v1739
        %v1875 = vpop.f32.mrf.mxu0
        %v1876 = vadd.f32 0.0, %v1875
        %v1877 = vpop.f32.mrf.mxu0
        %v1878 = vpop.f32.mrf.mxu0
        %v1879 = vadd.f32 0.0, %v1878
        %v1880 = vpop.f32.mrf.mxu0
        %1881 = vmatprep.mubr.bf16.mxu0 0
        %1882 = vmatmul.mubr.bf16.gmra.mxu0 %v1740
        %v1883 = vpop.f32.mrf.mxu0
        %v1884 = vadd.f32 0.0, %v1883
        %v1885 = vpop.f32.mrf.mxu0
        %v1886 = vpop.f32.mrf.mxu0
        %v1887 = vadd.f32 0.0, %v1886
        %v1888 = vpop.f32.mrf.mxu0
        %1889 = vmatprep.mubr.bf16.mxu0 0
        %1890 = vmatmul.mubr.bf16.gmra.mxu0 %v1741
        %v1891 = vpop.f32.mrf.mxu0
        %v1892 = vadd.f32 0.0, %v1891
        %v1893 = vpop.f32.mrf.mxu0
        %v1894 = vpop.f32.mrf.mxu0
        %v1895 = vadd.f32 0.0, %v1894
        %v1896 = vpop.f32.mrf.mxu0
        %1897 = vmatprep.mubr.bf16.mxu0 0
        %1898 = vmatmul.mubr.bf16.gmra.mxu0 %v1742
        %v1899 = vpop.f32.mrf.mxu0
        %v1900 = vadd.f32 0.0, %v1899
        %v1901 = vpop.f32.mrf.mxu0
        %v1902 = vpop.f32.mrf.mxu0
        %v1903 = vadd.f32 0.0, %v1902
        %v1904 = vpop.f32.mrf.mxu0
        %1905 = vmatprep.mubr.bf16.mxu0 0
        %1906 = vmatmul.mubr.bf16.gmra.mxu0 %v1743
        %v1907 = vpop.f32.mrf.mxu0
        %v1908 = vadd.f32 0.0, %v1907
        %v1909 = vpop.f32.mrf.mxu0
        %v1910 = vpop.f32.mrf.mxu0
        %v1911 = vadd.f32 0.0, %v1910
        %v1912 = vpop.f32.mrf.mxu0
        %1913 = vmatprep.mubr.bf16.mxu0 0
        %1914 = vmatmul.mubr.bf16.gmra.mxu0 %v1744
        %v1915 = vpop.f32.mrf.mxu0
        %v1916 = vadd.f32 0.0, %v1915
        %v1917 = vpop.f32.mrf.mxu0
        %v1918 = vpop.f32.mrf.mxu0
        %v1919 = vadd.f32 0.0, %v1918
        %v1920 = vpop.f32.mrf.mxu0
        %1921 = vmatprep.mubr.bf16.mxu0 0
        %1922 = vmatmul.mubr.bf16.gmra.mxu0 %v1745
        %v1923 = vpop.f32.mrf.mxu0
        %v1924 = vadd.f32 0.0, %v1923
        %v1925 = vpop.f32.mrf.mxu0
        %v1926 = vpop.f32.mrf.mxu0
        %v1927 = vadd.f32 0.0, %v1926
        %v1928 = vpop.f32.mrf.mxu0
        %1929 = vmatprep.mubr.bf16.mxu0 0
        %1930 = vmatmul.mubr.bf16.gmra.mxu0 %v1746
        %v1931 = vpop.f32.mrf.mxu0
        %v1932 = vadd.f32 0.0, %v1931
        %v1933 = vpop.f32.mrf.mxu0
        %v1934 = vpop.f32.mrf.mxu0
        %v1935 = vadd.f32 0.0, %v1934
        %v1936 = vpop.f32.mrf.mxu0
        %1937 = vmatprep.mubr.bf16.mxu0 0
        %1938 = vmatmul.mubr.bf16.gmra.mxu0 %v1747
        %v1939 = vpop.f32.mrf.mxu0
        %v1940 = vadd.f32 0.0, %v1939
        %v1941 = vpop.f32.mrf.mxu0
        %v1942 = vpop.f32.mrf.mxu0
        %v1943 = vadd.f32 0.0, %v1942
        %v1944 = vpop.f32.mrf.mxu0
        %1945 = vmatprep.mubr.bf16.mxu0 0
        %1946 = vmatmul.mubr.bf16.gmra.mxu0 %v1748
        %v1947 = vpop.f32.mrf.mxu0
        %v1948 = vadd.f32 0.0, %v1947
        %v1949 = vpop.f32.mrf.mxu0
        %v1950 = vpop.f32.mrf.mxu0
        %v1951 = vadd.f32 0.0, %v1950
        %v1952 = vpop.f32.mrf.mxu0
        %1953 = vmatprep.mubr.bf16.mxu0 0
        %1954 = vmatmul.mubr.bf16.gmra.mxu0 %v1749
        %v1955 = vpop.f32.mrf.mxu0
        %v1956 = vadd.f32 0.0, %v1955
        %v1957 = vpop.f32.mrf.mxu0
        %v1958 = vpop.f32.mrf.mxu0
        %v1959 = vadd.f32 0.0, %v1958
        %v1960 = vpop.f32.mrf.mxu0
        %1961 = vmatprep.mubr.bf16.mxu0 0
        %1962 = vmatmul.mubr.bf16.gmra.mxu0 %v1750
        %v1963 = vpop.f32.mrf.mxu0
        %v1964 = vadd.f32 0.0, %v1963
        %v1965 = vpop.f32.mrf.mxu0
        %v1966 = vpop.f32.mrf.mxu0
        %v1967 = vadd.f32 0.0, %v1966
        %v1968 = vpop.f32.mrf.mxu0
        %1969 = vmatprep.mubr.bf16.mxu0 0
        %1970 = vmatmul.mubr.bf16.gmra.mxu0 %v1751
        %v1971 = vpop.f32.mrf.mxu0
        %v1972 = vadd.f32 0.0, %v1971
        %v1973 = vpop.f32.mrf.mxu0
        %v1974 = vpop.f32.mrf.mxu0
        %v1975 = vadd.f32 0.0, %v1974
        %v1976 = vpop.f32.mrf.mxu0
        %1977 = vdwg.mxu0
        %v1978 = vadd.f32 %v1704, %v1852
        %v1979 = vadd.f32 %v1705, %v1855
        %v1980 = vadd.f32 %v1706, %v1860
        %v1981 = vadd.f32 %v1707, %v1863
        %v1982 = vadd.f32 %v1708, %v1868
        %v1983 = vadd.f32 %v1709, %v1871
        %v1984 = vadd.f32 %v1710, %v1876
        %v1985 = vadd.f32 %v1711, %v1879
        %v1986 = vadd.f32 %v1712, %v1884
        %v1987 = vadd.f32 %v1713, %v1887
        %v1988 = vadd.f32 %v1714, %v1892
        %v1989 = vadd.f32 %v1715, %v1895
        %v1990 = vadd.f32 %v1716, %v1900
        %v1991 = vadd.f32 %v1717, %v1903
        %v1992 = vadd.f32 %v1718, %v1908
        %v1993 = vadd.f32 %v1719, %v1911
        %v1994 = vadd.f32 %v1720, %v1916
        %v1995 = vadd.f32 %v1721, %v1919
        %v1996 = vadd.f32 %v1722, %v1924
        %v1997 = vadd.f32 %v1723, %v1927
        %v1998 = vadd.f32 %v1724, %v1932
        %v1999 = vadd.f32 %v1725, %v1935
        %v2000 = vadd.f32 %v1726, %v1940
        %v2001 = vadd.f32 %v1727, %v1943
        %v2002 = vadd.f32 %v1728, %v1948
        %v2003 = vadd.f32 %v1729, %v1951
        %v2004 = vadd.f32 %v1730, %v1956
        %v2005 = vadd.f32 %v1731, %v1959
        %v2006 = vadd.f32 %v1732, %v1964
        %v2007 = vadd.f32 %v1733, %v1967
        %v2008 = vadd.f32 %v1734, %v1972
        %v2009 = vadd.f32 %v1735, %v1975
        %2010 = vst [vmem:[#allocation4] sm:$0xff] %v1978
        %2011 = vst [vmem:[#allocation4 + $0x8] sm:$0xff] %v1979
        %2012 = vst [vmem:[#allocation4 + $0x10] sm:$0xff] %v1980
        %2013 = vst [vmem:[#allocation4 + $0x18] sm:$0xff] %v1981
        %2014 = vst [vmem:[#allocation4 + $0x20] sm:$0xff] %v1982
        %2015 = vst [vmem:[#allocation4 + $0x28] sm:$0xff] %v1983
        %2016 = vst [vmem:[#allocation4 + $0x30] sm:$0xff] %v1984
        %2017 = vst [vmem:[#allocation4 + $0x38] sm:$0xff] %v1985
        %2018 = vst [vmem:[#allocation4 + $0x40] sm:$0xff] %v1986
        %2019 = vst [vmem:[#allocation4 + $0x48] sm:$0xff] %v1987
        %2020 = vst [vmem:[#allocation4 + $0x50] sm:$0xff] %v1988
        %2021 = vst [vmem:[#allocation4 + $0x58] sm:$0xff] %v1989
        %2022 = vst [vmem:[#allocation4 + $0x60] sm:$0xff] %v1990
        %2023 = vst [vmem:[#allocation4 + $0x68] sm:$0xff] %v1991
        %2024 = vst [vmem:[#allocation4 + $0x70] sm:$0xff] %v1992
        %2025 = vst [vmem:[#allocation4 + $0x78] sm:$0xff] %v1993
        %2026 = vst [vmem:[#allocation4 + $0x80] sm:$0xff] %v1994
        %2027 = vst [vmem:[#allocation4 + $0x88] sm:$0xff] %v1995
        %2028 = vst [vmem:[#allocation4 + $0x90] sm:$0xff] %v1996
        %2029 = vst [vmem:[#allocation4 + $0x98] sm:$0xff] %v1997
        %2030 = vst [vmem:[#allocation4 + $0xa0] sm:$0xff] %v1998
        %2031 = vst [vmem:[#allocation4 + $0xa8] sm:$0xff] %v1999
        %2032 = vst [vmem:[#allocation4 + $0xb0] sm:$0xff] %v2000
        %2033 = vst [vmem:[#allocation4 + $0xb8] sm:$0xff] %v2001
        %2034 = vst [vmem:[#allocation4 + $0xc0] sm:$0xff] %v2002
        %2035 = vst [vmem:[#allocation4 + $0xc8] sm:$0xff] %v2003
        %2036 = vst [vmem:[#allocation4 + $0xd0] sm:$0xff] %v2004
        %2037 = vst [vmem:[#allocation4 + $0xd8] sm:$0xff] %v2005
        %2038 = vst [vmem:[#allocation4 + $0xe0] sm:$0xff] %v2006
        %2039 = vst [vmem:[#allocation4 + $0xe8] sm:$0xff] %v2007
        %2040 = vst [vmem:[#allocation4 + $0xf0] sm:$0xff] %v2008
        %2041 = vst [vmem:[#allocation4 + $0xf8] sm:$0xff] %v2009
        %v2042 = vld [vmem:[#allocation2 + $0x17] sm:$0xff]
        %v2043 = vld [vmem:[#allocation2 + $0x1f] sm:$0xff]
        %v2044 = vld [vmem:[#allocation2 + $0x27] sm:$0xff]
        %v2045 = vld [vmem:[#allocation2 + $0x2f] sm:$0xff]
        %v2046 = vld [vmem:[#allocation2 + $0x37] sm:$0xff]
        %v2047 = vld [vmem:[#allocation2 + $0x3f] sm:$0xff]
        %v2048 = vld [vmem:[#allocation2 + $0x47] sm:$0xff]
        %v2049 = vld [vmem:[#allocation2 + $0x4f] sm:$0xff]
        %v2050 = vld [vmem:[#allocation2 + $0x57] sm:$0xff]
        %v2051 = vld [vmem:[#allocation2 + $0x5f] sm:$0xff]
        %v2052 = vld [vmem:[#allocation2 + $0x67] sm:$0xff]
        %v2053 = vld [vmem:[#allocation2 + $0x6f] sm:$0xff]
        %v2054 = vld [vmem:[#allocation2 + $0x77] sm:$0xff]
        %v2055 = vld [vmem:[#allocation2 + $0x7f] sm:$0xff]
        %v2056 = vld [vmem:[#allocation2 + $0x87] sm:$0xff]
        %v2057 = vld [vmem:[#allocation2 + $0x8f] sm:$0xff]
        %v2058 = vld [vmem:[#allocation2 + $0x97] sm:$0xff]
        %v2059 = vld [vmem:[#allocation2 + $0x9f] sm:$0xff]
        %v2060 = vld [vmem:[#allocation2 + $0xa7] sm:$0xff]
        %v2061 = vld [vmem:[#allocation2 + $0xaf] sm:$0xff]
        %v2062 = vld [vmem:[#allocation2 + $0xb7] sm:$0xff]
        %v2063 = vld [vmem:[#allocation2 + $0xbf] sm:$0xff]
        %v2064 = vld [vmem:[#allocation2 + $0xc7] sm:$0xff]
        %v2065 = vld [vmem:[#allocation2 + $0xcf] sm:$0xff]
        %v2066 = vld [vmem:[#allocation2 + $0xd7] sm:$0xff]
        %v2067 = vld [vmem:[#allocation2 + $0xdf] sm:$0xff]
        %v2068 = vld [vmem:[#allocation2 + $0xe7] sm:$0xff]
        %v2069 = vld [vmem:[#allocation2 + $0xef] sm:$0xff]
        %v2070 = vld [vmem:[#allocation2 + $0xf7] sm:$0xff]
        %v2071 = vld [vmem:[#allocation2 + $0xff] sm:$0xff]
        %v2072 = vld [vmem:[#allocation2 + $0x107] sm:$0xff]
        %v2073 = vld [vmem:[#allocation2 + $0x10f] sm:$0xff]
        %v2074 = vsel %vm837, %v2042, 0.0
        %v2075 = vsel %vm838, %v2043, 0.0
        %v2076 = vsel %vm839, %v2044, 0.0
        %v2077 = vsel %vm840, %v2045, 0.0
        %v2078 = vsel %vm841, %v2046, 0.0
        %v2079 = vsel %vm842, %v2047, 0.0
        %v2080 = vsel %vm843, %v2048, 0.0
        %v2081 = vsel %vm844, %v2049, 0.0
        %v2082 = vsel %vm845, %v2050, 0.0
        %v2083 = vsel %vm846, %v2051, 0.0
        %v2084 = vsel %vm847, %v2052, 0.0
        %v2085 = vsel %vm848, %v2053, 0.0
        %v2086 = vsel %vm849, %v2054, 0.0
        %v2087 = vsel %vm850, %v2055, 0.0
        %v2088 = vsel %vm851, %v2056, 0.0
        %v2089 = vsel %vm852, %v2057, 0.0
        %v2090 = vsel %vm853, %v2058, 0.0
        %v2091 = vsel %vm854, %v2059, 0.0
        %v2092 = vsel %vm855, %v2060, 0.0
        %v2093 = vsel %vm856, %v2061, 0.0
        %v2094 = vsel %vm857, %v2062, 0.0
        %v2095 = vsel %vm858, %v2063, 0.0
        %v2096 = vsel %vm859, %v2064, 0.0
        %v2097 = vsel %vm860, %v2065, 0.0
        %v2098 = vsel %vm861, %v2066, 0.0
        %v2099 = vsel %vm862, %v2067, 0.0
        %v2100 = vsel %vm863, %v2068, 0.0
        %v2101 = vsel %vm864, %v2069, 0.0
        %v2102 = vsel %vm865, %v2070, 0.0
        %v2103 = vsel %vm866, %v2071, 0.0
        %v2104 = vsel %vm867, %v2072, 0.0
        %v2105 = vsel %vm868, %v2073, 0.0
        %v2106 = vld [vmem:[#allocation4] sm:$0xff]
        %v2107 = vld [vmem:[#allocation4 + $0x8] sm:$0xff]
        %v2108 = vld [vmem:[#allocation4 + $0x10] sm:$0xff]
        %v2109 = vld [vmem:[#allocation4 + $0x18] sm:$0xff]
        %v2110 = vld [vmem:[#allocation4 + $0x20] sm:$0xff]
        %v2111 = vld [vmem:[#allocation4 + $0x28] sm:$0xff]
        %v2112 = vld [vmem:[#allocation4 + $0x30] sm:$0xff]
        %v2113 = vld [vmem:[#allocation4 + $0x38] sm:$0xff]
        %v2114 = vld [vmem:[#allocation4 + $0x40] sm:$0xff]
        %v2115 = vld [vmem:[#allocation4 + $0x48] sm:$0xff]
        %v2116 = vld [vmem:[#allocation4 + $0x50] sm:$0xff]
        %v2117 = vld [vmem:[#allocation4 + $0x58] sm:$0xff]
        %v2118 = vld [vmem:[#allocation4 + $0x60] sm:$0xff]
        %v2119 = vld [vmem:[#allocation4 + $0x68] sm:$0xff]
        %v2120 = vld [vmem:[#allocation4 + $0x70] sm:$0xff]
        %v2121 = vld [vmem:[#allocation4 + $0x78] sm:$0xff]
        %v2122 = vld [vmem:[#allocation4 + $0x80] sm:$0xff]
        %v2123 = vld [vmem:[#allocation4 + $0x88] sm:$0xff]
        %v2124 = vld [vmem:[#allocation4 + $0x90] sm:$0xff]
        %v2125 = vld [vmem:[#allocation4 + $0x98] sm:$0xff]
        %v2126 = vld [vmem:[#allocation4 + $0xa0] sm:$0xff]
        %v2127 = vld [vmem:[#allocation4 + $0xa8] sm:$0xff]
        %v2128 = vld [vmem:[#allocation4 + $0xb0] sm:$0xff]
        %v2129 = vld [vmem:[#allocation4 + $0xb8] sm:$0xff]
        %v2130 = vld [vmem:[#allocation4 + $0xc0] sm:$0xff]
        %v2131 = vld [vmem:[#allocation4 + $0xc8] sm:$0xff]
        %v2132 = vld [vmem:[#allocation4 + $0xd0] sm:$0xff]
        %v2133 = vld [vmem:[#allocation4 + $0xd8] sm:$0xff]
        %v2134 = vld [vmem:[#allocation4 + $0xe0] sm:$0xff]
        %v2135 = vld [vmem:[#allocation4 + $0xe8] sm:$0xff]
        %v2136 = vld [vmem:[#allocation4 + $0xf0] sm:$0xff]
        %v2137 = vld [vmem:[#allocation4 + $0xf8] sm:$0xff]
        %v2138 = vpack.c.bf16 %v2075, %v2074
        %v2139 = vpack.c.bf16 %v2077, %v2076
        %v2140 = vpack.c.bf16 %v2079, %v2078
        %v2141 = vpack.c.bf16 %v2081, %v2080
        %v2142 = vpack.c.bf16 %v2083, %v2082
        %v2143 = vpack.c.bf16 %v2085, %v2084
        %v2144 = vpack.c.bf16 %v2087, %v2086
        %v2145 = vpack.c.bf16 %v2089, %v2088
        %v2146 = vpack.c.bf16 %v2091, %v2090
        %v2147 = vpack.c.bf16 %v2093, %v2092
        %v2148 = vpack.c.bf16 %v2095, %v2094
        %v2149 = vpack.c.bf16 %v2097, %v2096
        %v2150 = vpack.c.bf16 %v2099, %v2098
        %v2151 = vpack.c.bf16 %v2101, %v2100
        %v2152 = vpack.c.bf16 %v2103, %v2102
        %v2153 = vpack.c.bf16 %v2105, %v2104
        %s2154 = scalar_lea.vmem [#allocation8], 192
        %v2155 = vld [vmem:[%s2154] sm:$0xf]
        %v2156 = vld [vmem:[%s2154 + $0x4] sm:$0xf]
        %v2157 = vld [vmem:[%s2154 + $0x8] sm:$0xf]
        %v2158 = vld [vmem:[%s2154 + $0xc] sm:$0xf]
        %v2159 = vld [vmem:[%s2154 + $0x10] sm:$0xf]
        %v2160 = vld [vmem:[%s2154 + $0x14] sm:$0xf]
        %v2161 = vld [vmem:[%s2154 + $0x18] sm:$0xf]
        %v2162 = vld [vmem:[%s2154 + $0x1c] sm:$0xf]
        %v2163 = vld [vmem:[%s2154 + $0x20] sm:$0xf]
        %v2164 = vld [vmem:[%s2154 + $0x24] sm:$0xf]
        %v2165 = vld [vmem:[%s2154 + $0x28] sm:$0xf]
        %v2166 = vld [vmem:[%s2154 + $0x2c] sm:$0xf]
        %v2167 = vld [vmem:[%s2154 + $0x30] sm:$0xf]
        %v2168 = vld [vmem:[%s2154 + $0x34] sm:$0xf]
        %v2169 = vld [vmem:[%s2154 + $0x38] sm:$0xf]
        %v2170 = vld [vmem:[%s2154 + $0x3c] sm:$0xf]
        %v2187 = vunpack.c.l.b16 %v2155
        %v2188 = vunpack.c.l.b16 %v2156
        %v2189 = vunpack.c.l.b16 %v2157
        %v2190 = vunpack.c.l.b16 %v2158
        %v2191 = vunpack.c.l.b16 %v2159
        %v2192 = vunpack.c.l.b16 %v2160
        %v2193 = vunpack.c.l.b16 %v2161
        %v2194 = vunpack.c.l.b16 %v2162
        %v2195 = vunpack.c.l.b16 %v2163
        %v2196 = vunpack.c.l.b16 %v2164
        %v2197 = vunpack.c.l.b16 %v2165
        %v2198 = vunpack.c.l.b16 %v2166
        %v2199 = vunpack.c.l.b16 %v2167
        %v2200 = vunpack.c.l.b16 %v2168
        %v2201 = vunpack.c.l.b16 %v2169
        %v2202 = vunpack.c.l.b16 %v2170
        %v2203 = vpack.c.b16 %v2188, %v2187
        %v2204 = vpack.c.b16 %v2190, %v2189
        %v2205 = vpack.c.b16 %v2192, %v2191
        %v2206 = vpack.c.b16 %v2194, %v2193
        %v2207 = vpack.c.b16 %v2196, %v2195
        %v2208 = vpack.c.b16 %v2198, %v2197
        %v2209 = vpack.c.b16 %v2200, %v2199
        %v2210 = vpack.c.b16 %v2202, %v2201
        %2219 = vmatprep.subr.bf16.mxu0 0
        %2220 = vmatpush1.bf16.msra.mxu0 %v2210
        %2221 = vmatprep.subr.bf16.mxu0 0
        %2222 = vmatpush1.bf16.msra.mxu0 %v2209
        %2223 = vmatprep.subr.bf16.mxu0 0
        %2224 = vmatpush1.bf16.msra.mxu0 %v2208
        %2225 = vmatprep.subr.bf16.mxu0 0
        %2226 = vmatpush1.bf16.msra.mxu0 %v2207
        %2227 = vmatprep.subr.bf16.mxu0 0
        %2228 = vmatpush1.bf16.msra.mxu0 %v2206
        %2229 = vmatprep.subr.bf16.mxu0 0
        %2230 = vmatpush1.bf16.msra.mxu0 %v2205
        %2231 = vmatprep.subr.bf16.mxu0 0
        %2232 = vmatpush1.bf16.msra.mxu0 %v2204
        %2233 = vmatprep.subr.bf16.mxu0 0
        %2234 = vmatpush1.bf16.msra.mxu0 %v2203
        %2235 = vmatprep.subr.bf16.mxu0 0
        %2236 = vmatpush2.bf16.msra.mxu0 0
        %2237 = vmatprep.subr.bf16.mxu0 0
        %2238 = vmatpush2.bf16.msra.mxu0 0
        %2239 = vmatprep.subr.bf16.mxu0 0
        %2240 = vmatpush2.bf16.msra.mxu0 0
        %2241 = vmatprep.subr.bf16.mxu0 0
        %2242 = vmatpush2.bf16.msra.mxu0 0
        %2243 = vmatprep.subr.bf16.mxu0 0
        %2244 = vmatpush2.bf16.msra.mxu0 0
        %2245 = vmatprep.subr.bf16.mxu0 0
        %2246 = vmatpush2.bf16.msra.mxu0 0
        %2247 = vmatprep.subr.bf16.mxu0 0
        %2248 = vmatpush2.bf16.msra.mxu0 0
        %2249 = vmatprep.subr.bf16.mxu0 0
        %2250 = vmatpush2.bf16.msra.mxu0 0
        %2251 = vmatprep.mubr.bf16.mxu0 0
        %2252 = vmatmul.mubr.bf16.gmra.mxu0 %v2138
        %v2253 = vpop.f32.mrf.mxu0
        %v2254 = vadd.f32 0.0, %v2253
        %v2255 = vpop.f32.mrf.mxu0
        %v2256 = vpop.f32.mrf.mxu0
        %v2257 = vadd.f32 0.0, %v2256
        %v2258 = vpop.f32.mrf.mxu0
        %2259 = vmatprep.mubr.bf16.mxu0 0
        %2260 = vmatmul.mubr.bf16.gmra.mxu0 %v2139
        %v2261 = vpop.f32.mrf.mxu0
        %v2262 = vadd.f32 0.0, %v2261
        %v2263 = vpop.f32.mrf.mxu0
        %v2264 = vpop.f32.mrf.mxu0
        %v2265 = vadd.f32 0.0, %v2264
        %v2266 = vpop.f32.mrf.mxu0
        %2267 = vmatprep.mubr.bf16.mxu0 0
        %2268 = vmatmul.mubr.bf16.gmra.mxu0 %v2140
        %v2269 = vpop.f32.mrf.mxu0
        %v2270 = vadd.f32 0.0, %v2269
        %v2271 = vpop.f32.mrf.mxu0
        %v2272 = vpop.f32.mrf.mxu0
        %v2273 = vadd.f32 0.0, %v2272
        %v2274 = vpop.f32.mrf.mxu0
        %2275 = vmatprep.mubr.bf16.mxu0 0
        %2276 = vmatmul.mubr.bf16.gmra.mxu0 %v2141
        %v2277 = vpop.f32.mrf.mxu0
        %v2278 = vadd.f32 0.0, %v2277
        %v2279 = vpop.f32.mrf.mxu0
        %v2280 = vpop.f32.mrf.mxu0
        %v2281 = vadd.f32 0.0, %v2280
        %v2282 = vpop.f32.mrf.mxu0
        %2283 = vmatprep.mubr.bf16.mxu0 0
        %2284 = vmatmul.mubr.bf16.gmra.mxu0 %v2142
        %v2285 = vpop.f32.mrf.mxu0
        %v2286 = vadd.f32 0.0, %v2285
        %v2287 = vpop.f32.mrf.mxu0
        %v2288 = vpop.f32.mrf.mxu0
        %v2289 = vadd.f32 0.0, %v2288
        %v2290 = vpop.f32.mrf.mxu0
        %2291 = vmatprep.mubr.bf16.mxu0 0
        %2292 = vmatmul.mubr.bf16.gmra.mxu0 %v2143
        %v2293 = vpop.f32.mrf.mxu0
        %v2294 = vadd.f32 0.0, %v2293
        %v2295 = vpop.f32.mrf.mxu0
        %v2296 = vpop.f32.mrf.mxu0
        %v2297 = vadd.f32 0.0, %v2296
        %v2298 = vpop.f32.mrf.mxu0
        %2299 = vmatprep.mubr.bf16.mxu0 0
        %2300 = vmatmul.mubr.bf16.gmra.mxu0 %v2144
        %v2301 = vpop.f32.mrf.mxu0
        %v2302 = vadd.f32 0.0, %v2301
        %v2303 = vpop.f32.mrf.mxu0
        %v2304 = vpop.f32.mrf.mxu0
        %v2305 = vadd.f32 0.0, %v2304
        %v2306 = vpop.f32.mrf.mxu0
        %2307 = vmatprep.mubr.bf16.mxu0 0
        %2308 = vmatmul.mubr.bf16.gmra.mxu0 %v2145
        %v2309 = vpop.f32.mrf.mxu0
        %v2310 = vadd.f32 0.0, %v2309
        %v2311 = vpop.f32.mrf.mxu0
        %v2312 = vpop.f32.mrf.mxu0
        %v2313 = vadd.f32 0.0, %v2312
        %v2314 = vpop.f32.mrf.mxu0
        %2315 = vmatprep.mubr.bf16.mxu0 0
        %2316 = vmatmul.mubr.bf16.gmra.mxu0 %v2146
        %v2317 = vpop.f32.mrf.mxu0
        %v2318 = vadd.f32 0.0, %v2317
        %v2319 = vpop.f32.mrf.mxu0
        %v2320 = vpop.f32.mrf.mxu0
        %v2321 = vadd.f32 0.0, %v2320
        %v2322 = vpop.f32.mrf.mxu0
        %2323 = vmatprep.mubr.bf16.mxu0 0
        %2324 = vmatmul.mubr.bf16.gmra.mxu0 %v2147
        %v2325 = vpop.f32.mrf.mxu0
        %v2326 = vadd.f32 0.0, %v2325
        %v2327 = vpop.f32.mrf.mxu0
        %v2328 = vpop.f32.mrf.mxu0
        %v2329 = vadd.f32 0.0, %v2328
        %v2330 = vpop.f32.mrf.mxu0
        %2331 = vmatprep.mubr.bf16.mxu0 0
        %2332 = vmatmul.mubr.bf16.gmra.mxu0 %v2148
        %v2333 = vpop.f32.mrf.mxu0
        %v2334 = vadd.f32 0.0, %v2333
        %v2335 = vpop.f32.mrf.mxu0
        %v2336 = vpop.f32.mrf.mxu0
        %v2337 = vadd.f32 0.0, %v2336
        %v2338 = vpop.f32.mrf.mxu0
        %2339 = vmatprep.mubr.bf16.mxu0 0
        %2340 = vmatmul.mubr.bf16.gmra.mxu0 %v2149
        %v2341 = vpop.f32.mrf.mxu0
        %v2342 = vadd.f32 0.0, %v2341
        %v2343 = vpop.f32.mrf.mxu0
        %v2344 = vpop.f32.mrf.mxu0
        %v2345 = vadd.f32 0.0, %v2344
        %v2346 = vpop.f32.mrf.mxu0
        %2347 = vmatprep.mubr.bf16.mxu0 0
        %2348 = vmatmul.mubr.bf16.gmra.mxu0 %v2150
        %v2349 = vpop.f32.mrf.mxu0
        %v2350 = vadd.f32 0.0, %v2349
        %v2351 = vpop.f32.mrf.mxu0
        %v2352 = vpop.f32.mrf.mxu0
        %v2353 = vadd.f32 0.0, %v2352
        %v2354 = vpop.f32.mrf.mxu0
        %2355 = vmatprep.mubr.bf16.mxu0 0
        %2356 = vmatmul.mubr.bf16.gmra.mxu0 %v2151
        %v2357 = vpop.f32.mrf.mxu0
        %v2358 = vadd.f32 0.0, %v2357
        %v2359 = vpop.f32.mrf.mxu0
        %v2360 = vpop.f32.mrf.mxu0
        %v2361 = vadd.f32 0.0, %v2360
        %v2362 = vpop.f32.mrf.mxu0
        %2363 = vmatprep.mubr.bf16.mxu0 0
        %2364 = vmatmul.mubr.bf16.gmra.mxu0 %v2152
        %v2365 = vpop.f32.mrf.mxu0
        %v2366 = vadd.f32 0.0, %v2365
        %v2367 = vpop.f32.mrf.mxu0
        %v2368 = vpop.f32.mrf.mxu0
        %v2369 = vadd.f32 0.0, %v2368
        %v2370 = vpop.f32.mrf.mxu0
        %2371 = vmatprep.mubr.bf16.mxu0 0
        %2372 = vmatmul.mubr.bf16.gmra.mxu0 %v2153
        %v2373 = vpop.f32.mrf.mxu0
        %v2374 = vadd.f32 0.0, %v2373
        %v2375 = vpop.f32.mrf.mxu0
        %v2376 = vpop.f32.mrf.mxu0
        %v2377 = vadd.f32 0.0, %v2376
        %v2378 = vpop.f32.mrf.mxu0
        %2379 = vdwg.mxu0
        %v2380 = vadd.f32 %v2106, %v2254
        %v2381 = vadd.f32 %v2107, %v2257
        %v2382 = vadd.f32 %v2108, %v2262
        %v2383 = vadd.f32 %v2109, %v2265
        %v2384 = vadd.f32 %v2110, %v2270
        %v2385 = vadd.f32 %v2111, %v2273
        %v2386 = vadd.f32 %v2112, %v2278
        %v2387 = vadd.f32 %v2113, %v2281
        %v2388 = vadd.f32 %v2114, %v2286
        %v2389 = vadd.f32 %v2115, %v2289
        %v2390 = vadd.f32 %v2116, %v2294
        %v2391 = vadd.f32 %v2117, %v2297
        %v2392 = vadd.f32 %v2118, %v2302
        %v2393 = vadd.f32 %v2119, %v2305
        %v2394 = vadd.f32 %v2120, %v2310
        %v2395 = vadd.f32 %v2121, %v2313
        %v2396 = vadd.f32 %v2122, %v2318
        %v2397 = vadd.f32 %v2123, %v2321
        %v2398 = vadd.f32 %v2124, %v2326
        %v2399 = vadd.f32 %v2125, %v2329
        %v2400 = vadd.f32 %v2126, %v2334
        %v2401 = vadd.f32 %v2127, %v2337
        %v2402 = vadd.f32 %v2128, %v2342
        %v2403 = vadd.f32 %v2129, %v2345
        %v2404 = vadd.f32 %v2130, %v2350
        %v2405 = vadd.f32 %v2131, %v2353
        %v2406 = vadd.f32 %v2132, %v2358
        %v2407 = vadd.f32 %v2133, %v2361
        %v2408 = vadd.f32 %v2134, %v2366
        %v2409 = vadd.f32 %v2135, %v2369
        %v2410 = vadd.f32 %v2136, %v2374
        %v2411 = vadd.f32 %v2137, %v2377
        %2412 = vst [vmem:[#allocation4] sm:$0xff] %v2380
        %2413 = vst [vmem:[#allocation4 + $0x8] sm:$0xff] %v2381
        %2414 = vst [vmem:[#allocation4 + $0x10] sm:$0xff] %v2382
        %2415 = vst [vmem:[#allocation4 + $0x18] sm:$0xff] %v2383
        %2416 = vst [vmem:[#allocation4 + $0x20] sm:$0xff] %v2384
        %2417 = vst [vmem:[#allocation4 + $0x28] sm:$0xff] %v2385
        %2418 = vst [vmem:[#allocation4 + $0x30] sm:$0xff] %v2386
        %2419 = vst [vmem:[#allocation4 + $0x38] sm:$0xff] %v2387
        %2420 = vst [vmem:[#allocation4 + $0x40] sm:$0xff] %v2388
        %2421 = vst [vmem:[#allocation4 + $0x48] sm:$0xff] %v2389
        %2422 = vst [vmem:[#allocation4 + $0x50] sm:$0xff] %v2390
        %2423 = vst [vmem:[#allocation4 + $0x58] sm:$0xff] %v2391
        %2424 = vst [vmem:[#allocation4 + $0x60] sm:$0xff] %v2392
        %2425 = vst [vmem:[#allocation4 + $0x68] sm:$0xff] %v2393
        %2426 = vst [vmem:[#allocation4 + $0x70] sm:$0xff] %v2394
        %2427 = vst [vmem:[#allocation4 + $0x78] sm:$0xff] %v2395
        %2428 = vst [vmem:[#allocation4 + $0x80] sm:$0xff] %v2396
        %2429 = vst [vmem:[#allocation4 + $0x88] sm:$0xff] %v2397
        %2430 = vst [vmem:[#allocation4 + $0x90] sm:$0xff] %v2398
        %2431 = vst [vmem:[#allocation4 + $0x98] sm:$0xff] %v2399
        %2432 = vst [vmem:[#allocation4 + $0xa0] sm:$0xff] %v2400
        %2433 = vst [vmem:[#allocation4 + $0xa8] sm:$0xff] %v2401
        %2434 = vst [vmem:[#allocation4 + $0xb0] sm:$0xff] %v2402
        %2435 = vst [vmem:[#allocation4 + $0xb8] sm:$0xff] %v2403
        %2436 = vst [vmem:[#allocation4 + $0xc0] sm:$0xff] %v2404
        %2437 = vst [vmem:[#allocation4 + $0xc8] sm:$0xff] %v2405
        %2438 = vst [vmem:[#allocation4 + $0xd0] sm:$0xff] %v2406
        %2439 = vst [vmem:[#allocation4 + $0xd8] sm:$0xff] %v2407
        %2440 = vst [vmem:[#allocation4 + $0xe0] sm:$0xff] %v2408
        %2441 = vst [vmem:[#allocation4 + $0xe8] sm:$0xff] %v2409
        %2442 = vst [vmem:[#allocation4 + $0xf0] sm:$0xff] %v2410
        %2443 = vst [vmem:[#allocation4 + $0xf8] sm:$0xff] %v2411
        %v2444 = vld [vmem:[#allocation2 + $0x18] sm:$0xff]
        %v2445 = vld [vmem:[#allocation2 + $0x20] sm:$0xff]
        %v2446 = vld [vmem:[#allocation2 + $0x28] sm:$0xff]
        %v2447 = vld [vmem:[#allocation2 + $0x30] sm:$0xff]
        %v2448 = vld [vmem:[#allocation2 + $0x38] sm:$0xff]
        %v2449 = vld [vmem:[#allocation2 + $0x40] sm:$0xff]
        %v2450 = vld [vmem:[#allocation2 + $0x48] sm:$0xff]
        %v2451 = vld [vmem:[#allocation2 + $0x50] sm:$0xff]
        %v2452 = vld [vmem:[#allocation2 + $0x58] sm:$0xff]
        %v2453 = vld [vmem:[#allocation2 + $0x60] sm:$0xff]
        %v2454 = vld [vmem:[#allocation2 + $0x68] sm:$0xff]
        %v2455 = vld [vmem:[#allocation2 + $0x70] sm:$0xff]
        %v2456 = vld [vmem:[#allocation2 + $0x78] sm:$0xff]
        %v2457 = vld [vmem:[#allocation2 + $0x80] sm:$0xff]
        %v2458 = vld [vmem:[#allocation2 + $0x88] sm:$0xff]
        %v2459 = vld [vmem:[#allocation2 + $0x90] sm:$0xff]
        %v2460 = vld [vmem:[#allocation2 + $0x98] sm:$0xff]
        %v2461 = vld [vmem:[#allocation2 + $0xa0] sm:$0xff]
        %v2462 = vld [vmem:[#allocation2 + $0xa8] sm:$0xff]
        %v2463 = vld [vmem:[#allocation2 + $0xb0] sm:$0xff]
        %v2464 = vld [vmem:[#allocation2 + $0xb8] sm:$0xff]
        %v2465 = vld [vmem:[#allocation2 + $0xc0] sm:$0xff]
        %v2466 = vld [vmem:[#allocation2 + $0xc8] sm:$0xff]
        %v2467 = vld [vmem:[#allocation2 + $0xd0] sm:$0xff]
        %v2468 = vld [vmem:[#allocation2 + $0xd8] sm:$0xff]
        %v2469 = vld [vmem:[#allocation2 + $0xe0] sm:$0xff]
        %v2470 = vld [vmem:[#allocation2 + $0xe8] sm:$0xff]
        %v2471 = vld [vmem:[#allocation2 + $0xf0] sm:$0xff]
        %v2472 = vld [vmem:[#allocation2 + $0xf8] sm:$0xff]
        %v2473 = vld [vmem:[#allocation2 + $0x100] sm:$0xff]
        %v2474 = vld [vmem:[#allocation2 + $0x108] sm:$0xff]
        %v2475 = vld [vmem:[#allocation2 + $0x110] sm:$0xff]
        %v2476 = vld [vmem:[#allocation4] sm:$0xff]
        %v2477 = vld [vmem:[#allocation4 + $0x8] sm:$0xff]
        %v2478 = vld [vmem:[#allocation4 + $0x10] sm:$0xff]
        %v2479 = vld [vmem:[#allocation4 + $0x18] sm:$0xff]
        %v2480 = vld [vmem:[#allocation4 + $0x20] sm:$0xff]
        %v2481 = vld [vmem:[#allocation4 + $0x28] sm:$0xff]
        %v2482 = vld [vmem:[#allocation4 + $0x30] sm:$0xff]
        %v2483 = vld [vmem:[#allocation4 + $0x38] sm:$0xff]
        %v2484 = vld [vmem:[#allocation4 + $0x40] sm:$0xff]
        %v2485 = vld [vmem:[#allocation4 + $0x48] sm:$0xff]
        %v2486 = vld [vmem:[#allocation4 + $0x50] sm:$0xff]
        %v2487 = vld [vmem:[#allocation4 + $0x58] sm:$0xff]
        %v2488 = vld [vmem:[#allocation4 + $0x60] sm:$0xff]
        %v2489 = vld [vmem:[#allocation4 + $0x68] sm:$0xff]
        %v2490 = vld [vmem:[#allocation4 + $0x70] sm:$0xff]
        %v2491 = vld [vmem:[#allocation4 + $0x78] sm:$0xff]
        %v2492 = vld [vmem:[#allocation4 + $0x80] sm:$0xff]
        %v2493 = vld [vmem:[#allocation4 + $0x88] sm:$0xff]
        %v2494 = vld [vmem:[#allocation4 + $0x90] sm:$0xff]
        %v2495 = vld [vmem:[#allocation4 + $0x98] sm:$0xff]
        %v2496 = vld [vmem:[#allocation4 + $0xa0] sm:$0xff]
        %v2497 = vld [vmem:[#allocation4 + $0xa8] sm:$0xff]
        %v2498 = vld [vmem:[#allocation4 + $0xb0] sm:$0xff]
        %v2499 = vld [vmem:[#allocation4 + $0xb8] sm:$0xff]
        %v2500 = vld [vmem:[#allocation4 + $0xc0] sm:$0xff]
        %v2501 = vld [vmem:[#allocation4 + $0xc8] sm:$0xff]
        %v2502 = vld [vmem:[#allocation4 + $0xd0] sm:$0xff]
        %v2503 = vld [vmem:[#allocation4 + $0xd8] sm:$0xff]
        %v2504 = vld [vmem:[#allocation4 + $0xe0] sm:$0xff]
        %v2505 = vld [vmem:[#allocation4 + $0xe8] sm:$0xff]
        %v2506 = vld [vmem:[#allocation4 + $0xf0] sm:$0xff]
        %v2507 = vld [vmem:[#allocation4 + $0xf8] sm:$0xff]
        %v2508 = vpack.c.bf16 %v2445, %v2444
        %v2509 = vpack.c.bf16 %v2447, %v2446
        %v2510 = vpack.c.bf16 %v2449, %v2448
        %v2511 = vpack.c.bf16 %v2451, %v2450
        %v2512 = vpack.c.bf16 %v2453, %v2452
        %v2513 = vpack.c.bf16 %v2455, %v2454
        %v2514 = vpack.c.bf16 %v2457, %v2456
        %v2515 = vpack.c.bf16 %v2459, %v2458
        %v2516 = vpack.c.bf16 %v2461, %v2460
        %v2517 = vpack.c.bf16 %v2463, %v2462
        %v2518 = vpack.c.bf16 %v2465, %v2464
        %v2519 = vpack.c.bf16 %v2467, %v2466
        %v2520 = vpack.c.bf16 %v2469, %v2468
        %v2521 = vpack.c.bf16 %v2471, %v2470
        %v2522 = vpack.c.bf16 %v2473, %v2472
        %v2523 = vpack.c.bf16 %v2475, %v2474
        %s2524 = scalar_lea.vmem [#allocation8], 256
        %v2525 = vld [vmem:[%s2524] sm:$0xf]
        %v2526 = vld [vmem:[%s2524 + $0x4] sm:$0xf]
        %v2527 = vld [vmem:[%s2524 + $0x8] sm:$0xf]
        %v2528 = vld [vmem:[%s2524 + $0xc] sm:$0xf]
        %v2529 = vld [vmem:[%s2524 + $0x10] sm:$0xf]
        %v2530 = vld [vmem:[%s2524 + $0x14] sm:$0xf]
        %v2531 = vld [vmem:[%s2524 + $0x18] sm:$0xf]
        %v2532 = vld [vmem:[%s2524 + $0x1c] sm:$0xf]
        %v2533 = vld [vmem:[%s2524 + $0x20] sm:$0xf]
        %v2534 = vld [vmem:[%s2524 + $0x24] sm:$0xf]
        %v2535 = vld [vmem:[%s2524 + $0x28] sm:$0xf]
        %v2536 = vld [vmem:[%s2524 + $0x2c] sm:$0xf]
        %v2537 = vld [vmem:[%s2524 + $0x30] sm:$0xf]
        %v2538 = vld [vmem:[%s2524 + $0x34] sm:$0xf]
        %v2539 = vld [vmem:[%s2524 + $0x38] sm:$0xf]
        %v2540 = vld [vmem:[%s2524 + $0x3c] sm:$0xf]
        %v2557 = vunpack.c.l.b16 %v2525
        %v2558 = vunpack.c.l.b16 %v2526
        %v2559 = vunpack.c.l.b16 %v2527
        %v2560 = vunpack.c.l.b16 %v2528
        %v2561 = vunpack.c.l.b16 %v2529
        %v2562 = vunpack.c.l.b16 %v2530
        %v2563 = vunpack.c.l.b16 %v2531
        %v2564 = vunpack.c.l.b16 %v2532
        %v2565 = vunpack.c.l.b16 %v2533
        %v2566 = vunpack.c.l.b16 %v2534
        %v2567 = vunpack.c.l.b16 %v2535
        %v2568 = vunpack.c.l.b16 %v2536
        %v2569 = vunpack.c.l.b16 %v2537
        %v2570 = vunpack.c.l.b16 %v2538
        %v2571 = vunpack.c.l.b16 %v2539
        %v2572 = vunpack.c.l.b16 %v2540
        %v2573 = vpack.c.b16 %v2558, %v2557
        %v2574 = vpack.c.b16 %v2560, %v2559
        %v2575 = vpack.c.b16 %v2562, %v2561
        %v2576 = vpack.c.b16 %v2564, %v2563
        %v2577 = vpack.c.b16 %v2566, %v2565
        %v2578 = vpack.c.b16 %v2568, %v2567
        %v2579 = vpack.c.b16 %v2570, %v2569
        %v2580 = vpack.c.b16 %v2572, %v2571
        %2589 = vmatprep.subr.bf16.mxu0 0
        %2590 = vmatpush1.bf16.msra.mxu0 %v2580
        %2591 = vmatprep.subr.bf16.mxu0 0
        %2592 = vmatpush1.bf16.msra.mxu0 %v2579
        %2593 = vmatprep.subr.bf16.mxu0 0
        %2594 = vmatpush1.bf16.msra.mxu0 %v2578
        %2595 = vmatprep.subr.bf16.mxu0 0
        %2596 = vmatpush1.bf16.msra.mxu0 %v2577
        %2597 = vmatprep.subr.bf16.mxu0 0
        %2598 = vmatpush1.bf16.msra.mxu0 %v2576
        %2599 = vmatprep.subr.bf16.mxu0 0
        %2600 = vmatpush1.bf16.msra.mxu0 %v2575
        %2601 = vmatprep.subr.bf16.mxu0 0
        %2602 = vmatpush1.bf16.msra.mxu0 %v2574
        %2603 = vmatprep.subr.bf16.mxu0 0
        %2604 = vmatpush1.bf16.msra.mxu0 %v2573
        %2605 = vmatprep.subr.bf16.mxu0 0
        %2606 = vmatpush2.bf16.msra.mxu0 0
        %2607 = vmatprep.subr.bf16.mxu0 0
        %2608 = vmatpush2.bf16.msra.mxu0 0
        %2609 = vmatprep.subr.bf16.mxu0 0
        %2610 = vmatpush2.bf16.msra.mxu0 0
        %2611 = vmatprep.subr.bf16.mxu0 0
        %2612 = vmatpush2.bf16.msra.mxu0 0
        %2613 = vmatprep.subr.bf16.mxu0 0
        %2614 = vmatpush2.bf16.msra.mxu0 0
        %2615 = vmatprep.subr.bf16.mxu0 0
        %2616 = vmatpush2.bf16.msra.mxu0 0
        %2617 = vmatprep.subr.bf16.mxu0 0
        %2618 = vmatpush2.bf16.msra.mxu0 0
        %2619 = vmatprep.subr.bf16.mxu0 0
        %2620 = vmatpush2.bf16.msra.mxu0 0
        %2621 = vmatprep.mubr.bf16.mxu0 0
        %2622 = vmatmul.mubr.bf16.gmra.mxu0 %v2508
        %v2623 = vpop.f32.mrf.mxu0
        %v2624 = vadd.f32 0.0, %v2623
        %v2625 = vpop.f32.mrf.mxu0
        %v2626 = vpop.f32.mrf.mxu0
        %v2627 = vadd.f32 0.0, %v2626
        %v2628 = vpop.f32.mrf.mxu0
        %2629 = vmatprep.mubr.bf16.mxu0 0
        %2630 = vmatmul.mubr.bf16.gmra.mxu0 %v2509
        %v2631 = vpop.f32.mrf.mxu0
        %v2632 = vadd.f32 0.0, %v2631
        %v2633 = vpop.f32.mrf.mxu0
        %v2634 = vpop.f32.mrf.mxu0
        %v2635 = vadd.f32 0.0, %v2634
        %v2636 = vpop.f32.mrf.mxu0
        %2637 = vmatprep.mubr.bf16.mxu0 0
        %2638 = vmatmul.mubr.bf16.gmra.mxu0 %v2510
        %v2639 = vpop.f32.mrf.mxu0
        %v2640 = vadd.f32 0.0, %v2639
        %v2641 = vpop.f32.mrf.mxu0
        %v2642 = vpop.f32.mrf.mxu0
        %v2643 = vadd.f32 0.0, %v2642
        %v2644 = vpop.f32.mrf.mxu0
        %2645 = vmatprep.mubr.bf16.mxu0 0
        %2646 = vmatmul.mubr.bf16.gmra.mxu0 %v2511
        %v2647 = vpop.f32.mrf.mxu0
        %v2648 = vadd.f32 0.0, %v2647
        %v2649 = vpop.f32.mrf.mxu0
        %v2650 = vpop.f32.mrf.mxu0
        %v2651 = vadd.f32 0.0, %v2650
        %v2652 = vpop.f32.mrf.mxu0
        %2653 = vmatprep.mubr.bf16.mxu0 0
        %2654 = vmatmul.mubr.bf16.gmra.mxu0 %v2512
        %v2655 = vpop.f32.mrf.mxu0
        %v2656 = vadd.f32 0.0, %v2655
        %v2657 = vpop.f32.mrf.mxu0
        %v2658 = vpop.f32.mrf.mxu0
        %v2659 = vadd.f32 0.0, %v2658
        %v2660 = vpop.f32.mrf.mxu0
        %2661 = vmatprep.mubr.bf16.mxu0 0
        %2662 = vmatmul.mubr.bf16.gmra.mxu0 %v2513
        %v2663 = vpop.f32.mrf.mxu0
        %v2664 = vadd.f32 0.0, %v2663
        %v2665 = vpop.f32.mrf.mxu0
        %v2666 = vpop.f32.mrf.mxu0
        %v2667 = vadd.f32 0.0, %v2666
        %v2668 = vpop.f32.mrf.mxu0
        %2669 = vmatprep.mubr.bf16.mxu0 0
        %2670 = vmatmul.mubr.bf16.gmra.mxu0 %v2514
        %v2671 = vpop.f32.mrf.mxu0
        %v2672 = vadd.f32 0.0, %v2671
        %v2673 = vpop.f32.mrf.mxu0
        %v2674 = vpop.f32.mrf.mxu0
        %v2675 = vadd.f32 0.0, %v2674
        %v2676 = vpop.f32.mrf.mxu0
        %2677 = vmatprep.mubr.bf16.mxu0 0
        %2678 = vmatmul.mubr.bf16.gmra.mxu0 %v2515
        %v2679 = vpop.f32.mrf.mxu0
        %v2680 = vadd.f32 0.0, %v2679
        %v2681 = vpop.f32.mrf.mxu0
        %v2682 = vpop.f32.mrf.mxu0
        %v2683 = vadd.f32 0.0, %v2682
        %v2684 = vpop.f32.mrf.mxu0
        %2685 = vmatprep.mubr.bf16.mxu0 0
        %2686 = vmatmul.mubr.bf16.gmra.mxu0 %v2516
        %v2687 = vpop.f32.mrf.mxu0
        %v2688 = vadd.f32 0.0, %v2687
        %v2689 = vpop.f32.mrf.mxu0
        %v2690 = vpop.f32.mrf.mxu0
        %v2691 = vadd.f32 0.0, %v2690
        %v2692 = vpop.f32.mrf.mxu0
        %2693 = vmatprep.mubr.bf16.mxu0 0
        %2694 = vmatmul.mubr.bf16.gmra.mxu0 %v2517
        %v2695 = vpop.f32.mrf.mxu0
        %v2696 = vadd.f32 0.0, %v2695
        %v2697 = vpop.f32.mrf.mxu0
        %v2698 = vpop.f32.mrf.mxu0
        %v2699 = vadd.f32 0.0, %v2698
        %v2700 = vpop.f32.mrf.mxu0
        %2701 = vmatprep.mubr.bf16.mxu0 0
        %2702 = vmatmul.mubr.bf16.gmra.mxu0 %v2518
        %v2703 = vpop.f32.mrf.mxu0
        %v2704 = vadd.f32 0.0, %v2703
        %v2705 = vpop.f32.mrf.mxu0
        %v2706 = vpop.f32.mrf.mxu0
        %v2707 = vadd.f32 0.0, %v2706
        %v2708 = vpop.f32.mrf.mxu0
        %2709 = vmatprep.mubr.bf16.mxu0 0
        %2710 = vmatmul.mubr.bf16.gmra.mxu0 %v2519
        %v2711 = vpop.f32.mrf.mxu0
        %v2712 = vadd.f32 0.0, %v2711
        %v2713 = vpop.f32.mrf.mxu0
        %v2714 = vpop.f32.mrf.mxu0
        %v2715 = vadd.f32 0.0, %v2714
        %v2716 = vpop.f32.mrf.mxu0
        %2717 = vmatprep.mubr.bf16.mxu0 0
        %2718 = vmatmul.mubr.bf16.gmra.mxu0 %v2520
        %v2719 = vpop.f32.mrf.mxu0
        %v2720 = vadd.f32 0.0, %v2719
        %v2721 = vpop.f32.mrf.mxu0
        %v2722 = vpop.f32.mrf.mxu0
        %v2723 = vadd.f32 0.0, %v2722
        %v2724 = vpop.f32.mrf.mxu0
        %2725 = vmatprep.mubr.bf16.mxu0 0
        %2726 = vmatmul.mubr.bf16.gmra.mxu0 %v2521
        %v2727 = vpop.f32.mrf.mxu0
        %v2728 = vadd.f32 0.0, %v2727
        %v2729 = vpop.f32.mrf.mxu0
        %v2730 = vpop.f32.mrf.mxu0
        %v2731 = vadd.f32 0.0, %v2730
        %v2732 = vpop.f32.mrf.mxu0
        %2733 = vmatprep.mubr.bf16.mxu0 0
        %2734 = vmatmul.mubr.bf16.gmra.mxu0 %v2522
        %v2735 = vpop.f32.mrf.mxu0
        %v2736 = vadd.f32 0.0, %v2735
        %v2737 = vpop.f32.mrf.mxu0
        %v2738 = vpop.f32.mrf.mxu0
        %v2739 = vadd.f32 0.0, %v2738
        %v2740 = vpop.f32.mrf.mxu0
        %2741 = vmatprep.mubr.bf16.mxu0 0
        %2742 = vmatmul.mubr.bf16.gmra.mxu0 %v2523
        %v2743 = vpop.f32.mrf.mxu0
        %v2744 = vadd.f32 0.0, %v2743
        %v2745 = vpop.f32.mrf.mxu0
        %v2746 = vpop.f32.mrf.mxu0
        %v2747 = vadd.f32 0.0, %v2746
        %v2748 = vpop.f32.mrf.mxu0
        %2749 = vdwg.mxu0
        %v2750 = vadd.f32 %v2476, %v2624
        %v2751 = vadd.f32 %v2477, %v2627
        %v2752 = vadd.f32 %v2478, %v2632
        %v2753 = vadd.f32 %v2479, %v2635
        %v2754 = vadd.f32 %v2480, %v2640
        %v2755 = vadd.f32 %v2481, %v2643
        %v2756 = vadd.f32 %v2482, %v2648
        %v2757 = vadd.f32 %v2483, %v2651
        %v2758 = vadd.f32 %v2484, %v2656
        %v2759 = vadd.f32 %v2485, %v2659
        %v2760 = vadd.f32 %v2486, %v2664
        %v2761 = vadd.f32 %v2487, %v2667
        %v2762 = vadd.f32 %v2488, %v2672
        %v2763 = vadd.f32 %v2489, %v2675
        %v2764 = vadd.f32 %v2490, %v2680
        %v2765 = vadd.f32 %v2491, %v2683
        %v2766 = vadd.f32 %v2492, %v2688
        %v2767 = vadd.f32 %v2493, %v2691
        %v2768 = vadd.f32 %v2494, %v2696
        %v2769 = vadd.f32 %v2495, %v2699
        %v2770 = vadd.f32 %v2496, %v2704
        %v2771 = vadd.f32 %v2497, %v2707
        %v2772 = vadd.f32 %v2498, %v2712
        %v2773 = vadd.f32 %v2499, %v2715
        %v2774 = vadd.f32 %v2500, %v2720
        %v2775 = vadd.f32 %v2501, %v2723
        %v2776 = vadd.f32 %v2502, %v2728
        %v2777 = vadd.f32 %v2503, %v2731
        %v2778 = vadd.f32 %v2504, %v2736
        %v2779 = vadd.f32 %v2505, %v2739
        %v2780 = vadd.f32 %v2506, %v2744
        %v2781 = vadd.f32 %v2507, %v2747
        %2782 = vst [vmem:[#allocation4] sm:$0xff] %v2750
        %2783 = vst [vmem:[#allocation4 + $0x8] sm:$0xff] %v2751
        %2784 = vst [vmem:[#allocation4 + $0x10] sm:$0xff] %v2752
        %2785 = vst [vmem:[#allocation4 + $0x18] sm:$0xff] %v2753
        %2786 = vst [vmem:[#allocation4 + $0x20] sm:$0xff] %v2754
        %2787 = vst [vmem:[#allocation4 + $0x28] sm:$0xff] %v2755
        %2788 = vst [vmem:[#allocation4 + $0x30] sm:$0xff] %v2756
        %2789 = vst [vmem:[#allocation4 + $0x38] sm:$0xff] %v2757
        %2790 = vst [vmem:[#allocation4 + $0x40] sm:$0xff] %v2758
        %2791 = vst [vmem:[#allocation4 + $0x48] sm:$0xff] %v2759
        %2792 = vst [vmem:[#allocation4 + $0x50] sm:$0xff] %v2760
        %2793 = vst [vmem:[#allocation4 + $0x58] sm:$0xff] %v2761
        %2794 = vst [vmem:[#allocation4 + $0x60] sm:$0xff] %v2762
        %2795 = vst [vmem:[#allocation4 + $0x68] sm:$0xff] %v2763
        %2796 = vst [vmem:[#allocation4 + $0x70] sm:$0xff] %v2764
        %2797 = vst [vmem:[#allocation4 + $0x78] sm:$0xff] %v2765
        %2798 = vst [vmem:[#allocation4 + $0x80] sm:$0xff] %v2766
        %2799 = vst [vmem:[#allocation4 + $0x88] sm:$0xff] %v2767
        %2800 = vst [vmem:[#allocation4 + $0x90] sm:$0xff] %v2768
        %2801 = vst [vmem:[#allocation4 + $0x98] sm:$0xff] %v2769
        %2802 = vst [vmem:[#allocation4 + $0xa0] sm:$0xff] %v2770
        %2803 = vst [vmem:[#allocation4 + $0xa8] sm:$0xff] %v2771
        %2804 = vst [vmem:[#allocation4 + $0xb0] sm:$0xff] %v2772
        %2805 = vst [vmem:[#allocation4 + $0xb8] sm:$0xff] %v2773
        %2806 = vst [vmem:[#allocation4 + $0xc0] sm:$0xff] %v2774
        %2807 = vst [vmem:[#allocation4 + $0xc8] sm:$0xff] %v2775
        %2808 = vst [vmem:[#allocation4 + $0xd0] sm:$0xff] %v2776
        %2809 = vst [vmem:[#allocation4 + $0xd8] sm:$0xff] %v2777
        %2810 = vst [vmem:[#allocation4 + $0xe0] sm:$0xff] %v2778
        %2811 = vst [vmem:[#allocation4 + $0xe8] sm:$0xff] %v2779
        %2812 = vst [vmem:[#allocation4 + $0xf0] sm:$0xff] %v2780
        %2813 = vst [vmem:[#allocation4 + $0xf8] sm:$0xff] %v2781
        %v2814 = vld [vmem:[#allocation2 + $0x19] sm:$0xff]
        %v2815 = vld [vmem:[#allocation2 + $0x21] sm:$0xff]
        %v2816 = vld [vmem:[#allocation2 + $0x29] sm:$0xff]
        %v2817 = vld [vmem:[#allocation2 + $0x31] sm:$0xff]
        %v2818 = vld [vmem:[#allocation2 + $0x39] sm:$0xff]
        %v2819 = vld [vmem:[#allocation2 + $0x41] sm:$0xff]
        %v2820 = vld [vmem:[#allocation2 + $0x49] sm:$0xff]
        %v2821 = vld [vmem:[#allocation2 + $0x51] sm:$0xff]
        %v2822 = vld [vmem:[#allocation2 + $0x59] sm:$0xff]
        %v2823 = vld [vmem:[#allocation2 + $0x61] sm:$0xff]
        %v2824 = vld [vmem:[#allocation2 + $0x69] sm:$0xff]
        %v2825 = vld [vmem:[#allocation2 + $0x71] sm:$0xff]
        %v2826 = vld [vmem:[#allocation2 + $0x79] sm:$0xff]
        %v2827 = vld [vmem:[#allocation2 + $0x81] sm:$0xff]
        %v2828 = vld [vmem:[#allocation2 + $0x89] sm:$0xff]
        %v2829 = vld [vmem:[#allocation2 + $0x91] sm:$0xff]
        %v2830 = vld [vmem:[#allocation2 + $0x99] sm:$0xff]
        %v2831 = vld [vmem:[#allocation2 + $0xa1] sm:$0xff]
        %v2832 = vld [vmem:[#allocation2 + $0xa9] sm:$0xff]
        %v2833 = vld [vmem:[#allocation2 + $0xb1] sm:$0xff]
        %v2834 = vld [vmem:[#allocation2 + $0xb9] sm:$0xff]
        %v2835 = vld [vmem:[#allocation2 + $0xc1] sm:$0xff]
        %v2836 = vld [vmem:[#allocation2 + $0xc9] sm:$0xff]
        %v2837 = vld [vmem:[#allocation2 + $0xd1] sm:$0xff]
        %v2838 = vld [vmem:[#allocation2 + $0xd9] sm:$0xff]
        %v2839 = vld [vmem:[#allocation2 + $0xe1] sm:$0xff]
        %v2840 = vld [vmem:[#allocation2 + $0xe9] sm:$0xff]
        %v2841 = vld [vmem:[#allocation2 + $0xf1] sm:$0xff]
        %v2842 = vld [vmem:[#allocation2 + $0xf9] sm:$0xff]
        %v2843 = vld [vmem:[#allocation2 + $0x101] sm:$0xff]
        %v2844 = vld [vmem:[#allocation2 + $0x109] sm:$0xff]
        %v2845 = vld [vmem:[#allocation2 + $0x111] sm:$0xff]
        %v2846 = vsel %vm1640, %v2814, 0.0
        %v2847 = vsel %vm1641, %v2815, 0.0
        %v2848 = vsel %vm1642, %v2816, 0.0
        %v2849 = vsel %vm1643, %v2817, 0.0
        %v2850 = vsel %vm1644, %v2818, 0.0
        %v2851 = vsel %vm1645, %v2819, 0.0
        %v2852 = vsel %vm1646, %v2820, 0.0
        %v2853 = vsel %vm1647, %v2821, 0.0
        %v2854 = vsel %vm1648, %v2822, 0.0
        %v2855 = vsel %vm1649, %v2823, 0.0
        %v2856 = vsel %vm1650, %v2824, 0.0
        %v2857 = vsel %vm1651, %v2825, 0.0
        %v2858 = vsel %vm1652, %v2826, 0.0
        %v2859 = vsel %vm1653, %v2827, 0.0
        %v2860 = vsel %vm1654, %v2828, 0.0
        %v2861 = vsel %vm1655, %v2829, 0.0
        %v2862 = vsel %vm1656, %v2830, 0.0
        %v2863 = vsel %vm1657, %v2831, 0.0
        %v2864 = vsel %vm1658, %v2832, 0.0
        %v2865 = vsel %vm1659, %v2833, 0.0
        %v2866 = vsel %vm1660, %v2834, 0.0
        %v2867 = vsel %vm1661, %v2835, 0.0
        %v2868 = vsel %vm1662, %v2836, 0.0
        %v2869 = vsel %vm1663, %v2837, 0.0
        %v2870 = vsel %vm1664, %v2838, 0.0
        %v2871 = vsel %vm1665, %v2839, 0.0
        %v2872 = vsel %vm1666, %v2840, 0.0
        %v2873 = vsel %vm1667, %v2841, 0.0
        %v2874 = vsel %vm1668, %v2842, 0.0
        %v2875 = vsel %vm1669, %v2843, 0.0
        %v2876 = vsel %vm1670, %v2844, 0.0
        %v2877 = vsel %vm1671, %v2845, 0.0
        %v2878 = vld [vmem:[#allocation4] sm:$0xff]
        %v2879 = vld [vmem:[#allocation4 + $0x8] sm:$0xff]
        %v2880 = vld [vmem:[#allocation4 + $0x10] sm:$0xff]
        %v2881 = vld [vmem:[#allocation4 + $0x18] sm:$0xff]
        %v2882 = vld [vmem:[#allocation4 + $0x20] sm:$0xff]
        %v2883 = vld [vmem:[#allocation4 + $0x28] sm:$0xff]
        %v2884 = vld [vmem:[#allocation4 + $0x30] sm:$0xff]
        %v2885 = vld [vmem:[#allocation4 + $0x38] sm:$0xff]
        %v2886 = vld [vmem:[#allocation4 + $0x40] sm:$0xff]
        %v2887 = vld [vmem:[#allocation4 + $0x48] sm:$0xff]
        %v2888 = vld [vmem:[#allocation4 + $0x50] sm:$0xff]
        %v2889 = vld [vmem:[#allocation4 + $0x58] sm:$0xff]
        %v2890 = vld [vmem:[#allocation4 + $0x60] sm:$0xff]
        %v2891 = vld [vmem:[#allocation4 + $0x68] sm:$0xff]
        %v2892 = vld [vmem:[#allocation4 + $0x70] sm:$0xff]
        %v2893 = vld [vmem:[#allocation4 + $0x78] sm:$0xff]
        %v2894 = vld [vmem:[#allocation4 + $0x80] sm:$0xff]
        %v2895 = vld [vmem:[#allocation4 + $0x88] sm:$0xff]
        %v2896 = vld [vmem:[#allocation4 + $0x90] sm:$0xff]
        %v2897 = vld [vmem:[#allocation4 + $0x98] sm:$0xff]
        %v2898 = vld [vmem:[#allocation4 + $0xa0] sm:$0xff]
        %v2899 = vld [vmem:[#allocation4 + $0xa8] sm:$0xff]
        %v2900 = vld [vmem:[#allocation4 + $0xb0] sm:$0xff]
        %v2901 = vld [vmem:[#allocation4 + $0xb8] sm:$0xff]
        %v2902 = vld [vmem:[#allocation4 + $0xc0] sm:$0xff]
        %v2903 = vld [vmem:[#allocation4 + $0xc8] sm:$0xff]
        %v2904 = vld [vmem:[#allocation4 + $0xd0] sm:$0xff]
        %v2905 = vld [vmem:[#allocation4 + $0xd8] sm:$0xff]
        %v2906 = vld [vmem:[#allocation4 + $0xe0] sm:$0xff]
        %v2907 = vld [vmem:[#allocation4 + $0xe8] sm:$0xff]
        %v2908 = vld [vmem:[#allocation4 + $0xf0] sm:$0xff]
        %v2909 = vld [vmem:[#allocation4 + $0xf8] sm:$0xff]
        %v2910 = vpack.c.bf16 %v2847, %v2846
        %v2911 = vpack.c.bf16 %v2849, %v2848
        %v2912 = vpack.c.bf16 %v2851, %v2850
        %v2913 = vpack.c.bf16 %v2853, %v2852
        %v2914 = vpack.c.bf16 %v2855, %v2854
        %v2915 = vpack.c.bf16 %v2857, %v2856
        %v2916 = vpack.c.bf16 %v2859, %v2858
        %v2917 = vpack.c.bf16 %v2861, %v2860
        %v2918 = vpack.c.bf16 %v2863, %v2862
        %v2919 = vpack.c.bf16 %v2865, %v2864
        %v2920 = vpack.c.bf16 %v2867, %v2866
        %v2921 = vpack.c.bf16 %v2869, %v2868
        %v2922 = vpack.c.bf16 %v2871, %v2870
        %v2923 = vpack.c.bf16 %v2873, %v2872
        %v2924 = vpack.c.bf16 %v2875, %v2874
        %v2925 = vpack.c.bf16 %v2877, %v2876
        %s2926 = scalar_lea.vmem [#allocation8], 320
        %v2927 = vld [vmem:[%s2926] sm:$0xf]
        %v2928 = vld [vmem:[%s2926 + $0x4] sm:$0xf]
        %v2929 = vld [vmem:[%s2926 + $0x8] sm:$0xf]
        %v2930 = vld [vmem:[%s2926 + $0xc] sm:$0xf]
        %v2931 = vld [vmem:[%s2926 + $0x10] sm:$0xf]
        %v2932 = vld [vmem:[%s2926 + $0x14] sm:$0xf]
        %v2933 = vld [vmem:[%s2926 + $0x18] sm:$0xf]
        %v2934 = vld [vmem:[%s2926 + $0x1c] sm:$0xf]
        %v2935 = vld [vmem:[%s2926 + $0x20] sm:$0xf]
        %v2936 = vld [vmem:[%s2926 + $0x24] sm:$0xf]
        %v2937 = vld [vmem:[%s2926 + $0x28] sm:$0xf]
        %v2938 = vld [vmem:[%s2926 + $0x2c] sm:$0xf]
        %v2939 = vld [vmem:[%s2926 + $0x30] sm:$0xf]
        %v2940 = vld [vmem:[%s2926 + $0x34] sm:$0xf]
        %v2941 = vld [vmem:[%s2926 + $0x38] sm:$0xf]
        %v2942 = vld [vmem:[%s2926 + $0x3c] sm:$0xf]
        %v2959 = vunpack.c.l.b16 %v2927
        %v2960 = vunpack.c.l.b16 %v2928
        %v2961 = vunpack.c.l.b16 %v2929
        %v2962 = vunpack.c.l.b16 %v2930
        %v2963 = vunpack.c.l.b16 %v2931
        %v2964 = vunpack.c.l.b16 %v2932
        %v2965 = vunpack.c.l.b16 %v2933
        %v2966 = vunpack.c.l.b16 %v2934
        %v2967 = vunpack.c.l.b16 %v2935
        %v2968 = vunpack.c.l.b16 %v2936
        %v2969 = vunpack.c.l.b16 %v2937
        %v2970 = vunpack.c.l.b16 %v2938
        %v2971 = vunpack.c.l.b16 %v2939
        %v2972 = vunpack.c.l.b16 %v2940
        %v2973 = vunpack.c.l.b16 %v2941
        %v2974 = vunpack.c.l.b16 %v2942
        %v2975 = vpack.c.b16 %v2960, %v2959
        %v2976 = vpack.c.b16 %v2962, %v2961
        %v2977 = vpack.c.b16 %v2964, %v2963
        %v2978 = vpack.c.b16 %v2966, %v2965
        %v2979 = vpack.c.b16 %v2968, %v2967
        %v2980 = vpack.c.b16 %v2970, %v2969
        %v2981 = vpack.c.b16 %v2972, %v2971
        %v2982 = vpack.c.b16 %v2974, %v2973
        %2991 = vmatprep.subr.bf16.mxu0 0
        %2992 = vmatpush1.bf16.msra.mxu0 %v2982
        %2993 = vmatprep.subr.bf16.mxu0 0
        %2994 = vmatpush1.bf16.msra.mxu0 %v2981
        %2995 = vmatprep.subr.bf16.mxu0 0
        %2996 = vmatpush1.bf16.msra.mxu0 %v2980
        %2997 = vmatprep.subr.bf16.mxu0 0
        %2998 = vmatpush1.bf16.msra.mxu0 %v2979
        %2999 = vmatprep.subr.bf16.mxu0 0
        %3000 = vmatpush1.bf16.msra.mxu0 %v2978
        %3001 = vmatprep.subr.bf16.mxu0 0
        %3002 = vmatpush1.bf16.msra.mxu0 %v2977
        %3003 = vmatprep.subr.bf16.mxu0 0
        %3004 = vmatpush1.bf16.msra.mxu0 %v2976
        %3005 = vmatprep.subr.bf16.mxu0 0
        %3006 = vmatpush1.bf16.msra.mxu0 %v2975
        %3007 = vmatprep.subr.bf16.mxu0 0
        %3008 = vmatpush2.bf16.msra.mxu0 0
        %3009 = vmatprep.subr.bf16.mxu0 0
        %3010 = vmatpush2.bf16.msra.mxu0 0
        %3011 = vmatprep.subr.bf16.mxu0 0
        %3012 = vmatpush2.bf16.msra.mxu0 0
        %3013 = vmatprep.subr.bf16.mxu0 0
        %3014 = vmatpush2.bf16.msra.mxu0 0
        %3015 = vmatprep.subr.bf16.mxu0 0
        %3016 = vmatpush2.bf16.msra.mxu0 0
        %3017 = vmatprep.subr.bf16.mxu0 0
        %3018 = vmatpush2.bf16.msra.mxu0 0
        %3019 = vmatprep.subr.bf16.mxu0 0
        %3020 = vmatpush2.bf16.msra.mxu0 0
        %3021 = vmatprep.subr.bf16.mxu0 0
        %3022 = vmatpush2.bf16.msra.mxu0 0
        %3023 = vmatprep.mubr.bf16.mxu0 0
        %3024 = vmatmul.mubr.bf16.gmra.mxu0 %v2910
        %v3025 = vpop.f32.mrf.mxu0
        %v3026 = vadd.f32 0.0, %v3025
        %v3027 = vpop.f32.mrf.mxu0
        %v3028 = vpop.f32.mrf.mxu0
        %v3029 = vadd.f32 0.0, %v3028
        %v3030 = vpop.f32.mrf.mxu0
        %3031 = vmatprep.mubr.bf16.mxu0 0
        %3032 = vmatmul.mubr.bf16.gmra.mxu0 %v2911
        %v3033 = vpop.f32.mrf.mxu0
        %v3034 = vadd.f32 0.0, %v3033
        %v3035 = vpop.f32.mrf.mxu0
        %v3036 = vpop.f32.mrf.mxu0
        %v3037 = vadd.f32 0.0, %v3036
        %v3038 = vpop.f32.mrf.mxu0
        %3039 = vmatprep.mubr.bf16.mxu0 0
        %3040 = vmatmul.mubr.bf16.gmra.mxu0 %v2912
        %v3041 = vpop.f32.mrf.mxu0
        %v3042 = vadd.f32 0.0, %v3041
        %v3043 = vpop.f32.mrf.mxu0
        %v3044 = vpop.f32.mrf.mxu0
        %v3045 = vadd.f32 0.0, %v3044
        %v3046 = vpop.f32.mrf.mxu0
        %3047 = vmatprep.mubr.bf16.mxu0 0
        %3048 = vmatmul.mubr.bf16.gmra.mxu0 %v2913
        %v3049 = vpop.f32.mrf.mxu0
        %v3050 = vadd.f32 0.0, %v3049
        %v3051 = vpop.f32.mrf.mxu0
        %v3052 = vpop.f32.mrf.mxu0
        %v3053 = vadd.f32 0.0, %v3052
        %v3054 = vpop.f32.mrf.mxu0
        %3055 = vmatprep.mubr.bf16.mxu0 0
        %3056 = vmatmul.mubr.bf16.gmra.mxu0 %v2914
        %v3057 = vpop.f32.mrf.mxu0
        %v3058 = vadd.f32 0.0, %v3057
        %v3059 = vpop.f32.mrf.mxu0
        %v3060 = vpop.f32.mrf.mxu0
        %v3061 = vadd.f32 0.0, %v3060
        %v3062 = vpop.f32.mrf.mxu0
        %3063 = vmatprep.mubr.bf16.mxu0 0
        %3064 = vmatmul.mubr.bf16.gmra.mxu0 %v2915
        %v3065 = vpop.f32.mrf.mxu0
        %v3066 = vadd.f32 0.0, %v3065
        %v3067 = vpop.f32.mrf.mxu0
        %v3068 = vpop.f32.mrf.mxu0
        %v3069 = vadd.f32 0.0, %v3068
        %v3070 = vpop.f32.mrf.mxu0
        %3071 = vmatprep.mubr.bf16.mxu0 0
        %3072 = vmatmul.mubr.bf16.gmra.mxu0 %v2916
        %v3073 = vpop.f32.mrf.mxu0
        %v3074 = vadd.f32 0.0, %v3073
        %v3075 = vpop.f32.mrf.mxu0
        %v3076 = vpop.f32.mrf.mxu0
        %v3077 = vadd.f32 0.0, %v3076
        %v3078 = vpop.f32.mrf.mxu0
        %3079 = vmatprep.mubr.bf16.mxu0 0
        %3080 = vmatmul.mubr.bf16.gmra.mxu0 %v2917
        %v3081 = vpop.f32.mrf.mxu0
        %v3082 = vadd.f32 0.0, %v3081
        %v3083 = vpop.f32.mrf.mxu0
        %v3084 = vpop.f32.mrf.mxu0
        %v3085 = vadd.f32 0.0, %v3084
        %v3086 = vpop.f32.mrf.mxu0
        %3087 = vmatprep.mubr.bf16.mxu0 0
        %3088 = vmatmul.mubr.bf16.gmra.mxu0 %v2918
        %v3089 = vpop.f32.mrf.mxu0
        %v3090 = vadd.f32 0.0, %v3089
        %v3091 = vpop.f32.mrf.mxu0
        %v3092 = vpop.f32.mrf.mxu0
        %v3093 = vadd.f32 0.0, %v3092
        %v3094 = vpop.f32.mrf.mxu0
        %3095 = vmatprep.mubr.bf16.mxu0 0
        %3096 = vmatmul.mubr.bf16.gmra.mxu0 %v2919
        %v3097 = vpop.f32.mrf.mxu0
        %v3098 = vadd.f32 0.0, %v3097
        %v3099 = vpop.f32.mrf.mxu0
        %v3100 = vpop.f32.mrf.mxu0
        %v3101 = vadd.f32 0.0, %v3100
        %v3102 = vpop.f32.mrf.mxu0
        %3103 = vmatprep.mubr.bf16.mxu0 0
        %3104 = vmatmul.mubr.bf16.gmra.mxu0 %v2920
        %v3105 = vpop.f32.mrf.mxu0
        %v3106 = vadd.f32 0.0, %v3105
        %v3107 = vpop.f32.mrf.mxu0
        %v3108 = vpop.f32.mrf.mxu0
        %v3109 = vadd.f32 0.0, %v3108
        %v3110 = vpop.f32.mrf.mxu0
        %3111 = vmatprep.mubr.bf16.mxu0 0
        %3112 = vmatmul.mubr.bf16.gmra.mxu0 %v2921
        %v3113 = vpop.f32.mrf.mxu0
        %v3114 = vadd.f32 0.0, %v3113
        %v3115 = vpop.f32.mrf.mxu0
        %v3116 = vpop.f32.mrf.mxu0
        %v3117 = vadd.f32 0.0, %v3116
        %v3118 = vpop.f32.mrf.mxu0
        %3119 = vmatprep.mubr.bf16.mxu0 0
        %3120 = vmatmul.mubr.bf16.gmra.mxu0 %v2922
        %v3121 = vpop.f32.mrf.mxu0
        %v3122 = vadd.f32 0.0, %v3121
        %v3123 = vpop.f32.mrf.mxu0
        %v3124 = vpop.f32.mrf.mxu0
        %v3125 = vadd.f32 0.0, %v3124
        %v3126 = vpop.f32.mrf.mxu0
        %3127 = vmatprep.mubr.bf16.mxu0 0
        %3128 = vmatmul.mubr.bf16.gmra.mxu0 %v2923
        %v3129 = vpop.f32.mrf.mxu0
        %v3130 = vadd.f32 0.0, %v3129
        %v3131 = vpop.f32.mrf.mxu0
        %v3132 = vpop.f32.mrf.mxu0
        %v3133 = vadd.f32 0.0, %v3132
        %v3134 = vpop.f32.mrf.mxu0
        %3135 = vmatprep.mubr.bf16.mxu0 0
        %3136 = vmatmul.mubr.bf16.gmra.mxu0 %v2924
        %v3137 = vpop.f32.mrf.mxu0
        %v3138 = vadd.f32 0.0, %v3137
        %v3139 = vpop.f32.mrf.mxu0
        %v3140 = vpop.f32.mrf.mxu0
        %v3141 = vadd.f32 0.0, %v3140
        %v3142 = vpop.f32.mrf.mxu0
        %3143 = vmatprep.mubr.bf16.mxu0 0
        %3144 = vmatmul.mubr.bf16.gmra.mxu0 %v2925
        %v3145 = vpop.f32.mrf.mxu0
        %v3146 = vadd.f32 0.0, %v3145
        %v3147 = vpop.f32.mrf.mxu0
        %v3148 = vpop.f32.mrf.mxu0
        %v3149 = vadd.f32 0.0, %v3148
        %v3150 = vpop.f32.mrf.mxu0
        %3151 = vdwg.mxu0
        %v3152 = vadd.f32 %v2878, %v3026
        %v3153 = vadd.f32 %v2879, %v3029
        %v3154 = vadd.f32 %v2880, %v3034
        %v3155 = vadd.f32 %v2881, %v3037
        %v3156 = vadd.f32 %v2882, %v3042
        %v3157 = vadd.f32 %v2883, %v3045
        %v3158 = vadd.f32 %v2884, %v3050
        %v3159 = vadd.f32 %v2885, %v3053
        %v3160 = vadd.f32 %v2886, %v3058
        %v3161 = vadd.f32 %v2887, %v3061
        %v3162 = vadd.f32 %v2888, %v3066
        %v3163 = vadd.f32 %v2889, %v3069
        %v3164 = vadd.f32 %v2890, %v3074
        %v3165 = vadd.f32 %v2891, %v3077
        %v3166 = vadd.f32 %v2892, %v3082
        %v3167 = vadd.f32 %v2893, %v3085
        %v3168 = vadd.f32 %v2894, %v3090
        %v3169 = vadd.f32 %v2895, %v3093
        %v3170 = vadd.f32 %v2896, %v3098
        %v3171 = vadd.f32 %v2897, %v3101
        %v3172 = vadd.f32 %v2898, %v3106
        %v3173 = vadd.f32 %v2899, %v3109
        %v3174 = vadd.f32 %v2900, %v3114
        %v3175 = vadd.f32 %v2901, %v3117
        %v3176 = vadd.f32 %v2902, %v3122
        %v3177 = vadd.f32 %v2903, %v3125
        %v3178 = vadd.f32 %v2904, %v3130
        %v3179 = vadd.f32 %v2905, %v3133
        %v3180 = vadd.f32 %v2906, %v3138
        %v3181 = vadd.f32 %v2907, %v3141
        %v3182 = vadd.f32 %v2908, %v3146
        %v3183 = vadd.f32 %v2909, %v3149
        %3184 = vst [vmem:[#allocation4] sm:$0xff] %v3152
        %3185 = vst [vmem:[#allocation4 + $0x8] sm:$0xff] %v3153
        %3186 = vst [vmem:[#allocation4 + $0x10] sm:$0xff] %v3154
        %3187 = vst [vmem:[#allocation4 + $0x18] sm:$0xff] %v3155
        %3188 = vst [vmem:[#allocation4 + $0x20] sm:$0xff] %v3156
        %3189 = vst [vmem:[#allocation4 + $0x28] sm:$0xff] %v3157
        %3190 = vst [vmem:[#allocation4 + $0x30] sm:$0xff] %v3158
        %3191 = vst [vmem:[#allocation4 + $0x38] sm:$0xff] %v3159
        %3192 = vst [vmem:[#allocation4 + $0x40] sm:$0xff] %v3160
        %3193 = vst [vmem:[#allocation4 + $0x48] sm:$0xff] %v3161
        %3194 = vst [vmem:[#allocation4 + $0x50] sm:$0xff] %v3162
        %3195 = vst [vmem:[#allocation4 + $0x58] sm:$0xff] %v3163
        %3196 = vst [vmem:[#allocation4 + $0x60] sm:$0xff] %v3164
        %3197 = vst [vmem:[#allocation4 + $0x68] sm:$0xff] %v3165
        %3198 = vst [vmem:[#allocation4 + $0x70] sm:$0xff] %v3166
        %3199 = vst [vmem:[#allocation4 + $0x78] sm:$0xff] %v3167
        %3200 = vst [vmem:[#allocation4 + $0x80] sm:$0xff] %v3168
        %3201 = vst [vmem:[#allocation4 + $0x88] sm:$0xff] %v3169
        %3202 = vst [vmem:[#allocation4 + $0x90] sm:$0xff] %v3170
        %3203 = vst [vmem:[#allocation4 + $0x98] sm:$0xff] %v3171
        %3204 = vst [vmem:[#allocation4 + $0xa0] sm:$0xff] %v3172
        %3205 = vst [vmem:[#allocation4 + $0xa8] sm:$0xff] %v3173
        %3206 = vst [vmem:[#allocation4 + $0xb0] sm:$0xff] %v3174
        %3207 = vst [vmem:[#allocation4 + $0xb8] sm:$0xff] %v3175
        %3208 = vst [vmem:[#allocation4 + $0xc0] sm:$0xff] %v3176
        %3209 = vst [vmem:[#allocation4 + $0xc8] sm:$0xff] %v3177
        %3210 = vst [vmem:[#allocation4 + $0xd0] sm:$0xff] %v3178
        %3211 = vst [vmem:[#allocation4 + $0xd8] sm:$0xff] %v3179
        %3212 = vst [vmem:[#allocation4 + $0xe0] sm:$0xff] %v3180
        %3213 = vst [vmem:[#allocation4 + $0xe8] sm:$0xff] %v3181
        %3214 = vst [vmem:[#allocation4 + $0xf0] sm:$0xff] %v3182
        %3215 = vst [vmem:[#allocation4 + $0xf8] sm:$0xff] %v3183
        %v3216 = vld [vmem:[#allocation2 + $0x27] sm:$0xff]
        %v3217 = vld [vmem:[#allocation2 + $0x2f] sm:$0xff]
        %v3218 = vld [vmem:[#allocation2 + $0x37] sm:$0xff]
        %v3219 = vld [vmem:[#allocation2 + $0x3f] sm:$0xff]
        %v3220 = vld [vmem:[#allocation2 + $0x47] sm:$0xff]
        %v3221 = vld [vmem:[#allocation2 + $0x4f] sm:$0xff]
        %v3222 = vld [vmem:[#allocation2 + $0x57] sm:$0xff]
        %v3223 = vld [vmem:[#allocation2 + $0x5f] sm:$0xff]
        %v3224 = vld [vmem:[#allocation2 + $0x67] sm:$0xff]
        %v3225 = vld [vmem:[#allocation2 + $0x6f] sm:$0xff]
        %v3226 = vld [vmem:[#allocation2 + $0x77] sm:$0xff]
        %v3227 = vld [vmem:[#allocation2 + $0x7f] sm:$0xff]
        %v3228 = vld [vmem:[#allocation2 + $0x87] sm:$0xff]
        %v3229 = vld [vmem:[#allocation2 + $0x8f] sm:$0xff]
        %v3230 = vld [vmem:[#allocation2 + $0x97] sm:$0xff]
        %v3231 = vld [vmem:[#allocation2 + $0x9f] sm:$0xff]
        %v3232 = vld [vmem:[#allocation2 + $0xa7] sm:$0xff]
        %v3233 = vld [vmem:[#allocation2 + $0xaf] sm:$0xff]
        %v3234 = vld [vmem:[#allocation2 + $0xb7] sm:$0xff]
        %v3235 = vld [vmem:[#allocation2 + $0xbf] sm:$0xff]
        %v3236 = vld [vmem:[#allocation2 + $0xc7] sm:$0xff]
        %v3237 = vld [vmem:[#allocation2 + $0xcf] sm:$0xff]
        %v3238 = vld [vmem:[#allocation2 + $0xd7] sm:$0xff]
        %v3239 = vld [vmem:[#allocation2 + $0xdf] sm:$0xff]
        %v3240 = vld [vmem:[#allocation2 + $0xe7] sm:$0xff]
        %v3241 = vld [vmem:[#allocation2 + $0xef] sm:$0xff]
        %v3242 = vld [vmem:[#allocation2 + $0xf7] sm:$0xff]
        %v3243 = vld [vmem:[#allocation2 + $0xff] sm:$0xff]
        %v3244 = vld [vmem:[#allocation2 + $0x107] sm:$0xff]
        %v3245 = vld [vmem:[#allocation2 + $0x10f] sm:$0xff]
        %v3246 = vld [vmem:[#allocation2 + $0x117] sm:$0xff]
        %v3247 = vld [vmem:[#allocation2 + $0x11f] sm:$0xff]
        %v3248 = vsel %vm837, %v3216, 0.0
        %v3249 = vsel %vm838, %v3217, 0.0
        %v3250 = vsel %vm839, %v3218, 0.0
        %v3251 = vsel %vm840, %v3219, 0.0
        %v3252 = vsel %vm841, %v3220, 0.0
        %v3253 = vsel %vm842, %v3221, 0.0
        %v3254 = vsel %vm843, %v3222, 0.0
        %v3255 = vsel %vm844, %v3223, 0.0
        %v3256 = vsel %vm845, %v3224, 0.0
        %v3257 = vsel %vm846, %v3225, 0.0
        %v3258 = vsel %vm847, %v3226, 0.0
        %v3259 = vsel %vm848, %v3227, 0.0
        %v3260 = vsel %vm849, %v3228, 0.0
        %v3261 = vsel %vm850, %v3229, 0.0
        %v3262 = vsel %vm851, %v3230, 0.0
        %v3263 = vsel %vm852, %v3231, 0.0
        %v3264 = vsel %vm853, %v3232, 0.0
        %v3265 = vsel %vm854, %v3233, 0.0
        %v3266 = vsel %vm855, %v3234, 0.0
        %v3267 = vsel %vm856, %v3235, 0.0
        %v3268 = vsel %vm857, %v3236, 0.0
        %v3269 = vsel %vm858, %v3237, 0.0
        %v3270 = vsel %vm859, %v3238, 0.0
        %v3271 = vsel %vm860, %v3239, 0.0
        %v3272 = vsel %vm861, %v3240, 0.0
        %v3273 = vsel %vm862, %v3241, 0.0
        %v3274 = vsel %vm863, %v3242, 0.0
        %v3275 = vsel %vm864, %v3243, 0.0
        %v3276 = vsel %vm865, %v3244, 0.0
        %v3277 = vsel %vm866, %v3245, 0.0
        %v3278 = vsel %vm867, %v3246, 0.0
        %v3279 = vsel %vm868, %v3247, 0.0
        %v3280 = vld [vmem:[#allocation4] sm:$0xff]
        %v3281 = vld [vmem:[#allocation4 + $0x8] sm:$0xff]
        %v3282 = vld [vmem:[#allocation4 + $0x10] sm:$0xff]
        %v3283 = vld [vmem:[#allocation4 + $0x18] sm:$0xff]
        %v3284 = vld [vmem:[#allocation4 + $0x20] sm:$0xff]
        %v3285 = vld [vmem:[#allocation4 + $0x28] sm:$0xff]
        %v3286 = vld [vmem:[#allocation4 + $0x30] sm:$0xff]
        %v3287 = vld [vmem:[#allocation4 + $0x38] sm:$0xff]
        %v3288 = vld [vmem:[#allocation4 + $0x40] sm:$0xff]
        %v3289 = vld [vmem:[#allocation4 + $0x48] sm:$0xff]
        %v3290 = vld [vmem:[#allocation4 + $0x50] sm:$0xff]
        %v3291 = vld [vmem:[#allocation4 + $0x58] sm:$0xff]
        %v3292 = vld [vmem:[#allocation4 + $0x60] sm:$0xff]
        %v3293 = vld [vmem:[#allocation4 + $0x68] sm:$0xff]
        %v3294 = vld [vmem:[#allocation4 + $0x70] sm:$0xff]
        %v3295 = vld [vmem:[#allocation4 + $0x78] sm:$0xff]
        %v3296 = vld [vmem:[#allocation4 + $0x80] sm:$0xff]
        %v3297 = vld [vmem:[#allocation4 + $0x88] sm:$0xff]
        %v3298 = vld [vmem:[#allocation4 + $0x90] sm:$0xff]
        %v3299 = vld [vmem:[#allocation4 + $0x98] sm:$0xff]
        %v3300 = vld [vmem:[#allocation4 + $0xa0] sm:$0xff]
        %v3301 = vld [vmem:[#allocation4 + $0xa8] sm:$0xff]
        %v3302 = vld [vmem:[#allocation4 + $0xb0] sm:$0xff]
        %v3303 = vld [vmem:[#allocation4 + $0xb8] sm:$0xff]
        %v3304 = vld [vmem:[#allocation4 + $0xc0] sm:$0xff]
        %v3305 = vld [vmem:[#allocation4 + $0xc8] sm:$0xff]
        %v3306 = vld [vmem:[#allocation4 + $0xd0] sm:$0xff]
        %v3307 = vld [vmem:[#allocation4 + $0xd8] sm:$0xff]
        %v3308 = vld [vmem:[#allocation4 + $0xe0] sm:$0xff]
        %v3309 = vld [vmem:[#allocation4 + $0xe8] sm:$0xff]
        %v3310 = vld [vmem:[#allocation4 + $0xf0] sm:$0xff]
        %v3311 = vld [vmem:[#allocation4 + $0xf8] sm:$0xff]
        %v3312 = vpack.c.bf16 %v3249, %v3248
        %v3313 = vpack.c.bf16 %v3251, %v3250
        %v3314 = vpack.c.bf16 %v3253, %v3252
        %v3315 = vpack.c.bf16 %v3255, %v3254
        %v3316 = vpack.c.bf16 %v3257, %v3256
        %v3317 = vpack.c.bf16 %v3259, %v3258
        %v3318 = vpack.c.bf16 %v3261, %v3260
        %v3319 = vpack.c.bf16 %v3263, %v3262
        %v3320 = vpack.c.bf16 %v3265, %v3264
        %v3321 = vpack.c.bf16 %v3267, %v3266
        %v3322 = vpack.c.bf16 %v3269, %v3268
        %v3323 = vpack.c.bf16 %v3271, %v3270
        %v3324 = vpack.c.bf16 %v3273, %v3272
        %v3325 = vpack.c.bf16 %v3275, %v3274
        %v3326 = vpack.c.bf16 %v3277, %v3276
        %v3327 = vpack.c.bf16 %v3279, %v3278
        %s3328 = scalar_lea.vmem [#allocation8], 384
        %v3329 = vld [vmem:[%s3328] sm:$0xf]
        %v3330 = vld [vmem:[%s3328 + $0x4] sm:$0xf]
        %v3331 = vld [vmem:[%s3328 + $0x8] sm:$0xf]
        %v3332 = vld [vmem:[%s3328 + $0xc] sm:$0xf]
        %v3333 = vld [vmem:[%s3328 + $0x10] sm:$0xf]
        %v3334 = vld [vmem:[%s3328 + $0x14] sm:$0xf]
        %v3335 = vld [vmem:[%s3328 + $0x18] sm:$0xf]
        %v3336 = vld [vmem:[%s3328 + $0x1c] sm:$0xf]
        %v3337 = vld [vmem:[%s3328 + $0x20] sm:$0xf]
        %v3338 = vld [vmem:[%s3328 + $0x24] sm:$0xf]
        %v3339 = vld [vmem:[%s3328 + $0x28] sm:$0xf]
        %v3340 = vld [vmem:[%s3328 + $0x2c] sm:$0xf]
        %v3341 = vld [vmem:[%s3328 + $0x30] sm:$0xf]
        %v3342 = vld [vmem:[%s3328 + $0x34] sm:$0xf]
        %v3343 = vld [vmem:[%s3328 + $0x38] sm:$0xf]
        %v3344 = vld [vmem:[%s3328 + $0x3c] sm:$0xf]
        %v3361 = vunpack.c.l.b16 %v3329
        %v3362 = vunpack.c.l.b16 %v3330
        %v3363 = vunpack.c.l.b16 %v3331
        %v3364 = vunpack.c.l.b16 %v3332
        %v3365 = vunpack.c.l.b16 %v3333
        %v3366 = vunpack.c.l.b16 %v3334
        %v3367 = vunpack.c.l.b16 %v3335
        %v3368 = vunpack.c.l.b16 %v3336
        %v3369 = vunpack.c.l.b16 %v3337
        %v3370 = vunpack.c.l.b16 %v3338
        %v3371 = vunpack.c.l.b16 %v3339
        %v3372 = vunpack.c.l.b16 %v3340
        %v3373 = vunpack.c.l.b16 %v3341
        %v3374 = vunpack.c.l.b16 %v3342
        %v3375 = vunpack.c.l.b16 %v3343
        %v3376 = vunpack.c.l.b16 %v3344
        %v3377 = vpack.c.b16 %v3362, %v3361
        %v3378 = vpack.c.b16 %v3364, %v3363
        %v3379 = vpack.c.b16 %v3366, %v3365
        %v3380 = vpack.c.b16 %v3368, %v3367
        %v3381 = vpack.c.b16 %v3370, %v3369
        %v3382 = vpack.c.b16 %v3372, %v3371
        %v3383 = vpack.c.b16 %v3374, %v3373
        %v3384 = vpack.c.b16 %v3376, %v3375
        %3393 = vmatprep.subr.bf16.mxu0 0
        %3394 = vmatpush1.bf16.msra.mxu0 %v3384
        %3395 = vmatprep.subr.bf16.mxu0 0
        %3396 = vmatpush1.bf16.msra.mxu0 %v3383
        %3397 = vmatprep.subr.bf16.mxu0 0
        %3398 = vmatpush1.bf16.msra.mxu0 %v3382
        %3399 = vmatprep.subr.bf16.mxu0 0
        %3400 = vmatpush1.bf16.msra.mxu0 %v3381
        %3401 = vmatprep.subr.bf16.mxu0 0
        %3402 = vmatpush1.bf16.msra.mxu0 %v3380
        %3403 = vmatprep.subr.bf16.mxu0 0
        %3404 = vmatpush1.bf16.msra.mxu0 %v3379
        %3405 = vmatprep.subr.bf16.mxu0 0
        %3406 = vmatpush1.bf16.msra.mxu0 %v3378
        %3407 = vmatprep.subr.bf16.mxu0 0
        %3408 = vmatpush1.bf16.msra.mxu0 %v3377
        %3409 = vmatprep.subr.bf16.mxu0 0
        %3410 = vmatpush2.bf16.msra.mxu0 0
        %3411 = vmatprep.subr.bf16.mxu0 0
        %3412 = vmatpush2.bf16.msra.mxu0 0
        %3413 = vmatprep.subr.bf16.mxu0 0
        %3414 = vmatpush2.bf16.msra.mxu0 0
        %3415 = vmatprep.subr.bf16.mxu0 0
        %3416 = vmatpush2.bf16.msra.mxu0 0
        %3417 = vmatprep.subr.bf16.mxu0 0
        %3418 = vmatpush2.bf16.msra.mxu0 0
        %3419 = vmatprep.subr.bf16.mxu0 0
        %3420 = vmatpush2.bf16.msra.mxu0 0
        %3421 = vmatprep.subr.bf16.mxu0 0
        %3422 = vmatpush2.bf16.msra.mxu0 0
        %3423 = vmatprep.subr.bf16.mxu0 0
        %3424 = vmatpush2.bf16.msra.mxu0 0
        %3425 = vmatprep.mubr.bf16.mxu0 0
        %3426 = vmatmul.mubr.bf16.gmra.mxu0 %v3312
        %v3427 = vpop.f32.mrf.mxu0
        %v3428 = vadd.f32 0.0, %v3427
        %v3429 = vpop.f32.mrf.mxu0
        %v3430 = vpop.f32.mrf.mxu0
        %v3431 = vadd.f32 0.0, %v3430
        %v3432 = vpop.f32.mrf.mxu0
        %3433 = vmatprep.mubr.bf16.mxu0 0
        %3434 = vmatmul.mubr.bf16.gmra.mxu0 %v3313
        %v3435 = vpop.f32.mrf.mxu0
        %v3436 = vadd.f32 0.0, %v3435
        %v3437 = vpop.f32.mrf.mxu0
        %v3438 = vpop.f32.mrf.mxu0
        %v3439 = vadd.f32 0.0, %v3438
        %v3440 = vpop.f32.mrf.mxu0
        %3441 = vmatprep.mubr.bf16.mxu0 0
        %3442 = vmatmul.mubr.bf16.gmra.mxu0 %v3314
        %v3443 = vpop.f32.mrf.mxu0
        %v3444 = vadd.f32 0.0, %v3443
        %v3445 = vpop.f32.mrf.mxu0
        %v3446 = vpop.f32.mrf.mxu0
        %v3447 = vadd.f32 0.0, %v3446
        %v3448 = vpop.f32.mrf.mxu0
        %3449 = vmatprep.mubr.bf16.mxu0 0
        %3450 = vmatmul.mubr.bf16.gmra.mxu0 %v3315
        %v3451 = vpop.f32.mrf.mxu0
        %v3452 = vadd.f32 0.0, %v3451
        %v3453 = vpop.f32.mrf.mxu0
        %v3454 = vpop.f32.mrf.mxu0
        %v3455 = vadd.f32 0.0, %v3454
        %v3456 = vpop.f32.mrf.mxu0
        %3457 = vmatprep.mubr.bf16.mxu0 0
        %3458 = vmatmul.mubr.bf16.gmra.mxu0 %v3316
        %v3459 = vpop.f32.mrf.mxu0
        %v3460 = vadd.f32 0.0, %v3459
        %v3461 = vpop.f32.mrf.mxu0
        %v3462 = vpop.f32.mrf.mxu0
        %v3463 = vadd.f32 0.0, %v3462
        %v3464 = vpop.f32.mrf.mxu0
        %3465 = vmatprep.mubr.bf16.mxu0 0
        %3466 = vmatmul.mubr.bf16.gmra.mxu0 %v3317
        %v3467 = vpop.f32.mrf.mxu0
        %v3468 = vadd.f32 0.0, %v3467
        %v3469 = vpop.f32.mrf.mxu0
        %v3470 = vpop.f32.mrf.mxu0
        %v3471 = vadd.f32 0.0, %v3470
        %v3472 = vpop.f32.mrf.mxu0
        %3473 = vmatprep.mubr.bf16.mxu0 0
        %3474 = vmatmul.mubr.bf16.gmra.mxu0 %v3318
        %v3475 = vpop.f32.mrf.mxu0
        %v3476 = vadd.f32 0.0, %v3475
        %v3477 = vpop.f32.mrf.mxu0
        %v3478 = vpop.f32.mrf.mxu0
        %v3479 = vadd.f32 0.0, %v3478
        %v3480 = vpop.f32.mrf.mxu0
        %3481 = vmatprep.mubr.bf16.mxu0 0
        %3482 = vmatmul.mubr.bf16.gmra.mxu0 %v3319
        %v3483 = vpop.f32.mrf.mxu0
        %v3484 = vadd.f32 0.0, %v3483
        %v3485 = vpop.f32.mrf.mxu0
        %v3486 = vpop.f32.mrf.mxu0
        %v3487 = vadd.f32 0.0, %v3486
        %v3488 = vpop.f32.mrf.mxu0
        %3489 = vmatprep.mubr.bf16.mxu0 0
        %3490 = vmatmul.mubr.bf16.gmra.mxu0 %v3320
        %v3491 = vpop.f32.mrf.mxu0
        %v3492 = vadd.f32 0.0, %v3491
        %v3493 = vpop.f32.mrf.mxu0
        %v3494 = vpop.f32.mrf.mxu0
        %v3495 = vadd.f32 0.0, %v3494
        %v3496 = vpop.f32.mrf.mxu0
        %3497 = vmatprep.mubr.bf16.mxu0 0
        %3498 = vmatmul.mubr.bf16.gmra.mxu0 %v3321
        %v3499 = vpop.f32.mrf.mxu0
        %v3500 = vadd.f32 0.0, %v3499
        %v3501 = vpop.f32.mrf.mxu0
        %v3502 = vpop.f32.mrf.mxu0
        %v3503 = vadd.f32 0.0, %v3502
        %v3504 = vpop.f32.mrf.mxu0
        %3505 = vmatprep.mubr.bf16.mxu0 0
        %3506 = vmatmul.mubr.bf16.gmra.mxu0 %v3322
        %v3507 = vpop.f32.mrf.mxu0
        %v3508 = vadd.f32 0.0, %v3507
        %v3509 = vpop.f32.mrf.mxu0
        %v3510 = vpop.f32.mrf.mxu0
        %v3511 = vadd.f32 0.0, %v3510
        %v3512 = vpop.f32.mrf.mxu0
        %3513 = vmatprep.mubr.bf16.mxu0 0
        %3514 = vmatmul.mubr.bf16.gmra.mxu0 %v3323
        %v3515 = vpop.f32.mrf.mxu0
        %v3516 = vadd.f32 0.0, %v3515
        %v3517 = vpop.f32.mrf.mxu0
        %v3518 = vpop.f32.mrf.mxu0
        %v3519 = vadd.f32 0.0, %v3518
        %v3520 = vpop.f32.mrf.mxu0
        %3521 = vmatprep.mubr.bf16.mxu0 0
        %3522 = vmatmul.mubr.bf16.gmra.mxu0 %v3324
        %v3523 = vpop.f32.mrf.mxu0
        %v3524 = vadd.f32 0.0, %v3523
        %v3525 = vpop.f32.mrf.mxu0
        %v3526 = vpop.f32.mrf.mxu0
        %v3527 = vadd.f32 0.0, %v3526
        %v3528 = vpop.f32.mrf.mxu0
        %3529 = vmatprep.mubr.bf16.mxu0 0
        %3530 = vmatmul.mubr.bf16.gmra.mxu0 %v3325
        %v3531 = vpop.f32.mrf.mxu0
        %v3532 = vadd.f32 0.0, %v3531
        %v3533 = vpop.f32.mrf.mxu0
        %v3534 = vpop.f32.mrf.mxu0
        %v3535 = vadd.f32 0.0, %v3534
        %v3536 = vpop.f32.mrf.mxu0
        %3537 = vmatprep.mubr.bf16.mxu0 0
        %3538 = vmatmul.mubr.bf16.gmra.mxu0 %v3326
        %v3539 = vpop.f32.mrf.mxu0
        %v3540 = vadd.f32 0.0, %v3539
        %v3541 = vpop.f32.mrf.mxu0
        %v3542 = vpop.f32.mrf.mxu0
        %v3543 = vadd.f32 0.0, %v3542
        %v3544 = vpop.f32.mrf.mxu0
        %3545 = vmatprep.mubr.bf16.mxu0 0
        %3546 = vmatmul.mubr.bf16.gmra.mxu0 %v3327
        %v3547 = vpop.f32.mrf.mxu0
        %v3548 = vadd.f32 0.0, %v3547
        %v3549 = vpop.f32.mrf.mxu0
        %v3550 = vpop.f32.mrf.mxu0
        %v3551 = vadd.f32 0.0, %v3550
        %v3552 = vpop.f32.mrf.mxu0
        %3553 = vdwg.mxu0
        %v3554 = vadd.f32 %v3280, %v3428
        %v3555 = vadd.f32 %v3281, %v3431
        %v3556 = vadd.f32 %v3282, %v3436
        %v3557 = vadd.f32 %v3283, %v3439
        %v3558 = vadd.f32 %v3284, %v3444
        %v3559 = vadd.f32 %v3285, %v3447
        %v3560 = vadd.f32 %v3286, %v3452
        %v3561 = vadd.f32 %v3287, %v3455
        %v3562 = vadd.f32 %v3288, %v3460
        %v3563 = vadd.f32 %v3289, %v3463
        %v3564 = vadd.f32 %v3290, %v3468
        %v3565 = vadd.f32 %v3291, %v3471
        %v3566 = vadd.f32 %v3292, %v3476
        %v3567 = vadd.f32 %v3293, %v3479
        %v3568 = vadd.f32 %v3294, %v3484
        %v3569 = vadd.f32 %v3295, %v3487
        %v3570 = vadd.f32 %v3296, %v3492
        %v3571 = vadd.f32 %v3297, %v3495
        %v3572 = vadd.f32 %v3298, %v3500
        %v3573 = vadd.f32 %v3299, %v3503
        %v3574 = vadd.f32 %v3300, %v3508
        %v3575 = vadd.f32 %v3301, %v3511
        %v3576 = vadd.f32 %v3302, %v3516
        %v3577 = vadd.f32 %v3303, %v3519
        %v3578 = vadd.f32 %v3304, %v3524
        %v3579 = vadd.f32 %v3305, %v3527
        %v3580 = vadd.f32 %v3306, %v3532
        %v3581 = vadd.f32 %v3307, %v3535
        %v3582 = vadd.f32 %v3308, %v3540
        %v3583 = vadd.f32 %v3309, %v3543
        %v3584 = vadd.f32 %v3310, %v3548
        %v3585 = vadd.f32 %v3311, %v3551
        %3586 = vst [vmem:[#allocation4] sm:$0xff] %v3554
        %3587 = vst [vmem:[#allocation4 + $0x8] sm:$0xff] %v3555
        %3588 = vst [vmem:[#allocation4 + $0x10] sm:$0xff] %v3556
        %3589 = vst [vmem:[#allocation4 + $0x18] sm:$0xff] %v3557
        %3590 = vst [vmem:[#allocation4 + $0x20] sm:$0xff] %v3558
        %3591 = vst [vmem:[#allocation4 + $0x28] sm:$0xff] %v3559
        %3592 = vst [vmem:[#allocation4 + $0x30] sm:$0xff] %v3560
        %3593 = vst [vmem:[#allocation4 + $0x38] sm:$0xff] %v3561
        %3594 = vst [vmem:[#allocation4 + $0x40] sm:$0xff] %v3562
        %3595 = vst [vmem:[#allocation4 + $0x48] sm:$0xff] %v3563
        %3596 = vst [vmem:[#allocation4 + $0x50] sm:$0xff] %v3564
        %3597 = vst [vmem:[#allocation4 + $0x58] sm:$0xff] %v3565
        %3598 = vst [vmem:[#allocation4 + $0x60] sm:$0xff] %v3566
        %3599 = vst [vmem:[#allocation4 + $0x68] sm:$0xff] %v3567
        %3600 = vst [vmem:[#allocation4 + $0x70] sm:$0xff] %v3568
        %3601 = vst [vmem:[#allocation4 + $0x78] sm:$0xff] %v3569
        %3602 = vst [vmem:[#allocation4 + $0x80] sm:$0xff] %v3570
        %3603 = vst [vmem:[#allocation4 + $0x88] sm:$0xff] %v3571
        %3604 = vst [vmem:[#allocation4 + $0x90] sm:$0xff] %v3572
        %3605 = vst [vmem:[#allocation4 + $0x98] sm:$0xff] %v3573
        %3606 = vst [vmem:[#allocation4 + $0xa0] sm:$0xff] %v3574
        %3607 = vst [vmem:[#allocation4 + $0xa8] sm:$0xff] %v3575
        %3608 = vst [vmem:[#allocation4 + $0xb0] sm:$0xff] %v3576
        %3609 = vst [vmem:[#allocation4 + $0xb8] sm:$0xff] %v3577
        %3610 = vst [vmem:[#allocation4 + $0xc0] sm:$0xff] %v3578
        %3611 = vst [vmem:[#allocation4 + $0xc8] sm:$0xff] %v3579
        %3612 = vst [vmem:[#allocation4 + $0xd0] sm:$0xff] %v3580
        %3613 = vst [vmem:[#allocation4 + $0xd8] sm:$0xff] %v3581
        %3614 = vst [vmem:[#allocation4 + $0xe0] sm:$0xff] %v3582
        %3615 = vst [vmem:[#allocation4 + $0xe8] sm:$0xff] %v3583
        %3616 = vst [vmem:[#allocation4 + $0xf0] sm:$0xff] %v3584
        %3617 = vst [vmem:[#allocation4 + $0xf8] sm:$0xff] %v3585
        %v3618 = vld [vmem:[#allocation2 + $0x28] sm:$0xff]
        %v3619 = vld [vmem:[#allocation2 + $0x30] sm:$0xff]
        %v3620 = vld [vmem:[#allocation2 + $0x38] sm:$0xff]
        %v3621 = vld [vmem:[#allocation2 + $0x40] sm:$0xff]
        %v3622 = vld [vmem:[#allocation2 + $0x48] sm:$0xff]
        %v3623 = vld [vmem:[#allocation2 + $0x50] sm:$0xff]
        %v3624 = vld [vmem:[#allocation2 + $0x58] sm:$0xff]
        %v3625 = vld [vmem:[#allocation2 + $0x60] sm:$0xff]
        %v3626 = vld [vmem:[#allocation2 + $0x68] sm:$0xff]
        %v3627 = vld [vmem:[#allocation2 + $0x70] sm:$0xff]
        %v3628 = vld [vmem:[#allocation2 + $0x78] sm:$0xff]
        %v3629 = vld [vmem:[#allocation2 + $0x80] sm:$0xff]
        %v3630 = vld [vmem:[#allocation2 + $0x88] sm:$0xff]
        %v3631 = vld [vmem:[#allocation2 + $0x90] sm:$0xff]
        %v3632 = vld [vmem:[#allocation2 + $0x98] sm:$0xff]
        %v3633 = vld [vmem:[#allocation2 + $0xa0] sm:$0xff]
        %v3634 = vld [vmem:[#allocation2 + $0xa8] sm:$0xff]
        %v3635 = vld [vmem:[#allocation2 + $0xb0] sm:$0xff]
        %v3636 = vld [vmem:[#allocation2 + $0xb8] sm:$0xff]
        %v3637 = vld [vmem:[#allocation2 + $0xc0] sm:$0xff]
        %v3638 = vld [vmem:[#allocation2 + $0xc8] sm:$0xff]
        %v3639 = vld [vmem:[#allocation2 + $0xd0] sm:$0xff]
        %v3640 = vld [vmem:[#allocation2 + $0xd8] sm:$0xff]
        %v3641 = vld [vmem:[#allocation2 + $0xe0] sm:$0xff]
        %v3642 = vld [vmem:[#allocation2 + $0xe8] sm:$0xff]
        %v3643 = vld [vmem:[#allocation2 + $0xf0] sm:$0xff]
        %v3644 = vld [vmem:[#allocation2 + $0xf8] sm:$0xff]
        %v3645 = vld [vmem:[#allocation2 + $0x100] sm:$0xff]
        %v3646 = vld [vmem:[#allocation2 + $0x108] sm:$0xff]
        %v3647 = vld [vmem:[#allocation2 + $0x110] sm:$0xff]
        %v3648 = vld [vmem:[#allocation2 + $0x118] sm:$0xff]
        %v3649 = vld [vmem:[#allocation2 + $0x120] sm:$0xff]
        %v3650 = vld [vmem:[#allocation4] sm:$0xff]
        %v3651 = vld [vmem:[#allocation4 + $0x8] sm:$0xff]
        %v3652 = vld [vmem:[#allocation4 + $0x10] sm:$0xff]
        %v3653 = vld [vmem:[#allocation4 + $0x18] sm:$0xff]
        %v3654 = vld [vmem:[#allocation4 + $0x20] sm:$0xff]
        %v3655 = vld [vmem:[#allocation4 + $0x28] sm:$0xff]
        %v3656 = vld [vmem:[#allocation4 + $0x30] sm:$0xff]
        %v3657 = vld [vmem:[#allocation4 + $0x38] sm:$0xff]
        %v3658 = vld [vmem:[#allocation4 + $0x40] sm:$0xff]
        %v3659 = vld [vmem:[#allocation4 + $0x48] sm:$0xff]
        %v3660 = vld [vmem:[#allocation4 + $0x50] sm:$0xff]
        %v3661 = vld [vmem:[#allocation4 + $0x58] sm:$0xff]
        %v3662 = vld [vmem:[#allocation4 + $0x60] sm:$0xff]
        %v3663 = vld [vmem:[#allocation4 + $0x68] sm:$0xff]
        %v3664 = vld [vmem:[#allocation4 + $0x70] sm:$0xff]
        %v3665 = vld [vmem:[#allocation4 + $0x78] sm:$0xff]
        %v3666 = vld [vmem:[#allocation4 + $0x80] sm:$0xff]
        %v3667 = vld [vmem:[#allocation4 + $0x88] sm:$0xff]
        %v3668 = vld [vmem:[#allocation4 + $0x90] sm:$0xff]
        %v3669 = vld [vmem:[#allocation4 + $0x98] sm:$0xff]
        %v3670 = vld [vmem:[#allocation4 + $0xa0] sm:$0xff]
        %v3671 = vld [vmem:[#allocation4 + $0xa8] sm:$0xff]
        %v3672 = vld [vmem:[#allocation4 + $0xb0] sm:$0xff]
        %v3673 = vld [vmem:[#allocation4 + $0xb8] sm:$0xff]
        %v3674 = vld [vmem:[#allocation4 + $0xc0] sm:$0xff]
        %v3675 = vld [vmem:[#allocation4 + $0xc8] sm:$0xff]
        %v3676 = vld [vmem:[#allocation4 + $0xd0] sm:$0xff]
        %v3677 = vld [vmem:[#allocation4 + $0xd8] sm:$0xff]
        %v3678 = vld [vmem:[#allocation4 + $0xe0] sm:$0xff]
        %v3679 = vld [vmem:[#allocation4 + $0xe8] sm:$0xff]
        %v3680 = vld [vmem:[#allocation4 + $0xf0] sm:$0xff]
        %v3681 = vld [vmem:[#allocation4 + $0xf8] sm:$0xff]
        %v3682 = vpack.c.bf16 %v3619, %v3618
        %v3683 = vpack.c.bf16 %v3621, %v3620
        %v3684 = vpack.c.bf16 %v3623, %v3622
        %v3685 = vpack.c.bf16 %v3625, %v3624
        %v3686 = vpack.c.bf16 %v3627, %v3626
        %v3687 = vpack.c.bf16 %v3629, %v3628
        %v3688 = vpack.c.bf16 %v3631, %v3630
        %v3689 = vpack.c.bf16 %v3633, %v3632
        %v3690 = vpack.c.bf16 %v3635, %v3634
        %v3691 = vpack.c.bf16 %v3637, %v3636
        %v3692 = vpack.c.bf16 %v3639, %v3638
        %v3693 = vpack.c.bf16 %v3641, %v3640
        %v3694 = vpack.c.bf16 %v3643, %v3642
        %v3695 = vpack.c.bf16 %v3645, %v3644
        %v3696 = vpack.c.bf16 %v3647, %v3646
        %v3697 = vpack.c.bf16 %v3649, %v3648
        %s3698 = scalar_lea.vmem [#allocation8], 448
        %v3699 = vld [vmem:[%s3698] sm:$0xf]
        %v3700 = vld [vmem:[%s3698 + $0x4] sm:$0xf]
        %v3701 = vld [vmem:[%s3698 + $0x8] sm:$0xf]
        %v3702 = vld [vmem:[%s3698 + $0xc] sm:$0xf]
        %v3703 = vld [vmem:[%s3698 + $0x10] sm:$0xf]
        %v3704 = vld [vmem:[%s3698 + $0x14] sm:$0xf]
        %v3705 = vld [vmem:[%s3698 + $0x18] sm:$0xf]
        %v3706 = vld [vmem:[%s3698 + $0x1c] sm:$0xf]
        %v3707 = vld [vmem:[%s3698 + $0x20] sm:$0xf]
        %v3708 = vld [vmem:[%s3698 + $0x24] sm:$0xf]
        %v3709 = vld [vmem:[%s3698 + $0x28] sm:$0xf]
        %v3710 = vld [vmem:[%s3698 + $0x2c] sm:$0xf]
        %v3711 = vld [vmem:[%s3698 + $0x30] sm:$0xf]
        %v3712 = vld [vmem:[%s3698 + $0x34] sm:$0xf]
        %v3713 = vld [vmem:[%s3698 + $0x38] sm:$0xf]
        %v3714 = vld [vmem:[%s3698 + $0x3c] sm:$0xf]
        %v3731 = vunpack.c.l.b16 %v3699
        %v3732 = vunpack.c.l.b16 %v3700
        %v3733 = vunpack.c.l.b16 %v3701
        %v3734 = vunpack.c.l.b16 %v3702
        %v3735 = vunpack.c.l.b16 %v3703
        %v3736 = vunpack.c.l.b16 %v3704
        %v3737 = vunpack.c.l.b16 %v3705
        %v3738 = vunpack.c.l.b16 %v3706
        %v3739 = vunpack.c.l.b16 %v3707
        %v3740 = vunpack.c.l.b16 %v3708
        %v3741 = vunpack.c.l.b16 %v3709
        %v3742 = vunpack.c.l.b16 %v3710
        %v3743 = vunpack.c.l.b16 %v3711
        %v3744 = vunpack.c.l.b16 %v3712
        %v3745 = vunpack.c.l.b16 %v3713
        %v3746 = vunpack.c.l.b16 %v3714
        %v3747 = vpack.c.b16 %v3732, %v3731
        %v3748 = vpack.c.b16 %v3734, %v3733
        %v3749 = vpack.c.b16 %v3736, %v3735
        %v3750 = vpack.c.b16 %v3738, %v3737
        %v3751 = vpack.c.b16 %v3740, %v3739
        %v3752 = vpack.c.b16 %v3742, %v3741
        %v3753 = vpack.c.b16 %v3744, %v3743
        %v3754 = vpack.c.b16 %v3746, %v3745
        %3763 = vmatprep.subr.bf16.mxu0 0
        %3764 = vmatpush1.bf16.msra.mxu0 %v3754
        %3765 = vmatprep.subr.bf16.mxu0 0
        %3766 = vmatpush1.bf16.msra.mxu0 %v3753
        %3767 = vmatprep.subr.bf16.mxu0 0
        %3768 = vmatpush1.bf16.msra.mxu0 %v3752
        %3769 = vmatprep.subr.bf16.mxu0 0
        %3770 = vmatpush1.bf16.msra.mxu0 %v3751
        %3771 = vmatprep.subr.bf16.mxu0 0
        %3772 = vmatpush1.bf16.msra.mxu0 %v3750
        %3773 = vmatprep.subr.bf16.mxu0 0
        %3774 = vmatpush1.bf16.msra.mxu0 %v3749
        %3775 = vmatprep.subr.bf16.mxu0 0
        %3776 = vmatpush1.bf16.msra.mxu0 %v3748
        %3777 = vmatprep.subr.bf16.mxu0 0
        %3778 = vmatpush1.bf16.msra.mxu0 %v3747
        %3779 = vmatprep.subr.bf16.mxu0 0
        %3780 = vmatpush2.bf16.msra.mxu0 0
        %3781 = vmatprep.subr.bf16.mxu0 0
        %3782 = vmatpush2.bf16.msra.mxu0 0
        %3783 = vmatprep.subr.bf16.mxu0 0
        %3784 = vmatpush2.bf16.msra.mxu0 0
        %3785 = vmatprep.subr.bf16.mxu0 0
        %3786 = vmatpush2.bf16.msra.mxu0 0
        %3787 = vmatprep.subr.bf16.mxu0 0
        %3788 = vmatpush2.bf16.msra.mxu0 0
        %3789 = vmatprep.subr.bf16.mxu0 0
        %3790 = vmatpush2.bf16.msra.mxu0 0
        %3791 = vmatprep.subr.bf16.mxu0 0
        %3792 = vmatpush2.bf16.msra.mxu0 0
        %3793 = vmatprep.subr.bf16.mxu0 0
        %3794 = vmatpush2.bf16.msra.mxu0 0
        %3795 = vmatprep.mubr.bf16.mxu0 0
        %3796 = vmatmul.mubr.bf16.gmra.mxu0 %v3682
        %v3797 = vpop.f32.mrf.mxu0
        %v3798 = vadd.f32 0.0, %v3797
        %v3799 = vpop.f32.mrf.mxu0
        %v3800 = vpop.f32.mrf.mxu0
        %v3801 = vadd.f32 0.0, %v3800
        %v3802 = vpop.f32.mrf.mxu0
        %3803 = vmatprep.mubr.bf16.mxu0 0
        %3804 = vmatmul.mubr.bf16.gmra.mxu0 %v3683
        %v3805 = vpop.f32.mrf.mxu0
        %v3806 = vadd.f32 0.0, %v3805
        %v3807 = vpop.f32.mrf.mxu0
        %v3808 = vpop.f32.mrf.mxu0
        %v3809 = vadd.f32 0.0, %v3808
        %v3810 = vpop.f32.mrf.mxu0
        %3811 = vmatprep.mubr.bf16.mxu0 0
        %3812 = vmatmul.mubr.bf16.gmra.mxu0 %v3684
        %v3813 = vpop.f32.mrf.mxu0
        %v3814 = vadd.f32 0.0, %v3813
        %v3815 = vpop.f32.mrf.mxu0
        %v3816 = vpop.f32.mrf.mxu0
        %v3817 = vadd.f32 0.0, %v3816
        %v3818 = vpop.f32.mrf.mxu0
        %3819 = vmatprep.mubr.bf16.mxu0 0
        %3820 = vmatmul.mubr.bf16.gmra.mxu0 %v3685
        %v3821 = vpop.f32.mrf.mxu0
        %v3822 = vadd.f32 0.0, %v3821
        %v3823 = vpop.f32.mrf.mxu0
        %v3824 = vpop.f32.mrf.mxu0
        %v3825 = vadd.f32 0.0, %v3824
        %v3826 = vpop.f32.mrf.mxu0
        %3827 = vmatprep.mubr.bf16.mxu0 0
        %3828 = vmatmul.mubr.bf16.gmra.mxu0 %v3686
        %v3829 = vpop.f32.mrf.mxu0
        %v3830 = vadd.f32 0.0, %v3829
        %v3831 = vpop.f32.mrf.mxu0
        %v3832 = vpop.f32.mrf.mxu0
        %v3833 = vadd.f32 0.0, %v3832
        %v3834 = vpop.f32.mrf.mxu0
        %3835 = vmatprep.mubr.bf16.mxu0 0
        %3836 = vmatmul.mubr.bf16.gmra.mxu0 %v3687
        %v3837 = vpop.f32.mrf.mxu0
        %v3838 = vadd.f32 0.0, %v3837
        %v3839 = vpop.f32.mrf.mxu0
        %v3840 = vpop.f32.mrf.mxu0
        %v3841 = vadd.f32 0.0, %v3840
        %v3842 = vpop.f32.mrf.mxu0
        %3843 = vmatprep.mubr.bf16.mxu0 0
        %3844 = vmatmul.mubr.bf16.gmra.mxu0 %v3688
        %v3845 = vpop.f32.mrf.mxu0
        %v3846 = vadd.f32 0.0, %v3845
        %v3847 = vpop.f32.mrf.mxu0
        %v3848 = vpop.f32.mrf.mxu0
        %v3849 = vadd.f32 0.0, %v3848
        %v3850 = vpop.f32.mrf.mxu0
        %3851 = vmatprep.mubr.bf16.mxu0 0
        %3852 = vmatmul.mubr.bf16.gmra.mxu0 %v3689
        %v3853 = vpop.f32.mrf.mxu0
        %v3854 = vadd.f32 0.0, %v3853
        %v3855 = vpop.f32.mrf.mxu0
        %v3856 = vpop.f32.mrf.mxu0
        %v3857 = vadd.f32 0.0, %v3856
        %v3858 = vpop.f32.mrf.mxu0
        %3859 = vmatprep.mubr.bf16.mxu0 0
        %3860 = vmatmul.mubr.bf16.gmra.mxu0 %v3690
        %v3861 = vpop.f32.mrf.mxu0
        %v3862 = vadd.f32 0.0, %v3861
        %v3863 = vpop.f32.mrf.mxu0
        %v3864 = vpop.f32.mrf.mxu0
        %v3865 = vadd.f32 0.0, %v3864
        %v3866 = vpop.f32.mrf.mxu0
        %3867 = vmatprep.mubr.bf16.mxu0 0
        %3868 = vmatmul.mubr.bf16.gmra.mxu0 %v3691
        %v3869 = vpop.f32.mrf.mxu0
        %v3870 = vadd.f32 0.0, %v3869
        %v3871 = vpop.f32.mrf.mxu0
        %v3872 = vpop.f32.mrf.mxu0
        %v3873 = vadd.f32 0.0, %v3872
        %v3874 = vpop.f32.mrf.mxu0
        %3875 = vmatprep.mubr.bf16.mxu0 0
        %3876 = vmatmul.mubr.bf16.gmra.mxu0 %v3692
        %v3877 = vpop.f32.mrf.mxu0
        %v3878 = vadd.f32 0.0, %v3877
        %v3879 = vpop.f32.mrf.mxu0
        %v3880 = vpop.f32.mrf.mxu0
        %v3881 = vadd.f32 0.0, %v3880
        %v3882 = vpop.f32.mrf.mxu0
        %3883 = vmatprep.mubr.bf16.mxu0 0
        %3884 = vmatmul.mubr.bf16.gmra.mxu0 %v3693
        %v3885 = vpop.f32.mrf.mxu0
        %v3886 = vadd.f32 0.0, %v3885
        %v3887 = vpop.f32.mrf.mxu0
        %v3888 = vpop.f32.mrf.mxu0
        %v3889 = vadd.f32 0.0, %v3888
        %v3890 = vpop.f32.mrf.mxu0
        %3891 = vmatprep.mubr.bf16.mxu0 0
        %3892 = vmatmul.mubr.bf16.gmra.mxu0 %v3694
        %v3893 = vpop.f32.mrf.mxu0
        %v3894 = vadd.f32 0.0, %v3893
        %v3895 = vpop.f32.mrf.mxu0
        %v3896 = vpop.f32.mrf.mxu0
        %v3897 = vadd.f32 0.0, %v3896
        %v3898 = vpop.f32.mrf.mxu0
        %3899 = vmatprep.mubr.bf16.mxu0 0
        %3900 = vmatmul.mubr.bf16.gmra.mxu0 %v3695
        %v3901 = vpop.f32.mrf.mxu0
        %v3902 = vadd.f32 0.0, %v3901
        %v3903 = vpop.f32.mrf.mxu0
        %v3904 = vpop.f32.mrf.mxu0
        %v3905 = vadd.f32 0.0, %v3904
        %v3906 = vpop.f32.mrf.mxu0
        %3907 = vmatprep.mubr.bf16.mxu0 0
        %3908 = vmatmul.mubr.bf16.gmra.mxu0 %v3696
        %v3909 = vpop.f32.mrf.mxu0
        %v3910 = vadd.f32 0.0, %v3909
        %v3911 = vpop.f32.mrf.mxu0
        %v3912 = vpop.f32.mrf.mxu0
        %v3913 = vadd.f32 0.0, %v3912
        %v3914 = vpop.f32.mrf.mxu0
        %3915 = vmatprep.mubr.bf16.mxu0 0
        %3916 = vmatmul.mubr.bf16.gmra.mxu0 %v3697
        %v3917 = vpop.f32.mrf.mxu0
        %v3918 = vadd.f32 0.0, %v3917
        %v3919 = vpop.f32.mrf.mxu0
        %v3920 = vpop.f32.mrf.mxu0
        %v3921 = vadd.f32 0.0, %v3920
        %v3922 = vpop.f32.mrf.mxu0
        %3923 = vdwg.mxu0
        %v3924 = vadd.f32 %v3650, %v3798
        %v3925 = vadd.f32 %v3651, %v3801
        %v3926 = vadd.f32 %v3652, %v3806
        %v3927 = vadd.f32 %v3653, %v3809
        %v3928 = vadd.f32 %v3654, %v3814
        %v3929 = vadd.f32 %v3655, %v3817
        %v3930 = vadd.f32 %v3656, %v3822
        %v3931 = vadd.f32 %v3657, %v3825
        %v3932 = vadd.f32 %v3658, %v3830
        %v3933 = vadd.f32 %v3659, %v3833
        %v3934 = vadd.f32 %v3660, %v3838
        %v3935 = vadd.f32 %v3661, %v3841
        %v3936 = vadd.f32 %v3662, %v3846
        %v3937 = vadd.f32 %v3663, %v3849
        %v3938 = vadd.f32 %v3664, %v3854
        %v3939 = vadd.f32 %v3665, %v3857
        %v3940 = vadd.f32 %v3666, %v3862
        %v3941 = vadd.f32 %v3667, %v3865
        %v3942 = vadd.f32 %v3668, %v3870
        %v3943 = vadd.f32 %v3669, %v3873
        %v3944 = vadd.f32 %v3670, %v3878
        %v3945 = vadd.f32 %v3671, %v3881
        %v3946 = vadd.f32 %v3672, %v3886
        %v3947 = vadd.f32 %v3673, %v3889
        %v3948 = vadd.f32 %v3674, %v3894
        %v3949 = vadd.f32 %v3675, %v3897
        %v3950 = vadd.f32 %v3676, %v3902
        %v3951 = vadd.f32 %v3677, %v3905
        %v3952 = vadd.f32 %v3678, %v3910
        %v3953 = vadd.f32 %v3679, %v3913
        %v3954 = vadd.f32 %v3680, %v3918
        %v3955 = vadd.f32 %v3681, %v3921
        %3956 = vst [vmem:[#allocation4] sm:$0xff] %v3924
        %3957 = vst [vmem:[#allocation4 + $0x8] sm:$0xff] %v3925
        %3958 = vst [vmem:[#allocation4 + $0x10] sm:$0xff] %v3926
        %3959 = vst [vmem:[#allocation4 + $0x18] sm:$0xff] %v3927
        %3960 = vst [vmem:[#allocation4 + $0x20] sm:$0xff] %v3928
        %3961 = vst [vmem:[#allocation4 + $0x28] sm:$0xff] %v3929
        %3962 = vst [vmem:[#allocation4 + $0x30] sm:$0xff] %v3930
        %3963 = vst [vmem:[#allocation4 + $0x38] sm:$0xff] %v3931
        %3964 = vst [vmem:[#allocation4 + $0x40] sm:$0xff] %v3932
        %3965 = vst [vmem:[#allocation4 + $0x48] sm:$0xff] %v3933
        %3966 = vst [vmem:[#allocation4 + $0x50] sm:$0xff] %v3934
        %3967 = vst [vmem:[#allocation4 + $0x58] sm:$0xff] %v3935
        %3968 = vst [vmem:[#allocation4 + $0x60] sm:$0xff] %v3936
        %3969 = vst [vmem:[#allocation4 + $0x68] sm:$0xff] %v3937
        %3970 = vst [vmem:[#allocation4 + $0x70] sm:$0xff] %v3938
        %3971 = vst [vmem:[#allocation4 + $0x78] sm:$0xff] %v3939
        %3972 = vst [vmem:[#allocation4 + $0x80] sm:$0xff] %v3940
        %3973 = vst [vmem:[#allocation4 + $0x88] sm:$0xff] %v3941
        %3974 = vst [vmem:[#allocation4 + $0x90] sm:$0xff] %v3942
        %3975 = vst [vmem:[#allocation4 + $0x98] sm:$0xff] %v3943
        %3976 = vst [vmem:[#allocation4 + $0xa0] sm:$0xff] %v3944
        %3977 = vst [vmem:[#allocation4 + $0xa8] sm:$0xff] %v3945
        %3978 = vst [vmem:[#allocation4 + $0xb0] sm:$0xff] %v3946
        %3979 = vst [vmem:[#allocation4 + $0xb8] sm:$0xff] %v3947
        %3980 = vst [vmem:[#allocation4 + $0xc0] sm:$0xff] %v3948
        %3981 = vst [vmem:[#allocation4 + $0xc8] sm:$0xff] %v3949
        %3982 = vst [vmem:[#allocation4 + $0xd0] sm:$0xff] %v3950
        %3983 = vst [vmem:[#allocation4 + $0xd8] sm:$0xff] %v3951
        %3984 = vst [vmem:[#allocation4 + $0xe0] sm:$0xff] %v3952
        %3985 = vst [vmem:[#allocation4 + $0xe8] sm:$0xff] %v3953
        %3986 = vst [vmem:[#allocation4 + $0xf0] sm:$0xff] %v3954
        %3987 = vst [vmem:[#allocation4 + $0xf8] sm:$0xff] %v3955
        %v3988 = vld [vmem:[#allocation2 + $0x29] sm:$0xff]
        %v3989 = vld [vmem:[#allocation2 + $0x31] sm:$0xff]
        %v3990 = vld [vmem:[#allocation2 + $0x39] sm:$0xff]
        %v3991 = vld [vmem:[#allocation2 + $0x41] sm:$0xff]
        %v3992 = vld [vmem:[#allocation2 + $0x49] sm:$0xff]
        %v3993 = vld [vmem:[#allocation2 + $0x51] sm:$0xff]
        %v3994 = vld [vmem:[#allocation2 + $0x59] sm:$0xff]
        %v3995 = vld [vmem:[#allocation2 + $0x61] sm:$0xff]
        %v3996 = vld [vmem:[#allocation2 + $0x69] sm:$0xff]
        %v3997 = vld [vmem:[#allocation2 + $0x71] sm:$0xff]
        %v3998 = vld [vmem:[#allocation2 + $0x79] sm:$0xff]
        %v3999 = vld [vmem:[#allocation2 + $0x81] sm:$0xff]
        %v4000 = vld [vmem:[#allocation2 + $0x89] sm:$0xff]
        %v4001 = vld [vmem:[#allocation2 + $0x91] sm:$0xff]
        %v4002 = vld [vmem:[#allocation2 + $0x99] sm:$0xff]
        %v4003 = vld [vmem:[#allocation2 + $0xa1] sm:$0xff]
        %v4004 = vld [vmem:[#allocation2 + $0xa9] sm:$0xff]
        %v4005 = vld [vmem:[#allocation2 + $0xb1] sm:$0xff]
        %v4006 = vld [vmem:[#allocation2 + $0xb9] sm:$0xff]
        %v4007 = vld [vmem:[#allocation2 + $0xc1] sm:$0xff]
        %v4008 = vld [vmem:[#allocation2 + $0xc9] sm:$0xff]
        %v4009 = vld [vmem:[#allocation2 + $0xd1] sm:$0xff]
        %v4010 = vld [vmem:[#allocation2 + $0xd9] sm:$0xff]
        %v4011 = vld [vmem:[#allocation2 + $0xe1] sm:$0xff]
        %v4012 = vld [vmem:[#allocation2 + $0xe9] sm:$0xff]
        %v4013 = vld [vmem:[#allocation2 + $0xf1] sm:$0xff]
        %v4014 = vld [vmem:[#allocation2 + $0xf9] sm:$0xff]
        %v4015 = vld [vmem:[#allocation2 + $0x101] sm:$0xff]
        %v4016 = vld [vmem:[#allocation2 + $0x109] sm:$0xff]
        %v4017 = vld [vmem:[#allocation2 + $0x111] sm:$0xff]
        %v4018 = vld [vmem:[#allocation2 + $0x119] sm:$0xff]
        %v4019 = vld [vmem:[#allocation2 + $0x121] sm:$0xff]
        %v4020 = vsel %vm1640, %v3988, 0.0
        %v4021 = vsel %vm1641, %v3989, 0.0
        %v4022 = vsel %vm1642, %v3990, 0.0
        %v4023 = vsel %vm1643, %v3991, 0.0
        %v4024 = vsel %vm1644, %v3992, 0.0
        %v4025 = vsel %vm1645, %v3993, 0.0
        %v4026 = vsel %vm1646, %v3994, 0.0
        %v4027 = vsel %vm1647, %v3995, 0.0
        %v4028 = vsel %vm1648, %v3996, 0.0
        %v4029 = vsel %vm1649, %v3997, 0.0
        %v4030 = vsel %vm1650, %v3998, 0.0
        %v4031 = vsel %vm1651, %v3999, 0.0
        %v4032 = vsel %vm1652, %v4000, 0.0
        %v4033 = vsel %vm1653, %v4001, 0.0
        %v4034 = vsel %vm1654, %v4002, 0.0
        %v4035 = vsel %vm1655, %v4003, 0.0
        %v4036 = vsel %vm1656, %v4004, 0.0
        %v4037 = vsel %vm1657, %v4005, 0.0
        %v4038 = vsel %vm1658, %v4006, 0.0
        %v4039 = vsel %vm1659, %v4007, 0.0
        %v4040 = vsel %vm1660, %v4008, 0.0
        %v4041 = vsel %vm1661, %v4009, 0.0
        %v4042 = vsel %vm1662, %v4010, 0.0
        %v4043 = vsel %vm1663, %v4011, 0.0
        %v4044 = vsel %vm1664, %v4012, 0.0
        %v4045 = vsel %vm1665, %v4013, 0.0
        %v4046 = vsel %vm1666, %v4014, 0.0
        %v4047 = vsel %vm1667, %v4015, 0.0
        %v4048 = vsel %vm1668, %v4016, 0.0
        %v4049 = vsel %vm1669, %v4017, 0.0
        %v4050 = vsel %vm1670, %v4018, 0.0
        %v4051 = vsel %vm1671, %v4019, 0.0
        %v4052 = vld [vmem:[#allocation4] sm:$0xff]
        %v4053 = vld [vmem:[#allocation4 + $0x8] sm:$0xff]
        %v4054 = vld [vmem:[#allocation4 + $0x10] sm:$0xff]
        %v4055 = vld [vmem:[#allocation4 + $0x18] sm:$0xff]
        %v4056 = vld [vmem:[#allocation4 + $0x20] sm:$0xff]
        %v4057 = vld [vmem:[#allocation4 + $0x28] sm:$0xff]
        %v4058 = vld [vmem:[#allocation4 + $0x30] sm:$0xff]
        %v4059 = vld [vmem:[#allocation4 + $0x38] sm:$0xff]
        %v4060 = vld [vmem:[#allocation4 + $0x40] sm:$0xff]
        %v4061 = vld [vmem:[#allocation4 + $0x48] sm:$0xff]
        %v4062 = vld [vmem:[#allocation4 + $0x50] sm:$0xff]
        %v4063 = vld [vmem:[#allocation4 + $0x58] sm:$0xff]
        %v4064 = vld [vmem:[#allocation4 + $0x60] sm:$0xff]
        %v4065 = vld [vmem:[#allocation4 + $0x68] sm:$0xff]
        %v4066 = vld [vmem:[#allocation4 + $0x70] sm:$0xff]
        %v4067 = vld [vmem:[#allocation4 + $0x78] sm:$0xff]
        %v4068 = vld [vmem:[#allocation4 + $0x80] sm:$0xff]
        %v4069 = vld [vmem:[#allocation4 + $0x88] sm:$0xff]
        %v4070 = vld [vmem:[#allocation4 + $0x90] sm:$0xff]
        %v4071 = vld [vmem:[#allocation4 + $0x98] sm:$0xff]
        %v4072 = vld [vmem:[#allocation4 + $0xa0] sm:$0xff]
        %v4073 = vld [vmem:[#allocation4 + $0xa8] sm:$0xff]
        %v4074 = vld [vmem:[#allocation4 + $0xb0] sm:$0xff]
        %v4075 = vld [vmem:[#allocation4 + $0xb8] sm:$0xff]
        %v4076 = vld [vmem:[#allocation4 + $0xc0] sm:$0xff]
        %v4077 = vld [vmem:[#allocation4 + $0xc8] sm:$0xff]
        %v4078 = vld [vmem:[#allocation4 + $0xd0] sm:$0xff]
        %v4079 = vld [vmem:[#allocation4 + $0xd8] sm:$0xff]
        %v4080 = vld [vmem:[#allocation4 + $0xe0] sm:$0xff]
        %v4081 = vld [vmem:[#allocation4 + $0xe8] sm:$0xff]
        %v4082 = vld [vmem:[#allocation4 + $0xf0] sm:$0xff]
        %v4083 = vld [vmem:[#allocation4 + $0xf8] sm:$0xff]
        %v4084 = vpack.c.bf16 %v4021, %v4020
        %v4085 = vpack.c.bf16 %v4023, %v4022
        %v4086 = vpack.c.bf16 %v4025, %v4024
        %v4087 = vpack.c.bf16 %v4027, %v4026
        %v4088 = vpack.c.bf16 %v4029, %v4028
        %v4089 = vpack.c.bf16 %v4031, %v4030
        %v4090 = vpack.c.bf16 %v4033, %v4032
        %v4091 = vpack.c.bf16 %v4035, %v4034
        %v4092 = vpack.c.bf16 %v4037, %v4036
        %v4093 = vpack.c.bf16 %v4039, %v4038
        %v4094 = vpack.c.bf16 %v4041, %v4040
        %v4095 = vpack.c.bf16 %v4043, %v4042
        %v4096 = vpack.c.bf16 %v4045, %v4044
        %v4097 = vpack.c.bf16 %v4047, %v4046
        %v4098 = vpack.c.bf16 %v4049, %v4048
        %v4099 = vpack.c.bf16 %v4051, %v4050
        %s4100 = scalar_lea.vmem [#allocation8], 512
        %v4101 = vld [vmem:[%s4100] sm:$0xf]
        %v4102 = vld [vmem:[%s4100 + $0x4] sm:$0xf]
        %v4103 = vld [vmem:[%s4100 + $0x8] sm:$0xf]
        %v4104 = vld [vmem:[%s4100 + $0xc] sm:$0xf]
        %v4105 = vld [vmem:[%s4100 + $0x10] sm:$0xf]
        %v4106 = vld [vmem:[%s4100 + $0x14] sm:$0xf]
        %v4107 = vld [vmem:[%s4100 + $0x18] sm:$0xf]
        %v4108 = vld [vmem:[%s4100 + $0x1c] sm:$0xf]
        %v4109 = vld [vmem:[%s4100 + $0x20] sm:$0xf]
        %v4110 = vld [vmem:[%s4100 + $0x24] sm:$0xf]
        %v4111 = vld [vmem:[%s4100 + $0x28] sm:$0xf]
        %v4112 = vld [vmem:[%s4100 + $0x2c] sm:$0xf]
        %v4113 = vld [vmem:[%s4100 + $0x30] sm:$0xf]
        %v4114 = vld [vmem:[%s4100 + $0x34] sm:$0xf]
        %v4115 = vld [vmem:[%s4100 + $0x38] sm:$0xf]
        %v4116 = vld [vmem:[%s4100 + $0x3c] sm:$0xf]
        %v4133 = vunpack.c.l.b16 %v4101
        %v4134 = vunpack.c.l.b16 %v4102
        %v4135 = vunpack.c.l.b16 %v4103
        %v4136 = vunpack.c.l.b16 %v4104
        %v4137 = vunpack.c.l.b16 %v4105
        %v4138 = vunpack.c.l.b16 %v4106
        %v4139 = vunpack.c.l.b16 %v4107
        %v4140 = vunpack.c.l.b16 %v4108
        %v4141 = vunpack.c.l.b16 %v4109
        %v4142 = vunpack.c.l.b16 %v4110
        %v4143 = vunpack.c.l.b16 %v4111
        %v4144 = vunpack.c.l.b16 %v4112
        %v4145 = vunpack.c.l.b16 %v4113
        %v4146 = vunpack.c.l.b16 %v4114
        %v4147 = vunpack.c.l.b16 %v4115
        %v4148 = vunpack.c.l.b16 %v4116
        %v4149 = vpack.c.b16 %v4134, %v4133
        %v4150 = vpack.c.b16 %v4136, %v4135
        %v4151 = vpack.c.b16 %v4138, %v4137
        %v4152 = vpack.c.b16 %v4140, %v4139
        %v4153 = vpack.c.b16 %v4142, %v4141
        %v4154 = vpack.c.b16 %v4144, %v4143
        %v4155 = vpack.c.b16 %v4146, %v4145
        %v4156 = vpack.c.b16 %v4148, %v4147
        %4165 = vmatprep.subr.bf16.mxu0 0
        %4166 = vmatpush1.bf16.msra.mxu0 %v4156
        %4167 = vmatprep.subr.bf16.mxu0 0
        %4168 = vmatpush1.bf16.msra.mxu0 %v4155
        %4169 = vmatprep.subr.bf16.mxu0 0
        %4170 = vmatpush1.bf16.msra.mxu0 %v4154
        %4171 = vmatprep.subr.bf16.mxu0 0
        %4172 = vmatpush1.bf16.msra.mxu0 %v4153
        %4173 = vmatprep.subr.bf16.mxu0 0
        %4174 = vmatpush1.bf16.msra.mxu0 %v4152
        %4175 = vmatprep.subr.bf16.mxu0 0
        %4176 = vmatpush1.bf16.msra.mxu0 %v4151
        %4177 = vmatprep.subr.bf16.mxu0 0
        %4178 = vmatpush1.bf16.msra.mxu0 %v4150
        %4179 = vmatprep.subr.bf16.mxu0 0
        %4180 = vmatpush1.bf16.msra.mxu0 %v4149
        %4181 = vmatprep.subr.bf16.mxu0 0
        %4182 = vmatpush2.bf16.msra.mxu0 0
        %4183 = vmatprep.subr.bf16.mxu0 0
        %4184 = vmatpush2.bf16.msra.mxu0 0
        %4185 = vmatprep.subr.bf16.mxu0 0
        %4186 = vmatpush2.bf16.msra.mxu0 0
        %4187 = vmatprep.subr.bf16.mxu0 0
        %4188 = vmatpush2.bf16.msra.mxu0 0
        %4189 = vmatprep.subr.bf16.mxu0 0
        %4190 = vmatpush2.bf16.msra.mxu0 0
        %4191 = vmatprep.subr.bf16.mxu0 0
        %4192 = vmatpush2.bf16.msra.mxu0 0
        %4193 = vmatprep.subr.bf16.mxu0 0
        %4194 = vmatpush2.bf16.msra.mxu0 0
        %4195 = vmatprep.subr.bf16.mxu0 0
        %4196 = vmatpush2.bf16.msra.mxu0 0
        %4197 = vmatprep.mubr.bf16.mxu0 0
        %4198 = vmatmul.mubr.bf16.gmra.mxu0 %v4084
        %v4199 = vpop.f32.mrf.mxu0
        %v4200 = vadd.f32 0.0, %v4199
        %v4201 = vpop.f32.mrf.mxu0
        %v4202 = vpop.f32.mrf.mxu0
        %v4203 = vadd.f32 0.0, %v4202
        %v4204 = vpop.f32.mrf.mxu0
        %4205 = vmatprep.mubr.bf16.mxu0 0
        %4206 = vmatmul.mubr.bf16.gmra.mxu0 %v4085
        %v4207 = vpop.f32.mrf.mxu0
        %v4208 = vadd.f32 0.0, %v4207
        %v4209 = vpop.f32.mrf.mxu0
        %v4210 = vpop.f32.mrf.mxu0
        %v4211 = vadd.f32 0.0, %v4210
        %v4212 = vpop.f32.mrf.mxu0
        %4213 = vmatprep.mubr.bf16.mxu0 0
        %4214 = vmatmul.mubr.bf16.gmra.mxu0 %v4086
        %v4215 = vpop.f32.mrf.mxu0
        %v4216 = vadd.f32 0.0, %v4215
        %v4217 = vpop.f32.mrf.mxu0
        %v4218 = vpop.f32.mrf.mxu0
        %v4219 = vadd.f32 0.0, %v4218
        %v4220 = vpop.f32.mrf.mxu0
        %4221 = vmatprep.mubr.bf16.mxu0 0
        %4222 = vmatmul.mubr.bf16.gmra.mxu0 %v4087
        %v4223 = vpop.f32.mrf.mxu0
        %v4224 = vadd.f32 0.0, %v4223
        %v4225 = vpop.f32.mrf.mxu0
        %v4226 = vpop.f32.mrf.mxu0
        %v4227 = vadd.f32 0.0, %v4226
        %v4228 = vpop.f32.mrf.mxu0
        %4229 = vmatprep.mubr.bf16.mxu0 0
        %4230 = vmatmul.mubr.bf16.gmra.mxu0 %v4088
        %v4231 = vpop.f32.mrf.mxu0
        %v4232 = vadd.f32 0.0, %v4231
        %v4233 = vpop.f32.mrf.mxu0
        %v4234 = vpop.f32.mrf.mxu0
        %v4235 = vadd.f32 0.0, %v4234
        %v4236 = vpop.f32.mrf.mxu0
        %4237 = vmatprep.mubr.bf16.mxu0 0
        %4238 = vmatmul.mubr.bf16.gmra.mxu0 %v4089
        %v4239 = vpop.f32.mrf.mxu0
        %v4240 = vadd.f32 0.0, %v4239
        %v4241 = vpop.f32.mrf.mxu0
        %v4242 = vpop.f32.mrf.mxu0
        %v4243 = vadd.f32 0.0, %v4242
        %v4244 = vpop.f32.mrf.mxu0
        %4245 = vmatprep.mubr.bf16.mxu0 0
        %4246 = vmatmul.mubr.bf16.gmra.mxu0 %v4090
        %v4247 = vpop.f32.mrf.mxu0
        %v4248 = vadd.f32 0.0, %v4247
        %v4249 = vpop.f32.mrf.mxu0
        %v4250 = vpop.f32.mrf.mxu0
        %v4251 = vadd.f32 0.0, %v4250
        %v4252 = vpop.f32.mrf.mxu0
        %4253 = vmatprep.mubr.bf16.mxu0 0
        %4254 = vmatmul.mubr.bf16.gmra.mxu0 %v4091
        %v4255 = vpop.f32.mrf.mxu0
        %v4256 = vadd.f32 0.0, %v4255
        %v4257 = vpop.f32.mrf.mxu0
        %v4258 = vpop.f32.mrf.mxu0
        %v4259 = vadd.f32 0.0, %v4258
        %v4260 = vpop.f32.mrf.mxu0
        %4261 = vmatprep.mubr.bf16.mxu0 0
        %4262 = vmatmul.mubr.bf16.gmra.mxu0 %v4092
        %v4263 = vpop.f32.mrf.mxu0
        %v4264 = vadd.f32 0.0, %v4263
        %v4265 = vpop.f32.mrf.mxu0
        %v4266 = vpop.f32.mrf.mxu0
        %v4267 = vadd.f32 0.0, %v4266
        %v4268 = vpop.f32.mrf.mxu0
        %4269 = vmatprep.mubr.bf16.mxu0 0
        %4270 = vmatmul.mubr.bf16.gmra.mxu0 %v4093
        %v4271 = vpop.f32.mrf.mxu0
        %v4272 = vadd.f32 0.0, %v4271
        %v4273 = vpop.f32.mrf.mxu0
        %v4274 = vpop.f32.mrf.mxu0
        %v4275 = vadd.f32 0.0, %v4274
        %v4276 = vpop.f32.mrf.mxu0
        %4277 = vmatprep.mubr.bf16.mxu0 0
        %4278 = vmatmul.mubr.bf16.gmra.mxu0 %v4094
        %v4279 = vpop.f32.mrf.mxu0
        %v4280 = vadd.f32 0.0, %v4279
        %v4281 = vpop.f32.mrf.mxu0
        %v4282 = vpop.f32.mrf.mxu0
        %v4283 = vadd.f32 0.0, %v4282
        %v4284 = vpop.f32.mrf.mxu0
        %4285 = vmatprep.mubr.bf16.mxu0 0
        %4286 = vmatmul.mubr.bf16.gmra.mxu0 %v4095
        %v4287 = vpop.f32.mrf.mxu0
        %v4288 = vadd.f32 0.0, %v4287
        %v4289 = vpop.f32.mrf.mxu0
        %v4290 = vpop.f32.mrf.mxu0
        %v4291 = vadd.f32 0.0, %v4290
        %v4292 = vpop.f32.mrf.mxu0
        %4293 = vmatprep.mubr.bf16.mxu0 0
        %4294 = vmatmul.mubr.bf16.gmra.mxu0 %v4096
        %v4295 = vpop.f32.mrf.mxu0
        %v4296 = vadd.f32 0.0, %v4295
        %v4297 = vpop.f32.mrf.mxu0
        %v4298 = vpop.f32.mrf.mxu0
        %v4299 = vadd.f32 0.0, %v4298
        %v4300 = vpop.f32.mrf.mxu0
        %4301 = vmatprep.mubr.bf16.mxu0 0
        %4302 = vmatmul.mubr.bf16.gmra.mxu0 %v4097
        %v4303 = vpop.f32.mrf.mxu0
        %v4304 = vadd.f32 0.0, %v4303
        %v4305 = vpop.f32.mrf.mxu0
        %v4306 = vpop.f32.mrf.mxu0
        %v4307 = vadd.f32 0.0, %v4306
        %v4308 = vpop.f32.mrf.mxu0
        %4309 = vmatprep.mubr.bf16.mxu0 0
        %4310 = vmatmul.mubr.bf16.gmra.mxu0 %v4098
        %v4311 = vpop.f32.mrf.mxu0
        %v4312 = vadd.f32 0.0, %v4311
        %v4313 = vpop.f32.mrf.mxu0
        %v4314 = vpop.f32.mrf.mxu0
        %v4315 = vadd.f32 0.0, %v4314
        %v4316 = vpop.f32.mrf.mxu0
        %4317 = vmatprep.mubr.bf16.mxu0 0
        %4318 = vmatmul.mubr.bf16.gmra.mxu0 %v4099
        %v4319 = vpop.f32.mrf.mxu0
        %v4320 = vadd.f32 0.0, %v4319
        %v4321 = vpop.f32.mrf.mxu0
        %v4322 = vpop.f32.mrf.mxu0
        %v4323 = vadd.f32 0.0, %v4322
        %v4324 = vpop.f32.mrf.mxu0
        %4325 = vdwg.mxu0
        %v4326 = vadd.f32 %v4052, %v4200
        %v4327 = vadd.f32 %v4053, %v4203
        %v4328 = vadd.f32 %v4054, %v4208
        %v4329 = vadd.f32 %v4055, %v4211
        %v4330 = vadd.f32 %v4056, %v4216
        %v4331 = vadd.f32 %v4057, %v4219
        %v4332 = vadd.f32 %v4058, %v4224
        %v4333 = vadd.f32 %v4059, %v4227
        %v4334 = vadd.f32 %v4060, %v4232
        %v4335 = vadd.f32 %v4061, %v4235
        %v4336 = vadd.f32 %v4062, %v4240
        %v4337 = vadd.f32 %v4063, %v4243
        %v4338 = vadd.f32 %v4064, %v4248
        %v4339 = vadd.f32 %v4065, %v4251
        %v4340 = vadd.f32 %v4066, %v4256
        %v4341 = vadd.f32 %v4067, %v4259
        %v4342 = vadd.f32 %v4068, %v4264
        %v4343 = vadd.f32 %v4069, %v4267
        %v4344 = vadd.f32 %v4070, %v4272
        %v4345 = vadd.f32 %v4071, %v4275
        %v4346 = vadd.f32 %v4072, %v4280
        %v4347 = vadd.f32 %v4073, %v4283
        %v4348 = vadd.f32 %v4074, %v4288
        %v4349 = vadd.f32 %v4075, %v4291
        %v4350 = vadd.f32 %v4076, %v4296
        %v4351 = vadd.f32 %v4077, %v4299
        %v4352 = vadd.f32 %v4078, %v4304
        %v4353 = vadd.f32 %v4079, %v4307
        %v4354 = vadd.f32 %v4080, %v4312
        %v4355 = vadd.f32 %v4081, %v4315
        %v4356 = vadd.f32 %v4082, %v4320
        %v4357 = vadd.f32 %v4083, %v4323
        %4358 = vst [vmem:[#allocation4] sm:$0xff] %v4326
        %4359 = vst [vmem:[#allocation4 + $0x8] sm:$0xff] %v4327
        %4360 = vst [vmem:[#allocation4 + $0x10] sm:$0xff] %v4328
        %4361 = vst [vmem:[#allocation4 + $0x18] sm:$0xff] %v4329
        %4362 = vst [vmem:[#allocation4 + $0x20] sm:$0xff] %v4330
        %4363 = vst [vmem:[#allocation4 + $0x28] sm:$0xff] %v4331
        %4364 = vst [vmem:[#allocation4 + $0x30] sm:$0xff] %v4332
        %4365 = vst [vmem:[#allocation4 + $0x38] sm:$0xff] %v4333
        %4366 = vst [vmem:[#allocation4 + $0x40] sm:$0xff] %v4334
        %4367 = vst [vmem:[#allocation4 + $0x48] sm:$0xff] %v4335
        %4368 = vst [vmem:[#allocation4 + $0x50] sm:$0xff] %v4336
        %4369 = vst [vmem:[#allocation4 + $0x58] sm:$0xff] %v4337
        %4370 = vst [vmem:[#allocation4 + $0x60] sm:$0xff] %v4338
        %4371 = vst [vmem:[#allocation4 + $0x68] sm:$0xff] %v4339
        %4372 = vst [vmem:[#allocation4 + $0x70] sm:$0xff] %v4340
        %4373 = vst [vmem:[#allocation4 + $0x78] sm:$0xff] %v4341
        %4374 = vst [vmem:[#allocation4 + $0x80] sm:$0xff] %v4342
        %4375 = vst [vmem:[#allocation4 + $0x88] sm:$0xff] %v4343
        %4376 = vst [vmem:[#allocation4 + $0x90] sm:$0xff] %v4344
        %4377 = vst [vmem:[#allocation4 + $0x98] sm:$0xff] %v4345
        %4378 = vst [vmem:[#allocation4 + $0xa0] sm:$0xff] %v4346
        %4379 = vst [vmem:[#allocation4 + $0xa8] sm:$0xff] %v4347
        %4380 = vst [vmem:[#allocation4 + $0xb0] sm:$0xff] %v4348
        %4381 = vst [vmem:[#allocation4 + $0xb8] sm:$0xff] %v4349
        %4382 = vst [vmem:[#allocation4 + $0xc0] sm:$0xff] %v4350
        %4383 = vst [vmem:[#allocation4 + $0xc8] sm:$0xff] %v4351
        %4384 = vst [vmem:[#allocation4 + $0xd0] sm:$0xff] %v4352
        %4385 = vst [vmem:[#allocation4 + $0xd8] sm:$0xff] %v4353
        %4386 = vst [vmem:[#allocation4 + $0xe0] sm:$0xff] %v4354
        %4387 = vst [vmem:[#allocation4 + $0xe8] sm:$0xff] %v4355
        %4388 = vst [vmem:[#allocation4 + $0xf0] sm:$0xff] %v4356
        %4389 = vst [vmem:[#allocation4 + $0xf8] sm:$0xff] %v4357
        %v4390 = vld [vmem:[#allocation4] sm:$0xff]
        %v4391 = vld [vmem:[#allocation4 + $0x8] sm:$0xff]
        %v4392 = vld [vmem:[#allocation4 + $0x10] sm:$0xff]
        %v4393 = vld [vmem:[#allocation4 + $0x18] sm:$0xff]
        %v4394 = vld [vmem:[#allocation4 + $0x20] sm:$0xff]
        %v4395 = vld [vmem:[#allocation4 + $0x28] sm:$0xff]
        %v4396 = vld [vmem:[#allocation4 + $0x30] sm:$0xff]
        %v4397 = vld [vmem:[#allocation4 + $0x38] sm:$0xff]
        %v4398 = vld [vmem:[#allocation4 + $0x40] sm:$0xff]
        %v4399 = vld [vmem:[#allocation4 + $0x48] sm:$0xff]
        %v4400 = vld [vmem:[#allocation4 + $0x50] sm:$0xff]
        %v4401 = vld [vmem:[#allocation4 + $0x58] sm:$0xff]
        %v4402 = vld [vmem:[#allocation4 + $0x60] sm:$0xff]
        %v4403 = vld [vmem:[#allocation4 + $0x68] sm:$0xff]
        %v4404 = vld [vmem:[#allocation4 + $0x70] sm:$0xff]
        %v4405 = vld [vmem:[#allocation4 + $0x78] sm:$0xff]
        %v4406 = vld [vmem:[#allocation4 + $0x80] sm:$0xff]
        %v4407 = vld [vmem:[#allocation4 + $0x88] sm:$0xff]
        %v4408 = vld [vmem:[#allocation4 + $0x90] sm:$0xff]
        %v4409 = vld [vmem:[#allocation4 + $0x98] sm:$0xff]
        %v4410 = vld [vmem:[#allocation4 + $0xa0] sm:$0xff]
        %v4411 = vld [vmem:[#allocation4 + $0xa8] sm:$0xff]
        %v4412 = vld [vmem:[#allocation4 + $0xb0] sm:$0xff]
        %v4413 = vld [vmem:[#allocation4 + $0xb8] sm:$0xff]
        %v4414 = vld [vmem:[#allocation4 + $0xc0] sm:$0xff]
        %v4415 = vld [vmem:[#allocation4 + $0xc8] sm:$0xff]
        %v4416 = vld [vmem:[#allocation4 + $0xd0] sm:$0xff]
        %v4417 = vld [vmem:[#allocation4 + $0xd8] sm:$0xff]
        %v4418 = vld [vmem:[#allocation4 + $0xe0] sm:$0xff]
        %v4419 = vld [vmem:[#allocation4 + $0xe8] sm:$0xff]
        %v4420 = vld [vmem:[#allocation4 + $0xf0] sm:$0xff]
        %v4421 = vld [vmem:[#allocation4 + $0xf8] sm:$0xff]
        %v4422 = vmax.f32 %v4390, 0.0
        %v4423 = vmax.f32 %v4391, 0.0
        %v4424 = vmax.f32 %v4392, 0.0
        %v4425 = vmax.f32 %v4393, 0.0
        %v4426 = vmax.f32 %v4394, 0.0
        %v4427 = vmax.f32 %v4395, 0.0
        %v4428 = vmax.f32 %v4396, 0.0
        %v4429 = vmax.f32 %v4397, 0.0
        %v4430 = vmax.f32 %v4398, 0.0
        %v4431 = vmax.f32 %v4399, 0.0
        %v4432 = vmax.f32 %v4400, 0.0
        %v4433 = vmax.f32 %v4401, 0.0
        %v4434 = vmax.f32 %v4402, 0.0
        %v4435 = vmax.f32 %v4403, 0.0
        %v4436 = vmax.f32 %v4404, 0.0
        %v4437 = vmax.f32 %v4405, 0.0
        %v4438 = vmax.f32 %v4406, 0.0
        %v4439 = vmax.f32 %v4407, 0.0
        %v4440 = vmax.f32 %v4408, 0.0
        %v4441 = vmax.f32 %v4409, 0.0
        %v4442 = vmax.f32 %v4410, 0.0
        %v4443 = vmax.f32 %v4411, 0.0
        %v4444 = vmax.f32 %v4412, 0.0
        %v4445 = vmax.f32 %v4413, 0.0
        %v4446 = vmax.f32 %v4414, 0.0
        %v4447 = vmax.f32 %v4415, 0.0
        %v4448 = vmax.f32 %v4416, 0.0
        %v4449 = vmax.f32 %v4417, 0.0
        %v4450 = vmax.f32 %v4418, 0.0
        %v4451 = vmax.f32 %v4419, 0.0
        %v4452 = vmax.f32 %v4420, 0.0
        %v4453 = vmax.f32 %v4421, 0.0
        %4454 = vst [vmem:[#allocation3 + $0x18] sm:$0xff] %v4422
        %4455 = vst [vmem:[#allocation3 + $0x20] sm:$0xff] %v4423
        %4456 = vst [vmem:[#allocation3 + $0x28] sm:$0xff] %v4424
        %4457 = vst [vmem:[#allocation3 + $0x30] sm:$0xff] %v4425
        %4458 = vst [vmem:[#allocation3 + $0x38] sm:$0xff] %v4426
        %4459 = vst [vmem:[#allocation3 + $0x40] sm:$0xff] %v4427
        %4460 = vst [vmem:[#allocation3 + $0x48] sm:$0xff] %v4428
        %4461 = vst [vmem:[#allocation3 + $0x50] sm:$0xff] %v4429
        %4462 = vst [vmem:[#allocation3 + $0x58] sm:$0xff] %v4430
        %4463 = vst [vmem:[#allocation3 + $0x60] sm:$0xff] %v4431
        %4464 = vst [vmem:[#allocation3 + $0x68] sm:$0xff] %v4432
        %4465 = vst [vmem:[#allocation3 + $0x70] sm:$0xff] %v4433
        %4466 = vst [vmem:[#allocation3 + $0x78] sm:$0xff] %v4434
        %4467 = vst [vmem:[#allocation3 + $0x80] sm:$0xff] %v4435
        %4468 = vst [vmem:[#allocation3 + $0x88] sm:$0xff] %v4436
        %4469 = vst [vmem:[#allocation3 + $0x90] sm:$0xff] %v4437
        %4470 = vst [vmem:[#allocation3 + $0x98] sm:$0xff] %v4438
        %4471 = vst [vmem:[#allocation3 + $0xa0] sm:$0xff] %v4439
        %4472 = vst [vmem:[#allocation3 + $0xa8] sm:$0xff] %v4440
        %4473 = vst [vmem:[#allocation3 + $0xb0] sm:$0xff] %v4441
        %4474 = vst [vmem:[#allocation3 + $0xb8] sm:$0xff] %v4442
        %4475 = vst [vmem:[#allocation3 + $0xc0] sm:$0xff] %v4443
        %4476 = vst [vmem:[#allocation3 + $0xc8] sm:$0xff] %v4444
        %4477 = vst [vmem:[#allocation3 + $0xd0] sm:$0xff] %v4445
        %4478 = vst [vmem:[#allocation3 + $0xd8] sm:$0xff] %v4446
        %4479 = vst [vmem:[#allocation3 + $0xe0] sm:$0xff] %v4447
        %4480 = vst [vmem:[#allocation3 + $0xe8] sm:$0xff] %v4448
        %4481 = vst [vmem:[#allocation3 + $0xf0] sm:$0xff] %v4449
        %4482 = vst [vmem:[#allocation3 + $0xf8] sm:$0xff] %v4450
        %4483 = vst [vmem:[#allocation3 + $0x100] sm:$0xff] %v4451
        %4484 = vst [vmem:[#allocation3 + $0x108] sm:$0xff] %v4452
        %4485 = vst [vmem:[#allocation3 + $0x110] sm:$0xff] %v4453
        %v4486 = vld [vmem:[%s4] sm:$0x1]
        %v4488 = vlaneseq
        %v4489 = vshrl.u32 %v4488, 7
        %v4490 = vsub.s32 0, %v4489
        %v4491 = vrot.slane %v4486, %v4490
        %4493 = vst [vmem:[#allocation4] sm:$0xff] %v4491
        %4494 = vst [vmem:[#allocation4 + $0x8] sm:$0xff] %v4491
        %4495 = vst [vmem:[#allocation4 + $0x10] sm:$0xff] %v4491
        %4496 = vst [vmem:[#allocation4 + $0x18] sm:$0xff] %v4491
        %4497 = vst [vmem:[#allocation4 + $0x20] sm:$0xff] %v4491
        %4498 = vst [vmem:[#allocation4 + $0x28] sm:$0xff] %v4491
        %4499 = vst [vmem:[#allocation4 + $0x30] sm:$0xff] %v4491
        %4500 = vst [vmem:[#allocation4 + $0x38] sm:$0xff] %v4491
        %4501 = vst [vmem:[#allocation4 + $0x40] sm:$0xff] %v4491
        %4502 = vst [vmem:[#allocation4 + $0x48] sm:$0xff] %v4491
        %4503 = vst [vmem:[#allocation4 + $0x50] sm:$0xff] %v4491
        %4504 = vst [vmem:[#allocation4 + $0x58] sm:$0xff] %v4491
        %4505 = vst [vmem:[#allocation4 + $0x60] sm:$0xff] %v4491
        %4506 = vst [vmem:[#allocation4 + $0x68] sm:$0xff] %v4491
        %4507 = vst [vmem:[#allocation4 + $0x70] sm:$0xff] %v4491
        %4508 = vst [vmem:[#allocation4 + $0x78] sm:$0xff] %v4491
        %4509 = vst [vmem:[#allocation4 + $0x80] sm:$0xff] %v4491
        %4510 = vst [vmem:[#allocation4 + $0x88] sm:$0xff] %v4491
        %4511 = vst [vmem:[#allocation4 + $0x90] sm:$0xff] %v4491
        %4512 = vst [vmem:[#allocation4 + $0x98] sm:$0xff] %v4491
        %4513 = vst [vmem:[#allocation4 + $0xa0] sm:$0xff] %v4491
        %4514 = vst [vmem:[#allocation4 + $0xa8] sm:$0xff] %v4491
        %4515 = vst [vmem:[#allocation4 + $0xb0] sm:$0xff] %v4491
        %4516 = vst [vmem:[#allocation4 + $0xb8] sm:$0xff] %v4491
        %4517 = vst [vmem:[#allocation4 + $0xc0] sm:$0xff] %v4491
        %4518 = vst [vmem:[#allocation4 + $0xc8] sm:$0xff] %v4491
        %4519 = vst [vmem:[#allocation4 + $0xd0] sm:$0xff] %v4491
        %4520 = vst [vmem:[#allocation4 + $0xd8] sm:$0xff] %v4491
        %4521 = vst [vmem:[#allocation4 + $0xe0] sm:$0xff] %v4491
        %4522 = vst [vmem:[#allocation4 + $0xe8] sm:$0xff] %v4491
        %4523 = vst [vmem:[#allocation4 + $0xf0] sm:$0xff] %v4491
        %4524 = vst [vmem:[#allocation4 + $0xf8] sm:$0xff] %v4491
        %v4525 = vld [vmem:[#allocation3 + $0x7] sm:$0xff]
        %v4526 = vld [vmem:[#allocation3 + $0xf] sm:$0xff]
        %v4527 = vld [vmem:[#allocation3 + $0x17] sm:$0xff]
        %v4528 = vld [vmem:[#allocation3 + $0x1f] sm:$0xff]
        %v4529 = vld [vmem:[#allocation3 + $0x27] sm:$0xff]
        %v4530 = vld [vmem:[#allocation3 + $0x2f] sm:$0xff]
        %v4531 = vld [vmem:[#allocation3 + $0x37] sm:$0xff]
        %v4532 = vld [vmem:[#allocation3 + $0x3f] sm:$0xff]
        %v4533 = vld [vmem:[#allocation3 + $0x47] sm:$0xff]
        %v4534 = vld [vmem:[#allocation3 + $0x4f] sm:$0xff]
        %v4535 = vld [vmem:[#allocation3 + $0x57] sm:$0xff]
        %v4536 = vld [vmem:[#allocation3 + $0x5f] sm:$0xff]
        %v4537 = vld [vmem:[#allocation3 + $0x67] sm:$0xff]
        %v4538 = vld [vmem:[#allocation3 + $0x6f] sm:$0xff]
        %v4539 = vld [vmem:[#allocation3 + $0x77] sm:$0xff]
        %v4540 = vld [vmem:[#allocation3 + $0x7f] sm:$0xff]
        %v4541 = vld [vmem:[#allocation3 + $0x87] sm:$0xff]
        %v4542 = vld [vmem:[#allocation3 + $0x8f] sm:$0xff]
        %v4543 = vld [vmem:[#allocation3 + $0x97] sm:$0xff]
        %v4544 = vld [vmem:[#allocation3 + $0x9f] sm:$0xff]
        %v4545 = vld [vmem:[#allocation3 + $0xa7] sm:$0xff]
        %v4546 = vld [vmem:[#allocation3 + $0xaf] sm:$0xff]
        %v4547 = vld [vmem:[#allocation3 + $0xb7] sm:$0xff]
        %v4548 = vld [vmem:[#allocation3 + $0xbf] sm:$0xff]
        %v4549 = vld [vmem:[#allocation3 + $0xc7] sm:$0xff]
        %v4550 = vld [vmem:[#allocation3 + $0xcf] sm:$0xff]
        %v4551 = vld [vmem:[#allocation3 + $0xd7] sm:$0xff]
        %v4552 = vld [vmem:[#allocation3 + $0xdf] sm:$0xff]
        %v4553 = vld [vmem:[#allocation3 + $0xe7] sm:$0xff]
        %v4554 = vld [vmem:[#allocation3 + $0xef] sm:$0xff]
        %v4555 = vld [vmem:[#allocation3 + $0xf7] sm:$0xff]
        %v4556 = vld [vmem:[#allocation3 + $0xff] sm:$0xff]
        %v4557 = vsel %vm837, %v4525, 0.0
        %v4558 = vsel %vm838, %v4526, 0.0
        %v4559 = vsel %vm839, %v4527, 0.0
        %v4560 = vsel %vm840, %v4528, 0.0
        %v4561 = vsel %vm841, %v4529, 0.0
        %v4562 = vsel %vm842, %v4530, 0.0
        %v4563 = vsel %vm843, %v4531, 0.0
        %v4564 = vsel %vm844, %v4532, 0.0
        %v4565 = vsel %vm845, %v4533, 0.0
        %v4566 = vsel %vm846, %v4534, 0.0
        %v4567 = vsel %vm847, %v4535, 0.0
        %v4568 = vsel %vm848, %v4536, 0.0
        %v4569 = vsel %vm849, %v4537, 0.0
        %v4570 = vsel %vm850, %v4538, 0.0
        %v4571 = vsel %vm851, %v4539, 0.0
        %v4572 = vsel %vm852, %v4540, 0.0
        %v4573 = vsel %vm853, %v4541, 0.0
        %v4574 = vsel %vm854, %v4542, 0.0
        %v4575 = vsel %vm855, %v4543, 0.0
        %v4576 = vsel %vm856, %v4544, 0.0
        %v4577 = vsel %vm857, %v4545, 0.0
        %v4578 = vsel %vm858, %v4546, 0.0
        %v4579 = vsel %vm859, %v4547, 0.0
        %v4580 = vsel %vm860, %v4548, 0.0
        %v4581 = vsel %vm861, %v4549, 0.0
        %v4582 = vsel %vm862, %v4550, 0.0
        %v4583 = vsel %vm863, %v4551, 0.0
        %v4584 = vsel %vm864, %v4552, 0.0
        %v4585 = vsel %vm865, %v4553, 0.0
        %v4586 = vsel %vm866, %v4554, 0.0
        %v4587 = vsel %vm867, %v4555, 0.0
        %v4588 = vsel %vm868, %v4556, 0.0
        %v4589 = vld [vmem:[#allocation4] sm:$0xff]
        %v4590 = vld [vmem:[#allocation4 + $0x8] sm:$0xff]
        %v4591 = vld [vmem:[#allocation4 + $0x10] sm:$0xff]
        %v4592 = vld [vmem:[#allocation4 + $0x18] sm:$0xff]
        %v4593 = vld [vmem:[#allocation4 + $0x20] sm:$0xff]
        %v4594 = vld [vmem:[#allocation4 + $0x28] sm:$0xff]
        %v4595 = vld [vmem:[#allocation4 + $0x30] sm:$0xff]
        %v4596 = vld [vmem:[#allocation4 + $0x38] sm:$0xff]
        %v4597 = vld [vmem:[#allocation4 + $0x40] sm:$0xff]
        %v4598 = vld [vmem:[#allocation4 + $0x48] sm:$0xff]
        %v4599 = vld [vmem:[#allocation4 + $0x50] sm:$0xff]
        %v4600 = vld [vmem:[#allocation4 + $0x58] sm:$0xff]
        %v4601 = vld [vmem:[#allocation4 + $0x60] sm:$0xff]
        %v4602 = vld [vmem:[#allocation4 + $0x68] sm:$0xff]
        %v4603 = vld [vmem:[#allocation4 + $0x70] sm:$0xff]
        %v4604 = vld [vmem:[#allocation4 + $0x78] sm:$0xff]
        %v4605 = vld [vmem:[#allocation4 + $0x80] sm:$0xff]
        %v4606 = vld [vmem:[#allocation4 + $0x88] sm:$0xff]
        %v4607 = vld [vmem:[#allocation4 + $0x90] sm:$0xff]
        %v4608 = vld [vmem:[#allocation4 + $0x98] sm:$0xff]
        %v4609 = vld [vmem:[#allocation4 + $0xa0] sm:$0xff]
        %v4610 = vld [vmem:[#allocation4 + $0xa8] sm:$0xff]
        %v4611 = vld [vmem:[#allocation4 + $0xb0] sm:$0xff]
        %v4612 = vld [vmem:[#allocation4 + $0xb8] sm:$0xff]
        %v4613 = vld [vmem:[#allocation4 + $0xc0] sm:$0xff]
        %v4614 = vld [vmem:[#allocation4 + $0xc8] sm:$0xff]
        %v4615 = vld [vmem:[#allocation4 + $0xd0] sm:$0xff]
        %v4616 = vld [vmem:[#allocation4 + $0xd8] sm:$0xff]
        %v4617 = vld [vmem:[#allocation4 + $0xe0] sm:$0xff]
        %v4618 = vld [vmem:[#allocation4 + $0xe8] sm:$0xff]
        %v4619 = vld [vmem:[#allocation4 + $0xf0] sm:$0xff]
        %v4620 = vld [vmem:[#allocation4 + $0xf8] sm:$0xff]
        %v4621 = vpack.c.bf16 %v4558, %v4557
        %v4622 = vpack.c.bf16 %v4560, %v4559
        %v4623 = vpack.c.bf16 %v4562, %v4561
        %v4624 = vpack.c.bf16 %v4564, %v4563
        %v4625 = vpack.c.bf16 %v4566, %v4565
        %v4626 = vpack.c.bf16 %v4568, %v4567
        %v4627 = vpack.c.bf16 %v4570, %v4569
        %v4628 = vpack.c.bf16 %v4572, %v4571
        %v4629 = vpack.c.bf16 %v4574, %v4573
        %v4630 = vpack.c.bf16 %v4576, %v4575
        %v4631 = vpack.c.bf16 %v4578, %v4577
        %v4632 = vpack.c.bf16 %v4580, %v4579
        %v4633 = vpack.c.bf16 %v4582, %v4581
        %v4634 = vpack.c.bf16 %v4584, %v4583
        %v4635 = vpack.c.bf16 %v4586, %v4585
        %v4636 = vpack.c.bf16 %v4588, %v4587
        %v4637 = vld [vmem:[#allocation10] sm:$0xf]
        %v4638 = vld [vmem:[#allocation10 + $0x4] sm:$0xf]
        %v4639 = vld [vmem:[#allocation10 + $0x8] sm:$0xf]
        %v4640 = vld [vmem:[#allocation10 + $0xc] sm:$0xf]
        %v4641 = vld [vmem:[#allocation10 + $0x10] sm:$0xf]
        %v4642 = vld [vmem:[#allocation10 + $0x14] sm:$0xf]
        %v4643 = vld [vmem:[#allocation10 + $0x18] sm:$0xf]
        %v4644 = vld [vmem:[#allocation10 + $0x1c] sm:$0xf]
        %v4645 = vld [vmem:[#allocation10 + $0x20] sm:$0xf]
        %v4646 = vld [vmem:[#allocation10 + $0x24] sm:$0xf]
        %v4647 = vld [vmem:[#allocation10 + $0x28] sm:$0xf]
        %v4648 = vld [vmem:[#allocation10 + $0x2c] sm:$0xf]
        %v4649 = vld [vmem:[#allocation10 + $0x30] sm:$0xf]
        %v4650 = vld [vmem:[#allocation10 + $0x34] sm:$0xf]
        %v4651 = vld [vmem:[#allocation10 + $0x38] sm:$0xf]
        %v4652 = vld [vmem:[#allocation10 + $0x3c] sm:$0xf]
        %v4669 = vunpack.c.l.b16 %v4637
        %v4670 = vunpack.c.l.b16 %v4638
        %v4671 = vunpack.c.l.b16 %v4639
        %v4672 = vunpack.c.l.b16 %v4640
        %v4673 = vunpack.c.l.b16 %v4641
        %v4674 = vunpack.c.l.b16 %v4642
        %v4675 = vunpack.c.l.b16 %v4643
        %v4676 = vunpack.c.l.b16 %v4644
        %v4677 = vunpack.c.l.b16 %v4645
        %v4678 = vunpack.c.l.b16 %v4646
        %v4679 = vunpack.c.l.b16 %v4647
        %v4680 = vunpack.c.l.b16 %v4648
        %v4681 = vunpack.c.l.b16 %v4649
        %v4682 = vunpack.c.l.b16 %v4650
        %v4683 = vunpack.c.l.b16 %v4651
        %v4684 = vunpack.c.l.b16 %v4652
        %v4685 = vpack.c.b16 %v4670, %v4669
        %v4686 = vpack.c.b16 %v4672, %v4671
        %v4687 = vpack.c.b16 %v4674, %v4673
        %v4688 = vpack.c.b16 %v4676, %v4675
        %v4689 = vpack.c.b16 %v4678, %v4677
        %v4690 = vpack.c.b16 %v4680, %v4679
        %v4691 = vpack.c.b16 %v4682, %v4681
        %v4692 = vpack.c.b16 %v4684, %v4683
        %4701 = vmatprep.subr.bf16.mxu0 0
        %4702 = vmatpush1.bf16.msra.mxu0 %v4692
        %4703 = vmatprep.subr.bf16.mxu0 0
        %4704 = vmatpush1.bf16.msra.mxu0 %v4691
        %4705 = vmatprep.subr.bf16.mxu0 0
        %4706 = vmatpush1.bf16.msra.mxu0 %v4690
        %4707 = vmatprep.subr.bf16.mxu0 0
        %4708 = vmatpush1.bf16.msra.mxu0 %v4689
        %4709 = vmatprep.subr.bf16.mxu0 0
        %4710 = vmatpush1.bf16.msra.mxu0 %v4688
        %4711 = vmatprep.subr.bf16.mxu0 0
        %4712 = vmatpush1.bf16.msra.mxu0 %v4687
        %4713 = vmatprep.subr.bf16.mxu0 0
        %4714 = vmatpush1.bf16.msra.mxu0 %v4686
        %4715 = vmatprep.subr.bf16.mxu0 0
        %4716 = vmatpush1.bf16.msra.mxu0 %v4685
        %4717 = vmatprep.subr.bf16.mxu0 0
        %4718 = vmatpush2.bf16.msra.mxu0 0
        %4719 = vmatprep.subr.bf16.mxu0 0
        %4720 = vmatpush2.bf16.msra.mxu0 0
        %4721 = vmatprep.subr.bf16.mxu0 0
        %4722 = vmatpush2.bf16.msra.mxu0 0
        %4723 = vmatprep.subr.bf16.mxu0 0
        %4724 = vmatpush2.bf16.msra.mxu0 0
        %4725 = vmatprep.subr.bf16.mxu0 0
        %4726 = vmatpush2.bf16.msra.mxu0 0
        %4727 = vmatprep.subr.bf16.mxu0 0
        %4728 = vmatpush2.bf16.msra.mxu0 0
        %4729 = vmatprep.subr.bf16.mxu0 0
        %4730 = vmatpush2.bf16.msra.mxu0 0
        %4731 = vmatprep.subr.bf16.mxu0 0
        %4732 = vmatpush2.bf16.msra.mxu0 0
        %4733 = vmatprep.mubr.bf16.mxu0 0
        %4734 = vmatmul.mubr.bf16.gmra.mxu0 %v4621
        %v4735 = vpop.f32.mrf.mxu0
        %v4736 = vadd.f32 0.0, %v4735
        %v4737 = vpop.f32.mrf.mxu0
        %v4738 = vpop.f32.mrf.mxu0
        %v4739 = vadd.f32 0.0, %v4738
        %v4740 = vpop.f32.mrf.mxu0
        %4741 = vmatprep.mubr.bf16.mxu0 0
        %4742 = vmatmul.mubr.bf16.gmra.mxu0 %v4622
        %v4743 = vpop.f32.mrf.mxu0
        %v4744 = vadd.f32 0.0, %v4743
        %v4745 = vpop.f32.mrf.mxu0
        %v4746 = vpop.f32.mrf.mxu0
        %v4747 = vadd.f32 0.0, %v4746
        %v4748 = vpop.f32.mrf.mxu0
        %4749 = vmatprep.mubr.bf16.mxu0 0
        %4750 = vmatmul.mubr.bf16.gmra.mxu0 %v4623
        %v4751 = vpop.f32.mrf.mxu0
        %v4752 = vadd.f32 0.0, %v4751
        %v4753 = vpop.f32.mrf.mxu0
        %v4754 = vpop.f32.mrf.mxu0
        %v4755 = vadd.f32 0.0, %v4754
        %v4756 = vpop.f32.mrf.mxu0
        %4757 = vmatprep.mubr.bf16.mxu0 0
        %4758 = vmatmul.mubr.bf16.gmra.mxu0 %v4624
        %v4759 = vpop.f32.mrf.mxu0
        %v4760 = vadd.f32 0.0, %v4759
        %v4761 = vpop.f32.mrf.mxu0
        %v4762 = vpop.f32.mrf.mxu0
        %v4763 = vadd.f32 0.0, %v4762
        %v4764 = vpop.f32.mrf.mxu0
        %4765 = vmatprep.mubr.bf16.mxu0 0
        %4766 = vmatmul.mubr.bf16.gmra.mxu0 %v4625
        %v4767 = vpop.f32.mrf.mxu0
        %v4768 = vadd.f32 0.0, %v4767
        %v4769 = vpop.f32.mrf.mxu0
        %v4770 = vpop.f32.mrf.mxu0
        %v4771 = vadd.f32 0.0, %v4770
        %v4772 = vpop.f32.mrf.mxu0
        %4773 = vmatprep.mubr.bf16.mxu0 0
        %4774 = vmatmul.mubr.bf16.gmra.mxu0 %v4626
        %v4775 = vpop.f32.mrf.mxu0
        %v4776 = vadd.f32 0.0, %v4775
        %v4777 = vpop.f32.mrf.mxu0
        %v4778 = vpop.f32.mrf.mxu0
        %v4779 = vadd.f32 0.0, %v4778
        %v4780 = vpop.f32.mrf.mxu0
        %4781 = vmatprep.mubr.bf16.mxu0 0
        %4782 = vmatmul.mubr.bf16.gmra.mxu0 %v4627
        %v4783 = vpop.f32.mrf.mxu0
        %v4784 = vadd.f32 0.0, %v4783
        %v4785 = vpop.f32.mrf.mxu0
        %v4786 = vpop.f32.mrf.mxu0
        %v4787 = vadd.f32 0.0, %v4786
        %v4788 = vpop.f32.mrf.mxu0
        %4789 = vmatprep.mubr.bf16.mxu0 0
        %4790 = vmatmul.mubr.bf16.gmra.mxu0 %v4628
        %v4791 = vpop.f32.mrf.mxu0
        %v4792 = vadd.f32 0.0, %v4791
        %v4793 = vpop.f32.mrf.mxu0
        %v4794 = vpop.f32.mrf.mxu0
        %v4795 = vadd.f32 0.0, %v4794
        %v4796 = vpop.f32.mrf.mxu0
        %4797 = vmatprep.mubr.bf16.mxu0 0
        %4798 = vmatmul.mubr.bf16.gmra.mxu0 %v4629
        %v4799 = vpop.f32.mrf.mxu0
        %v4800 = vadd.f32 0.0, %v4799
        %v4801 = vpop.f32.mrf.mxu0
        %v4802 = vpop.f32.mrf.mxu0
        %v4803 = vadd.f32 0.0, %v4802
        %v4804 = vpop.f32.mrf.mxu0
        %4805 = vmatprep.mubr.bf16.mxu0 0
        %4806 = vmatmul.mubr.bf16.gmra.mxu0 %v4630
        %v4807 = vpop.f32.mrf.mxu0
        %v4808 = vadd.f32 0.0, %v4807
        %v4809 = vpop.f32.mrf.mxu0
        %v4810 = vpop.f32.mrf.mxu0
        %v4811 = vadd.f32 0.0, %v4810
        %v4812 = vpop.f32.mrf.mxu0
        %4813 = vmatprep.mubr.bf16.mxu0 0
        %4814 = vmatmul.mubr.bf16.gmra.mxu0 %v4631
        %v4815 = vpop.f32.mrf.mxu0
        %v4816 = vadd.f32 0.0, %v4815
        %v4817 = vpop.f32.mrf.mxu0
        %v4818 = vpop.f32.mrf.mxu0
        %v4819 = vadd.f32 0.0, %v4818
        %v4820 = vpop.f32.mrf.mxu0
        %4821 = vmatprep.mubr.bf16.mxu0 0
        %4822 = vmatmul.mubr.bf16.gmra.mxu0 %v4632
        %v4823 = vpop.f32.mrf.mxu0
        %v4824 = vadd.f32 0.0, %v4823
        %v4825 = vpop.f32.mrf.mxu0
        %v4826 = vpop.f32.mrf.mxu0
        %v4827 = vadd.f32 0.0, %v4826
        %v4828 = vpop.f32.mrf.mxu0
        %4829 = vmatprep.mubr.bf16.mxu0 0
        %4830 = vmatmul.mubr.bf16.gmra.mxu0 %v4633
        %v4831 = vpop.f32.mrf.mxu0
        %v4832 = vadd.f32 0.0, %v4831
        %v4833 = vpop.f32.mrf.mxu0
        %v4834 = vpop.f32.mrf.mxu0
        %v4835 = vadd.f32 0.0, %v4834
        %v4836 = vpop.f32.mrf.mxu0
        %4837 = vmatprep.mubr.bf16.mxu0 0
        %4838 = vmatmul.mubr.bf16.gmra.mxu0 %v4634
        %v4839 = vpop.f32.mrf.mxu0
        %v4840 = vadd.f32 0.0, %v4839
        %v4841 = vpop.f32.mrf.mxu0
        %v4842 = vpop.f32.mrf.mxu0
        %v4843 = vadd.f32 0.0, %v4842
        %v4844 = vpop.f32.mrf.mxu0
        %4845 = vmatprep.mubr.bf16.mxu0 0
        %4846 = vmatmul.mubr.bf16.gmra.mxu0 %v4635
        %v4847 = vpop.f32.mrf.mxu0
        %v4848 = vadd.f32 0.0, %v4847
        %v4849 = vpop.f32.mrf.mxu0
        %v4850 = vpop.f32.mrf.mxu0
        %v4851 = vadd.f32 0.0, %v4850
        %v4852 = vpop.f32.mrf.mxu0
        %4853 = vmatprep.mubr.bf16.mxu0 0
        %4854 = vmatmul.mubr.bf16.gmra.mxu0 %v4636
        %v4855 = vpop.f32.mrf.mxu0
        %v4856 = vadd.f32 0.0, %v4855
        %v4857 = vpop.f32.mrf.mxu0
        %v4858 = vpop.f32.mrf.mxu0
        %v4859 = vadd.f32 0.0, %v4858
        %v4860 = vpop.f32.mrf.mxu0
        %4861 = vdwg.mxu0
        %v4862 = vadd.f32 %v4589, %v4736
        %v4863 = vadd.f32 %v4590, %v4739
        %v4864 = vadd.f32 %v4591, %v4744
        %v4865 = vadd.f32 %v4592, %v4747
        %v4866 = vadd.f32 %v4593, %v4752
        %v4867 = vadd.f32 %v4594, %v4755
        %v4868 = vadd.f32 %v4595, %v4760
        %v4869 = vadd.f32 %v4596, %v4763
        %v4870 = vadd.f32 %v4597, %v4768
        %v4871 = vadd.f32 %v4598, %v4771
        %v4872 = vadd.f32 %v4599, %v4776
        %v4873 = vadd.f32 %v4600, %v4779
        %v4874 = vadd.f32 %v4601, %v4784
        %v4875 = vadd.f32 %v4602, %v4787
        %v4876 = vadd.f32 %v4603, %v4792
        %v4877 = vadd.f32 %v4604, %v4795
        %v4878 = vadd.f32 %v4605, %v4800
        %v4879 = vadd.f32 %v4606, %v4803
        %v4880 = vadd.f32 %v4607, %v4808
        %v4881 = vadd.f32 %v4608, %v4811
        %v4882 = vadd.f32 %v4609, %v4816
        %v4883 = vadd.f32 %v4610, %v4819
        %v4884 = vadd.f32 %v4611, %v4824
        %v4885 = vadd.f32 %v4612, %v4827
        %v4886 = vadd.f32 %v4613, %v4832
        %v4887 = vadd.f32 %v4614, %v4835
        %v4888 = vadd.f32 %v4615, %v4840
        %v4889 = vadd.f32 %v4616, %v4843
        %v4890 = vadd.f32 %v4617, %v4848
        %v4891 = vadd.f32 %v4618, %v4851
        %v4892 = vadd.f32 %v4619, %v4856
        %v4893 = vadd.f32 %v4620, %v4859
        %4894 = vst [vmem:[#allocation4] sm:$0xff] %v4862
        %4895 = vst [vmem:[#allocation4 + $0x8] sm:$0xff] %v4863
        %4896 = vst [vmem:[#allocation4 + $0x10] sm:$0xff] %v4864
        %4897 = vst [vmem:[#allocation4 + $0x18] sm:$0xff] %v4865
        %4898 = vst [vmem:[#allocation4 + $0x20] sm:$0xff] %v4866
        %4899 = vst [vmem:[#allocation4 + $0x28] sm:$0xff] %v4867
        %4900 = vst [vmem:[#allocation4 + $0x30] sm:$0xff] %v4868
        %4901 = vst [vmem:[#allocation4 + $0x38] sm:$0xff] %v4869
        %4902 = vst [vmem:[#allocation4 + $0x40] sm:$0xff] %v4870
        %4903 = vst [vmem:[#allocation4 + $0x48] sm:$0xff] %v4871
        %4904 = vst [vmem:[#allocation4 + $0x50] sm:$0xff] %v4872
        %4905 = vst [vmem:[#allocation4 + $0x58] sm:$0xff] %v4873
        %4906 = vst [vmem:[#allocation4 + $0x60] sm:$0xff] %v4874
        %4907 = vst [vmem:[#allocation4 + $0x68] sm:$0xff] %v4875
        %4908 = vst [vmem:[#allocation4 + $0x70] sm:$0xff] %v4876
        %4909 = vst [vmem:[#allocation4 + $0x78] sm:$0xff] %v4877
        %4910 = vst [vmem:[#allocation4 + $0x80] sm:$0xff] %v4878
        %4911 = vst [vmem:[#allocation4 + $0x88] sm:$0xff] %v4879
        %4912 = vst [vmem:[#allocation4 + $0x90] sm:$0xff] %v4880
        %4913 = vst [vmem:[#allocation4 + $0x98] sm:$0xff] %v4881
        %4914 = vst [vmem:[#allocation4 + $0xa0] sm:$0xff] %v4882
        %4915 = vst [vmem:[#allocation4 + $0xa8] sm:$0xff] %v4883
        %4916 = vst [vmem:[#allocation4 + $0xb0] sm:$0xff] %v4884
        %4917 = vst [vmem:[#allocation4 + $0xb8] sm:$0xff] %v4885
        %4918 = vst [vmem:[#allocation4 + $0xc0] sm:$0xff] %v4886
        %4919 = vst [vmem:[#allocation4 + $0xc8] sm:$0xff] %v4887
        %4920 = vst [vmem:[#allocation4 + $0xd0] sm:$0xff] %v4888
        %4921 = vst [vmem:[#allocation4 + $0xd8] sm:$0xff] %v4889
        %4922 = vst [vmem:[#allocation4 + $0xe0] sm:$0xff] %v4890
        %4923 = vst [vmem:[#allocation4 + $0xe8] sm:$0xff] %v4891
        %4924 = vst [vmem:[#allocation4 + $0xf0] sm:$0xff] %v4892
        %4925 = vst [vmem:[#allocation4 + $0xf8] sm:$0xff] %v4893
        %v4926 = vld [vmem:[#allocation3 + $0x8] sm:$0xff]
        %v4927 = vld [vmem:[#allocation3 + $0x10] sm:$0xff]
        %v4928 = vld [vmem:[#allocation3 + $0x18] sm:$0xff]
        %v4929 = vld [vmem:[#allocation3 + $0x20] sm:$0xff]
        %v4930 = vld [vmem:[#allocation3 + $0x28] sm:$0xff]
        %v4931 = vld [vmem:[#allocation3 + $0x30] sm:$0xff]
        %v4932 = vld [vmem:[#allocation3 + $0x38] sm:$0xff]
        %v4933 = vld [vmem:[#allocation3 + $0x40] sm:$0xff]
        %v4934 = vld [vmem:[#allocation3 + $0x48] sm:$0xff]
        %v4935 = vld [vmem:[#allocation3 + $0x50] sm:$0xff]
        %v4936 = vld [vmem:[#allocation3 + $0x58] sm:$0xff]
        %v4937 = vld [vmem:[#allocation3 + $0x60] sm:$0xff]
        %v4938 = vld [vmem:[#allocation3 + $0x68] sm:$0xff]
        %v4939 = vld [vmem:[#allocation3 + $0x70] sm:$0xff]
        %v4940 = vld [vmem:[#allocation3 + $0x78] sm:$0xff]
        %v4941 = vld [vmem:[#allocation3 + $0x80] sm:$0xff]
        %v4942 = vld [vmem:[#allocation3 + $0x88] sm:$0xff]
        %v4943 = vld [vmem:[#allocation3 + $0x90] sm:$0xff]
        %v4944 = vld [vmem:[#allocation3 + $0x98] sm:$0xff]
        %v4945 = vld [vmem:[#allocation3 + $0xa0] sm:$0xff]
        %v4946 = vld [vmem:[#allocation3 + $0xa8] sm:$0xff]
        %v4947 = vld [vmem:[#allocation3 + $0xb0] sm:$0xff]
        %v4948 = vld [vmem:[#allocation3 + $0xb8] sm:$0xff]
        %v4949 = vld [vmem:[#allocation3 + $0xc0] sm:$0xff]
        %v4950 = vld [vmem:[#allocation3 + $0xc8] sm:$0xff]
        %v4951 = vld [vmem:[#allocation3 + $0xd0] sm:$0xff]
        %v4952 = vld [vmem:[#allocation3 + $0xd8] sm:$0xff]
        %v4953 = vld [vmem:[#allocation3 + $0xe0] sm:$0xff]
        %v4954 = vld [vmem:[#allocation3 + $0xe8] sm:$0xff]
        %v4955 = vld [vmem:[#allocation3 + $0xf0] sm:$0xff]
        %v4956 = vld [vmem:[#allocation3 + $0xf8] sm:$0xff]
        %v4957 = vld [vmem:[#allocation3 + $0x100] sm:$0xff]
        %v4958 = vld [vmem:[#allocation4] sm:$0xff]
        %v4959 = vld [vmem:[#allocation4 + $0x8] sm:$0xff]
        %v4960 = vld [vmem:[#allocation4 + $0x10] sm:$0xff]
        %v4961 = vld [vmem:[#allocation4 + $0x18] sm:$0xff]
        %v4962 = vld [vmem:[#allocation4 + $0x20] sm:$0xff]
        %v4963 = vld [vmem:[#allocation4 + $0x28] sm:$0xff]
        %v4964 = vld [vmem:[#allocation4 + $0x30] sm:$0xff]
        %v4965 = vld [vmem:[#allocation4 + $0x38] sm:$0xff]
        %v4966 = vld [vmem:[#allocation4 + $0x40] sm:$0xff]
        %v4967 = vld [vmem:[#allocation4 + $0x48] sm:$0xff]
        %v4968 = vld [vmem:[#allocation4 + $0x50] sm:$0xff]
        %v4969 = vld [vmem:[#allocation4 + $0x58] sm:$0xff]
        %v4970 = vld [vmem:[#allocation4 + $0x60] sm:$0xff]
        %v4971 = vld [vmem:[#allocation4 + $0x68] sm:$0xff]
        %v4972 = vld [vmem:[#allocation4 + $0x70] sm:$0xff]
        %v4973 = vld [vmem:[#allocation4 + $0x78] sm:$0xff]
        %v4974 = vld [vmem:[#allocation4 + $0x80] sm:$0xff]
        %v4975 = vld [vmem:[#allocation4 + $0x88] sm:$0xff]
        %v4976 = vld [vmem:[#allocation4 + $0x90] sm:$0xff]
        %v4977 = vld [vmem:[#allocation4 + $0x98] sm:$0xff]
        %v4978 = vld [vmem:[#allocation4 + $0xa0] sm:$0xff]
        %v4979 = vld [vmem:[#allocation4 + $0xa8] sm:$0xff]
        %v4980 = vld [vmem:[#allocation4 + $0xb0] sm:$0xff]
        %v4981 = vld [vmem:[#allocation4 + $0xb8] sm:$0xff]
        %v4982 = vld [vmem:[#allocation4 + $0xc0] sm:$0xff]
        %v4983 = vld [vmem:[#allocation4 + $0xc8] sm:$0xff]
        %v4984 = vld [vmem:[#allocation4 + $0xd0] sm:$0xff]
        %v4985 = vld [vmem:[#allocation4 + $0xd8] sm:$0xff]
        %v4986 = vld [vmem:[#allocation4 + $0xe0] sm:$0xff]
        %v4987 = vld [vmem:[#allocation4 + $0xe8] sm:$0xff]
        %v4988 = vld [vmem:[#allocation4 + $0xf0] sm:$0xff]
        %v4989 = vld [vmem:[#allocation4 + $0xf8] sm:$0xff]
        %v4990 = vpack.c.bf16 %v4927, %v4926
        %v4991 = vpack.c.bf16 %v4929, %v4928
        %v4992 = vpack.c.bf16 %v4931, %v4930
        %v4993 = vpack.c.bf16 %v4933, %v4932
        %v4994 = vpack.c.bf16 %v4935, %v4934
        %v4995 = vpack.c.bf16 %v4937, %v4936
        %v4996 = vpack.c.bf16 %v4939, %v4938
        %v4997 = vpack.c.bf16 %v4941, %v4940
        %v4998 = vpack.c.bf16 %v4943, %v4942
        %v4999 = vpack.c.bf16 %v4945, %v4944
        %v5000 = vpack.c.bf16 %v4947, %v4946
        %v5001 = vpack.c.bf16 %v4949, %v4948
        %v5002 = vpack.c.bf16 %v4951, %v4950
        %v5003 = vpack.c.bf16 %v4953, %v4952
        %v5004 = vpack.c.bf16 %v4955, %v4954
        %v5005 = vpack.c.bf16 %v4957, %v4956
        %s5006 = scalar_lea.vmem [#allocation10], 64
        %v5007 = vld [vmem:[%s5006] sm:$0xf]
        %v5008 = vld [vmem:[%s5006 + $0x4] sm:$0xf]
        %v5009 = vld [vmem:[%s5006 + $0x8] sm:$0xf]
        %v5010 = vld [vmem:[%s5006 + $0xc] sm:$0xf]
        %v5011 = vld [vmem:[%s5006 + $0x10] sm:$0xf]
        %v5012 = vld [vmem:[%s5006 + $0x14] sm:$0xf]
        %v5013 = vld [vmem:[%s5006 + $0x18] sm:$0xf]
        %v5014 = vld [vmem:[%s5006 + $0x1c] sm:$0xf]
        %v5015 = vld [vmem:[%s5006 + $0x20] sm:$0xf]
        %v5016 = vld [vmem:[%s5006 + $0x24] sm:$0xf]
        %v5017 = vld [vmem:[%s5006 + $0x28] sm:$0xf]
        %v5018 = vld [vmem:[%s5006 + $0x2c] sm:$0xf]
        %v5019 = vld [vmem:[%s5006 + $0x30] sm:$0xf]
        %v5020 = vld [vmem:[%s5006 + $0x34] sm:$0xf]
        %v5021 = vld [vmem:[%s5006 + $0x38] sm:$0xf]
        %v5022 = vld [vmem:[%s5006 + $0x3c] sm:$0xf]
        %v5039 = vunpack.c.l.b16 %v5007
        %v5040 = vunpack.c.l.b16 %v5008
        %v5041 = vunpack.c.l.b16 %v5009
        %v5042 = vunpack.c.l.b16 %v5010
        %v5043 = vunpack.c.l.b16 %v5011
        %v5044 = vunpack.c.l.b16 %v5012
        %v5045 = vunpack.c.l.b16 %v5013
        %v5046 = vunpack.c.l.b16 %v5014
        %v5047 = vunpack.c.l.b16 %v5015
        %v5048 = vunpack.c.l.b16 %v5016
        %v5049 = vunpack.c.l.b16 %v5017
        %v5050 = vunpack.c.l.b16 %v5018
        %v5051 = vunpack.c.l.b16 %v5019
        %v5052 = vunpack.c.l.b16 %v5020
        %v5053 = vunpack.c.l.b16 %v5021
        %v5054 = vunpack.c.l.b16 %v5022
        %v5055 = vpack.c.b16 %v5040, %v5039
        %v5056 = vpack.c.b16 %v5042, %v5041
        %v5057 = vpack.c.b16 %v5044, %v5043
        %v5058 = vpack.c.b16 %v5046, %v5045
        %v5059 = vpack.c.b16 %v5048, %v5047
        %v5060 = vpack.c.b16 %v5050, %v5049
        %v5061 = vpack.c.b16 %v5052, %v5051
        %v5062 = vpack.c.b16 %v5054, %v5053
        %5071 = vmatprep.subr.bf16.mxu0 0
        %5072 = vmatpush1.bf16.msra.mxu0 %v5062
        %5073 = vmatprep.subr.bf16.mxu0 0
        %5074 = vmatpush1.bf16.msra.mxu0 %v5061
        %5075 = vmatprep.subr.bf16.mxu0 0
        %5076 = vmatpush1.bf16.msra.mxu0 %v5060
        %5077 = vmatprep.subr.bf16.mxu0 0
        %5078 = vmatpush1.bf16.msra.mxu0 %v5059
        %5079 = vmatprep.subr.bf16.mxu0 0
        %5080 = vmatpush1.bf16.msra.mxu0 %v5058
        %5081 = vmatprep.subr.bf16.mxu0 0
        %5082 = vmatpush1.bf16.msra.mxu0 %v5057
        %5083 = vmatprep.subr.bf16.mxu0 0
        %5084 = vmatpush1.bf16.msra.mxu0 %v5056
        %5085 = vmatprep.subr.bf16.mxu0 0
        %5086 = vmatpush1.bf16.msra.mxu0 %v5055
        %5087 = vmatprep.subr.bf16.mxu0 0
        %5088 = vmatpush2.bf16.msra.mxu0 0
        %5089 = vmatprep.subr.bf16.mxu0 0
        %5090 = vmatpush2.bf16.msra.mxu0 0
        %5091 = vmatprep.subr.bf16.mxu0 0
        %5092 = vmatpush2.bf16.msra.mxu0 0
        %5093 = vmatprep.subr.bf16.mxu0 0
        %5094 = vmatpush2.bf16.msra.mxu0 0
        %5095 = vmatprep.subr.bf16.mxu0 0
        %5096 = vmatpush2.bf16.msra.mxu0 0
        %5097 = vmatprep.subr.bf16.mxu0 0
        %5098 = vmatpush2.bf16.msra.mxu0 0
        %5099 = vmatprep.subr.bf16.mxu0 0
        %5100 = vmatpush2.bf16.msra.mxu0 0
        %5101 = vmatprep.subr.bf16.mxu0 0
        %5102 = vmatpush2.bf16.msra.mxu0 0
        %5103 = vmatprep.mubr.bf16.mxu0 0
        %5104 = vmatmul.mubr.bf16.gmra.mxu0 %v4990
        %v5105 = vpop.f32.mrf.mxu0
        %v5106 = vadd.f32 0.0, %v5105
        %v5107 = vpop.f32.mrf.mxu0
        %v5108 = vpop.f32.mrf.mxu0
        %v5109 = vadd.f32 0.0, %v5108
        %v5110 = vpop.f32.mrf.mxu0
        %5111 = vmatprep.mubr.bf16.mxu0 0
        %5112 = vmatmul.mubr.bf16.gmra.mxu0 %v4991
        %v5113 = vpop.f32.mrf.mxu0
        %v5114 = vadd.f32 0.0, %v5113
        %v5115 = vpop.f32.mrf.mxu0
        %v5116 = vpop.f32.mrf.mxu0
        %v5117 = vadd.f32 0.0, %v5116
        %v5118 = vpop.f32.mrf.mxu0
        %5119 = vmatprep.mubr.bf16.mxu0 0
        %5120 = vmatmul.mubr.bf16.gmra.mxu0 %v4992
        %v5121 = vpop.f32.mrf.mxu0
        %v5122 = vadd.f32 0.0, %v5121
        %v5123 = vpop.f32.mrf.mxu0
        %v5124 = vpop.f32.mrf.mxu0
        %v5125 = vadd.f32 0.0, %v5124
        %v5126 = vpop.f32.mrf.mxu0
        %5127 = vmatprep.mubr.bf16.mxu0 0
        %5128 = vmatmul.mubr.bf16.gmra.mxu0 %v4993
        %v5129 = vpop.f32.mrf.mxu0
        %v5130 = vadd.f32 0.0, %v5129
        %v5131 = vpop.f32.mrf.mxu0
        %v5132 = vpop.f32.mrf.mxu0
        %v5133 = vadd.f32 0.0, %v5132
        %v5134 = vpop.f32.mrf.mxu0
        %5135 = vmatprep.mubr.bf16.mxu0 0
        %5136 = vmatmul.mubr.bf16.gmra.mxu0 %v4994
        %v5137 = vpop.f32.mrf.mxu0
        %v5138 = vadd.f32 0.0, %v5137
        %v5139 = vpop.f32.mrf.mxu0
        %v5140 = vpop.f32.mrf.mxu0
        %v5141 = vadd.f32 0.0, %v5140
        %v5142 = vpop.f32.mrf.mxu0
        %5143 = vmatprep.mubr.bf16.mxu0 0
        %5144 = vmatmul.mubr.bf16.gmra.mxu0 %v4995
        %v5145 = vpop.f32.mrf.mxu0
        %v5146 = vadd.f32 0.0, %v5145
        %v5147 = vpop.f32.mrf.mxu0
        %v5148 = vpop.f32.mrf.mxu0
        %v5149 = vadd.f32 0.0, %v5148
        %v5150 = vpop.f32.mrf.mxu0
        %5151 = vmatprep.mubr.bf16.mxu0 0
        %5152 = vmatmul.mubr.bf16.gmra.mxu0 %v4996
        %v5153 = vpop.f32.mrf.mxu0
        %v5154 = vadd.f32 0.0, %v5153
        %v5155 = vpop.f32.mrf.mxu0
        %v5156 = vpop.f32.mrf.mxu0
        %v5157 = vadd.f32 0.0, %v5156
        %v5158 = vpop.f32.mrf.mxu0
        %5159 = vmatprep.mubr.bf16.mxu0 0
        %5160 = vmatmul.mubr.bf16.gmra.mxu0 %v4997
        %v5161 = vpop.f32.mrf.mxu0
        %v5162 = vadd.f32 0.0, %v5161
        %v5163 = vpop.f32.mrf.mxu0
        %v5164 = vpop.f32.mrf.mxu0
        %v5165 = vadd.f32 0.0, %v5164
        %v5166 = vpop.f32.mrf.mxu0
        %5167 = vmatprep.mubr.bf16.mxu0 0
        %5168 = vmatmul.mubr.bf16.gmra.mxu0 %v4998
        %v5169 = vpop.f32.mrf.mxu0
        %v5170 = vadd.f32 0.0, %v5169
        %v5171 = vpop.f32.mrf.mxu0
        %v5172 = vpop.f32.mrf.mxu0
        %v5173 = vadd.f32 0.0, %v5172
        %v5174 = vpop.f32.mrf.mxu0
        %5175 = vmatprep.mubr.bf16.mxu0 0
        %5176 = vmatmul.mubr.bf16.gmra.mxu0 %v4999
        %v5177 = vpop.f32.mrf.mxu0
        %v5178 = vadd.f32 0.0, %v5177
        %v5179 = vpop.f32.mrf.mxu0
        %v5180 = vpop.f32.mrf.mxu0
        %v5181 = vadd.f32 0.0, %v5180
        %v5182 = vpop.f32.mrf.mxu0
        %5183 = vmatprep.mubr.bf16.mxu0 0
        %5184 = vmatmul.mubr.bf16.gmra.mxu0 %v5000
        %v5185 = vpop.f32.mrf.mxu0
        %v5186 = vadd.f32 0.0, %v5185
        %v5187 = vpop.f32.mrf.mxu0
        %v5188 = vpop.f32.mrf.mxu0
        %v5189 = vadd.f32 0.0, %v5188
        %v5190 = vpop.f32.mrf.mxu0
        %5191 = vmatprep.mubr.bf16.mxu0 0
        %5192 = vmatmul.mubr.bf16.gmra.mxu0 %v5001
        %v5193 = vpop.f32.mrf.mxu0
        %v5194 = vadd.f32 0.0, %v5193
        %v5195 = vpop.f32.mrf.mxu0
        %v5196 = vpop.f32.mrf.mxu0
        %v5197 = vadd.f32 0.0, %v5196
        %v5198 = vpop.f32.mrf.mxu0
        %5199 = vmatprep.mubr.bf16.mxu0 0
        %5200 = vmatmul.mubr.bf16.gmra.mxu0 %v5002
        %v5201 = vpop.f32.mrf.mxu0
        %v5202 = vadd.f32 0.0, %v5201
        %v5203 = vpop.f32.mrf.mxu0
        %v5204 = vpop.f32.mrf.mxu0
        %v5205 = vadd.f32 0.0, %v5204
        %v5206 = vpop.f32.mrf.mxu0
        %5207 = vmatprep.mubr.bf16.mxu0 0
        %5208 = vmatmul.mubr.bf16.gmra.mxu0 %v5003
        %v5209 = vpop.f32.mrf.mxu0
        %v5210 = vadd.f32 0.0, %v5209
        %v5211 = vpop.f32.mrf.mxu0
        %v5212 = vpop.f32.mrf.mxu0
        %v5213 = vadd.f32 0.0, %v5212
        %v5214 = vpop.f32.mrf.mxu0
        %5215 = vmatprep.mubr.bf16.mxu0 0
        %5216 = vmatmul.mubr.bf16.gmra.mxu0 %v5004
        %v5217 = vpop.f32.mrf.mxu0
        %v5218 = vadd.f32 0.0, %v5217
        %v5219 = vpop.f32.mrf.mxu0
        %v5220 = vpop.f32.mrf.mxu0
        %v5221 = vadd.f32 0.0, %v5220
        %v5222 = vpop.f32.mrf.mxu0
        %5223 = vmatprep.mubr.bf16.mxu0 0
        %5224 = vmatmul.mubr.bf16.gmra.mxu0 %v5005
        %v5225 = vpop.f32.mrf.mxu0
        %v5226 = vadd.f32 0.0, %v5225
        %v5227 = vpop.f32.mrf.mxu0
        %v5228 = vpop.f32.mrf.mxu0
        %v5229 = vadd.f32 0.0, %v5228
        %v5230 = vpop.f32.mrf.mxu0
        %5231 = vdwg.mxu0
        %v5232 = vadd.f32 %v4958, %v5106
        %v5233 = vadd.f32 %v4959, %v5109
        %v5234 = vadd.f32 %v4960, %v5114
        %v5235 = vadd.f32 %v4961, %v5117
        %v5236 = vadd.f32 %v4962, %v5122
        %v5237 = vadd.f32 %v4963, %v5125
        %v5238 = vadd.f32 %v4964, %v5130
        %v5239 = vadd.f32 %v4965, %v5133
        %v5240 = vadd.f32 %v4966, %v5138
        %v5241 = vadd.f32 %v4967, %v5141
        %v5242 = vadd.f32 %v4968, %v5146
        %v5243 = vadd.f32 %v4969, %v5149
        %v5244 = vadd.f32 %v4970, %v5154
        %v5245 = vadd.f32 %v4971, %v5157
        %v5246 = vadd.f32 %v4972, %v5162
        %v5247 = vadd.f32 %v4973, %v5165
        %v5248 = vadd.f32 %v4974, %v5170
        %v5249 = vadd.f32 %v4975, %v5173
        %v5250 = vadd.f32 %v4976, %v5178
        %v5251 = vadd.f32 %v4977, %v5181
        %v5252 = vadd.f32 %v4978, %v5186
        %v5253 = vadd.f32 %v4979, %v5189
        %v5254 = vadd.f32 %v4980, %v5194
        %v5255 = vadd.f32 %v4981, %v5197
        %v5256 = vadd.f32 %v4982, %v5202
        %v5257 = vadd.f32 %v4983, %v5205
        %v5258 = vadd.f32 %v4984, %v5210
        %v5259 = vadd.f32 %v4985, %v5213
        %v5260 = vadd.f32 %v4986, %v5218
        %v5261 = vadd.f32 %v4987, %v5221
        %v5262 = vadd.f32 %v4988, %v5226
        %v5263 = vadd.f32 %v4989, %v5229
        %5264 = vst [vmem:[#allocation4] sm:$0xff] %v5232
        %5265 = vst [vmem:[#allocation4 + $0x8] sm:$0xff] %v5233
        %5266 = vst [vmem:[#allocation4 + $0x10] sm:$0xff] %v5234
        %5267 = vst [vmem:[#allocation4 + $0x18] sm:$0xff] %v5235
        %5268 = vst [vmem:[#allocation4 + $0x20] sm:$0xff] %v5236
        %5269 = vst [vmem:[#allocation4 + $0x28] sm:$0xff] %v5237
        %5270 = vst [vmem:[#allocation4 + $0x30] sm:$0xff] %v5238
        %5271 = vst [vmem:[#allocation4 + $0x38] sm:$0xff] %v5239
        %5272 = vst [vmem:[#allocation4 + $0x40] sm:$0xff] %v5240
        %5273 = vst [vmem:[#allocation4 + $0x48] sm:$0xff] %v5241
        %5274 = vst [vmem:[#allocation4 + $0x50] sm:$0xff] %v5242
        %5275 = vst [vmem:[#allocation4 + $0x58] sm:$0xff] %v5243
        %5276 = vst [vmem:[#allocation4 + $0x60] sm:$0xff] %v5244
        %5277 = vst [vmem:[#allocation4 + $0x68] sm:$0xff] %v5245
        %5278 = vst [vmem:[#allocation4 + $0x70] sm:$0xff] %v5246
        %5279 = vst [vmem:[#allocation4 + $0x78] sm:$0xff] %v5247
        %5280 = vst [vmem:[#allocation4 + $0x80] sm:$0xff] %v5248
        %5281 = vst [vmem:[#allocation4 + $0x88] sm:$0xff] %v5249
        %5282 = vst [vmem:[#allocation4 + $0x90] sm:$0xff] %v5250
        %5283 = vst [vmem:[#allocation4 + $0x98] sm:$0xff] %v5251
        %5284 = vst [vmem:[#allocation4 + $0xa0] sm:$0xff] %v5252
        %5285 = vst [vmem:[#allocation4 + $0xa8] sm:$0xff] %v5253
        %5286 = vst [vmem:[#allocation4 + $0xb0] sm:$0xff] %v5254
        %5287 = vst [vmem:[#allocation4 + $0xb8] sm:$0xff] %v5255
        %5288 = vst [vmem:[#allocation4 + $0xc0] sm:$0xff] %v5256
        %5289 = vst [vmem:[#allocation4 + $0xc8] sm:$0xff] %v5257
        %5290 = vst [vmem:[#allocation4 + $0xd0] sm:$0xff] %v5258
        %5291 = vst [vmem:[#allocation4 + $0xd8] sm:$0xff] %v5259
        %5292 = vst [vmem:[#allocation4 + $0xe0] sm:$0xff] %v5260
        %5293 = vst [vmem:[#allocation4 + $0xe8] sm:$0xff] %v5261
        %5294 = vst [vmem:[#allocation4 + $0xf0] sm:$0xff] %v5262
        %5295 = vst [vmem:[#allocation4 + $0xf8] sm:$0xff] %v5263
        %v5296 = vld [vmem:[#allocation3 + $0x9] sm:$0xff]
        %v5297 = vld [vmem:[#allocation3 + $0x11] sm:$0xff]
        %v5298 = vld [vmem:[#allocation3 + $0x19] sm:$0xff]
        %v5299 = vld [vmem:[#allocation3 + $0x21] sm:$0xff]
        %v5300 = vld [vmem:[#allocation3 + $0x29] sm:$0xff]
        %v5301 = vld [vmem:[#allocation3 + $0x31] sm:$0xff]
        %v5302 = vld [vmem:[#allocation3 + $0x39] sm:$0xff]
        %v5303 = vld [vmem:[#allocation3 + $0x41] sm:$0xff]
        %v5304 = vld [vmem:[#allocation3 + $0x49] sm:$0xff]
        %v5305 = vld [vmem:[#allocation3 + $0x51] sm:$0xff]
        %v5306 = vld [vmem:[#allocation3 + $0x59] sm:$0xff]
        %v5307 = vld [vmem:[#allocation3 + $0x61] sm:$0xff]
        %v5308 = vld [vmem:[#allocation3 + $0x69] sm:$0xff]
        %v5309 = vld [vmem:[#allocation3 + $0x71] sm:$0xff]
        %v5310 = vld [vmem:[#allocation3 + $0x79] sm:$0xff]
        %v5311 = vld [vmem:[#allocation3 + $0x81] sm:$0xff]
        %v5312 = vld [vmem:[#allocation3 + $0x89] sm:$0xff]
        %v5313 = vld [vmem:[#allocation3 + $0x91] sm:$0xff]
        %v5314 = vld [vmem:[#allocation3 + $0x99] sm:$0xff]
        %v5315 = vld [vmem:[#allocation3 + $0xa1] sm:$0xff]
        %v5316 = vld [vmem:[#allocation3 + $0xa9] sm:$0xff]
        %v5317 = vld [vmem:[#allocation3 + $0xb1] sm:$0xff]
        %v5318 = vld [vmem:[#allocation3 + $0xb9] sm:$0xff]
        %v5319 = vld [vmem:[#allocation3 + $0xc1] sm:$0xff]
        %v5320 = vld [vmem:[#allocation3 + $0xc9] sm:$0xff]
        %v5321 = vld [vmem:[#allocation3 + $0xd1] sm:$0xff]
        %v5322 = vld [vmem:[#allocation3 + $0xd9] sm:$0xff]
        %v5323 = vld [vmem:[#allocation3 + $0xe1] sm:$0xff]
        %v5324 = vld [vmem:[#allocation3 + $0xe9] sm:$0xff]
        %v5325 = vld [vmem:[#allocation3 + $0xf1] sm:$0xff]
        %v5326 = vld [vmem:[#allocation3 + $0xf9] sm:$0xff]
        %v5327 = vld [vmem:[#allocation3 + $0x101] sm:$0xff]
        %v5328 = vsel %vm1640, %v5296, 0.0
        %v5329 = vsel %vm1641, %v5297, 0.0
        %v5330 = vsel %vm1642, %v5298, 0.0
        %v5331 = vsel %vm1643, %v5299, 0.0
        %v5332 = vsel %vm1644, %v5300, 0.0
        %v5333 = vsel %vm1645, %v5301, 0.0
        %v5334 = vsel %vm1646, %v5302, 0.0
        %v5335 = vsel %vm1647, %v5303, 0.0
        %v5336 = vsel %vm1648, %v5304, 0.0
        %v5337 = vsel %vm1649, %v5305, 0.0
        %v5338 = vsel %vm1650, %v5306, 0.0
        %v5339 = vsel %vm1651, %v5307, 0.0
        %v5340 = vsel %vm1652, %v5308, 0.0
        %v5341 = vsel %vm1653, %v5309, 0.0
        %v5342 = vsel %vm1654, %v5310, 0.0
        %v5343 = vsel %vm1655, %v5311, 0.0
        %v5344 = vsel %vm1656, %v5312, 0.0
        %v5345 = vsel %vm1657, %v5313, 0.0
        %v5346 = vsel %vm1658, %v5314, 0.0
        %v5347 = vsel %vm1659, %v5315, 0.0
        %v5348 = vsel %vm1660, %v5316, 0.0
        %v5349 = vsel %vm1661, %v5317, 0.0
        %v5350 = vsel %vm1662, %v5318, 0.0
        %v5351 = vsel %vm1663, %v5319, 0.0
        %v5352 = vsel %vm1664, %v5320, 0.0
        %v5353 = vsel %vm1665, %v5321, 0.0
        %v5354 = vsel %vm1666, %v5322, 0.0
        %v5355 = vsel %vm1667, %v5323, 0.0
        %v5356 = vsel %vm1668, %v5324, 0.0
        %v5357 = vsel %vm1669, %v5325, 0.0
        %v5358 = vsel %vm1670, %v5326, 0.0
        %v5359 = vsel %vm1671, %v5327, 0.0
        %v5360 = vld [vmem:[#allocation4] sm:$0xff]
        %v5361 = vld [vmem:[#allocation4 + $0x8] sm:$0xff]
        %v5362 = vld [vmem:[#allocation4 + $0x10] sm:$0xff]
        %v5363 = vld [vmem:[#allocation4 + $0x18] sm:$0xff]
        %v5364 = vld [vmem:[#allocation4 + $0x20] sm:$0xff]
        %v5365 = vld [vmem:[#allocation4 + $0x28] sm:$0xff]
        %v5366 = vld [vmem:[#allocation4 + $0x30] sm:$0xff]
        %v5367 = vld [vmem:[#allocation4 + $0x38] sm:$0xff]
        %v5368 = vld [vmem:[#allocation4 + $0x40] sm:$0xff]
        %v5369 = vld [vmem:[#allocation4 + $0x48] sm:$0xff]
        %v5370 = vld [vmem:[#allocation4 + $0x50] sm:$0xff]
        %v5371 = vld [vmem:[#allocation4 + $0x58] sm:$0xff]
        %v5372 = vld [vmem:[#allocation4 + $0x60] sm:$0xff]
        %v5373 = vld [vmem:[#allocation4 + $0x68] sm:$0xff]
        %v5374 = vld [vmem:[#allocation4 + $0x70] sm:$0xff]
        %v5375 = vld [vmem:[#allocation4 + $0x78] sm:$0xff]
        %v5376 = vld [vmem:[#allocation4 + $0x80] sm:$0xff]
        %v5377 = vld [vmem:[#allocation4 + $0x88] sm:$0xff]
        %v5378 = vld [vmem:[#allocation4 + $0x90] sm:$0xff]
        %v5379 = vld [vmem:[#allocation4 + $0x98] sm:$0xff]
        %v5380 = vld [vmem:[#allocation4 + $0xa0] sm:$0xff]
        %v5381 = vld [vmem:[#allocation4 + $0xa8] sm:$0xff]
        %v5382 = vld [vmem:[#allocation4 + $0xb0] sm:$0xff]
        %v5383 = vld [vmem:[#allocation4 + $0xb8] sm:$0xff]
        %v5384 = vld [vmem:[#allocation4 + $0xc0] sm:$0xff]
        %v5385 = vld [vmem:[#allocation4 + $0xc8] sm:$0xff]
        %v5386 = vld [vmem:[#allocation4 + $0xd0] sm:$0xff]
        %v5387 = vld [vmem:[#allocation4 + $0xd8] sm:$0xff]
        %v5388 = vld [vmem:[#allocation4 + $0xe0] sm:$0xff]
        %v5389 = vld [vmem:[#allocation4 + $0xe8] sm:$0xff]
        %v5390 = vld [vmem:[#allocation4 + $0xf0] sm:$0xff]
        %v5391 = vld [vmem:[#allocation4 + $0xf8] sm:$0xff]
        %v5392 = vpack.c.bf16 %v5329, %v5328
        %v5393 = vpack.c.bf16 %v5331, %v5330
        %v5394 = vpack.c.bf16 %v5333, %v5332
        %v5395 = vpack.c.bf16 %v5335, %v5334
        %v5396 = vpack.c.bf16 %v5337, %v5336
        %v5397 = vpack.c.bf16 %v5339, %v5338
        %v5398 = vpack.c.bf16 %v5341, %v5340
        %v5399 = vpack.c.bf16 %v5343, %v5342
        %v5400 = vpack.c.bf16 %v5345, %v5344
        %v5401 = vpack.c.bf16 %v5347, %v5346
        %v5402 = vpack.c.bf16 %v5349, %v5348
        %v5403 = vpack.c.bf16 %v5351, %v5350
        %v5404 = vpack.c.bf16 %v5353, %v5352
        %v5405 = vpack.c.bf16 %v5355, %v5354
        %v5406 = vpack.c.bf16 %v5357, %v5356
        %v5407 = vpack.c.bf16 %v5359, %v5358
        %s5408 = scalar_lea.vmem [#allocation10], 128
        %v5409 = vld [vmem:[%s5408] sm:$0xf]
        %v5410 = vld [vmem:[%s5408 + $0x4] sm:$0xf]
        %v5411 = vld [vmem:[%s5408 + $0x8] sm:$0xf]
        %v5412 = vld [vmem:[%s5408 + $0xc] sm:$0xf]
        %v5413 = vld [vmem:[%s5408 + $0x10] sm:$0xf]
        %v5414 = vld [vmem:[%s5408 + $0x14] sm:$0xf]
        %v5415 = vld [vmem:[%s5408 + $0x18] sm:$0xf]
        %v5416 = vld [vmem:[%s5408 + $0x1c] sm:$0xf]
        %v5417 = vld [vmem:[%s5408 + $0x20] sm:$0xf]
        %v5418 = vld [vmem:[%s5408 + $0x24] sm:$0xf]
        %v5419 = vld [vmem:[%s5408 + $0x28] sm:$0xf]
        %v5420 = vld [vmem:[%s5408 + $0x2c] sm:$0xf]
        %v5421 = vld [vmem:[%s5408 + $0x30] sm:$0xf]
        %v5422 = vld [vmem:[%s5408 + $0x34] sm:$0xf]
        %v5423 = vld [vmem:[%s5408 + $0x38] sm:$0xf]
        %v5424 = vld [vmem:[%s5408 + $0x3c] sm:$0xf]
        %v5441 = vunpack.c.l.b16 %v5409
        %v5442 = vunpack.c.l.b16 %v5410
        %v5443 = vunpack.c.l.b16 %v5411
        %v5444 = vunpack.c.l.b16 %v5412
        %v5445 = vunpack.c.l.b16 %v5413
        %v5446 = vunpack.c.l.b16 %v5414
        %v5447 = vunpack.c.l.b16 %v5415
        %v5448 = vunpack.c.l.b16 %v5416
        %v5449 = vunpack.c.l.b16 %v5417
        %v5450 = vunpack.c.l.b16 %v5418
        %v5451 = vunpack.c.l.b16 %v5419
        %v5452 = vunpack.c.l.b16 %v5420
        %v5453 = vunpack.c.l.b16 %v5421
        %v5454 = vunpack.c.l.b16 %v5422
        %v5455 = vunpack.c.l.b16 %v5423
        %v5456 = vunpack.c.l.b16 %v5424
        %v5457 = vpack.c.b16 %v5442, %v5441
        %v5458 = vpack.c.b16 %v5444, %v5443
        %v5459 = vpack.c.b16 %v5446, %v5445
        %v5460 = vpack.c.b16 %v5448, %v5447
        %v5461 = vpack.c.b16 %v5450, %v5449
        %v5462 = vpack.c.b16 %v5452, %v5451
        %v5463 = vpack.c.b16 %v5454, %v5453
        %v5464 = vpack.c.b16 %v5456, %v5455
        %5473 = vmatprep.subr.bf16.mxu0 0
        %5474 = vmatpush1.bf16.msra.mxu0 %v5464
        %5475 = vmatprep.subr.bf16.mxu0 0
        %5476 = vmatpush1.bf16.msra.mxu0 %v5463
        %5477 = vmatprep.subr.bf16.mxu0 0
        %5478 = vmatpush1.bf16.msra.mxu0 %v5462
        %5479 = vmatprep.subr.bf16.mxu0 0
        %5480 = vmatpush1.bf16.msra.mxu0 %v5461
        %5481 = vmatprep.subr.bf16.mxu0 0
        %5482 = vmatpush1.bf16.msra.mxu0 %v5460
        %5483 = vmatprep.subr.bf16.mxu0 0
        %5484 = vmatpush1.bf16.msra.mxu0 %v5459
        %5485 = vmatprep.subr.bf16.mxu0 0
        %5486 = vmatpush1.bf16.msra.mxu0 %v5458
        %5487 = vmatprep.subr.bf16.mxu0 0
        %5488 = vmatpush1.bf16.msra.mxu0 %v5457
        %5489 = vmatprep.subr.bf16.mxu0 0
        %5490 = vmatpush2.bf16.msra.mxu0 0
        %5491 = vmatprep.subr.bf16.mxu0 0
        %5492 = vmatpush2.bf16.msra.mxu0 0
        %5493 = vmatprep.subr.bf16.mxu0 0
        %5494 = vmatpush2.bf16.msra.mxu0 0
        %5495 = vmatprep.subr.bf16.mxu0 0
        %5496 = vmatpush2.bf16.msra.mxu0 0
        %5497 = vmatprep.subr.bf16.mxu0 0
        %5498 = vmatpush2.bf16.msra.mxu0 0
        %5499 = vmatprep.subr.bf16.mxu0 0
        %5500 = vmatpush2.bf16.msra.mxu0 0
        %5501 = vmatprep.subr.bf16.mxu0 0
        %5502 = vmatpush2.bf16.msra.mxu0 0
        %5503 = vmatprep.subr.bf16.mxu0 0
        %5504 = vmatpush2.bf16.msra.mxu0 0
        %5505 = vmatprep.mubr.bf16.mxu0 0
        %5506 = vmatmul.mubr.bf16.gmra.mxu0 %v5392
        %v5507 = vpop.f32.mrf.mxu0
        %v5508 = vadd.f32 0.0, %v5507
        %v5509 = vpop.f32.mrf.mxu0
        %v5510 = vpop.f32.mrf.mxu0
        %v5511 = vadd.f32 0.0, %v5510
        %v5512 = vpop.f32.mrf.mxu0
        %5513 = vmatprep.mubr.bf16.mxu0 0
        %5514 = vmatmul.mubr.bf16.gmra.mxu0 %v5393
        %v5515 = vpop.f32.mrf.mxu0
        %v5516 = vadd.f32 0.0, %v5515
        %v5517 = vpop.f32.mrf.mxu0
        %v5518 = vpop.f32.mrf.mxu0
        %v5519 = vadd.f32 0.0, %v5518
        %v5520 = vpop.f32.mrf.mxu0
        %5521 = vmatprep.mubr.bf16.mxu0 0
        %5522 = vmatmul.mubr.bf16.gmra.mxu0 %v5394
        %v5523 = vpop.f32.mrf.mxu0
        %v5524 = vadd.f32 0.0, %v5523
        %v5525 = vpop.f32.mrf.mxu0
        %v5526 = vpop.f32.mrf.mxu0
        %v5527 = vadd.f32 0.0, %v5526
        %v5528 = vpop.f32.mrf.mxu0
        %5529 = vmatprep.mubr.bf16.mxu0 0
        %5530 = vmatmul.mubr.bf16.gmra.mxu0 %v5395
        %v5531 = vpop.f32.mrf.mxu0
        %v5532 = vadd.f32 0.0, %v5531
        %v5533 = vpop.f32.mrf.mxu0
        %v5534 = vpop.f32.mrf.mxu0
        %v5535 = vadd.f32 0.0, %v5534
        %v5536 = vpop.f32.mrf.mxu0
        %5537 = vmatprep.mubr.bf16.mxu0 0
        %5538 = vmatmul.mubr.bf16.gmra.mxu0 %v5396
        %v5539 = vpop.f32.mrf.mxu0
        %v5540 = vadd.f32 0.0, %v5539
        %v5541 = vpop.f32.mrf.mxu0
        %v5542 = vpop.f32.mrf.mxu0
        %v5543 = vadd.f32 0.0, %v5542
        %v5544 = vpop.f32.mrf.mxu0
        %5545 = vmatprep.mubr.bf16.mxu0 0
        %5546 = vmatmul.mubr.bf16.gmra.mxu0 %v5397
        %v5547 = vpop.f32.mrf.mxu0
        %v5548 = vadd.f32 0.0, %v5547
        %v5549 = vpop.f32.mrf.mxu0
        %v5550 = vpop.f32.mrf.mxu0
        %v5551 = vadd.f32 0.0, %v5550
        %v5552 = vpop.f32.mrf.mxu0
        %5553 = vmatprep.mubr.bf16.mxu0 0
        %5554 = vmatmul.mubr.bf16.gmra.mxu0 %v5398
        %v5555 = vpop.f32.mrf.mxu0
        %v5556 = vadd.f32 0.0, %v5555
        %v5557 = vpop.f32.mrf.mxu0
        %v5558 = vpop.f32.mrf.mxu0
        %v5559 = vadd.f32 0.0, %v5558
        %v5560 = vpop.f32.mrf.mxu0
        %5561 = vmatprep.mubr.bf16.mxu0 0
        %5562 = vmatmul.mubr.bf16.gmra.mxu0 %v5399
        %v5563 = vpop.f32.mrf.mxu0
        %v5564 = vadd.f32 0.0, %v5563
        %v5565 = vpop.f32.mrf.mxu0
        %v5566 = vpop.f32.mrf.mxu0
        %v5567 = vadd.f32 0.0, %v5566
        %v5568 = vpop.f32.mrf.mxu0
        %5569 = vmatprep.mubr.bf16.mxu0 0
        %5570 = vmatmul.mubr.bf16.gmra.mxu0 %v5400
        %v5571 = vpop.f32.mrf.mxu0
        %v5572 = vadd.f32 0.0, %v5571
        %v5573 = vpop.f32.mrf.mxu0
        %v5574 = vpop.f32.mrf.mxu0
        %v5575 = vadd.f32 0.0, %v5574
        %v5576 = vpop.f32.mrf.mxu0
        %5577 = vmatprep.mubr.bf16.mxu0 0
        %5578 = vmatmul.mubr.bf16.gmra.mxu0 %v5401
        %v5579 = vpop.f32.mrf.mxu0
        %v5580 = vadd.f32 0.0, %v5579
        %v5581 = vpop.f32.mrf.mxu0
        %v5582 = vpop.f32.mrf.mxu0
        %v5583 = vadd.f32 0.0, %v5582
        %v5584 = vpop.f32.mrf.mxu0
        %5585 = vmatprep.mubr.bf16.mxu0 0
        %5586 = vmatmul.mubr.bf16.gmra.mxu0 %v5402
        %v5587 = vpop.f32.mrf.mxu0
        %v5588 = vadd.f32 0.0, %v5587
        %v5589 = vpop.f32.mrf.mxu0
        %v5590 = vpop.f32.mrf.mxu0
        %v5591 = vadd.f32 0.0, %v5590
        %v5592 = vpop.f32.mrf.mxu0
        %5593 = vmatprep.mubr.bf16.mxu0 0
        %5594 = vmatmul.mubr.bf16.gmra.mxu0 %v5403
        %v5595 = vpop.f32.mrf.mxu0
        %v5596 = vadd.f32 0.0, %v5595
        %v5597 = vpop.f32.mrf.mxu0
        %v5598 = vpop.f32.mrf.mxu0
        %v5599 = vadd.f32 0.0, %v5598
        %v5600 = vpop.f32.mrf.mxu0
        %5601 = vmatprep.mubr.bf16.mxu0 0
        %5602 = vmatmul.mubr.bf16.gmra.mxu0 %v5404
        %v5603 = vpop.f32.mrf.mxu0
        %v5604 = vadd.f32 0.0, %v5603
        %v5605 = vpop.f32.mrf.mxu0
        %v5606 = vpop.f32.mrf.mxu0
        %v5607 = vadd.f32 0.0, %v5606
        %v5608 = vpop.f32.mrf.mxu0
        %5609 = vmatprep.mubr.bf16.mxu0 0
        %5610 = vmatmul.mubr.bf16.gmra.mxu0 %v5405
        %v5611 = vpop.f32.mrf.mxu0
        %v5612 = vadd.f32 0.0, %v5611
        %v5613 = vpop.f32.mrf.mxu0
        %v5614 = vpop.f32.mrf.mxu0
        %v5615 = vadd.f32 0.0, %v5614
        %v5616 = vpop.f32.mrf.mxu0
        %5617 = vmatprep.mubr.bf16.mxu0 0
        %5618 = vmatmul.mubr.bf16.gmra.mxu0 %v5406
        %v5619 = vpop.f32.mrf.mxu0
        %v5620 = vadd.f32 0.0, %v5619
        %v5621 = vpop.f32.mrf.mxu0
        %v5622 = vpop.f32.mrf.mxu0
        %v5623 = vadd.f32 0.0, %v5622
        %v5624 = vpop.f32.mrf.mxu0
        %5625 = vmatprep.mubr.bf16.mxu0 0
        %5626 = vmatmul.mubr.bf16.gmra.mxu0 %v5407
        %v5627 = vpop.f32.mrf.mxu0
        %v5628 = vadd.f32 0.0, %v5627
        %v5629 = vpop.f32.mrf.mxu0
        %v5630 = vpop.f32.mrf.mxu0
        %v5631 = vadd.f32 0.0, %v5630
        %v5632 = vpop.f32.mrf.mxu0
        %5633 = vdwg.mxu0
        %v5634 = vadd.f32 %v5360, %v5508
        %v5635 = vadd.f32 %v5361, %v5511
        %v5636 = vadd.f32 %v5362, %v5516
        %v5637 = vadd.f32 %v5363, %v5519
        %v5638 = vadd.f32 %v5364, %v5524
        %v5639 = vadd.f32 %v5365, %v5527
        %v5640 = vadd.f32 %v5366, %v5532
        %v5641 = vadd.f32 %v5367, %v5535
        %v5642 = vadd.f32 %v5368, %v5540
        %v5643 = vadd.f32 %v5369, %v5543
        %v5644 = vadd.f32 %v5370, %v5548
        %v5645 = vadd.f32 %v5371, %v5551
        %v5646 = vadd.f32 %v5372, %v5556
        %v5647 = vadd.f32 %v5373, %v5559
        %v5648 = vadd.f32 %v5374, %v5564
        %v5649 = vadd.f32 %v5375, %v5567
        %v5650 = vadd.f32 %v5376, %v5572
        %v5651 = vadd.f32 %v5377, %v5575
        %v5652 = vadd.f32 %v5378, %v5580
        %v5653 = vadd.f32 %v5379, %v5583
        %v5654 = vadd.f32 %v5380, %v5588
        %v5655 = vadd.f32 %v5381, %v5591
        %v5656 = vadd.f32 %v5382, %v5596
        %v5657 = vadd.f32 %v5383, %v5599
        %v5658 = vadd.f32 %v5384, %v5604
        %v5659 = vadd.f32 %v5385, %v5607
        %v5660 = vadd.f32 %v5386, %v5612
        %v5661 = vadd.f32 %v5387, %v5615
        %v5662 = vadd.f32 %v5388, %v5620
        %v5663 = vadd.f32 %v5389, %v5623
        %v5664 = vadd.f32 %v5390, %v5628
        %v5665 = vadd.f32 %v5391, %v5631
        %5666 = vst [vmem:[#allocation4] sm:$0xff] %v5634
        %5667 = vst [vmem:[#allocation4 + $0x8] sm:$0xff] %v5635
        %5668 = vst [vmem:[#allocation4 + $0x10] sm:$0xff] %v5636
        %5669 = vst [vmem:[#allocation4 + $0x18] sm:$0xff] %v5637
        %5670 = vst [vmem:[#allocation4 + $0x20] sm:$0xff] %v5638
        %5671 = vst [vmem:[#allocation4 + $0x28] sm:$0xff] %v5639
        %5672 = vst [vmem:[#allocation4 + $0x30] sm:$0xff] %v5640
        %5673 = vst [vmem:[#allocation4 + $0x38] sm:$0xff] %v5641
        %5674 = vst [vmem:[#allocation4 + $0x40] sm:$0xff] %v5642
        %5675 = vst [vmem:[#allocation4 + $0x48] sm:$0xff] %v5643
        %5676 = vst [vmem:[#allocation4 + $0x50] sm:$0xff] %v5644
        %5677 = vst [vmem:[#allocation4 + $0x58] sm:$0xff] %v5645
        %5678 = vst [vmem:[#allocation4 + $0x60] sm:$0xff] %v5646
        %5679 = vst [vmem:[#allocation4 + $0x68] sm:$0xff] %v5647
        %5680 = vst [vmem:[#allocation4 + $0x70] sm:$0xff] %v5648
        %5681 = vst [vmem:[#allocation4 + $0x78] sm:$0xff] %v5649
        %5682 = vst [vmem:[#allocation4 + $0x80] sm:$0xff] %v5650
        %5683 = vst [vmem:[#allocation4 + $0x88] sm:$0xff] %v5651
        %5684 = vst [vmem:[#allocation4 + $0x90] sm:$0xff] %v5652
        %5685 = vst [vmem:[#allocation4 + $0x98] sm:$0xff] %v5653
        %5686 = vst [vmem:[#allocation4 + $0xa0] sm:$0xff] %v5654
        %5687 = vst [vmem:[#allocation4 + $0xa8] sm:$0xff] %v5655
        %5688 = vst [vmem:[#allocation4 + $0xb0] sm:$0xff] %v5656
        %5689 = vst [vmem:[#allocation4 + $0xb8] sm:$0xff] %v5657
        %5690 = vst [vmem:[#allocation4 + $0xc0] sm:$0xff] %v5658
        %5691 = vst [vmem:[#allocation4 + $0xc8] sm:$0xff] %v5659
        %5692 = vst [vmem:[#allocation4 + $0xd0] sm:$0xff] %v5660
        %5693 = vst [vmem:[#allocation4 + $0xd8] sm:$0xff] %v5661
        %5694 = vst [vmem:[#allocation4 + $0xe0] sm:$0xff] %v5662
        %5695 = vst [vmem:[#allocation4 + $0xe8] sm:$0xff] %v5663
        %5696 = vst [vmem:[#allocation4 + $0xf0] sm:$0xff] %v5664
        %5697 = vst [vmem:[#allocation4 + $0xf8] sm:$0xff] %v5665
        %v5698 = vld [vmem:[#allocation3 + $0x17] sm:$0xff]
        %v5699 = vld [vmem:[#allocation3 + $0x1f] sm:$0xff]
        %v5700 = vld [vmem:[#allocation3 + $0x27] sm:$0xff]
        %v5701 = vld [vmem:[#allocation3 + $0x2f] sm:$0xff]
        %v5702 = vld [vmem:[#allocation3 + $0x37] sm:$0xff]
        %v5703 = vld [vmem:[#allocation3 + $0x3f] sm:$0xff]
        %v5704 = vld [vmem:[#allocation3 + $0x47] sm:$0xff]
        %v5705 = vld [vmem:[#allocation3 + $0x4f] sm:$0xff]
        %v5706 = vld [vmem:[#allocation3 + $0x57] sm:$0xff]
        %v5707 = vld [vmem:[#allocation3 + $0x5f] sm:$0xff]
        %v5708 = vld [vmem:[#allocation3 + $0x67] sm:$0xff]
        %v5709 = vld [vmem:[#allocation3 + $0x6f] sm:$0xff]
        %v5710 = vld [vmem:[#allocation3 + $0x77] sm:$0xff]
        %v5711 = vld [vmem:[#allocation3 + $0x7f] sm:$0xff]
        %v5712 = vld [vmem:[#allocation3 + $0x87] sm:$0xff]
        %v5713 = vld [vmem:[#allocation3 + $0x8f] sm:$0xff]
        %v5714 = vld [vmem:[#allocation3 + $0x97] sm:$0xff]
        %v5715 = vld [vmem:[#allocation3 + $0x9f] sm:$0xff]
        %v5716 = vld [vmem:[#allocation3 + $0xa7] sm:$0xff]
        %v5717 = vld [vmem:[#allocation3 + $0xaf] sm:$0xff]
        %v5718 = vld [vmem:[#allocation3 + $0xb7] sm:$0xff]
        %v5719 = vld [vmem:[#allocation3 + $0xbf] sm:$0xff]
        %v5720 = vld [vmem:[#allocation3 + $0xc7] sm:$0xff]
        %v5721 = vld [vmem:[#allocation3 + $0xcf] sm:$0xff]
        %v5722 = vld [vmem:[#allocation3 + $0xd7] sm:$0xff]
        %v5723 = vld [vmem:[#allocation3 + $0xdf] sm:$0xff]
        %v5724 = vld [vmem:[#allocation3 + $0xe7] sm:$0xff]
        %v5725 = vld [vmem:[#allocation3 + $0xef] sm:$0xff]
        %v5726 = vld [vmem:[#allocation3 + $0xf7] sm:$0xff]
        %v5727 = vld [vmem:[#allocation3 + $0xff] sm:$0xff]
        %v5728 = vld [vmem:[#allocation3 + $0x107] sm:$0xff]
        %v5729 = vld [vmem:[#allocation3 + $0x10f] sm:$0xff]
        %v5730 = vsel %vm837, %v5698, 0.0
        %v5731 = vsel %vm838, %v5699, 0.0
        %v5732 = vsel %vm839, %v5700, 0.0
        %v5733 = vsel %vm840, %v5701, 0.0
        %v5734 = vsel %vm841, %v5702, 0.0
        %v5735 = vsel %vm842, %v5703, 0.0
        %v5736 = vsel %vm843, %v5704, 0.0
        %v5737 = vsel %vm844, %v5705, 0.0
        %v5738 = vsel %vm845, %v5706, 0.0
        %v5739 = vsel %vm846, %v5707, 0.0
        %v5740 = vsel %vm847, %v5708, 0.0
        %v5741 = vsel %vm848, %v5709, 0.0
        %v5742 = vsel %vm849, %v5710, 0.0
        %v5743 = vsel %vm850, %v5711, 0.0
        %v5744 = vsel %vm851, %v5712, 0.0
        %v5745 = vsel %vm852, %v5713, 0.0
        %v5746 = vsel %vm853, %v5714, 0.0
        %v5747 = vsel %vm854, %v5715, 0.0
        %v5748 = vsel %vm855, %v5716, 0.0
        %v5749 = vsel %vm856, %v5717, 0.0
        %v5750 = vsel %vm857, %v5718, 0.0
        %v5751 = vsel %vm858, %v5719, 0.0
        %v5752 = vsel %vm859, %v5720, 0.0
        %v5753 = vsel %vm860, %v5721, 0.0
        %v5754 = vsel %vm861, %v5722, 0.0
        %v5755 = vsel %vm862, %v5723, 0.0
        %v5756 = vsel %vm863, %v5724, 0.0
        %v5757 = vsel %vm864, %v5725, 0.0
        %v5758 = vsel %vm865, %v5726, 0.0
        %v5759 = vsel %vm866, %v5727, 0.0
        %v5760 = vsel %vm867, %v5728, 0.0
        %v5761 = vsel %vm868, %v5729, 0.0
        %v5762 = vld [vmem:[#allocation4] sm:$0xff]
        %v5763 = vld [vmem:[#allocation4 + $0x8] sm:$0xff]
        %v5764 = vld [vmem:[#allocation4 + $0x10] sm:$0xff]
        %v5765 = vld [vmem:[#allocation4 + $0x18] sm:$0xff]
        %v5766 = vld [vmem:[#allocation4 + $0x20] sm:$0xff]
        %v5767 = vld [vmem:[#allocation4 + $0x28] sm:$0xff]
        %v5768 = vld [vmem:[#allocation4 + $0x30] sm:$0xff]
        %v5769 = vld [vmem:[#allocation4 + $0x38] sm:$0xff]
        %v5770 = vld [vmem:[#allocation4 + $0x40] sm:$0xff]
        %v5771 = vld [vmem:[#allocation4 + $0x48] sm:$0xff]
        %v5772 = vld [vmem:[#allocation4 + $0x50] sm:$0xff]
        %v5773 = vld [vmem:[#allocation4 + $0x58] sm:$0xff]
        %v5774 = vld [vmem:[#allocation4 + $0x60] sm:$0xff]
        %v5775 = vld [vmem:[#allocation4 + $0x68] sm:$0xff]
        %v5776 = vld [vmem:[#allocation4 + $0x70] sm:$0xff]
        %v5777 = vld [vmem:[#allocation4 + $0x78] sm:$0xff]
        %v5778 = vld [vmem:[#allocation4 + $0x80] sm:$0xff]
        %v5779 = vld [vmem:[#allocation4 + $0x88] sm:$0xff]
        %v5780 = vld [vmem:[#allocation4 + $0x90] sm:$0xff]
        %v5781 = vld [vmem:[#allocation4 + $0x98] sm:$0xff]
        %v5782 = vld [vmem:[#allocation4 + $0xa0] sm:$0xff]
        %v5783 = vld [vmem:[#allocation4 + $0xa8] sm:$0xff]
        %v5784 = vld [vmem:[#allocation4 + $0xb0] sm:$0xff]
        %v5785 = vld [vmem:[#allocation4 + $0xb8] sm:$0xff]
        %v5786 = vld [vmem:[#allocation4 + $0xc0] sm:$0xff]
        %v5787 = vld [vmem:[#allocation4 + $0xc8] sm:$0xff]
        %v5788 = vld [vmem:[#allocation4 + $0xd0] sm:$0xff]
        %v5789 = vld [vmem:[#allocation4 + $0xd8] sm:$0xff]
        %v5790 = vld [vmem:[#allocation4 + $0xe0] sm:$0xff]
        %v5791 = vld [vmem:[#allocation4 + $0xe8] sm:$0xff]
        %v5792 = vld [vmem:[#allocation4 + $0xf0] sm:$0xff]
        %v5793 = vld [vmem:[#allocation4 + $0xf8] sm:$0xff]
        %v5794 = vpack.c.bf16 %v5731, %v5730
        %v5795 = vpack.c.bf16 %v5733, %v5732
        %v5796 = vpack.c.bf16 %v5735, %v5734
        %v5797 = vpack.c.bf16 %v5737, %v5736
        %v5798 = vpack.c.bf16 %v5739, %v5738
        %v5799 = vpack.c.bf16 %v5741, %v5740
        %v5800 = vpack.c.bf16 %v5743, %v5742
        %v5801 = vpack.c.bf16 %v5745, %v5744
        %v5802 = vpack.c.bf16 %v5747, %v5746
        %v5803 = vpack.c.bf16 %v5749, %v5748
        %v5804 = vpack.c.bf16 %v5751, %v5750
        %v5805 = vpack.c.bf16 %v5753, %v5752
        %v5806 = vpack.c.bf16 %v5755, %v5754
        %v5807 = vpack.c.bf16 %v5757, %v5756
        %v5808 = vpack.c.bf16 %v5759, %v5758
        %v5809 = vpack.c.bf16 %v5761, %v5760
        %s5810 = scalar_lea.vmem [#allocation10], 192
        %v5811 = vld [vmem:[%s5810] sm:$0xf]
        %v5812 = vld [vmem:[%s5810 + $0x4] sm:$0xf]
        %v5813 = vld [vmem:[%s5810 + $0x8] sm:$0xf]
        %v5814 = vld [vmem:[%s5810 + $0xc] sm:$0xf]
        %v5815 = vld [vmem:[%s5810 + $0x10] sm:$0xf]
        %v5816 = vld [vmem:[%s5810 + $0x14] sm:$0xf]
        %v5817 = vld [vmem:[%s5810 + $0x18] sm:$0xf]
        %v5818 = vld [vmem:[%s5810 + $0x1c] sm:$0xf]
        %v5819 = vld [vmem:[%s5810 + $0x20] sm:$0xf]
        %v5820 = vld [vmem:[%s5810 + $0x24] sm:$0xf]
        %v5821 = vld [vmem:[%s5810 + $0x28] sm:$0xf]
        %v5822 = vld [vmem:[%s5810 + $0x2c] sm:$0xf]
        %v5823 = vld [vmem:[%s5810 + $0x30] sm:$0xf]
        %v5824 = vld [vmem:[%s5810 + $0x34] sm:$0xf]
        %v5825 = vld [vmem:[%s5810 + $0x38] sm:$0xf]
        %v5826 = vld [vmem:[%s5810 + $0x3c] sm:$0xf]
        %v5843 = vunpack.c.l.b16 %v5811
        %v5844 = vunpack.c.l.b16 %v5812
        %v5845 = vunpack.c.l.b16 %v5813
        %v5846 = vunpack.c.l.b16 %v5814
        %v5847 = vunpack.c.l.b16 %v5815
        %v5848 = vunpack.c.l.b16 %v5816
        %v5849 = vunpack.c.l.b16 %v5817
        %v5850 = vunpack.c.l.b16 %v5818
        %v5851 = vunpack.c.l.b16 %v5819
        %v5852 = vunpack.c.l.b16 %v5820
        %v5853 = vunpack.c.l.b16 %v5821
        %v5854 = vunpack.c.l.b16 %v5822
        %v5855 = vunpack.c.l.b16 %v5823
        %v5856 = vunpack.c.l.b16 %v5824
        %v5857 = vunpack.c.l.b16 %v5825
        %v5858 = vunpack.c.l.b16 %v5826
        %v5859 = vpack.c.b16 %v5844, %v5843
        %v5860 = vpack.c.b16 %v5846, %v5845
        %v5861 = vpack.c.b16 %v5848, %v5847
        %v5862 = vpack.c.b16 %v5850, %v5849
        %v5863 = vpack.c.b16 %v5852, %v5851
        %v5864 = vpack.c.b16 %v5854, %v5853
        %v5865 = vpack.c.b16 %v5856, %v5855
        %v5866 = vpack.c.b16 %v5858, %v5857
        %5875 = vmatprep.subr.bf16.mxu0 0
        %5876 = vmatpush1.bf16.msra.mxu0 %v5866
        %5877 = vmatprep.subr.bf16.mxu0 0
        %5878 = vmatpush1.bf16.msra.mxu0 %v5865
        %5879 = vmatprep.subr.bf16.mxu0 0
        %5880 = vmatpush1.bf16.msra.mxu0 %v5864
        %5881 = vmatprep.subr.bf16.mxu0 0
        %5882 = vmatpush1.bf16.msra.mxu0 %v5863
        %5883 = vmatprep.subr.bf16.mxu0 0
        %5884 = vmatpush1.bf16.msra.mxu0 %v5862
        %5885 = vmatprep.subr.bf16.mxu0 0
        %5886 = vmatpush1.bf16.msra.mxu0 %v5861
        %5887 = vmatprep.subr.bf16.mxu0 0
        %5888 = vmatpush1.bf16.msra.mxu0 %v5860
        %5889 = vmatprep.subr.bf16.mxu0 0
        %5890 = vmatpush1.bf16.msra.mxu0 %v5859
        %5891 = vmatprep.subr.bf16.mxu0 0
        %5892 = vmatpush2.bf16.msra.mxu0 0
        %5893 = vmatprep.subr.bf16.mxu0 0
        %5894 = vmatpush2.bf16.msra.mxu0 0
        %5895 = vmatprep.subr.bf16.mxu0 0
        %5896 = vmatpush2.bf16.msra.mxu0 0
        %5897 = vmatprep.subr.bf16.mxu0 0
        %5898 = vmatpush2.bf16.msra.mxu0 0
        %5899 = vmatprep.subr.bf16.mxu0 0
        %5900 = vmatpush2.bf16.msra.mxu0 0
        %5901 = vmatprep.subr.bf16.mxu0 0
        %5902 = vmatpush2.bf16.msra.mxu0 0
        %5903 = vmatprep.subr.bf16.mxu0 0
        %5904 = vmatpush2.bf16.msra.mxu0 0
        %5905 = vmatprep.subr.bf16.mxu0 0
        %5906 = vmatpush2.bf16.msra.mxu0 0
        %5907 = vmatprep.mubr.bf16.mxu0 0
        %5908 = vmatmul.mubr.bf16.gmra.mxu0 %v5794
        %v5909 = vpop.f32.mrf.mxu0
        %v5910 = vadd.f32 0.0, %v5909
        %v5911 = vpop.f32.mrf.mxu0
        %v5912 = vpop.f32.mrf.mxu0
        %v5913 = vadd.f32 0.0, %v5912
        %v5914 = vpop.f32.mrf.mxu0
        %5915 = vmatprep.mubr.bf16.mxu0 0
        %5916 = vmatmul.mubr.bf16.gmra.mxu0 %v5795
        %v5917 = vpop.f32.mrf.mxu0
        %v5918 = vadd.f32 0.0, %v5917
        %v5919 = vpop.f32.mrf.mxu0
        %v5920 = vpop.f32.mrf.mxu0
        %v5921 = vadd.f32 0.0, %v5920
        %v5922 = vpop.f32.mrf.mxu0
        %5923 = vmatprep.mubr.bf16.mxu0 0
        %5924 = vmatmul.mubr.bf16.gmra.mxu0 %v5796
        %v5925 = vpop.f32.mrf.mxu0
        %v5926 = vadd.f32 0.0, %v5925
        %v5927 = vpop.f32.mrf.mxu0
        %v5928 = vpop.f32.mrf.mxu0
        %v5929 = vadd.f32 0.0, %v5928
        %v5930 = vpop.f32.mrf.mxu0
        %5931 = vmatprep.mubr.bf16.mxu0 0
        %5932 = vmatmul.mubr.bf16.gmra.mxu0 %v5797
        %v5933 = vpop.f32.mrf.mxu0
        %v5934 = vadd.f32 0.0, %v5933
        %v5935 = vpop.f32.mrf.mxu0
        %v5936 = vpop.f32.mrf.mxu0
        %v5937 = vadd.f32 0.0, %v5936
        %v5938 = vpop.f32.mrf.mxu0
        %5939 = vmatprep.mubr.bf16.mxu0 0
        %5940 = vmatmul.mubr.bf16.gmra.mxu0 %v5798
        %v5941 = vpop.f32.mrf.mxu0
        %v5942 = vadd.f32 0.0, %v5941
        %v5943 = vpop.f32.mrf.mxu0
        %v5944 = vpop.f32.mrf.mxu0
        %v5945 = vadd.f32 0.0, %v5944
        %v5946 = vpop.f32.mrf.mxu0
        %5947 = vmatprep.mubr.bf16.mxu0 0
        %5948 = vmatmul.mubr.bf16.gmra.mxu0 %v5799
        %v5949 = vpop.f32.mrf.mxu0
        %v5950 = vadd.f32 0.0, %v5949
        %v5951 = vpop.f32.mrf.mxu0
        %v5952 = vpop.f32.mrf.mxu0
        %v5953 = vadd.f32 0.0, %v5952
        %v5954 = vpop.f32.mrf.mxu0
        %5955 = vmatprep.mubr.bf16.mxu0 0
        %5956 = vmatmul.mubr.bf16.gmra.mxu0 %v5800
        %v5957 = vpop.f32.mrf.mxu0
        %v5958 = vadd.f32 0.0, %v5957
        %v5959 = vpop.f32.mrf.mxu0
        %v5960 = vpop.f32.mrf.mxu0
        %v5961 = vadd.f32 0.0, %v5960
        %v5962 = vpop.f32.mrf.mxu0
        %5963 = vmatprep.mubr.bf16.mxu0 0
        %5964 = vmatmul.mubr.bf16.gmra.mxu0 %v5801
        %v5965 = vpop.f32.mrf.mxu0
        %v5966 = vadd.f32 0.0, %v5965
        %v5967 = vpop.f32.mrf.mxu0
        %v5968 = vpop.f32.mrf.mxu0
        %v5969 = vadd.f32 0.0, %v5968
        %v5970 = vpop.f32.mrf.mxu0
        %5971 = vmatprep.mubr.bf16.mxu0 0
        %5972 = vmatmul.mubr.bf16.gmra.mxu0 %v5802
        %v5973 = vpop.f32.mrf.mxu0
        %v5974 = vadd.f32 0.0, %v5973
        %v5975 = vpop.f32.mrf.mxu0
        %v5976 = vpop.f32.mrf.mxu0
        %v5977 = vadd.f32 0.0, %v5976
        %v5978 = vpop.f32.mrf.mxu0
        %5979 = vmatprep.mubr.bf16.mxu0 0
        %5980 = vmatmul.mubr.bf16.gmra.mxu0 %v5803
        %v5981 = vpop.f32.mrf.mxu0
        %v5982 = vadd.f32 0.0, %v5981
        %v5983 = vpop.f32.mrf.mxu0
        %v5984 = vpop.f32.mrf.mxu0
        %v5985 = vadd.f32 0.0, %v5984
        %v5986 = vpop.f32.mrf.mxu0
        %5987 = vmatprep.mubr.bf16.mxu0 0
        %5988 = vmatmul.mubr.bf16.gmra.mxu0 %v5804
        %v5989 = vpop.f32.mrf.mxu0
        %v5990 = vadd.f32 0.0, %v5989
        %v5991 = vpop.f32.mrf.mxu0
        %v5992 = vpop.f32.mrf.mxu0
        %v5993 = vadd.f32 0.0, %v5992
        %v5994 = vpop.f32.mrf.mxu0
        %5995 = vmatprep.mubr.bf16.mxu0 0
        %5996 = vmatmul.mubr.bf16.gmra.mxu0 %v5805
        %v5997 = vpop.f32.mrf.mxu0
        %v5998 = vadd.f32 0.0, %v5997
        %v5999 = vpop.f32.mrf.mxu0
        %v6000 = vpop.f32.mrf.mxu0
        %v6001 = vadd.f32 0.0, %v6000
        %v6002 = vpop.f32.mrf.mxu0
        %6003 = vmatprep.mubr.bf16.mxu0 0
        %6004 = vmatmul.mubr.bf16.gmra.mxu0 %v5806
        %v6005 = vpop.f32.mrf.mxu0
        %v6006 = vadd.f32 0.0, %v6005
        %v6007 = vpop.f32.mrf.mxu0
        %v6008 = vpop.f32.mrf.mxu0
        %v6009 = vadd.f32 0.0, %v6008
        %v6010 = vpop.f32.mrf.mxu0
        %6011 = vmatprep.mubr.bf16.mxu0 0
        %6012 = vmatmul.mubr.bf16.gmra.mxu0 %v5807
        %v6013 = vpop.f32.mrf.mxu0
        %v6014 = vadd.f32 0.0, %v6013
        %v6015 = vpop.f32.mrf.mxu0
        %v6016 = vpop.f32.mrf.mxu0
        %v6017 = vadd.f32 0.0, %v6016
        %v6018 = vpop.f32.mrf.mxu0
        %6019 = vmatprep.mubr.bf16.mxu0 0
        %6020 = vmatmul.mubr.bf16.gmra.mxu0 %v5808
        %v6021 = vpop.f32.mrf.mxu0
        %v6022 = vadd.f32 0.0, %v6021
        %v6023 = vpop.f32.mrf.mxu0
        %v6024 = vpop.f32.mrf.mxu0
        %v6025 = vadd.f32 0.0, %v6024
        %v6026 = vpop.f32.mrf.mxu0
        %6027 = vmatprep.mubr.bf16.mxu0 0
        %6028 = vmatmul.mubr.bf16.gmra.mxu0 %v5809
        %v6029 = vpop.f32.mrf.mxu0
        %v6030 = vadd.f32 0.0, %v6029
        %v6031 = vpop.f32.mrf.mxu0
        %v6032 = vpop.f32.mrf.mxu0
        %v6033 = vadd.f32 0.0, %v6032
        %v6034 = vpop.f32.mrf.mxu0
        %6035 = vdwg.mxu0
        %v6036 = vadd.f32 %v5762, %v5910
        %v6037 = vadd.f32 %v5763, %v5913
        %v6038 = vadd.f32 %v5764, %v5918
        %v6039 = vadd.f32 %v5765, %v5921
        %v6040 = vadd.f32 %v5766, %v5926
        %v6041 = vadd.f32 %v5767, %v5929
        %v6042 = vadd.f32 %v5768, %v5934
        %v6043 = vadd.f32 %v5769, %v5937
        %v6044 = vadd.f32 %v5770, %v5942
        %v6045 = vadd.f32 %v5771, %v5945
        %v6046 = vadd.f32 %v5772, %v5950
        %v6047 = vadd.f32 %v5773, %v5953
        %v6048 = vadd.f32 %v5774, %v5958
        %v6049 = vadd.f32 %v5775, %v5961
        %v6050 = vadd.f32 %v5776, %v5966
        %v6051 = vadd.f32 %v5777, %v5969
        %v6052 = vadd.f32 %v5778, %v5974
        %v6053 = vadd.f32 %v5779, %v5977
        %v6054 = vadd.f32 %v5780, %v5982
        %v6055 = vadd.f32 %v5781, %v5985
        %v6056 = vadd.f32 %v5782, %v5990
        %v6057 = vadd.f32 %v5783, %v5993
        %v6058 = vadd.f32 %v5784, %v5998
        %v6059 = vadd.f32 %v5785, %v6001
        %v6060 = vadd.f32 %v5786, %v6006
        %v6061 = vadd.f32 %v5787, %v6009
        %v6062 = vadd.f32 %v5788, %v6014
        %v6063 = vadd.f32 %v5789, %v6017
        %v6064 = vadd.f32 %v5790, %v6022
        %v6065 = vadd.f32 %v5791, %v6025
        %v6066 = vadd.f32 %v5792, %v6030
        %v6067 = vadd.f32 %v5793, %v6033
        %6068 = vst [vmem:[#allocation4] sm:$0xff] %v6036
        %6069 = vst [vmem:[#allocation4 + $0x8] sm:$0xff] %v6037
        %6070 = vst [vmem:[#allocation4 + $0x10] sm:$0xff] %v6038
        %6071 = vst [vmem:[#allocation4 + $0x18] sm:$0xff] %v6039
        %6072 = vst [vmem:[#allocation4 + $0x20] sm:$0xff] %v6040
        %6073 = vst [vmem:[#allocation4 + $0x28] sm:$0xff] %v6041
        %6074 = vst [vmem:[#allocation4 + $0x30] sm:$0xff] %v6042
        %6075 = vst [vmem:[#allocation4 + $0x38] sm:$0xff] %v6043
        %6076 = vst [vmem:[#allocation4 + $0x40] sm:$0xff] %v6044
        %6077 = vst [vmem:[#allocation4 + $0x48] sm:$0xff] %v6045
        %6078 = vst [vmem:[#allocation4 + $0x50] sm:$0xff] %v6046
        %6079 = vst [vmem:[#allocation4 + $0x58] sm:$0xff] %v6047
        %6080 = vst [vmem:[#allocation4 + $0x60] sm:$0xff] %v6048
        %6081 = vst [vmem:[#allocation4 + $0x68] sm:$0xff] %v6049
        %6082 = vst [vmem:[#allocation4 + $0x70] sm:$0xff] %v6050
        %6083 = vst [vmem:[#allocation4 + $0x78] sm:$0xff] %v6051
        %6084 = vst [vmem:[#allocation4 + $0x80] sm:$0xff] %v6052
        %6085 = vst [vmem:[#allocation4 + $0x88] sm:$0xff] %v6053
        %6086 = vst [vmem:[#allocation4 + $0x90] sm:$0xff] %v6054
        %6087 = vst [vmem:[#allocation4 + $0x98] sm:$0xff] %v6055
        %6088 = vst [vmem:[#allocation4 + $0xa0] sm:$0xff] %v6056
        %6089 = vst [vmem:[#allocation4 + $0xa8] sm:$0xff] %v6057
        %6090 = vst [vmem:[#allocation4 + $0xb0] sm:$0xff] %v6058
        %6091 = vst [vmem:[#allocation4 + $0xb8] sm:$0xff] %v6059
        %6092 = vst [vmem:[#allocation4 + $0xc0] sm:$0xff] %v6060
        %6093 = vst [vmem:[#allocation4 + $0xc8] sm:$0xff] %v6061
        %6094 = vst [vmem:[#allocation4 + $0xd0] sm:$0xff] %v6062
        %6095 = vst [vmem:[#allocation4 + $0xd8] sm:$0xff] %v6063
        %6096 = vst [vmem:[#allocation4 + $0xe0] sm:$0xff] %v6064
        %6097 = vst [vmem:[#allocation4 + $0xe8] sm:$0xff] %v6065
        %6098 = vst [vmem:[#allocation4 + $0xf0] sm:$0xff] %v6066
        %6099 = vst [vmem:[#allocation4 + $0xf8] sm:$0xff] %v6067
        %v6100 = vld [vmem:[#allocation3 + $0x18] sm:$0xff]
        %v6101 = vld [vmem:[#allocation3 + $0x20] sm:$0xff]
        %v6102 = vld [vmem:[#allocation3 + $0x28] sm:$0xff]
        %v6103 = vld [vmem:[#allocation3 + $0x30] sm:$0xff]
        %v6104 = vld [vmem:[#allocation3 + $0x38] sm:$0xff]
        %v6105 = vld [vmem:[#allocation3 + $0x40] sm:$0xff]
        %v6106 = vld [vmem:[#allocation3 + $0x48] sm:$0xff]
        %v6107 = vld [vmem:[#allocation3 + $0x50] sm:$0xff]
        %v6108 = vld [vmem:[#allocation3 + $0x58] sm:$0xff]
        %v6109 = vld [vmem:[#allocation3 + $0x60] sm:$0xff]
        %v6110 = vld [vmem:[#allocation3 + $0x68] sm:$0xff]
        %v6111 = vld [vmem:[#allocation3 + $0x70] sm:$0xff]
        %v6112 = vld [vmem:[#allocation3 + $0x78] sm:$0xff]
        %v6113 = vld [vmem:[#allocation3 + $0x80] sm:$0xff]
        %v6114 = vld [vmem:[#allocation3 + $0x88] sm:$0xff]
        %v6115 = vld [vmem:[#allocation3 + $0x90] sm:$0xff]
        %v6116 = vld [vmem:[#allocation3 + $0x98] sm:$0xff]
        %v6117 = vld [vmem:[#allocation3 + $0xa0] sm:$0xff]
        %v6118 = vld [vmem:[#allocation3 + $0xa8] sm:$0xff]
        %v6119 = vld [vmem:[#allocation3 + $0xb0] sm:$0xff]
        %v6120 = vld [vmem:[#allocation3 + $0xb8] sm:$0xff]
        %v6121 = vld [vmem:[#allocation3 + $0xc0] sm:$0xff]
        %v6122 = vld [vmem:[#allocation3 + $0xc8] sm:$0xff]
        %v6123 = vld [vmem:[#allocation3 + $0xd0] sm:$0xff]
        %v6124 = vld [vmem:[#allocation3 + $0xd8] sm:$0xff]
        %v6125 = vld [vmem:[#allocation3 + $0xe0] sm:$0xff]
        %v6126 = vld [vmem:[#allocation3 + $0xe8] sm:$0xff]
        %v6127 = vld [vmem:[#allocation3 + $0xf0] sm:$0xff]
        %v6128 = vld [vmem:[#allocation3 + $0xf8] sm:$0xff]
        %v6129 = vld [vmem:[#allocation3 + $0x100] sm:$0xff]
        %v6130 = vld [vmem:[#allocation3 + $0x108] sm:$0xff]
        %v6131 = vld [vmem:[#allocation3 + $0x110] sm:$0xff]
        %v6132 = vld [vmem:[#allocation4] sm:$0xff]
        %v6133 = vld [vmem:[#allocation4 + $0x8] sm:$0xff]
        %v6134 = vld [vmem:[#allocation4 + $0x10] sm:$0xff]
        %v6135 = vld [vmem:[#allocation4 + $0x18] sm:$0xff]
        %v6136 = vld [vmem:[#allocation4 + $0x20] sm:$0xff]
        %v6137 = vld [vmem:[#allocation4 + $0x28] sm:$0xff]
        %v6138 = vld [vmem:[#allocation4 + $0x30] sm:$0xff]
        %v6139 = vld [vmem:[#allocation4 + $0x38] sm:$0xff]
        %v6140 = vld [vmem:[#allocation4 + $0x40] sm:$0xff]
        %v6141 = vld [vmem:[#allocation4 + $0x48] sm:$0xff]
        %v6142 = vld [vmem:[#allocation4 + $0x50] sm:$0xff]
        %v6143 = vld [vmem:[#allocation4 + $0x58] sm:$0xff]
        %v6144 = vld [vmem:[#allocation4 + $0x60] sm:$0xff]
        %v6145 = vld [vmem:[#allocation4 + $0x68] sm:$0xff]
        %v6146 = vld [vmem:[#allocation4 + $0x70] sm:$0xff]
        %v6147 = vld [vmem:[#allocation4 + $0x78] sm:$0xff]
        %v6148 = vld [vmem:[#allocation4 + $0x80] sm:$0xff]
        %v6149 = vld [vmem:[#allocation4 + $0x88] sm:$0xff]
        %v6150 = vld [vmem:[#allocation4 + $0x90] sm:$0xff]
        %v6151 = vld [vmem:[#allocation4 + $0x98] sm:$0xff]
        %v6152 = vld [vmem:[#allocation4 + $0xa0] sm:$0xff]
        %v6153 = vld [vmem:[#allocation4 + $0xa8] sm:$0xff]
        %v6154 = vld [vmem:[#allocation4 + $0xb0] sm:$0xff]
        %v6155 = vld [vmem:[#allocation4 + $0xb8] sm:$0xff]
        %v6156 = vld [vmem:[#allocation4 + $0xc0] sm:$0xff]
        %v6157 = vld [vmem:[#allocation4 + $0xc8] sm:$0xff]
        %v6158 = vld [vmem:[#allocation4 + $0xd0] sm:$0xff]
        %v6159 = vld [vmem:[#allocation4 + $0xd8] sm:$0xff]
        %v6160 = vld [vmem:[#allocation4 + $0xe0] sm:$0xff]
        %v6161 = vld [vmem:[#allocation4 + $0xe8] sm:$0xff]
        %v6162 = vld [vmem:[#allocation4 + $0xf0] sm:$0xff]
        %v6163 = vld [vmem:[#allocation4 + $0xf8] sm:$0xff]
        %v6164 = vpack.c.bf16 %v6101, %v6100
        %v6165 = vpack.c.bf16 %v6103, %v6102
        %v6166 = vpack.c.bf16 %v6105, %v6104
        %v6167 = vpack.c.bf16 %v6107, %v6106
        %v6168 = vpack.c.bf16 %v6109, %v6108
        %v6169 = vpack.c.bf16 %v6111, %v6110
        %v6170 = vpack.c.bf16 %v6113, %v6112
        %v6171 = vpack.c.bf16 %v6115, %v6114
        %v6172 = vpack.c.bf16 %v6117, %v6116
        %v6173 = vpack.c.bf16 %v6119, %v6118
        %v6174 = vpack.c.bf16 %v6121, %v6120
        %v6175 = vpack.c.bf16 %v6123, %v6122
        %v6176 = vpack.c.bf16 %v6125, %v6124
        %v6177 = vpack.c.bf16 %v6127, %v6126
        %v6178 = vpack.c.bf16 %v6129, %v6128
        %v6179 = vpack.c.bf16 %v6131, %v6130
        %s6180 = scalar_lea.vmem [#allocation10], 256
        %v6181 = vld [vmem:[%s6180] sm:$0xf]
        %v6182 = vld [vmem:[%s6180 + $0x4] sm:$0xf]
        %v6183 = vld [vmem:[%s6180 + $0x8] sm:$0xf]
        %v6184 = vld [vmem:[%s6180 + $0xc] sm:$0xf]
        %v6185 = vld [vmem:[%s6180 + $0x10] sm:$0xf]
        %v6186 = vld [vmem:[%s6180 + $0x14] sm:$0xf]
        %v6187 = vld [vmem:[%s6180 + $0x18] sm:$0xf]
        %v6188 = vld [vmem:[%s6180 + $0x1c] sm:$0xf]
        %v6189 = vld [vmem:[%s6180 + $0x20] sm:$0xf]
        %v6190 = vld [vmem:[%s6180 + $0x24] sm:$0xf]
        %v6191 = vld [vmem:[%s6180 + $0x28] sm:$0xf]
        %v6192 = vld [vmem:[%s6180 + $0x2c] sm:$0xf]
        %v6193 = vld [vmem:[%s6180 + $0x30] sm:$0xf]
        %v6194 = vld [vmem:[%s6180 + $0x34] sm:$0xf]
        %v6195 = vld [vmem:[%s6180 + $0x38] sm:$0xf]
        %v6196 = vld [vmem:[%s6180 + $0x3c] sm:$0xf]
        %v6213 = vunpack.c.l.b16 %v6181
        %v6214 = vunpack.c.l.b16 %v6182
        %v6215 = vunpack.c.l.b16 %v6183
        %v6216 = vunpack.c.l.b16 %v6184
        %v6217 = vunpack.c.l.b16 %v6185
        %v6218 = vunpack.c.l.b16 %v6186
        %v6219 = vunpack.c.l.b16 %v6187
        %v6220 = vunpack.c.l.b16 %v6188
        %v6221 = vunpack.c.l.b16 %v6189
        %v6222 = vunpack.c.l.b16 %v6190
        %v6223 = vunpack.c.l.b16 %v6191
        %v6224 = vunpack.c.l.b16 %v6192
        %v6225 = vunpack.c.l.b16 %v6193
        %v6226 = vunpack.c.l.b16 %v6194
        %v6227 = vunpack.c.l.b16 %v6195
        %v6228 = vunpack.c.l.b16 %v6196
        %v6229 = vpack.c.b16 %v6214, %v6213
        %v6230 = vpack.c.b16 %v6216, %v6215
        %v6231 = vpack.c.b16 %v6218, %v6217
        %v6232 = vpack.c.b16 %v6220, %v6219
        %v6233 = vpack.c.b16 %v6222, %v6221
        %v6234 = vpack.c.b16 %v6224, %v6223
        %v6235 = vpack.c.b16 %v6226, %v6225
        %v6236 = vpack.c.b16 %v6228, %v6227
        %6245 = vmatprep.subr.bf16.mxu0 0
        %6246 = vmatpush1.bf16.msra.mxu0 %v6236
        %6247 = vmatprep.subr.bf16.mxu0 0
        %6248 = vmatpush1.bf16.msra.mxu0 %v6235
        %6249 = vmatprep.subr.bf16.mxu0 0
        %6250 = vmatpush1.bf16.msra.mxu0 %v6234
        %6251 = vmatprep.subr.bf16.mxu0 0
        %6252 = vmatpush1.bf16.msra.mxu0 %v6233
        %6253 = vmatprep.subr.bf16.mxu0 0
        %6254 = vmatpush1.bf16.msra.mxu0 %v6232
        %6255 = vmatprep.subr.bf16.mxu0 0
        %6256 = vmatpush1.bf16.msra.mxu0 %v6231
        %6257 = vmatprep.subr.bf16.mxu0 0
        %6258 = vmatpush1.bf16.msra.mxu0 %v6230
        %6259 = vmatprep.subr.bf16.mxu0 0
        %6260 = vmatpush1.bf16.msra.mxu0 %v6229
        %6261 = vmatprep.subr.bf16.mxu0 0
        %6262 = vmatpush2.bf16.msra.mxu0 0
        %6263 = vmatprep.subr.bf16.mxu0 0
        %6264 = vmatpush2.bf16.msra.mxu0 0
        %6265 = vmatprep.subr.bf16.mxu0 0
        %6266 = vmatpush2.bf16.msra.mxu0 0
        %6267 = vmatprep.subr.bf16.mxu0 0
        %6268 = vmatpush2.bf16.msra.mxu0 0
        %6269 = vmatprep.subr.bf16.mxu0 0
        %6270 = vmatpush2.bf16.msra.mxu0 0
        %6271 = vmatprep.subr.bf16.mxu0 0
        %6272 = vmatpush2.bf16.msra.mxu0 0
        %6273 = vmatprep.subr.bf16.mxu0 0
        %6274 = vmatpush2.bf16.msra.mxu0 0
        %6275 = vmatprep.subr.bf16.mxu0 0
        %6276 = vmatpush2.bf16.msra.mxu0 0
        %6277 = vmatprep.mubr.bf16.mxu0 0
        %6278 = vmatmul.mubr.bf16.gmra.mxu0 %v6164
        %v6279 = vpop.f32.mrf.mxu0
        %v6280 = vadd.f32 0.0, %v6279
        %v6281 = vpop.f32.mrf.mxu0
        %v6282 = vpop.f32.mrf.mxu0
        %v6283 = vadd.f32 0.0, %v6282
        %v6284 = vpop.f32.mrf.mxu0
        %6285 = vmatprep.mubr.bf16.mxu0 0
        %6286 = vmatmul.mubr.bf16.gmra.mxu0 %v6165
        %v6287 = vpop.f32.mrf.mxu0
        %v6288 = vadd.f32 0.0, %v6287
        %v6289 = vpop.f32.mrf.mxu0
        %v6290 = vpop.f32.mrf.mxu0
        %v6291 = vadd.f32 0.0, %v6290
        %v6292 = vpop.f32.mrf.mxu0
        %6293 = vmatprep.mubr.bf16.mxu0 0
        %6294 = vmatmul.mubr.bf16.gmra.mxu0 %v6166
        %v6295 = vpop.f32.mrf.mxu0
        %v6296 = vadd.f32 0.0, %v6295
        %v6297 = vpop.f32.mrf.mxu0
        %v6298 = vpop.f32.mrf.mxu0
        %v6299 = vadd.f32 0.0, %v6298
        %v6300 = vpop.f32.mrf.mxu0
        %6301 = vmatprep.mubr.bf16.mxu0 0
        %6302 = vmatmul.mubr.bf16.gmra.mxu0 %v6167
        %v6303 = vpop.f32.mrf.mxu0
        %v6304 = vadd.f32 0.0, %v6303
        %v6305 = vpop.f32.mrf.mxu0
        %v6306 = vpop.f32.mrf.mxu0
        %v6307 = vadd.f32 0.0, %v6306
        %v6308 = vpop.f32.mrf.mxu0
        %6309 = vmatprep.mubr.bf16.mxu0 0
        %6310 = vmatmul.mubr.bf16.gmra.mxu0 %v6168
        %v6311 = vpop.f32.mrf.mxu0
        %v6312 = vadd.f32 0.0, %v6311
        %v6313 = vpop.f32.mrf.mxu0
        %v6314 = vpop.f32.mrf.mxu0
        %v6315 = vadd.f32 0.0, %v6314
        %v6316 = vpop.f32.mrf.mxu0
        %6317 = vmatprep.mubr.bf16.mxu0 0
        %6318 = vmatmul.mubr.bf16.gmra.mxu0 %v6169
        %v6319 = vpop.f32.mrf.mxu0
        %v6320 = vadd.f32 0.0, %v6319
        %v6321 = vpop.f32.mrf.mxu0
        %v6322 = vpop.f32.mrf.mxu0
        %v6323 = vadd.f32 0.0, %v6322
        %v6324 = vpop.f32.mrf.mxu0
        %6325 = vmatprep.mubr.bf16.mxu0 0
        %6326 = vmatmul.mubr.bf16.gmra.mxu0 %v6170
        %v6327 = vpop.f32.mrf.mxu0
        %v6328 = vadd.f32 0.0, %v6327
        %v6329 = vpop.f32.mrf.mxu0
        %v6330 = vpop.f32.mrf.mxu0
        %v6331 = vadd.f32 0.0, %v6330
        %v6332 = vpop.f32.mrf.mxu0
        %6333 = vmatprep.mubr.bf16.mxu0 0
        %6334 = vmatmul.mubr.bf16.gmra.mxu0 %v6171
        %v6335 = vpop.f32.mrf.mxu0
        %v6336 = vadd.f32 0.0, %v6335
        %v6337 = vpop.f32.mrf.mxu0
        %v6338 = vpop.f32.mrf.mxu0
        %v6339 = vadd.f32 0.0, %v6338
        %v6340 = vpop.f32.mrf.mxu0
        %6341 = vmatprep.mubr.bf16.mxu0 0
        %6342 = vmatmul.mubr.bf16.gmra.mxu0 %v6172
        %v6343 = vpop.f32.mrf.mxu0
        %v6344 = vadd.f32 0.0, %v6343
        %v6345 = vpop.f32.mrf.mxu0
        %v6346 = vpop.f32.mrf.mxu0
        %v6347 = vadd.f32 0.0, %v6346
        %v6348 = vpop.f32.mrf.mxu0
        %6349 = vmatprep.mubr.bf16.mxu0 0
        %6350 = vmatmul.mubr.bf16.gmra.mxu0 %v6173
        %v6351 = vpop.f32.mrf.mxu0
        %v6352 = vadd.f32 0.0, %v6351
        %v6353 = vpop.f32.mrf.mxu0
        %v6354 = vpop.f32.mrf.mxu0
        %v6355 = vadd.f32 0.0, %v6354
        %v6356 = vpop.f32.mrf.mxu0
        %6357 = vmatprep.mubr.bf16.mxu0 0
        %6358 = vmatmul.mubr.bf16.gmra.mxu0 %v6174
        %v6359 = vpop.f32.mrf.mxu0
        %v6360 = vadd.f32 0.0, %v6359
        %v6361 = vpop.f32.mrf.mxu0
        %v6362 = vpop.f32.mrf.mxu0
        %v6363 = vadd.f32 0.0, %v6362
        %v6364 = vpop.f32.mrf.mxu0
        %6365 = vmatprep.mubr.bf16.mxu0 0
        %6366 = vmatmul.mubr.bf16.gmra.mxu0 %v6175
        %v6367 = vpop.f32.mrf.mxu0
        %v6368 = vadd.f32 0.0, %v6367
        %v6369 = vpop.f32.mrf.mxu0
        %v6370 = vpop.f32.mrf.mxu0
        %v6371 = vadd.f32 0.0, %v6370
        %v6372 = vpop.f32.mrf.mxu0
        %6373 = vmatprep.mubr.bf16.mxu0 0
        %6374 = vmatmul.mubr.bf16.gmra.mxu0 %v6176
        %v6375 = vpop.f32.mrf.mxu0
        %v6376 = vadd.f32 0.0, %v6375
        %v6377 = vpop.f32.mrf.mxu0
        %v6378 = vpop.f32.mrf.mxu0
        %v6379 = vadd.f32 0.0, %v6378
        %v6380 = vpop.f32.mrf.mxu0
        %6381 = vmatprep.mubr.bf16.mxu0 0
        %6382 = vmatmul.mubr.bf16.gmra.mxu0 %v6177
        %v6383 = vpop.f32.mrf.mxu0
        %v6384 = vadd.f32 0.0, %v6383
        %v6385 = vpop.f32.mrf.mxu0
        %v6386 = vpop.f32.mrf.mxu0
        %v6387 = vadd.f32 0.0, %v6386
        %v6388 = vpop.f32.mrf.mxu0
        %6389 = vmatprep.mubr.bf16.mxu0 0
        %6390 = vmatmul.mubr.bf16.gmra.mxu0 %v6178
        %v6391 = vpop.f32.mrf.mxu0
        %v6392 = vadd.f32 0.0, %v6391
        %v6393 = vpop.f32.mrf.mxu0
        %v6394 = vpop.f32.mrf.mxu0
        %v6395 = vadd.f32 0.0, %v6394
        %v6396 = vpop.f32.mrf.mxu0
        %6397 = vmatprep.mubr.bf16.mxu0 0
        %6398 = vmatmul.mubr.bf16.gmra.mxu0 %v6179
        %v6399 = vpop.f32.mrf.mxu0
        %v6400 = vadd.f32 0.0, %v6399
        %v6401 = vpop.f32.mrf.mxu0
        %v6402 = vpop.f32.mrf.mxu0
        %v6403 = vadd.f32 0.0, %v6402
        %v6404 = vpop.f32.mrf.mxu0
        %6405 = vdwg.mxu0
        %v6406 = vadd.f32 %v6132, %v6280
        %v6407 = vadd.f32 %v6133, %v6283
        %v6408 = vadd.f32 %v6134, %v6288
        %v6409 = vadd.f32 %v6135, %v6291
        %v6410 = vadd.f32 %v6136, %v6296
        %v6411 = vadd.f32 %v6137, %v6299
        %v6412 = vadd.f32 %v6138, %v6304
        %v6413 = vadd.f32 %v6139, %v6307
        %v6414 = vadd.f32 %v6140, %v6312
        %v6415 = vadd.f32 %v6141, %v6315
        %v6416 = vadd.f32 %v6142, %v6320
        %v6417 = vadd.f32 %v6143, %v6323
        %v6418 = vadd.f32 %v6144, %v6328
        %v6419 = vadd.f32 %v6145, %v6331
        %v6420 = vadd.f32 %v6146, %v6336
        %v6421 = vadd.f32 %v6147, %v6339
        %v6422 = vadd.f32 %v6148, %v6344
        %v6423 = vadd.f32 %v6149, %v6347
        %v6424 = vadd.f32 %v6150, %v6352
        %v6425 = vadd.f32 %v6151, %v6355
        %v6426 = vadd.f32 %v6152, %v6360
        %v6427 = vadd.f32 %v6153, %v6363
        %v6428 = vadd.f32 %v6154, %v6368
        %v6429 = vadd.f32 %v6155, %v6371
        %v6430 = vadd.f32 %v6156, %v6376
        %v6431 = vadd.f32 %v6157, %v6379
        %v6432 = vadd.f32 %v6158, %v6384
        %v6433 = vadd.f32 %v6159, %v6387
        %v6434 = vadd.f32 %v6160, %v6392
        %v6435 = vadd.f32 %v6161, %v6395
        %v6436 = vadd.f32 %v6162, %v6400
        %v6437 = vadd.f32 %v6163, %v6403
        %6438 = vst [vmem:[#allocation4] sm:$0xff] %v6406
        %6439 = vst [vmem:[#allocation4 + $0x8] sm:$0xff] %v6407
        %6440 = vst [vmem:[#allocation4 + $0x10] sm:$0xff] %v6408
        %6441 = vst [vmem:[#allocation4 + $0x18] sm:$0xff] %v6409
        %6442 = vst [vmem:[#allocation4 + $0x20] sm:$0xff] %v6410
        %6443 = vst [vmem:[#allocation4 + $0x28] sm:$0xff] %v6411
        %6444 = vst [vmem:[#allocation4 + $0x30] sm:$0xff] %v6412
        %6445 = vst [vmem:[#allocation4 + $0x38] sm:$0xff] %v6413
        %6446 = vst [vmem:[#allocation4 + $0x40] sm:$0xff] %v6414
        %6447 = vst [vmem:[#allocation4 + $0x48] sm:$0xff] %v6415
        %6448 = vst [vmem:[#allocation4 + $0x50] sm:$0xff] %v6416
        %6449 = vst [vmem:[#allocation4 + $0x58] sm:$0xff] %v6417
        %6450 = vst [vmem:[#allocation4 + $0x60] sm:$0xff] %v6418
        %6451 = vst [vmem:[#allocation4 + $0x68] sm:$0xff] %v6419
        %6452 = vst [vmem:[#allocation4 + $0x70] sm:$0xff] %v6420
        %6453 = vst [vmem:[#allocation4 + $0x78] sm:$0xff] %v6421
        %6454 = vst [vmem:[#allocation4 + $0x80] sm:$0xff] %v6422
        %6455 = vst [vmem:[#allocation4 + $0x88] sm:$0xff] %v6423
        %6456 = vst [vmem:[#allocation4 + $0x90] sm:$0xff] %v6424
        %6457 = vst [vmem:[#allocation4 + $0x98] sm:$0xff] %v6425
        %6458 = vst [vmem:[#allocation4 + $0xa0] sm:$0xff] %v6426
        %6459 = vst [vmem:[#allocation4 + $0xa8] sm:$0xff] %v6427
        %6460 = vst [vmem:[#allocation4 + $0xb0] sm:$0xff] %v6428
        %6461 = vst [vmem:[#allocation4 + $0xb8] sm:$0xff] %v6429
        %6462 = vst [vmem:[#allocation4 + $0xc0] sm:$0xff] %v6430
        %6463 = vst [vmem:[#allocation4 + $0xc8] sm:$0xff] %v6431
        %6464 = vst [vmem:[#allocation4 + $0xd0] sm:$0xff] %v6432
        %6465 = vst [vmem:[#allocation4 + $0xd8] sm:$0xff] %v6433
        %6466 = vst [vmem:[#allocation4 + $0xe0] sm:$0xff] %v6434
        %6467 = vst [vmem:[#allocation4 + $0xe8] sm:$0xff] %v6435
        %6468 = vst [vmem:[#allocation4 + $0xf0] sm:$0xff] %v6436
        %6469 = vst [vmem:[#allocation4 + $0xf8] sm:$0xff] %v6437
        %v6470 = vld [vmem:[#allocation3 + $0x19] sm:$0xff]
        %v6471 = vld [vmem:[#allocation3 + $0x21] sm:$0xff]
        %v6472 = vld [vmem:[#allocation3 + $0x29] sm:$0xff]
        %v6473 = vld [vmem:[#allocation3 + $0x31] sm:$0xff]
        %v6474 = vld [vmem:[#allocation3 + $0x39] sm:$0xff]
        %v6475 = vld [vmem:[#allocation3 + $0x41] sm:$0xff]
        %v6476 = vld [vmem:[#allocation3 + $0x49] sm:$0xff]
        %v6477 = vld [vmem:[#allocation3 + $0x51] sm:$0xff]
        %v6478 = vld [vmem:[#allocation3 + $0x59] sm:$0xff]
        %v6479 = vld [vmem:[#allocation3 + $0x61] sm:$0xff]
        %v6480 = vld [vmem:[#allocation3 + $0x69] sm:$0xff]
        %v6481 = vld [vmem:[#allocation3 + $0x71] sm:$0xff]
        %v6482 = vld [vmem:[#allocation3 + $0x79] sm:$0xff]
        %v6483 = vld [vmem:[#allocation3 + $0x81] sm:$0xff]
        %v6484 = vld [vmem:[#allocation3 + $0x89] sm:$0xff]
        %v6485 = vld [vmem:[#allocation3 + $0x91] sm:$0xff]
        %v6486 = vld [vmem:[#allocation3 + $0x99] sm:$0xff]
        %v6487 = vld [vmem:[#allocation3 + $0xa1] sm:$0xff]
        %v6488 = vld [vmem:[#allocation3 + $0xa9] sm:$0xff]
        %v6489 = vld [vmem:[#allocation3 + $0xb1] sm:$0xff]
        %v6490 = vld [vmem:[#allocation3 + $0xb9] sm:$0xff]
        %v6491 = vld [vmem:[#allocation3 + $0xc1] sm:$0xff]
        %v6492 = vld [vmem:[#allocation3 + $0xc9] sm:$0xff]
        %v6493 = vld [vmem:[#allocation3 + $0xd1] sm:$0xff]
        %v6494 = vld [vmem:[#allocation3 + $0xd9] sm:$0xff]
        %v6495 = vld [vmem:[#allocation3 + $0xe1] sm:$0xff]
        %v6496 = vld [vmem:[#allocation3 + $0xe9] sm:$0xff]
        %v6497 = vld [vmem:[#allocation3 + $0xf1] sm:$0xff]
        %v6498 = vld [vmem:[#allocation3 + $0xf9] sm:$0xff]
        %v6499 = vld [vmem:[#allocation3 + $0x101] sm:$0xff]
        %v6500 = vld [vmem:[#allocation3 + $0x109] sm:$0xff]
        %v6501 = vld [vmem:[#allocation3 + $0x111] sm:$0xff]
        %v6502 = vsel %vm1640, %v6470, 0.0
        %v6503 = vsel %vm1641, %v6471, 0.0
        %v6504 = vsel %vm1642, %v6472, 0.0
        %v6505 = vsel %vm1643, %v6473, 0.0
        %v6506 = vsel %vm1644, %v6474, 0.0
        %v6507 = vsel %vm1645, %v6475, 0.0
        %v6508 = vsel %vm1646, %v6476, 0.0
        %v6509 = vsel %vm1647, %v6477, 0.0
        %v6510 = vsel %vm1648, %v6478, 0.0
        %v6511 = vsel %vm1649, %v6479, 0.0
        %v6512 = vsel %vm1650, %v6480, 0.0
        %v6513 = vsel %vm1651, %v6481, 0.0
        %v6514 = vsel %vm1652, %v6482, 0.0
        %v6515 = vsel %vm1653, %v6483, 0.0
        %v6516 = vsel %vm1654, %v6484, 0.0
        %v6517 = vsel %vm1655, %v6485, 0.0
        %v6518 = vsel %vm1656, %v6486, 0.0
        %v6519 = vsel %vm1657, %v6487, 0.0
        %v6520 = vsel %vm1658, %v6488, 0.0
        %v6521 = vsel %vm1659, %v6489, 0.0
        %v6522 = vsel %vm1660, %v6490, 0.0
        %v6523 = vsel %vm1661, %v6491, 0.0
        %v6524 = vsel %vm1662, %v6492, 0.0
        %v6525 = vsel %vm1663, %v6493, 0.0
        %v6526 = vsel %vm1664, %v6494, 0.0
        %v6527 = vsel %vm1665, %v6495, 0.0
        %v6528 = vsel %vm1666, %v6496, 0.0
        %v6529 = vsel %vm1667, %v6497, 0.0
        %v6530 = vsel %vm1668, %v6498, 0.0
        %v6531 = vsel %vm1669, %v6499, 0.0
        %v6532 = vsel %vm1670, %v6500, 0.0
        %v6533 = vsel %vm1671, %v6501, 0.0
        %v6534 = vld [vmem:[#allocation4] sm:$0xff]
        %v6535 = vld [vmem:[#allocation4 + $0x8] sm:$0xff]
        %v6536 = vld [vmem:[#allocation4 + $0x10] sm:$0xff]
        %v6537 = vld [vmem:[#allocation4 + $0x18] sm:$0xff]
        %v6538 = vld [vmem:[#allocation4 + $0x20] sm:$0xff]
        %v6539 = vld [vmem:[#allocation4 + $0x28] sm:$0xff]
        %v6540 = vld [vmem:[#allocation4 + $0x30] sm:$0xff]
        %v6541 = vld [vmem:[#allocation4 + $0x38] sm:$0xff]
        %v6542 = vld [vmem:[#allocation4 + $0x40] sm:$0xff]
        %v6543 = vld [vmem:[#allocation4 + $0x48] sm:$0xff]
        %v6544 = vld [vmem:[#allocation4 + $0x50] sm:$0xff]
        %v6545 = vld [vmem:[#allocation4 + $0x58] sm:$0xff]
        %v6546 = vld [vmem:[#allocation4 + $0x60] sm:$0xff]
        %v6547 = vld [vmem:[#allocation4 + $0x68] sm:$0xff]
        %v6548 = vld [vmem:[#allocation4 + $0x70] sm:$0xff]
        %v6549 = vld [vmem:[#allocation4 + $0x78] sm:$0xff]
        %v6550 = vld [vmem:[#allocation4 + $0x80] sm:$0xff]
        %v6551 = vld [vmem:[#allocation4 + $0x88] sm:$0xff]
        %v6552 = vld [vmem:[#allocation4 + $0x90] sm:$0xff]
        %v6553 = vld [vmem:[#allocation4 + $0x98] sm:$0xff]
        %v6554 = vld [vmem:[#allocation4 + $0xa0] sm:$0xff]
        %v6555 = vld [vmem:[#allocation4 + $0xa8] sm:$0xff]
        %v6556 = vld [vmem:[#allocation4 + $0xb0] sm:$0xff]
        %v6557 = vld [vmem:[#allocation4 + $0xb8] sm:$0xff]
        %v6558 = vld [vmem:[#allocation4 + $0xc0] sm:$0xff]
        %v6559 = vld [vmem:[#allocation4 + $0xc8] sm:$0xff]
        %v6560 = vld [vmem:[#allocation4 + $0xd0] sm:$0xff]
        %v6561 = vld [vmem:[#allocation4 + $0xd8] sm:$0xff]
        %v6562 = vld [vmem:[#allocation4 + $0xe0] sm:$0xff]
        %v6563 = vld [vmem:[#allocation4 + $0xe8] sm:$0xff]
        %v6564 = vld [vmem:[#allocation4 + $0xf0] sm:$0xff]
        %v6565 = vld [vmem:[#allocation4 + $0xf8] sm:$0xff]
        %v6566 = vpack.c.bf16 %v6503, %v6502
        %v6567 = vpack.c.bf16 %v6505, %v6504
        %v6568 = vpack.c.bf16 %v6507, %v6506
        %v6569 = vpack.c.bf16 %v6509, %v6508
        %v6570 = vpack.c.bf16 %v6511, %v6510
        %v6571 = vpack.c.bf16 %v6513, %v6512
        %v6572 = vpack.c.bf16 %v6515, %v6514
        %v6573 = vpack.c.bf16 %v6517, %v6516
        %v6574 = vpack.c.bf16 %v6519, %v6518
        %v6575 = vpack.c.bf16 %v6521, %v6520
        %v6576 = vpack.c.bf16 %v6523, %v6522
        %v6577 = vpack.c.bf16 %v6525, %v6524
        %v6578 = vpack.c.bf16 %v6527, %v6526
        %v6579 = vpack.c.bf16 %v6529, %v6528
        %v6580 = vpack.c.bf16 %v6531, %v6530
        %v6581 = vpack.c.bf16 %v6533, %v6532
        %s6582 = scalar_lea.vmem [#allocation10], 320
        %v6583 = vld [vmem:[%s6582] sm:$0xf]
        %v6584 = vld [vmem:[%s6582 + $0x4] sm:$0xf]
        %v6585 = vld [vmem:[%s6582 + $0x8] sm:$0xf]
        %v6586 = vld [vmem:[%s6582 + $0xc] sm:$0xf]
        %v6587 = vld [vmem:[%s6582 + $0x10] sm:$0xf]
        %v6588 = vld [vmem:[%s6582 + $0x14] sm:$0xf]
        %v6589 = vld [vmem:[%s6582 + $0x18] sm:$0xf]
        %v6590 = vld [vmem:[%s6582 + $0x1c] sm:$0xf]
        %v6591 = vld [vmem:[%s6582 + $0x20] sm:$0xf]
        %v6592 = vld [vmem:[%s6582 + $0x24] sm:$0xf]
        %v6593 = vld [vmem:[%s6582 + $0x28] sm:$0xf]
        %v6594 = vld [vmem:[%s6582 + $0x2c] sm:$0xf]
        %v6595 = vld [vmem:[%s6582 + $0x30] sm:$0xf]
        %v6596 = vld [vmem:[%s6582 + $0x34] sm:$0xf]
        %v6597 = vld [vmem:[%s6582 + $0x38] sm:$0xf]
        %v6598 = vld [vmem:[%s6582 + $0x3c] sm:$0xf]
        %v6615 = vunpack.c.l.b16 %v6583
        %v6616 = vunpack.c.l.b16 %v6584
        %v6617 = vunpack.c.l.b16 %v6585
        %v6618 = vunpack.c.l.b16 %v6586
        %v6619 = vunpack.c.l.b16 %v6587
        %v6620 = vunpack.c.l.b16 %v6588
        %v6621 = vunpack.c.l.b16 %v6589
        %v6622 = vunpack.c.l.b16 %v6590
        %v6623 = vunpack.c.l.b16 %v6591
        %v6624 = vunpack.c.l.b16 %v6592
        %v6625 = vunpack.c.l.b16 %v6593
        %v6626 = vunpack.c.l.b16 %v6594
        %v6627 = vunpack.c.l.b16 %v6595
        %v6628 = vunpack.c.l.b16 %v6596
        %v6629 = vunpack.c.l.b16 %v6597
        %v6630 = vunpack.c.l.b16 %v6598
        %v6631 = vpack.c.b16 %v6616, %v6615
        %v6632 = vpack.c.b16 %v6618, %v6617
        %v6633 = vpack.c.b16 %v6620, %v6619
        %v6634 = vpack.c.b16 %v6622, %v6621
        %v6635 = vpack.c.b16 %v6624, %v6623
        %v6636 = vpack.c.b16 %v6626, %v6625
        %v6637 = vpack.c.b16 %v6628, %v6627
        %v6638 = vpack.c.b16 %v6630, %v6629
        %6647 = vmatprep.subr.bf16.mxu0 0
        %6648 = vmatpush1.bf16.msra.mxu0 %v6638
        %6649 = vmatprep.subr.bf16.mxu0 0
        %6650 = vmatpush1.bf16.msra.mxu0 %v6637
        %6651 = vmatprep.subr.bf16.mxu0 0
        %6652 = vmatpush1.bf16.msra.mxu0 %v6636
        %6653 = vmatprep.subr.bf16.mxu0 0
        %6654 = vmatpush1.bf16.msra.mxu0 %v6635
        %6655 = vmatprep.subr.bf16.mxu0 0
        %6656 = vmatpush1.bf16.msra.mxu0 %v6634
        %6657 = vmatprep.subr.bf16.mxu0 0
        %6658 = vmatpush1.bf16.msra.mxu0 %v6633
        %6659 = vmatprep.subr.bf16.mxu0 0
        %6660 = vmatpush1.bf16.msra.mxu0 %v6632
        %6661 = vmatprep.subr.bf16.mxu0 0
        %6662 = vmatpush1.bf16.msra.mxu0 %v6631
        %6663 = vmatprep.subr.bf16.mxu0 0
        %6664 = vmatpush2.bf16.msra.mxu0 0
        %6665 = vmatprep.subr.bf16.mxu0 0
        %6666 = vmatpush2.bf16.msra.mxu0 0
        %6667 = vmatprep.subr.bf16.mxu0 0
        %6668 = vmatpush2.bf16.msra.mxu0 0
        %6669 = vmatprep.subr.bf16.mxu0 0
        %6670 = vmatpush2.bf16.msra.mxu0 0
        %6671 = vmatprep.subr.bf16.mxu0 0
        %6672 = vmatpush2.bf16.msra.mxu0 0
        %6673 = vmatprep.subr.bf16.mxu0 0
        %6674 = vmatpush2.bf16.msra.mxu0 0
        %6675 = vmatprep.subr.bf16.mxu0 0
        %6676 = vmatpush2.bf16.msra.mxu0 0
        %6677 = vmatprep.subr.bf16.mxu0 0
        %6678 = vmatpush2.bf16.msra.mxu0 0
        %6679 = vmatprep.mubr.bf16.mxu0 0
        %6680 = vmatmul.mubr.bf16.gmra.mxu0 %v6566
        %v6681 = vpop.f32.mrf.mxu0
        %v6682 = vadd.f32 0.0, %v6681
        %v6683 = vpop.f32.mrf.mxu0
        %v6684 = vpop.f32.mrf.mxu0
        %v6685 = vadd.f32 0.0, %v6684
        %v6686 = vpop.f32.mrf.mxu0
        %6687 = vmatprep.mubr.bf16.mxu0 0
        %6688 = vmatmul.mubr.bf16.gmra.mxu0 %v6567
        %v6689 = vpop.f32.mrf.mxu0
        %v6690 = vadd.f32 0.0, %v6689
        %v6691 = vpop.f32.mrf.mxu0
        %v6692 = vpop.f32.mrf.mxu0
        %v6693 = vadd.f32 0.0, %v6692
        %v6694 = vpop.f32.mrf.mxu0
        %6695 = vmatprep.mubr.bf16.mxu0 0
        %6696 = vmatmul.mubr.bf16.gmra.mxu0 %v6568
        %v6697 = vpop.f32.mrf.mxu0
        %v6698 = vadd.f32 0.0, %v6697
        %v6699 = vpop.f32.mrf.mxu0
        %v6700 = vpop.f32.mrf.mxu0
        %v6701 = vadd.f32 0.0, %v6700
        %v6702 = vpop.f32.mrf.mxu0
        %6703 = vmatprep.mubr.bf16.mxu0 0
        %6704 = vmatmul.mubr.bf16.gmra.mxu0 %v6569
        %v6705 = vpop.f32.mrf.mxu0
        %v6706 = vadd.f32 0.0, %v6705
        %v6707 = vpop.f32.mrf.mxu0
        %v6708 = vpop.f32.mrf.mxu0
        %v6709 = vadd.f32 0.0, %v6708
        %v6710 = vpop.f32.mrf.mxu0
        %6711 = vmatprep.mubr.bf16.mxu0 0
        %6712 = vmatmul.mubr.bf16.gmra.mxu0 %v6570
        %v6713 = vpop.f32.mrf.mxu0
        %v6714 = vadd.f32 0.0, %v6713
        %v6715 = vpop.f32.mrf.mxu0
        %v6716 = vpop.f32.mrf.mxu0
        %v6717 = vadd.f32 0.0, %v6716
        %v6718 = vpop.f32.mrf.mxu0
        %6719 = vmatprep.mubr.bf16.mxu0 0
        %6720 = vmatmul.mubr.bf16.gmra.mxu0 %v6571
        %v6721 = vpop.f32.mrf.mxu0
        %v6722 = vadd.f32 0.0, %v6721
        %v6723 = vpop.f32.mrf.mxu0
        %v6724 = vpop.f32.mrf.mxu0
        %v6725 = vadd.f32 0.0, %v6724
        %v6726 = vpop.f32.mrf.mxu0
        %6727 = vmatprep.mubr.bf16.mxu0 0
        %6728 = vmatmul.mubr.bf16.gmra.mxu0 %v6572
        %v6729 = vpop.f32.mrf.mxu0
        %v6730 = vadd.f32 0.0, %v6729
        %v6731 = vpop.f32.mrf.mxu0
        %v6732 = vpop.f32.mrf.mxu0
        %v6733 = vadd.f32 0.0, %v6732
        %v6734 = vpop.f32.mrf.mxu0
        %6735 = vmatprep.mubr.bf16.mxu0 0
        %6736 = vmatmul.mubr.bf16.gmra.mxu0 %v6573
        %v6737 = vpop.f32.mrf.mxu0
        %v6738 = vadd.f32 0.0, %v6737
        %v6739 = vpop.f32.mrf.mxu0
        %v6740 = vpop.f32.mrf.mxu0
        %v6741 = vadd.f32 0.0, %v6740
        %v6742 = vpop.f32.mrf.mxu0
        %6743 = vmatprep.mubr.bf16.mxu0 0
        %6744 = vmatmul.mubr.bf16.gmra.mxu0 %v6574
        %v6745 = vpop.f32.mrf.mxu0
        %v6746 = vadd.f32 0.0, %v6745
        %v6747 = vpop.f32.mrf.mxu0
        %v6748 = vpop.f32.mrf.mxu0
        %v6749 = vadd.f32 0.0, %v6748
        %v6750 = vpop.f32.mrf.mxu0
        %6751 = vmatprep.mubr.bf16.mxu0 0
        %6752 = vmatmul.mubr.bf16.gmra.mxu0 %v6575
        %v6753 = vpop.f32.mrf.mxu0
        %v6754 = vadd.f32 0.0, %v6753
        %v6755 = vpop.f32.mrf.mxu0
        %v6756 = vpop.f32.mrf.mxu0
        %v6757 = vadd.f32 0.0, %v6756
        %v6758 = vpop.f32.mrf.mxu0
        %6759 = vmatprep.mubr.bf16.mxu0 0
        %6760 = vmatmul.mubr.bf16.gmra.mxu0 %v6576
        %v6761 = vpop.f32.mrf.mxu0
        %v6762 = vadd.f32 0.0, %v6761
        %v6763 = vpop.f32.mrf.mxu0
        %v6764 = vpop.f32.mrf.mxu0
        %v6765 = vadd.f32 0.0, %v6764
        %v6766 = vpop.f32.mrf.mxu0
        %6767 = vmatprep.mubr.bf16.mxu0 0
        %6768 = vmatmul.mubr.bf16.gmra.mxu0 %v6577
        %v6769 = vpop.f32.mrf.mxu0
        %v6770 = vadd.f32 0.0, %v6769
        %v6771 = vpop.f32.mrf.mxu0
        %v6772 = vpop.f32.mrf.mxu0
        %v6773 = vadd.f32 0.0, %v6772
        %v6774 = vpop.f32.mrf.mxu0
        %6775 = vmatprep.mubr.bf16.mxu0 0
        %6776 = vmatmul.mubr.bf16.gmra.mxu0 %v6578
        %v6777 = vpop.f32.mrf.mxu0
        %v6778 = vadd.f32 0.0, %v6777
        %v6779 = vpop.f32.mrf.mxu0
        %v6780 = vpop.f32.mrf.mxu0
        %v6781 = vadd.f32 0.0, %v6780
        %v6782 = vpop.f32.mrf.mxu0
        %6783 = vmatprep.mubr.bf16.mxu0 0
        %6784 = vmatmul.mubr.bf16.gmra.mxu0 %v6579
        %v6785 = vpop.f32.mrf.mxu0
        %v6786 = vadd.f32 0.0, %v6785
        %v6787 = vpop.f32.mrf.mxu0
        %v6788 = vpop.f32.mrf.mxu0
        %v6789 = vadd.f32 0.0, %v6788
        %v6790 = vpop.f32.mrf.mxu0
        %6791 = vmatprep.mubr.bf16.mxu0 0
        %6792 = vmatmul.mubr.bf16.gmra.mxu0 %v6580
        %v6793 = vpop.f32.mrf.mxu0
        %v6794 = vadd.f32 0.0, %v6793
        %v6795 = vpop.f32.mrf.mxu0
        %v6796 = vpop.f32.mrf.mxu0
        %v6797 = vadd.f32 0.0, %v6796
        %v6798 = vpop.f32.mrf.mxu0
        %6799 = vmatprep.mubr.bf16.mxu0 0
        %6800 = vmatmul.mubr.bf16.gmra.mxu0 %v6581
        %v6801 = vpop.f32.mrf.mxu0
        %v6802 = vadd.f32 0.0, %v6801
        %v6803 = vpop.f32.mrf.mxu0
        %v6804 = vpop.f32.mrf.mxu0
        %v6805 = vadd.f32 0.0, %v6804
        %v6806 = vpop.f32.mrf.mxu0
        %6807 = vdwg.mxu0
        %v6808 = vadd.f32 %v6534, %v6682
        %v6809 = vadd.f32 %v6535, %v6685
        %v6810 = vadd.f32 %v6536, %v6690
        %v6811 = vadd.f32 %v6537, %v6693
        %v6812 = vadd.f32 %v6538, %v6698
        %v6813 = vadd.f32 %v6539, %v6701
        %v6814 = vadd.f32 %v6540, %v6706
        %v6815 = vadd.f32 %v6541, %v6709
        %v6816 = vadd.f32 %v6542, %v6714
        %v6817 = vadd.f32 %v6543, %v6717
        %v6818 = vadd.f32 %v6544, %v6722
        %v6819 = vadd.f32 %v6545, %v6725
        %v6820 = vadd.f32 %v6546, %v6730
        %v6821 = vadd.f32 %v6547, %v6733
        %v6822 = vadd.f32 %v6548, %v6738
        %v6823 = vadd.f32 %v6549, %v6741
        %v6824 = vadd.f32 %v6550, %v6746
        %v6825 = vadd.f32 %v6551, %v6749
        %v6826 = vadd.f32 %v6552, %v6754
        %v6827 = vadd.f32 %v6553, %v6757
        %v6828 = vadd.f32 %v6554, %v6762
        %v6829 = vadd.f32 %v6555, %v6765
        %v6830 = vadd.f32 %v6556, %v6770
        %v6831 = vadd.f32 %v6557, %v6773
        %v6832 = vadd.f32 %v6558, %v6778
        %v6833 = vadd.f32 %v6559, %v6781
        %v6834 = vadd.f32 %v6560, %v6786
        %v6835 = vadd.f32 %v6561, %v6789
        %v6836 = vadd.f32 %v6562, %v6794
        %v6837 = vadd.f32 %v6563, %v6797
        %v6838 = vadd.f32 %v6564, %v6802
        %v6839 = vadd.f32 %v6565, %v6805
        %6840 = vst [vmem:[#allocation4] sm:$0xff] %v6808
        %6841 = vst [vmem:[#allocation4 + $0x8] sm:$0xff] %v6809
        %6842 = vst [vmem:[#allocation4 + $0x10] sm:$0xff] %v6810
        %6843 = vst [vmem:[#allocation4 + $0x18] sm:$0xff] %v6811
        %6844 = vst [vmem:[#allocation4 + $0x20] sm:$0xff] %v6812
        %6845 = vst [vmem:[#allocation4 + $0x28] sm:$0xff] %v6813
        %6846 = vst [vmem:[#allocation4 + $0x30] sm:$0xff] %v6814
        %6847 = vst [vmem:[#allocation4 + $0x38] sm:$0xff] %v6815
        %6848 = vst [vmem:[#allocation4 + $0x40] sm:$0xff] %v6816
        %6849 = vst [vmem:[#allocation4 + $0x48] sm:$0xff] %v6817
        %6850 = vst [vmem:[#allocation4 + $0x50] sm:$0xff] %v6818
        %6851 = vst [vmem:[#allocation4 + $0x58] sm:$0xff] %v6819
        %6852 = vst [vmem:[#allocation4 + $0x60] sm:$0xff] %v6820
        %6853 = vst [vmem:[#allocation4 + $0x68] sm:$0xff] %v6821
        %6854 = vst [vmem:[#allocation4 + $0x70] sm:$0xff] %v6822
        %6855 = vst [vmem:[#allocation4 + $0x78] sm:$0xff] %v6823
        %6856 = vst [vmem:[#allocation4 + $0x80] sm:$0xff] %v6824
        %6857 = vst [vmem:[#allocation4 + $0x88] sm:$0xff] %v6825
        %6858 = vst [vmem:[#allocation4 + $0x90] sm:$0xff] %v6826
        %6859 = vst [vmem:[#allocation4 + $0x98] sm:$0xff] %v6827
        %6860 = vst [vmem:[#allocation4 + $0xa0] sm:$0xff] %v6828
        %6861 = vst [vmem:[#allocation4 + $0xa8] sm:$0xff] %v6829
        %6862 = vst [vmem:[#allocation4 + $0xb0] sm:$0xff] %v6830
        %6863 = vst [vmem:[#allocation4 + $0xb8] sm:$0xff] %v6831
        %6864 = vst [vmem:[#allocation4 + $0xc0] sm:$0xff] %v6832
        %6865 = vst [vmem:[#allocation4 + $0xc8] sm:$0xff] %v6833
        %6866 = vst [vmem:[#allocation4 + $0xd0] sm:$0xff] %v6834
        %6867 = vst [vmem:[#allocation4 + $0xd8] sm:$0xff] %v6835
        %6868 = vst [vmem:[#allocation4 + $0xe0] sm:$0xff] %v6836
        %6869 = vst [vmem:[#allocation4 + $0xe8] sm:$0xff] %v6837
        %6870 = vst [vmem:[#allocation4 + $0xf0] sm:$0xff] %v6838
        %6871 = vst [vmem:[#allocation4 + $0xf8] sm:$0xff] %v6839
        %v6872 = vld [vmem:[#allocation3 + $0x27] sm:$0xff]
        %v6873 = vld [vmem:[#allocation3 + $0x2f] sm:$0xff]
        %v6874 = vld [vmem:[#allocation3 + $0x37] sm:$0xff]
        %v6875 = vld [vmem:[#allocation3 + $0x3f] sm:$0xff]
        %v6876 = vld [vmem:[#allocation3 + $0x47] sm:$0xff]
        %v6877 = vld [vmem:[#allocation3 + $0x4f] sm:$0xff]
        %v6878 = vld [vmem:[#allocation3 + $0x57] sm:$0xff]
        %v6879 = vld [vmem:[#allocation3 + $0x5f] sm:$0xff]
        %v6880 = vld [vmem:[#allocation3 + $0x67] sm:$0xff]
        %v6881 = vld [vmem:[#allocation3 + $0x6f] sm:$0xff]
        %v6882 = vld [vmem:[#allocation3 + $0x77] sm:$0xff]
        %v6883 = vld [vmem:[#allocation3 + $0x7f] sm:$0xff]
        %v6884 = vld [vmem:[#allocation3 + $0x87] sm:$0xff]
        %v6885 = vld [vmem:[#allocation3 + $0x8f] sm:$0xff]
        %v6886 = vld [vmem:[#allocation3 + $0x97] sm:$0xff]
        %v6887 = vld [vmem:[#allocation3 + $0x9f] sm:$0xff]
        %v6888 = vld [vmem:[#allocation3 + $0xa7] sm:$0xff]
        %v6889 = vld [vmem:[#allocation3 + $0xaf] sm:$0xff]
        %v6890 = vld [vmem:[#allocation3 + $0xb7] sm:$0xff]
        %v6891 = vld [vmem:[#allocation3 + $0xbf] sm:$0xff]
        %v6892 = vld [vmem:[#allocation3 + $0xc7] sm:$0xff]
        %v6893 = vld [vmem:[#allocation3 + $0xcf] sm:$0xff]
        %v6894 = vld [vmem:[#allocation3 + $0xd7] sm:$0xff]
        %v6895 = vld [vmem:[#allocation3 + $0xdf] sm:$0xff]
        %v6896 = vld [vmem:[#allocation3 + $0xe7] sm:$0xff]
        %v6897 = vld [vmem:[#allocation3 + $0xef] sm:$0xff]
        %v6898 = vld [vmem:[#allocation3 + $0xf7] sm:$0xff]
        %v6899 = vld [vmem:[#allocation3 + $0xff] sm:$0xff]
        %v6900 = vld [vmem:[#allocation3 + $0x107] sm:$0xff]
        %v6901 = vld [vmem:[#allocation3 + $0x10f] sm:$0xff]
        %v6902 = vld [vmem:[#allocation3 + $0x117] sm:$0xff]
        %v6903 = vld [vmem:[#allocation3 + $0x11f] sm:$0xff]
        %v6904 = vsel %vm837, %v6872, 0.0
        %v6905 = vsel %vm838, %v6873, 0.0
        %v6906 = vsel %vm839, %v6874, 0.0
        %v6907 = vsel %vm840, %v6875, 0.0
        %v6908 = vsel %vm841, %v6876, 0.0
        %v6909 = vsel %vm842, %v6877, 0.0
        %v6910 = vsel %vm843, %v6878, 0.0
        %v6911 = vsel %vm844, %v6879, 0.0
        %v6912 = vsel %vm845, %v6880, 0.0
        %v6913 = vsel %vm846, %v6881, 0.0
        %v6914 = vsel %vm847, %v6882, 0.0
        %v6915 = vsel %vm848, %v6883, 0.0
        %v6916 = vsel %vm849, %v6884, 0.0
        %v6917 = vsel %vm850, %v6885, 0.0
        %v6918 = vsel %vm851, %v6886, 0.0
        %v6919 = vsel %vm852, %v6887, 0.0
        %v6920 = vsel %vm853, %v6888, 0.0
        %v6921 = vsel %vm854, %v6889, 0.0
        %v6922 = vsel %vm855, %v6890, 0.0
        %v6923 = vsel %vm856, %v6891, 0.0
        %v6924 = vsel %vm857, %v6892, 0.0
        %v6925 = vsel %vm858, %v6893, 0.0
        %v6926 = vsel %vm859, %v6894, 0.0
        %v6927 = vsel %vm860, %v6895, 0.0
        %v6928 = vsel %vm861, %v6896, 0.0
        %v6929 = vsel %vm862, %v6897, 0.0
        %v6930 = vsel %vm863, %v6898, 0.0
        %v6931 = vsel %vm864, %v6899, 0.0
        %v6932 = vsel %vm865, %v6900, 0.0
        %v6933 = vsel %vm866, %v6901, 0.0
        %v6934 = vsel %vm867, %v6902, 0.0
        %v6935 = vsel %vm868, %v6903, 0.0
        %v6936 = vld [vmem:[#allocation4] sm:$0xff]
        %v6937 = vld [vmem:[#allocation4 + $0x8] sm:$0xff]
        %v6938 = vld [vmem:[#allocation4 + $0x10] sm:$0xff]
        %v6939 = vld [vmem:[#allocation4 + $0x18] sm:$0xff]
        %v6940 = vld [vmem:[#allocation4 + $0x20] sm:$0xff]
        %v6941 = vld [vmem:[#allocation4 + $0x28] sm:$0xff]
        %v6942 = vld [vmem:[#allocation4 + $0x30] sm:$0xff]
        %v6943 = vld [vmem:[#allocation4 + $0x38] sm:$0xff]
        %v6944 = vld [vmem:[#allocation4 + $0x40] sm:$0xff]
        %v6945 = vld [vmem:[#allocation4 + $0x48] sm:$0xff]
        %v6946 = vld [vmem:[#allocation4 + $0x50] sm:$0xff]
        %v6947 = vld [vmem:[#allocation4 + $0x58] sm:$0xff]
        %v6948 = vld [vmem:[#allocation4 + $0x60] sm:$0xff]
        %v6949 = vld [vmem:[#allocation4 + $0x68] sm:$0xff]
        %v6950 = vld [vmem:[#allocation4 + $0x70] sm:$0xff]
        %v6951 = vld [vmem:[#allocation4 + $0x78] sm:$0xff]
        %v6952 = vld [vmem:[#allocation4 + $0x80] sm:$0xff]
        %v6953 = vld [vmem:[#allocation4 + $0x88] sm:$0xff]
        %v6954 = vld [vmem:[#allocation4 + $0x90] sm:$0xff]
        %v6955 = vld [vmem:[#allocation4 + $0x98] sm:$0xff]
        %v6956 = vld [vmem:[#allocation4 + $0xa0] sm:$0xff]
        %v6957 = vld [vmem:[#allocation4 + $0xa8] sm:$0xff]
        %v6958 = vld [vmem:[#allocation4 + $0xb0] sm:$0xff]
        %v6959 = vld [vmem:[#allocation4 + $0xb8] sm:$0xff]
        %v6960 = vld [vmem:[#allocation4 + $0xc0] sm:$0xff]
        %v6961 = vld [vmem:[#allocation4 + $0xc8] sm:$0xff]
        %v6962 = vld [vmem:[#allocation4 + $0xd0] sm:$0xff]
        %v6963 = vld [vmem:[#allocation4 + $0xd8] sm:$0xff]
        %v6964 = vld [vmem:[#allocation4 + $0xe0] sm:$0xff]
        %v6965 = vld [vmem:[#allocation4 + $0xe8] sm:$0xff]
        %v6966 = vld [vmem:[#allocation4 + $0xf0] sm:$0xff]
        %v6967 = vld [vmem:[#allocation4 + $0xf8] sm:$0xff]
        %v6968 = vpack.c.bf16 %v6905, %v6904
        %v6969 = vpack.c.bf16 %v6907, %v6906
        %v6970 = vpack.c.bf16 %v6909, %v6908
        %v6971 = vpack.c.bf16 %v6911, %v6910
        %v6972 = vpack.c.bf16 %v6913, %v6912
        %v6973 = vpack.c.bf16 %v6915, %v6914
        %v6974 = vpack.c.bf16 %v6917, %v6916
        %v6975 = vpack.c.bf16 %v6919, %v6918
        %v6976 = vpack.c.bf16 %v6921, %v6920
        %v6977 = vpack.c.bf16 %v6923, %v6922
        %v6978 = vpack.c.bf16 %v6925, %v6924
        %v6979 = vpack.c.bf16 %v6927, %v6926
        %v6980 = vpack.c.bf16 %v6929, %v6928
        %v6981 = vpack.c.bf16 %v6931, %v6930
        %v6982 = vpack.c.bf16 %v6933, %v6932
        %v6983 = vpack.c.bf16 %v6935, %v6934
        %s6984 = scalar_lea.vmem [#allocation10], 384
        %v6985 = vld [vmem:[%s6984] sm:$0xf]
        %v6986 = vld [vmem:[%s6984 + $0x4] sm:$0xf]
        %v6987 = vld [vmem:[%s6984 + $0x8] sm:$0xf]
        %v6988 = vld [vmem:[%s6984 + $0xc] sm:$0xf]
        %v6989 = vld [vmem:[%s6984 + $0x10] sm:$0xf]
        %v6990 = vld [vmem:[%s6984 + $0x14] sm:$0xf]
        %v6991 = vld [vmem:[%s6984 + $0x18] sm:$0xf]
        %v6992 = vld [vmem:[%s6984 + $0x1c] sm:$0xf]
        %v6993 = vld [vmem:[%s6984 + $0x20] sm:$0xf]
        %v6994 = vld [vmem:[%s6984 + $0x24] sm:$0xf]
        %v6995 = vld [vmem:[%s6984 + $0x28] sm:$0xf]
        %v6996 = vld [vmem:[%s6984 + $0x2c] sm:$0xf]
        %v6997 = vld [vmem:[%s6984 + $0x30] sm:$0xf]
        %v6998 = vld [vmem:[%s6984 + $0x34] sm:$0xf]
        %v6999 = vld [vmem:[%s6984 + $0x38] sm:$0xf]
        %v7000 = vld [vmem:[%s6984 + $0x3c] sm:$0xf]
        %v7017 = vunpack.c.l.b16 %v6985
        %v7018 = vunpack.c.l.b16 %v6986
        %v7019 = vunpack.c.l.b16 %v6987
        %v7020 = vunpack.c.l.b16 %v6988
        %v7021 = vunpack.c.l.b16 %v6989
        %v7022 = vunpack.c.l.b16 %v6990
        %v7023 = vunpack.c.l.b16 %v6991
        %v7024 = vunpack.c.l.b16 %v6992
        %v7025 = vunpack.c.l.b16 %v6993
        %v7026 = vunpack.c.l.b16 %v6994
        %v7027 = vunpack.c.l.b16 %v6995
        %v7028 = vunpack.c.l.b16 %v6996
        %v7029 = vunpack.c.l.b16 %v6997
        %v7030 = vunpack.c.l.b16 %v6998
        %v7031 = vunpack.c.l.b16 %v6999
        %v7032 = vunpack.c.l.b16 %v7000
        %v7033 = vpack.c.b16 %v7018, %v7017
        %v7034 = vpack.c.b16 %v7020, %v7019
        %v7035 = vpack.c.b16 %v7022, %v7021
        %v7036 = vpack.c.b16 %v7024, %v7023
        %v7037 = vpack.c.b16 %v7026, %v7025
        %v7038 = vpack.c.b16 %v7028, %v7027
        %v7039 = vpack.c.b16 %v7030, %v7029
        %v7040 = vpack.c.b16 %v7032, %v7031
        %7049 = vmatprep.subr.bf16.mxu0 0
        %7050 = vmatpush1.bf16.msra.mxu0 %v7040
        %7051 = vmatprep.subr.bf16.mxu0 0
        %7052 = vmatpush1.bf16.msra.mxu0 %v7039
        %7053 = vmatprep.subr.bf16.mxu0 0
        %7054 = vmatpush1.bf16.msra.mxu0 %v7038
        %7055 = vmatprep.subr.bf16.mxu0 0
        %7056 = vmatpush1.bf16.msra.mxu0 %v7037
        %7057 = vmatprep.subr.bf16.mxu0 0
        %7058 = vmatpush1.bf16.msra.mxu0 %v7036
        %7059 = vmatprep.subr.bf16.mxu0 0
        %7060 = vmatpush1.bf16.msra.mxu0 %v7035
        %7061 = vmatprep.subr.bf16.mxu0 0
        %7062 = vmatpush1.bf16.msra.mxu0 %v7034
        %7063 = vmatprep.subr.bf16.mxu0 0
        %7064 = vmatpush1.bf16.msra.mxu0 %v7033
        %7065 = vmatprep.subr.bf16.mxu0 0
        %7066 = vmatpush2.bf16.msra.mxu0 0
        %7067 = vmatprep.subr.bf16.mxu0 0
        %7068 = vmatpush2.bf16.msra.mxu0 0
        %7069 = vmatprep.subr.bf16.mxu0 0
        %7070 = vmatpush2.bf16.msra.mxu0 0
        %7071 = vmatprep.subr.bf16.mxu0 0
        %7072 = vmatpush2.bf16.msra.mxu0 0
        %7073 = vmatprep.subr.bf16.mxu0 0
        %7074 = vmatpush2.bf16.msra.mxu0 0
        %7075 = vmatprep.subr.bf16.mxu0 0
        %7076 = vmatpush2.bf16.msra.mxu0 0
        %7077 = vmatprep.subr.bf16.mxu0 0
        %7078 = vmatpush2.bf16.msra.mxu0 0
        %7079 = vmatprep.subr.bf16.mxu0 0
        %7080 = vmatpush2.bf16.msra.mxu0 0
        %7081 = vmatprep.mubr.bf16.mxu0 0
        %7082 = vmatmul.mubr.bf16.gmra.mxu0 %v6968
        %v7083 = vpop.f32.mrf.mxu0
        %v7084 = vadd.f32 0.0, %v7083
        %v7085 = vpop.f32.mrf.mxu0
        %v7086 = vpop.f32.mrf.mxu0
        %v7087 = vadd.f32 0.0, %v7086
        %v7088 = vpop.f32.mrf.mxu0
        %7089 = vmatprep.mubr.bf16.mxu0 0
        %7090 = vmatmul.mubr.bf16.gmra.mxu0 %v6969
        %v7091 = vpop.f32.mrf.mxu0
        %v7092 = vadd.f32 0.0, %v7091
        %v7093 = vpop.f32.mrf.mxu0
        %v7094 = vpop.f32.mrf.mxu0
        %v7095 = vadd.f32 0.0, %v7094
        %v7096 = vpop.f32.mrf.mxu0
        %7097 = vmatprep.mubr.bf16.mxu0 0
        %7098 = vmatmul.mubr.bf16.gmra.mxu0 %v6970
        %v7099 = vpop.f32.mrf.mxu0
        %v7100 = vadd.f32 0.0, %v7099
        %v7101 = vpop.f32.mrf.mxu0
        %v7102 = vpop.f32.mrf.mxu0
        %v7103 = vadd.f32 0.0, %v7102
        %v7104 = vpop.f32.mrf.mxu0
        %7105 = vmatprep.mubr.bf16.mxu0 0
        %7106 = vmatmul.mubr.bf16.gmra.mxu0 %v6971
        %v7107 = vpop.f32.mrf.mxu0
        %v7108 = vadd.f32 0.0, %v7107
        %v7109 = vpop.f32.mrf.mxu0
        %v7110 = vpop.f32.mrf.mxu0
        %v7111 = vadd.f32 0.0, %v7110
        %v7112 = vpop.f32.mrf.mxu0
        %7113 = vmatprep.mubr.bf16.mxu0 0
        %7114 = vmatmul.mubr.bf16.gmra.mxu0 %v6972
        %v7115 = vpop.f32.mrf.mxu0
        %v7116 = vadd.f32 0.0, %v7115
        %v7117 = vpop.f32.mrf.mxu0
        %v7118 = vpop.f32.mrf.mxu0
        %v7119 = vadd.f32 0.0, %v7118
        %v7120 = vpop.f32.mrf.mxu0
        %7121 = vmatprep.mubr.bf16.mxu0 0
        %7122 = vmatmul.mubr.bf16.gmra.mxu0 %v6973
        %v7123 = vpop.f32.mrf.mxu0
        %v7124 = vadd.f32 0.0, %v7123
        %v7125 = vpop.f32.mrf.mxu0
        %v7126 = vpop.f32.mrf.mxu0
        %v7127 = vadd.f32 0.0, %v7126
        %v7128 = vpop.f32.mrf.mxu0
        %7129 = vmatprep.mubr.bf16.mxu0 0
        %7130 = vmatmul.mubr.bf16.gmra.mxu0 %v6974
        %v7131 = vpop.f32.mrf.mxu0
        %v7132 = vadd.f32 0.0, %v7131
        %v7133 = vpop.f32.mrf.mxu0
        %v7134 = vpop.f32.mrf.mxu0
        %v7135 = vadd.f32 0.0, %v7134
        %v7136 = vpop.f32.mrf.mxu0
        %7137 = vmatprep.mubr.bf16.mxu0 0
        %7138 = vmatmul.mubr.bf16.gmra.mxu0 %v6975
        %v7139 = vpop.f32.mrf.mxu0
        %v7140 = vadd.f32 0.0, %v7139
        %v7141 = vpop.f32.mrf.mxu0
        %v7142 = vpop.f32.mrf.mxu0
        %v7143 = vadd.f32 0.0, %v7142
        %v7144 = vpop.f32.mrf.mxu0
        %7145 = vmatprep.mubr.bf16.mxu0 0
        %7146 = vmatmul.mubr.bf16.gmra.mxu0 %v6976
        %v7147 = vpop.f32.mrf.mxu0
        %v7148 = vadd.f32 0.0, %v7147
        %v7149 = vpop.f32.mrf.mxu0
        %v7150 = vpop.f32.mrf.mxu0
        %v7151 = vadd.f32 0.0, %v7150
        %v7152 = vpop.f32.mrf.mxu0
        %7153 = vmatprep.mubr.bf16.mxu0 0
        %7154 = vmatmul.mubr.bf16.gmra.mxu0 %v6977
        %v7155 = vpop.f32.mrf.mxu0
        %v7156 = vadd.f32 0.0, %v7155
        %v7157 = vpop.f32.mrf.mxu0
        %v7158 = vpop.f32.mrf.mxu0
        %v7159 = vadd.f32 0.0, %v7158
        %v7160 = vpop.f32.mrf.mxu0
        %7161 = vmatprep.mubr.bf16.mxu0 0
        %7162 = vmatmul.mubr.bf16.gmra.mxu0 %v6978
        %v7163 = vpop.f32.mrf.mxu0
        %v7164 = vadd.f32 0.0, %v7163
        %v7165 = vpop.f32.mrf.mxu0
        %v7166 = vpop.f32.mrf.mxu0
        %v7167 = vadd.f32 0.0, %v7166
        %v7168 = vpop.f32.mrf.mxu0
        %7169 = vmatprep.mubr.bf16.mxu0 0
        %7170 = vmatmul.mubr.bf16.gmra.mxu0 %v6979
        %v7171 = vpop.f32.mrf.mxu0
        %v7172 = vadd.f32 0.0, %v7171
        %v7173 = vpop.f32.mrf.mxu0
        %v7174 = vpop.f32.mrf.mxu0
        %v7175 = vadd.f32 0.0, %v7174
        %v7176 = vpop.f32.mrf.mxu0
        %7177 = vmatprep.mubr.bf16.mxu0 0
        %7178 = vmatmul.mubr.bf16.gmra.mxu0 %v6980
        %v7179 = vpop.f32.mrf.mxu0
        %v7180 = vadd.f32 0.0, %v7179
        %v7181 = vpop.f32.mrf.mxu0
        %v7182 = vpop.f32.mrf.mxu0
        %v7183 = vadd.f32 0.0, %v7182
        %v7184 = vpop.f32.mrf.mxu0
        %7185 = vmatprep.mubr.bf16.mxu0 0
        %7186 = vmatmul.mubr.bf16.gmra.mxu0 %v6981
        %v7187 = vpop.f32.mrf.mxu0
        %v7188 = vadd.f32 0.0, %v7187
        %v7189 = vpop.f32.mrf.mxu0
        %v7190 = vpop.f32.mrf.mxu0
        %v7191 = vadd.f32 0.0, %v7190
        %v7192 = vpop.f32.mrf.mxu0
        %7193 = vmatprep.mubr.bf16.mxu0 0
        %7194 = vmatmul.mubr.bf16.gmra.mxu0 %v6982
        %v7195 = vpop.f32.mrf.mxu0
        %v7196 = vadd.f32 0.0, %v7195
        %v7197 = vpop.f32.mrf.mxu0
        %v7198 = vpop.f32.mrf.mxu0
        %v7199 = vadd.f32 0.0, %v7198
        %v7200 = vpop.f32.mrf.mxu0
        %7201 = vmatprep.mubr.bf16.mxu0 0
        %7202 = vmatmul.mubr.bf16.gmra.mxu0 %v6983
        %v7203 = vpop.f32.mrf.mxu0
        %v7204 = vadd.f32 0.0, %v7203
        %v7205 = vpop.f32.mrf.mxu0
        %v7206 = vpop.f32.mrf.mxu0
        %v7207 = vadd.f32 0.0, %v7206
        %v7208 = vpop.f32.mrf.mxu0
        %7209 = vdwg.mxu0
        %v7210 = vadd.f32 %v6936, %v7084
        %v7211 = vadd.f32 %v6937, %v7087
        %v7212 = vadd.f32 %v6938, %v7092
        %v7213 = vadd.f32 %v6939, %v7095
        %v7214 = vadd.f32 %v6940, %v7100
        %v7215 = vadd.f32 %v6941, %v7103
        %v7216 = vadd.f32 %v6942, %v7108
        %v7217 = vadd.f32 %v6943, %v7111
        %v7218 = vadd.f32 %v6944, %v7116
        %v7219 = vadd.f32 %v6945, %v7119
        %v7220 = vadd.f32 %v6946, %v7124
        %v7221 = vadd.f32 %v6947, %v7127
        %v7222 = vadd.f32 %v6948, %v7132
        %v7223 = vadd.f32 %v6949, %v7135
        %v7224 = vadd.f32 %v6950, %v7140
        %v7225 = vadd.f32 %v6951, %v7143
        %v7226 = vadd.f32 %v6952, %v7148
        %v7227 = vadd.f32 %v6953, %v7151
        %v7228 = vadd.f32 %v6954, %v7156
        %v7229 = vadd.f32 %v6955, %v7159
        %v7230 = vadd.f32 %v6956, %v7164
        %v7231 = vadd.f32 %v6957, %v7167
        %v7232 = vadd.f32 %v6958, %v7172
        %v7233 = vadd.f32 %v6959, %v7175
        %v7234 = vadd.f32 %v6960, %v7180
        %v7235 = vadd.f32 %v6961, %v7183
        %v7236 = vadd.f32 %v6962, %v7188
        %v7237 = vadd.f32 %v6963, %v7191
        %v7238 = vadd.f32 %v6964, %v7196
        %v7239 = vadd.f32 %v6965, %v7199
        %v7240 = vadd.f32 %v6966, %v7204
        %v7241 = vadd.f32 %v6967, %v7207
        %7242 = vst [vmem:[#allocation4] sm:$0xff] %v7210
        %7243 = vst [vmem:[#allocation4 + $0x8] sm:$0xff] %v7211
        %7244 = vst [vmem:[#allocation4 + $0x10] sm:$0xff] %v7212
        %7245 = vst [vmem:[#allocation4 + $0x18] sm:$0xff] %v7213
        %7246 = vst [vmem:[#allocation4 + $0x20] sm:$0xff] %v7214
        %7247 = vst [vmem:[#allocation4 + $0x28] sm:$0xff] %v7215
        %7248 = vst [vmem:[#allocation4 + $0x30] sm:$0xff] %v7216
        %7249 = vst [vmem:[#allocation4 + $0x38] sm:$0xff] %v7217
        %7250 = vst [vmem:[#allocation4 + $0x40] sm:$0xff] %v7218
        %7251 = vst [vmem:[#allocation4 + $0x48] sm:$0xff] %v7219
        %7252 = vst [vmem:[#allocation4 + $0x50] sm:$0xff] %v7220
        %7253 = vst [vmem:[#allocation4 + $0x58] sm:$0xff] %v7221
        %7254 = vst [vmem:[#allocation4 + $0x60] sm:$0xff] %v7222
        %7255 = vst [vmem:[#allocation4 + $0x68] sm:$0xff] %v7223
        %7256 = vst [vmem:[#allocation4 + $0x70] sm:$0xff] %v7224
        %7257 = vst [vmem:[#allocation4 + $0x78] sm:$0xff] %v7225
        %7258 = vst [vmem:[#allocation4 + $0x80] sm:$0xff] %v7226
        %7259 = vst [vmem:[#allocation4 + $0x88] sm:$0xff] %v7227
        %7260 = vst [vmem:[#allocation4 + $0x90] sm:$0xff] %v7228
        %7261 = vst [vmem:[#allocation4 + $0x98] sm:$0xff] %v7229
        %7262 = vst [vmem:[#allocation4 + $0xa0] sm:$0xff] %v7230
        %7263 = vst [vmem:[#allocation4 + $0xa8] sm:$0xff] %v7231
        %7264 = vst [vmem:[#allocation4 + $0xb0] sm:$0xff] %v7232
        %7265 = vst [vmem:[#allocation4 + $0xb8] sm:$0xff] %v7233
        %7266 = vst [vmem:[#allocation4 + $0xc0] sm:$0xff] %v7234
        %7267 = vst [vmem:[#allocation4 + $0xc8] sm:$0xff] %v7235
        %7268 = vst [vmem:[#allocation4 + $0xd0] sm:$0xff] %v7236
        %7269 = vst [vmem:[#allocation4 + $0xd8] sm:$0xff] %v7237
        %7270 = vst [vmem:[#allocation4 + $0xe0] sm:$0xff] %v7238
        %7271 = vst [vmem:[#allocation4 + $0xe8] sm:$0xff] %v7239
        %7272 = vst [vmem:[#allocation4 + $0xf0] sm:$0xff] %v7240
        %7273 = vst [vmem:[#allocation4 + $0xf8] sm:$0xff] %v7241
        %v7274 = vld [vmem:[#allocation3 + $0x28] sm:$0xff]
        %v7275 = vld [vmem:[#allocation3 + $0x30] sm:$0xff]
        %v7276 = vld [vmem:[#allocation3 + $0x38] sm:$0xff]
        %v7277 = vld [vmem:[#allocation3 + $0x40] sm:$0xff]
        %v7278 = vld [vmem:[#allocation3 + $0x48] sm:$0xff]
        %v7279 = vld [vmem:[#allocation3 + $0x50] sm:$0xff]
        %v7280 = vld [vmem:[#allocation3 + $0x58] sm:$0xff]
        %v7281 = vld [vmem:[#allocation3 + $0x60] sm:$0xff]
        %v7282 = vld [vmem:[#allocation3 + $0x68] sm:$0xff]
        %v7283 = vld [vmem:[#allocation3 + $0x70] sm:$0xff]
        %v7284 = vld [vmem:[#allocation3 + $0x78] sm:$0xff]
        %v7285 = vld [vmem:[#allocation3 + $0x80] sm:$0xff]
        %v7286 = vld [vmem:[#allocation3 + $0x88] sm:$0xff]
        %v7287 = vld [vmem:[#allocation3 + $0x90] sm:$0xff]
        %v7288 = vld [vmem:[#allocation3 + $0x98] sm:$0xff]
        %v7289 = vld [vmem:[#allocation3 + $0xa0] sm:$0xff]
        %v7290 = vld [vmem:[#allocation3 + $0xa8] sm:$0xff]
        %v7291 = vld [vmem:[#allocation3 + $0xb0] sm:$0xff]
        %v7292 = vld [vmem:[#allocation3 + $0xb8] sm:$0xff]
        %v7293 = vld [vmem:[#allocation3 + $0xc0] sm:$0xff]
        %v7294 = vld [vmem:[#allocation3 + $0xc8] sm:$0xff]
        %v7295 = vld [vmem:[#allocation3 + $0xd0] sm:$0xff]
        %v7296 = vld [vmem:[#allocation3 + $0xd8] sm:$0xff]
        %v7297 = vld [vmem:[#allocation3 + $0xe0] sm:$0xff]
        %v7298 = vld [vmem:[#allocation3 + $0xe8] sm:$0xff]
        %v7299 = vld [vmem:[#allocation3 + $0xf0] sm:$0xff]
        %v7300 = vld [vmem:[#allocation3 + $0xf8] sm:$0xff]
        %v7301 = vld [vmem:[#allocation3 + $0x100] sm:$0xff]
        %v7302 = vld [vmem:[#allocation3 + $0x108] sm:$0xff]
        %v7303 = vld [vmem:[#allocation3 + $0x110] sm:$0xff]
        %v7304 = vld [vmem:[#allocation3 + $0x118] sm:$0xff]
        %v7305 = vld [vmem:[#allocation3 + $0x120] sm:$0xff]
        %v7306 = vld [vmem:[#allocation4] sm:$0xff]
        %v7307 = vld [vmem:[#allocation4 + $0x8] sm:$0xff]
        %v7308 = vld [vmem:[#allocation4 + $0x10] sm:$0xff]
        %v7309 = vld [vmem:[#allocation4 + $0x18] sm:$0xff]
        %v7310 = vld [vmem:[#allocation4 + $0x20] sm:$0xff]
        %v7311 = vld [vmem:[#allocation4 + $0x28] sm:$0xff]
        %v7312 = vld [vmem:[#allocation4 + $0x30] sm:$0xff]
        %v7313 = vld [vmem:[#allocation4 + $0x38] sm:$0xff]
        %v7314 = vld [vmem:[#allocation4 + $0x40] sm:$0xff]
        %v7315 = vld [vmem:[#allocation4 + $0x48] sm:$0xff]
        %v7316 = vld [vmem:[#allocation4 + $0x50] sm:$0xff]
        %v7317 = vld [vmem:[#allocation4 + $0x58] sm:$0xff]
        %v7318 = vld [vmem:[#allocation4 + $0x60] sm:$0xff]
        %v7319 = vld [vmem:[#allocation4 + $0x68] sm:$0xff]
        %v7320 = vld [vmem:[#allocation4 + $0x70] sm:$0xff]
        %v7321 = vld [vmem:[#allocation4 + $0x78] sm:$0xff]
        %v7322 = vld [vmem:[#allocation4 + $0x80] sm:$0xff]
        %v7323 = vld [vmem:[#allocation4 + $0x88] sm:$0xff]
        %v7324 = vld [vmem:[#allocation4 + $0x90] sm:$0xff]
        %v7325 = vld [vmem:[#allocation4 + $0x98] sm:$0xff]
        %v7326 = vld [vmem:[#allocation4 + $0xa0] sm:$0xff]
        %v7327 = vld [vmem:[#allocation4 + $0xa8] sm:$0xff]
        %v7328 = vld [vmem:[#allocation4 + $0xb0] sm:$0xff]
        %v7329 = vld [vmem:[#allocation4 + $0xb8] sm:$0xff]
        %v7330 = vld [vmem:[#allocation4 + $0xc0] sm:$0xff]
        %v7331 = vld [vmem:[#allocation4 + $0xc8] sm:$0xff]
        %v7332 = vld [vmem:[#allocation4 + $0xd0] sm:$0xff]
        %v7333 = vld [vmem:[#allocation4 + $0xd8] sm:$0xff]
        %v7334 = vld [vmem:[#allocation4 + $0xe0] sm:$0xff]
        %v7335 = vld [vmem:[#allocation4 + $0xe8] sm:$0xff]
        %v7336 = vld [vmem:[#allocation4 + $0xf0] sm:$0xff]
        %v7337 = vld [vmem:[#allocation4 + $0xf8] sm:$0xff]
        %v7338 = vpack.c.bf16 %v7275, %v7274
        %v7339 = vpack.c.bf16 %v7277, %v7276
        %v7340 = vpack.c.bf16 %v7279, %v7278
        %v7341 = vpack.c.bf16 %v7281, %v7280
        %v7342 = vpack.c.bf16 %v7283, %v7282
        %v7343 = vpack.c.bf16 %v7285, %v7284
        %v7344 = vpack.c.bf16 %v7287, %v7286
        %v7345 = vpack.c.bf16 %v7289, %v7288
        %v7346 = vpack.c.bf16 %v7291, %v7290
        %v7347 = vpack.c.bf16 %v7293, %v7292
        %v7348 = vpack.c.bf16 %v7295, %v7294
        %v7349 = vpack.c.bf16 %v7297, %v7296
        %v7350 = vpack.c.bf16 %v7299, %v7298
        %v7351 = vpack.c.bf16 %v7301, %v7300
        %v7352 = vpack.c.bf16 %v7303, %v7302
        %v7353 = vpack.c.bf16 %v7305, %v7304
        %s7354 = scalar_lea.vmem [#allocation10], 448
        %v7355 = vld [vmem:[%s7354] sm:$0xf]
        %v7356 = vld [vmem:[%s7354 + $0x4] sm:$0xf]
        %v7357 = vld [vmem:[%s7354 + $0x8] sm:$0xf]
        %v7358 = vld [vmem:[%s7354 + $0xc] sm:$0xf]
        %v7359 = vld [vmem:[%s7354 + $0x10] sm:$0xf]
        %v7360 = vld [vmem:[%s7354 + $0x14] sm:$0xf]
        %v7361 = vld [vmem:[%s7354 + $0x18] sm:$0xf]
        %v7362 = vld [vmem:[%s7354 + $0x1c] sm:$0xf]
        %v7363 = vld [vmem:[%s7354 + $0x20] sm:$0xf]
        %v7364 = vld [vmem:[%s7354 + $0x24] sm:$0xf]
        %v7365 = vld [vmem:[%s7354 + $0x28] sm:$0xf]
        %v7366 = vld [vmem:[%s7354 + $0x2c] sm:$0xf]
        %v7367 = vld [vmem:[%s7354 + $0x30] sm:$0xf]
        %v7368 = vld [vmem:[%s7354 + $0x34] sm:$0xf]
        %v7369 = vld [vmem:[%s7354 + $0x38] sm:$0xf]
        %v7370 = vld [vmem:[%s7354 + $0x3c] sm:$0xf]
        %v7387 = vunpack.c.l.b16 %v7355
        %v7388 = vunpack.c.l.b16 %v7356
        %v7389 = vunpack.c.l.b16 %v7357
        %v7390 = vunpack.c.l.b16 %v7358
        %v7391 = vunpack.c.l.b16 %v7359
        %v7392 = vunpack.c.l.b16 %v7360
        %v7393 = vunpack.c.l.b16 %v7361
        %v7394 = vunpack.c.l.b16 %v7362
        %v7395 = vunpack.c.l.b16 %v7363
        %v7396 = vunpack.c.l.b16 %v7364
        %v7397 = vunpack.c.l.b16 %v7365
        %v7398 = vunpack.c.l.b16 %v7366
        %v7399 = vunpack.c.l.b16 %v7367
        %v7400 = vunpack.c.l.b16 %v7368
        %v7401 = vunpack.c.l.b16 %v7369
        %v7402 = vunpack.c.l.b16 %v7370
        %v7403 = vpack.c.b16 %v7388, %v7387
        %v7404 = vpack.c.b16 %v7390, %v7389
        %v7405 = vpack.c.b16 %v7392, %v7391
        %v7406 = vpack.c.b16 %v7394, %v7393
        %v7407 = vpack.c.b16 %v7396, %v7395
        %v7408 = vpack.c.b16 %v7398, %v7397
        %v7409 = vpack.c.b16 %v7400, %v7399
        %v7410 = vpack.c.b16 %v7402, %v7401
        %7419 = vmatprep.subr.bf16.mxu0 0
        %7420 = vmatpush1.bf16.msra.mxu0 %v7410
        %7421 = vmatprep.subr.bf16.mxu0 0
        %7422 = vmatpush1.bf16.msra.mxu0 %v7409
        %7423 = vmatprep.subr.bf16.mxu0 0
        %7424 = vmatpush1.bf16.msra.mxu0 %v7408
        %7425 = vmatprep.subr.bf16.mxu0 0
        %7426 = vmatpush1.bf16.msra.mxu0 %v7407
        %7427 = vmatprep.subr.bf16.mxu0 0
        %7428 = vmatpush1.bf16.msra.mxu0 %v7406
        %7429 = vmatprep.subr.bf16.mxu0 0
        %7430 = vmatpush1.bf16.msra.mxu0 %v7405
        %7431 = vmatprep.subr.bf16.mxu0 0
        %7432 = vmatpush1.bf16.msra.mxu0 %v7404
        %7433 = vmatprep.subr.bf16.mxu0 0
        %7434 = vmatpush1.bf16.msra.mxu0 %v7403
        %7435 = vmatprep.subr.bf16.mxu0 0
        %7436 = vmatpush2.bf16.msra.mxu0 0
        %7437 = vmatprep.subr.bf16.mxu0 0
        %7438 = vmatpush2.bf16.msra.mxu0 0
        %7439 = vmatprep.subr.bf16.mxu0 0
        %7440 = vmatpush2.bf16.msra.mxu0 0
        %7441 = vmatprep.subr.bf16.mxu0 0
        %7442 = vmatpush2.bf16.msra.mxu0 0
        %7443 = vmatprep.subr.bf16.mxu0 0
        %7444 = vmatpush2.bf16.msra.mxu0 0
        %7445 = vmatprep.subr.bf16.mxu0 0
        %7446 = vmatpush2.bf16.msra.mxu0 0
        %7447 = vmatprep.subr.bf16.mxu0 0
        %7448 = vmatpush2.bf16.msra.mxu0 0
        %7449 = vmatprep.subr.bf16.mxu0 0
        %7450 = vmatpush2.bf16.msra.mxu0 0
        %7451 = vmatprep.mubr.bf16.mxu0 0
        %7452 = vmatmul.mubr.bf16.gmra.mxu0 %v7338
        %v7453 = vpop.f32.mrf.mxu0
        %v7454 = vadd.f32 0.0, %v7453
        %v7455 = vpop.f32.mrf.mxu0
        %v7456 = vpop.f32.mrf.mxu0
        %v7457 = vadd.f32 0.0, %v7456
        %v7458 = vpop.f32.mrf.mxu0
        %7459 = vmatprep.mubr.bf16.mxu0 0
        %7460 = vmatmul.mubr.bf16.gmra.mxu0 %v7339
        %v7461 = vpop.f32.mrf.mxu0
        %v7462 = vadd.f32 0.0, %v7461
        %v7463 = vpop.f32.mrf.mxu0
        %v7464 = vpop.f32.mrf.mxu0
        %v7465 = vadd.f32 0.0, %v7464
        %v7466 = vpop.f32.mrf.mxu0
        %7467 = vmatprep.mubr.bf16.mxu0 0
        %7468 = vmatmul.mubr.bf16.gmra.mxu0 %v7340
        %v7469 = vpop.f32.mrf.mxu0
        %v7470 = vadd.f32 0.0, %v7469
        %v7471 = vpop.f32.mrf.mxu0
        %v7472 = vpop.f32.mrf.mxu0
        %v7473 = vadd.f32 0.0, %v7472
        %v7474 = vpop.f32.mrf.mxu0
        %7475 = vmatprep.mubr.bf16.mxu0 0
        %7476 = vmatmul.mubr.bf16.gmra.mxu0 %v7341
        %v7477 = vpop.f32.mrf.mxu0
        %v7478 = vadd.f32 0.0, %v7477
        %v7479 = vpop.f32.mrf.mxu0
        %v7480 = vpop.f32.mrf.mxu0
        %v7481 = vadd.f32 0.0, %v7480
        %v7482 = vpop.f32.mrf.mxu0
        %7483 = vmatprep.mubr.bf16.mxu0 0
        %7484 = vmatmul.mubr.bf16.gmra.mxu0 %v7342
        %v7485 = vpop.f32.mrf.mxu0
        %v7486 = vadd.f32 0.0, %v7485
        %v7487 = vpop.f32.mrf.mxu0
        %v7488 = vpop.f32.mrf.mxu0
        %v7489 = vadd.f32 0.0, %v7488
        %v7490 = vpop.f32.mrf.mxu0
        %7491 = vmatprep.mubr.bf16.mxu0 0
        %7492 = vmatmul.mubr.bf16.gmra.mxu0 %v7343
        %v7493 = vpop.f32.mrf.mxu0
        %v7494 = vadd.f32 0.0, %v7493
        %v7495 = vpop.f32.mrf.mxu0
        %v7496 = vpop.f32.mrf.mxu0
        %v7497 = vadd.f32 0.0, %v7496
        %v7498 = vpop.f32.mrf.mxu0
        %7499 = vmatprep.mubr.bf16.mxu0 0
        %7500 = vmatmul.mubr.bf16.gmra.mxu0 %v7344
        %v7501 = vpop.f32.mrf.mxu0
        %v7502 = vadd.f32 0.0, %v7501
        %v7503 = vpop.f32.mrf.mxu0
        %v7504 = vpop.f32.mrf.mxu0
        %v7505 = vadd.f32 0.0, %v7504
        %v7506 = vpop.f32.mrf.mxu0
        %7507 = vmatprep.mubr.bf16.mxu0 0
        %7508 = vmatmul.mubr.bf16.gmra.mxu0 %v7345
        %v7509 = vpop.f32.mrf.mxu0
        %v7510 = vadd.f32 0.0, %v7509
        %v7511 = vpop.f32.mrf.mxu0
        %v7512 = vpop.f32.mrf.mxu0
        %v7513 = vadd.f32 0.0, %v7512
        %v7514 = vpop.f32.mrf.mxu0
        %7515 = vmatprep.mubr.bf16.mxu0 0
        %7516 = vmatmul.mubr.bf16.gmra.mxu0 %v7346
        %v7517 = vpop.f32.mrf.mxu0
        %v7518 = vadd.f32 0.0, %v7517
        %v7519 = vpop.f32.mrf.mxu0
        %v7520 = vpop.f32.mrf.mxu0
        %v7521 = vadd.f32 0.0, %v7520
        %v7522 = vpop.f32.mrf.mxu0
        %7523 = vmatprep.mubr.bf16.mxu0 0
        %7524 = vmatmul.mubr.bf16.gmra.mxu0 %v7347
        %v7525 = vpop.f32.mrf.mxu0
        %v7526 = vadd.f32 0.0, %v7525
        %v7527 = vpop.f32.mrf.mxu0
        %v7528 = vpop.f32.mrf.mxu0
        %v7529 = vadd.f32 0.0, %v7528
        %v7530 = vpop.f32.mrf.mxu0
        %7531 = vmatprep.mubr.bf16.mxu0 0
        %7532 = vmatmul.mubr.bf16.gmra.mxu0 %v7348
        %v7533 = vpop.f32.mrf.mxu0
        %v7534 = vadd.f32 0.0, %v7533
        %v7535 = vpop.f32.mrf.mxu0
        %v7536 = vpop.f32.mrf.mxu0
        %v7537 = vadd.f32 0.0, %v7536
        %v7538 = vpop.f32.mrf.mxu0
        %7539 = vmatprep.mubr.bf16.mxu0 0
        %7540 = vmatmul.mubr.bf16.gmra.mxu0 %v7349
        %v7541 = vpop.f32.mrf.mxu0
        %v7542 = vadd.f32 0.0, %v7541
        %v7543 = vpop.f32.mrf.mxu0
        %v7544 = vpop.f32.mrf.mxu0
        %v7545 = vadd.f32 0.0, %v7544
        %v7546 = vpop.f32.mrf.mxu0
        %7547 = vmatprep.mubr.bf16.mxu0 0
        %7548 = vmatmul.mubr.bf16.gmra.mxu0 %v7350
        %v7549 = vpop.f32.mrf.mxu0
        %v7550 = vadd.f32 0.0, %v7549
        %v7551 = vpop.f32.mrf.mxu0
        %v7552 = vpop.f32.mrf.mxu0
        %v7553 = vadd.f32 0.0, %v7552
        %v7554 = vpop.f32.mrf.mxu0
        %7555 = vmatprep.mubr.bf16.mxu0 0
        %7556 = vmatmul.mubr.bf16.gmra.mxu0 %v7351
        %v7557 = vpop.f32.mrf.mxu0
        %v7558 = vadd.f32 0.0, %v7557
        %v7559 = vpop.f32.mrf.mxu0
        %v7560 = vpop.f32.mrf.mxu0
        %v7561 = vadd.f32 0.0, %v7560
        %v7562 = vpop.f32.mrf.mxu0
        %7563 = vmatprep.mubr.bf16.mxu0 0
        %7564 = vmatmul.mubr.bf16.gmra.mxu0 %v7352
        %v7565 = vpop.f32.mrf.mxu0
        %v7566 = vadd.f32 0.0, %v7565
        %v7567 = vpop.f32.mrf.mxu0
        %v7568 = vpop.f32.mrf.mxu0
        %v7569 = vadd.f32 0.0, %v7568
        %v7570 = vpop.f32.mrf.mxu0
        %7571 = vmatprep.mubr.bf16.mxu0 0
        %7572 = vmatmul.mubr.bf16.gmra.mxu0 %v7353
        %v7573 = vpop.f32.mrf.mxu0
        %v7574 = vadd.f32 0.0, %v7573
        %v7575 = vpop.f32.mrf.mxu0
        %v7576 = vpop.f32.mrf.mxu0
        %v7577 = vadd.f32 0.0, %v7576
        %v7578 = vpop.f32.mrf.mxu0
        %7579 = vdwg.mxu0
        %v7580 = vadd.f32 %v7306, %v7454
        %v7581 = vadd.f32 %v7307, %v7457
        %v7582 = vadd.f32 %v7308, %v7462
        %v7583 = vadd.f32 %v7309, %v7465
        %v7584 = vadd.f32 %v7310, %v7470
        %v7585 = vadd.f32 %v7311, %v7473
        %v7586 = vadd.f32 %v7312, %v7478
        %v7587 = vadd.f32 %v7313, %v7481
        %v7588 = vadd.f32 %v7314, %v7486
        %v7589 = vadd.f32 %v7315, %v7489
        %v7590 = vadd.f32 %v7316, %v7494
        %v7591 = vadd.f32 %v7317, %v7497
        %v7592 = vadd.f32 %v7318, %v7502
        %v7593 = vadd.f32 %v7319, %v7505
        %v7594 = vadd.f32 %v7320, %v7510
        %v7595 = vadd.f32 %v7321, %v7513
        %v7596 = vadd.f32 %v7322, %v7518
        %v7597 = vadd.f32 %v7323, %v7521
        %v7598 = vadd.f32 %v7324, %v7526
        %v7599 = vadd.f32 %v7325, %v7529
        %v7600 = vadd.f32 %v7326, %v7534
        %v7601 = vadd.f32 %v7327, %v7537
        %v7602 = vadd.f32 %v7328, %v7542
        %v7603 = vadd.f32 %v7329, %v7545
        %v7604 = vadd.f32 %v7330, %v7550
        %v7605 = vadd.f32 %v7331, %v7553
        %v7606 = vadd.f32 %v7332, %v7558
        %v7607 = vadd.f32 %v7333, %v7561
        %v7608 = vadd.f32 %v7334, %v7566
        %v7609 = vadd.f32 %v7335, %v7569
        %v7610 = vadd.f32 %v7336, %v7574
        %v7611 = vadd.f32 %v7337, %v7577
        %7612 = vst [vmem:[#allocation4] sm:$0xff] %v7580
        %7613 = vst [vmem:[#allocation4 + $0x8] sm:$0xff] %v7581
        %7614 = vst [vmem:[#allocation4 + $0x10] sm:$0xff] %v7582
        %7615 = vst [vmem:[#allocation4 + $0x18] sm:$0xff] %v7583
        %7616 = vst [vmem:[#allocation4 + $0x20] sm:$0xff] %v7584
        %7617 = vst [vmem:[#allocation4 + $0x28] sm:$0xff] %v7585
        %7618 = vst [vmem:[#allocation4 + $0x30] sm:$0xff] %v7586
        %7619 = vst [vmem:[#allocation4 + $0x38] sm:$0xff] %v7587
        %7620 = vst [vmem:[#allocation4 + $0x40] sm:$0xff] %v7588
        %7621 = vst [vmem:[#allocation4 + $0x48] sm:$0xff] %v7589
        %7622 = vst [vmem:[#allocation4 + $0x50] sm:$0xff] %v7590
        %7623 = vst [vmem:[#allocation4 + $0x58] sm:$0xff] %v7591
        %7624 = vst [vmem:[#allocation4 + $0x60] sm:$0xff] %v7592
        %7625 = vst [vmem:[#allocation4 + $0x68] sm:$0xff] %v7593
        %7626 = vst [vmem:[#allocation4 + $0x70] sm:$0xff] %v7594
        %7627 = vst [vmem:[#allocation4 + $0x78] sm:$0xff] %v7595
        %7628 = vst [vmem:[#allocation4 + $0x80] sm:$0xff] %v7596
        %7629 = vst [vmem:[#allocation4 + $0x88] sm:$0xff] %v7597
        %7630 = vst [vmem:[#allocation4 + $0x90] sm:$0xff] %v7598
        %7631 = vst [vmem:[#allocation4 + $0x98] sm:$0xff] %v7599
        %7632 = vst [vmem:[#allocation4 + $0xa0] sm:$0xff] %v7600
        %7633 = vst [vmem:[#allocation4 + $0xa8] sm:$0xff] %v7601
        %7634 = vst [vmem:[#allocation4 + $0xb0] sm:$0xff] %v7602
        %7635 = vst [vmem:[#allocation4 + $0xb8] sm:$0xff] %v7603
        %7636 = vst [vmem:[#allocation4 + $0xc0] sm:$0xff] %v7604
        %7637 = vst [vmem:[#allocation4 + $0xc8] sm:$0xff] %v7605
        %7638 = vst [vmem:[#allocation4 + $0xd0] sm:$0xff] %v7606
        %7639 = vst [vmem:[#allocation4 + $0xd8] sm:$0xff] %v7607
        %7640 = vst [vmem:[#allocation4 + $0xe0] sm:$0xff] %v7608
        %7641 = vst [vmem:[#allocation4 + $0xe8] sm:$0xff] %v7609
        %7642 = vst [vmem:[#allocation4 + $0xf0] sm:$0xff] %v7610
        %7643 = vst [vmem:[#allocation4 + $0xf8] sm:$0xff] %v7611
        %v7644 = vld [vmem:[#allocation3 + $0x29] sm:$0xff]
        %v7645 = vld [vmem:[#allocation3 + $0x31] sm:$0xff]
        %v7646 = vld [vmem:[#allocation3 + $0x39] sm:$0xff]
        %v7647 = vld [vmem:[#allocation3 + $0x41] sm:$0xff]
        %v7648 = vld [vmem:[#allocation3 + $0x49] sm:$0xff]
        %v7649 = vld [vmem:[#allocation3 + $0x51] sm:$0xff]
        %v7650 = vld [vmem:[#allocation3 + $0x59] sm:$0xff]
        %v7651 = vld [vmem:[#allocation3 + $0x61] sm:$0xff]
        %v7652 = vld [vmem:[#allocation3 + $0x69] sm:$0xff]
        %v7653 = vld [vmem:[#allocation3 + $0x71] sm:$0xff]
        %v7654 = vld [vmem:[#allocation3 + $0x79] sm:$0xff]
        %v7655 = vld [vmem:[#allocation3 + $0x81] sm:$0xff]
        %v7656 = vld [vmem:[#allocation3 + $0x89] sm:$0xff]
        %v7657 = vld [vmem:[#allocation3 + $0x91] sm:$0xff]
        %v7658 = vld [vmem:[#allocation3 + $0x99] sm:$0xff]
        %v7659 = vld [vmem:[#allocation3 + $0xa1] sm:$0xff]
        %v7660 = vld [vmem:[#allocation3 + $0xa9] sm:$0xff]
        %v7661 = vld [vmem:[#allocation3 + $0xb1] sm:$0xff]
        %v7662 = vld [vmem:[#allocation3 + $0xb9] sm:$0xff]
        %v7663 = vld [vmem:[#allocation3 + $0xc1] sm:$0xff]
        %v7664 = vld [vmem:[#allocation3 + $0xc9] sm:$0xff]
        %v7665 = vld [vmem:[#allocation3 + $0xd1] sm:$0xff]
        %v7666 = vld [vmem:[#allocation3 + $0xd9] sm:$0xff]
        %v7667 = vld [vmem:[#allocation3 + $0xe1] sm:$0xff]
        %v7668 = vld [vmem:[#allocation3 + $0xe9] sm:$0xff]
        %v7669 = vld [vmem:[#allocation3 + $0xf1] sm:$0xff]
        %v7670 = vld [vmem:[#allocation3 + $0xf9] sm:$0xff]
        %v7671 = vld [vmem:[#allocation3 + $0x101] sm:$0xff]
        %v7672 = vld [vmem:[#allocation3 + $0x109] sm:$0xff]
        %v7673 = vld [vmem:[#allocation3 + $0x111] sm:$0xff]
        %v7674 = vld [vmem:[#allocation3 + $0x119] sm:$0xff]
        %v7675 = vld [vmem:[#allocation3 + $0x121] sm:$0xff]
        %v7676 = vsel %vm1640, %v7644, 0.0
        %v7677 = vsel %vm1641, %v7645, 0.0
        %v7678 = vsel %vm1642, %v7646, 0.0
        %v7679 = vsel %vm1643, %v7647, 0.0
        %v7680 = vsel %vm1644, %v7648, 0.0
        %v7681 = vsel %vm1645, %v7649, 0.0
        %v7682 = vsel %vm1646, %v7650, 0.0
        %v7683 = vsel %vm1647, %v7651, 0.0
        %v7684 = vsel %vm1648, %v7652, 0.0
        %v7685 = vsel %vm1649, %v7653, 0.0
        %v7686 = vsel %vm1650, %v7654, 0.0
        %v7687 = vsel %vm1651, %v7655, 0.0
        %v7688 = vsel %vm1652, %v7656, 0.0
        %v7689 = vsel %vm1653, %v7657, 0.0
        %v7690 = vsel %vm1654, %v7658, 0.0
        %v7691 = vsel %vm1655, %v7659, 0.0
        %v7692 = vsel %vm1656, %v7660, 0.0
        %v7693 = vsel %vm1657, %v7661, 0.0
        %v7694 = vsel %vm1658, %v7662, 0.0
        %v7695 = vsel %vm1659, %v7663, 0.0
        %v7696 = vsel %vm1660, %v7664, 0.0
        %v7697 = vsel %vm1661, %v7665, 0.0
        %v7698 = vsel %vm1662, %v7666, 0.0
        %v7699 = vsel %vm1663, %v7667, 0.0
        %v7700 = vsel %vm1664, %v7668, 0.0
        %v7701 = vsel %vm1665, %v7669, 0.0
        %v7702 = vsel %vm1666, %v7670, 0.0
        %v7703 = vsel %vm1667, %v7671, 0.0
        %v7704 = vsel %vm1668, %v7672, 0.0
        %v7705 = vsel %vm1669, %v7673, 0.0
        %v7706 = vsel %vm1670, %v7674, 0.0
        %v7707 = vsel %vm1671, %v7675, 0.0
        %v7708 = vld [vmem:[#allocation4] sm:$0xff]
        %v7709 = vld [vmem:[#allocation4 + $0x8] sm:$0xff]
        %v7710 = vld [vmem:[#allocation4 + $0x10] sm:$0xff]
        %v7711 = vld [vmem:[#allocation4 + $0x18] sm:$0xff]
        %v7712 = vld [vmem:[#allocation4 + $0x20] sm:$0xff]
        %v7713 = vld [vmem:[#allocation4 + $0x28] sm:$0xff]
        %v7714 = vld [vmem:[#allocation4 + $0x30] sm:$0xff]
        %v7715 = vld [vmem:[#allocation4 + $0x38] sm:$0xff]
        %v7716 = vld [vmem:[#allocation4 + $0x40] sm:$0xff]
        %v7717 = vld [vmem:[#allocation4 + $0x48] sm:$0xff]
        %v7718 = vld [vmem:[#allocation4 + $0x50] sm:$0xff]
        %v7719 = vld [vmem:[#allocation4 + $0x58] sm:$0xff]
        %v7720 = vld [vmem:[#allocation4 + $0x60] sm:$0xff]
        %v7721 = vld [vmem:[#allocation4 + $0x68] sm:$0xff]
        %v7722 = vld [vmem:[#allocation4 + $0x70] sm:$0xff]
        %v7723 = vld [vmem:[#allocation4 + $0x78] sm:$0xff]
        %v7724 = vld [vmem:[#allocation4 + $0x80] sm:$0xff]
        %v7725 = vld [vmem:[#allocation4 + $0x88] sm:$0xff]
        %v7726 = vld [vmem:[#allocation4 + $0x90] sm:$0xff]
        %v7727 = vld [vmem:[#allocation4 + $0x98] sm:$0xff]
        %v7728 = vld [vmem:[#allocation4 + $0xa0] sm:$0xff]
        %v7729 = vld [vmem:[#allocation4 + $0xa8] sm:$0xff]
        %v7730 = vld [vmem:[#allocation4 + $0xb0] sm:$0xff]
        %v7731 = vld [vmem:[#allocation4 + $0xb8] sm:$0xff]
        %v7732 = vld [vmem:[#allocation4 + $0xc0] sm:$0xff]
        %v7733 = vld [vmem:[#allocation4 + $0xc8] sm:$0xff]
        %v7734 = vld [vmem:[#allocation4 + $0xd0] sm:$0xff]
        %v7735 = vld [vmem:[#allocation4 + $0xd8] sm:$0xff]
        %v7736 = vld [vmem:[#allocation4 + $0xe0] sm:$0xff]
        %v7737 = vld [vmem:[#allocation4 + $0xe8] sm:$0xff]
        %v7738 = vld [vmem:[#allocation4 + $0xf0] sm:$0xff]
        %v7739 = vld [vmem:[#allocation4 + $0xf8] sm:$0xff]
        %v7740 = vpack.c.bf16 %v7677, %v7676
        %v7741 = vpack.c.bf16 %v7679, %v7678
        %v7742 = vpack.c.bf16 %v7681, %v7680
        %v7743 = vpack.c.bf16 %v7683, %v7682
        %v7744 = vpack.c.bf16 %v7685, %v7684
        %v7745 = vpack.c.bf16 %v7687, %v7686
        %v7746 = vpack.c.bf16 %v7689, %v7688
        %v7747 = vpack.c.bf16 %v7691, %v7690
        %v7748 = vpack.c.bf16 %v7693, %v7692
        %v7749 = vpack.c.bf16 %v7695, %v7694
        %v7750 = vpack.c.bf16 %v7697, %v7696
        %v7751 = vpack.c.bf16 %v7699, %v7698
        %v7752 = vpack.c.bf16 %v7701, %v7700
        %v7753 = vpack.c.bf16 %v7703, %v7702
        %v7754 = vpack.c.bf16 %v7705, %v7704
        %v7755 = vpack.c.bf16 %v7707, %v7706
        %s7756 = scalar_lea.vmem [#allocation10], 512
        %v7757 = vld [vmem:[%s7756] sm:$0xf]
        %v7758 = vld [vmem:[%s7756 + $0x4] sm:$0xf]
        %v7759 = vld [vmem:[%s7756 + $0x8] sm:$0xf]
        %v7760 = vld [vmem:[%s7756 + $0xc] sm:$0xf]
        %v7761 = vld [vmem:[%s7756 + $0x10] sm:$0xf]
        %v7762 = vld [vmem:[%s7756 + $0x14] sm:$0xf]
        %v7763 = vld [vmem:[%s7756 + $0x18] sm:$0xf]
        %v7764 = vld [vmem:[%s7756 + $0x1c] sm:$0xf]
        %v7765 = vld [vmem:[%s7756 + $0x20] sm:$0xf]
        %v7766 = vld [vmem:[%s7756 + $0x24] sm:$0xf]
        %v7767 = vld [vmem:[%s7756 + $0x28] sm:$0xf]
        %v7768 = vld [vmem:[%s7756 + $0x2c] sm:$0xf]
        %v7769 = vld [vmem:[%s7756 + $0x30] sm:$0xf]
        %v7770 = vld [vmem:[%s7756 + $0x34] sm:$0xf]
        %v7771 = vld [vmem:[%s7756 + $0x38] sm:$0xf]
        %v7772 = vld [vmem:[%s7756 + $0x3c] sm:$0xf]
        %v7789 = vunpack.c.l.b16 %v7757
        %v7790 = vunpack.c.l.b16 %v7758
        %v7791 = vunpack.c.l.b16 %v7759
        %v7792 = vunpack.c.l.b16 %v7760
        %v7793 = vunpack.c.l.b16 %v7761
        %v7794 = vunpack.c.l.b16 %v7762
        %v7795 = vunpack.c.l.b16 %v7763
        %v7796 = vunpack.c.l.b16 %v7764
        %v7797 = vunpack.c.l.b16 %v7765
        %v7798 = vunpack.c.l.b16 %v7766
        %v7799 = vunpack.c.l.b16 %v7767
        %v7800 = vunpack.c.l.b16 %v7768
        %v7801 = vunpack.c.l.b16 %v7769
        %v7802 = vunpack.c.l.b16 %v7770
        %v7803 = vunpack.c.l.b16 %v7771
        %v7804 = vunpack.c.l.b16 %v7772
        %v7805 = vpack.c.b16 %v7790, %v7789
        %v7806 = vpack.c.b16 %v7792, %v7791
        %v7807 = vpack.c.b16 %v7794, %v7793
        %v7808 = vpack.c.b16 %v7796, %v7795
        %v7809 = vpack.c.b16 %v7798, %v7797
        %v7810 = vpack.c.b16 %v7800, %v7799
        %v7811 = vpack.c.b16 %v7802, %v7801
        %v7812 = vpack.c.b16 %v7804, %v7803
        %7821 = vmatprep.subr.bf16.mxu0 0
        %7822 = vmatpush1.bf16.msra.mxu0 %v7812
        %7823 = vmatprep.subr.bf16.mxu0 0
        %7824 = vmatpush1.bf16.msra.mxu0 %v7811
        %7825 = vmatprep.subr.bf16.mxu0 0
        %7826 = vmatpush1.bf16.msra.mxu0 %v7810
        %7827 = vmatprep.subr.bf16.mxu0 0
        %7828 = vmatpush1.bf16.msra.mxu0 %v7809
        %7829 = vmatprep.subr.bf16.mxu0 0
        %7830 = vmatpush1.bf16.msra.mxu0 %v7808
        %7831 = vmatprep.subr.bf16.mxu0 0
        %7832 = vmatpush1.bf16.msra.mxu0 %v7807
        %7833 = vmatprep.subr.bf16.mxu0 0
        %7834 = vmatpush1.bf16.msra.mxu0 %v7806
        %7835 = vmatprep.subr.bf16.mxu0 0
        %7836 = vmatpush1.bf16.msra.mxu0 %v7805
        %7837 = vmatprep.subr.bf16.mxu0 0
        %7838 = vmatpush2.bf16.msra.mxu0 0
        %7839 = vmatprep.subr.bf16.mxu0 0
        %7840 = vmatpush2.bf16.msra.mxu0 0
        %7841 = vmatprep.subr.bf16.mxu0 0
        %7842 = vmatpush2.bf16.msra.mxu0 0
        %7843 = vmatprep.subr.bf16.mxu0 0
        %7844 = vmatpush2.bf16.msra.mxu0 0
        %7845 = vmatprep.subr.bf16.mxu0 0
        %7846 = vmatpush2.bf16.msra.mxu0 0
        %7847 = vmatprep.subr.bf16.mxu0 0
        %7848 = vmatpush2.bf16.msra.mxu0 0
        %7849 = vmatprep.subr.bf16.mxu0 0
        %7850 = vmatpush2.bf16.msra.mxu0 0
        %7851 = vmatprep.subr.bf16.mxu0 0
        %7852 = vmatpush2.bf16.msra.mxu0 0
        %7853 = vmatprep.mubr.bf16.mxu0 0
        %7854 = vmatmul.mubr.bf16.gmra.mxu0 %v7740
        %v7855 = vpop.f32.mrf.mxu0
        %v7856 = vadd.f32 0.0, %v7855
        %v7857 = vpop.f32.mrf.mxu0
        %v7858 = vpop.f32.mrf.mxu0
        %v7859 = vadd.f32 0.0, %v7858
        %v7860 = vpop.f32.mrf.mxu0
        %7861 = vmatprep.mubr.bf16.mxu0 0
        %7862 = vmatmul.mubr.bf16.gmra.mxu0 %v7741
        %v7863 = vpop.f32.mrf.mxu0
        %v7864 = vadd.f32 0.0, %v7863
        %v7865 = vpop.f32.mrf.mxu0
        %v7866 = vpop.f32.mrf.mxu0
        %v7867 = vadd.f32 0.0, %v7866
        %v7868 = vpop.f32.mrf.mxu0
        %7869 = vmatprep.mubr.bf16.mxu0 0
        %7870 = vmatmul.mubr.bf16.gmra.mxu0 %v7742
        %v7871 = vpop.f32.mrf.mxu0
        %v7872 = vadd.f32 0.0, %v7871
        %v7873 = vpop.f32.mrf.mxu0
        %v7874 = vpop.f32.mrf.mxu0
        %v7875 = vadd.f32 0.0, %v7874
        %v7876 = vpop.f32.mrf.mxu0
        %7877 = vmatprep.mubr.bf16.mxu0 0
        %7878 = vmatmul.mubr.bf16.gmra.mxu0 %v7743
        %v7879 = vpop.f32.mrf.mxu0
        %v7880 = vadd.f32 0.0, %v7879
        %v7881 = vpop.f32.mrf.mxu0
        %v7882 = vpop.f32.mrf.mxu0
        %v7883 = vadd.f32 0.0, %v7882
        %v7884 = vpop.f32.mrf.mxu0
        %7885 = vmatprep.mubr.bf16.mxu0 0
        %7886 = vmatmul.mubr.bf16.gmra.mxu0 %v7744
        %v7887 = vpop.f32.mrf.mxu0
        %v7888 = vadd.f32 0.0, %v7887
        %v7889 = vpop.f32.mrf.mxu0
        %v7890 = vpop.f32.mrf.mxu0
        %v7891 = vadd.f32 0.0, %v7890
        %v7892 = vpop.f32.mrf.mxu0
        %7893 = vmatprep.mubr.bf16.mxu0 0
        %7894 = vmatmul.mubr.bf16.gmra.mxu0 %v7745
        %v7895 = vpop.f32.mrf.mxu0
        %v7896 = vadd.f32 0.0, %v7895
        %v7897 = vpop.f32.mrf.mxu0
        %v7898 = vpop.f32.mrf.mxu0
        %v7899 = vadd.f32 0.0, %v7898
        %v7900 = vpop.f32.mrf.mxu0
        %7901 = vmatprep.mubr.bf16.mxu0 0
        %7902 = vmatmul.mubr.bf16.gmra.mxu0 %v7746
        %v7903 = vpop.f32.mrf.mxu0
        %v7904 = vadd.f32 0.0, %v7903
        %v7905 = vpop.f32.mrf.mxu0
        %v7906 = vpop.f32.mrf.mxu0
        %v7907 = vadd.f32 0.0, %v7906
        %v7908 = vpop.f32.mrf.mxu0
        %7909 = vmatprep.mubr.bf16.mxu0 0
        %7910 = vmatmul.mubr.bf16.gmra.mxu0 %v7747
        %v7911 = vpop.f32.mrf.mxu0
        %v7912 = vadd.f32 0.0, %v7911
        %v7913 = vpop.f32.mrf.mxu0
        %v7914 = vpop.f32.mrf.mxu0
        %v7915 = vadd.f32 0.0, %v7914
        %v7916 = vpop.f32.mrf.mxu0
        %7917 = vmatprep.mubr.bf16.mxu0 0
        %7918 = vmatmul.mubr.bf16.gmra.mxu0 %v7748
        %v7919 = vpop.f32.mrf.mxu0
        %v7920 = vadd.f32 0.0, %v7919
        %v7921 = vpop.f32.mrf.mxu0
        %v7922 = vpop.f32.mrf.mxu0
        %v7923 = vadd.f32 0.0, %v7922
        %v7924 = vpop.f32.mrf.mxu0
        %7925 = vmatprep.mubr.bf16.mxu0 0
        %7926 = vmatmul.mubr.bf16.gmra.mxu0 %v7749
        %v7927 = vpop.f32.mrf.mxu0
        %v7928 = vadd.f32 0.0, %v7927
        %v7929 = vpop.f32.mrf.mxu0
        %v7930 = vpop.f32.mrf.mxu0
        %v7931 = vadd.f32 0.0, %v7930
        %v7932 = vpop.f32.mrf.mxu0
        %7933 = vmatprep.mubr.bf16.mxu0 0
        %7934 = vmatmul.mubr.bf16.gmra.mxu0 %v7750
        %v7935 = vpop.f32.mrf.mxu0
        %v7936 = vadd.f32 0.0, %v7935
        %v7937 = vpop.f32.mrf.mxu0
        %v7938 = vpop.f32.mrf.mxu0
        %v7939 = vadd.f32 0.0, %v7938
        %v7940 = vpop.f32.mrf.mxu0
        %7941 = vmatprep.mubr.bf16.mxu0 0
        %7942 = vmatmul.mubr.bf16.gmra.mxu0 %v7751
        %v7943 = vpop.f32.mrf.mxu0
        %v7944 = vadd.f32 0.0, %v7943
        %v7945 = vpop.f32.mrf.mxu0
        %v7946 = vpop.f32.mrf.mxu0
        %v7947 = vadd.f32 0.0, %v7946
        %v7948 = vpop.f32.mrf.mxu0
        %7949 = vmatprep.mubr.bf16.mxu0 0
        %7950 = vmatmul.mubr.bf16.gmra.mxu0 %v7752
        %v7951 = vpop.f32.mrf.mxu0
        %v7952 = vadd.f32 0.0, %v7951
        %v7953 = vpop.f32.mrf.mxu0
        %v7954 = vpop.f32.mrf.mxu0
        %v7955 = vadd.f32 0.0, %v7954
        %v7956 = vpop.f32.mrf.mxu0
        %7957 = vmatprep.mubr.bf16.mxu0 0
        %7958 = vmatmul.mubr.bf16.gmra.mxu0 %v7753
        %v7959 = vpop.f32.mrf.mxu0
        %v7960 = vadd.f32 0.0, %v7959
        %v7961 = vpop.f32.mrf.mxu0
        %v7962 = vpop.f32.mrf.mxu0
        %v7963 = vadd.f32 0.0, %v7962
        %v7964 = vpop.f32.mrf.mxu0
        %7965 = vmatprep.mubr.bf16.mxu0 0
        %7966 = vmatmul.mubr.bf16.gmra.mxu0 %v7754
        %v7967 = vpop.f32.mrf.mxu0
        %v7968 = vadd.f32 0.0, %v7967
        %v7969 = vpop.f32.mrf.mxu0
        %v7970 = vpop.f32.mrf.mxu0
        %v7971 = vadd.f32 0.0, %v7970
        %v7972 = vpop.f32.mrf.mxu0
        %7973 = vmatprep.mubr.bf16.mxu0 0
        %7974 = vmatmul.mubr.bf16.gmra.mxu0 %v7755
        %v7975 = vpop.f32.mrf.mxu0
        %v7976 = vadd.f32 0.0, %v7975
        %v7977 = vpop.f32.mrf.mxu0
        %v7978 = vpop.f32.mrf.mxu0
        %v7979 = vadd.f32 0.0, %v7978
        %v7980 = vpop.f32.mrf.mxu0
        %7981 = vdwg.mxu0
        %v7982 = vadd.f32 %v7708, %v7856
        %v7983 = vadd.f32 %v7709, %v7859
        %v7984 = vadd.f32 %v7710, %v7864
        %v7985 = vadd.f32 %v7711, %v7867
        %v7986 = vadd.f32 %v7712, %v7872
        %v7987 = vadd.f32 %v7713, %v7875
        %v7988 = vadd.f32 %v7714, %v7880
        %v7989 = vadd.f32 %v7715, %v7883
        %v7990 = vadd.f32 %v7716, %v7888
        %v7991 = vadd.f32 %v7717, %v7891
        %v7992 = vadd.f32 %v7718, %v7896
        %v7993 = vadd.f32 %v7719, %v7899
        %v7994 = vadd.f32 %v7720, %v7904
        %v7995 = vadd.f32 %v7721, %v7907
        %v7996 = vadd.f32 %v7722, %v7912
        %v7997 = vadd.f32 %v7723, %v7915
        %v7998 = vadd.f32 %v7724, %v7920
        %v7999 = vadd.f32 %v7725, %v7923
        %v8000 = vadd.f32 %v7726, %v7928
        %v8001 = vadd.f32 %v7727, %v7931
        %v8002 = vadd.f32 %v7728, %v7936
        %v8003 = vadd.f32 %v7729, %v7939
        %v8004 = vadd.f32 %v7730, %v7944
        %v8005 = vadd.f32 %v7731, %v7947
        %v8006 = vadd.f32 %v7732, %v7952
        %v8007 = vadd.f32 %v7733, %v7955
        %v8008 = vadd.f32 %v7734, %v7960
        %v8009 = vadd.f32 %v7735, %v7963
        %v8010 = vadd.f32 %v7736, %v7968
        %v8011 = vadd.f32 %v7737, %v7971
        %v8012 = vadd.f32 %v7738, %v7976
        %v8013 = vadd.f32 %v7739, %v7979
        %8014 = vst [vmem:[#allocation4] sm:$0xff] %v7982
        %8015 = vst [vmem:[#allocation4 + $0x8] sm:$0xff] %v7983
        %8016 = vst [vmem:[#allocation4 + $0x10] sm:$0xff] %v7984
        %8017 = vst [vmem:[#allocation4 + $0x18] sm:$0xff] %v7985
        %8018 = vst [vmem:[#allocation4 + $0x20] sm:$0xff] %v7986
        %8019 = vst [vmem:[#allocation4 + $0x28] sm:$0xff] %v7987
        %8020 = vst [vmem:[#allocation4 + $0x30] sm:$0xff] %v7988
        %8021 = vst [vmem:[#allocation4 + $0x38] sm:$0xff] %v7989
        %8022 = vst [vmem:[#allocation4 + $0x40] sm:$0xff] %v7990
        %8023 = vst [vmem:[#allocation4 + $0x48] sm:$0xff] %v7991
        %8024 = vst [vmem:[#allocation4 + $0x50] sm:$0xff] %v7992
        %8025 = vst [vmem:[#allocation4 + $0x58] sm:$0xff] %v7993
        %8026 = vst [vmem:[#allocation4 + $0x60] sm:$0xff] %v7994
        %8027 = vst [vmem:[#allocation4 + $0x68] sm:$0xff] %v7995
        %8028 = vst [vmem:[#allocation4 + $0x70] sm:$0xff] %v7996
        %8029 = vst [vmem:[#allocation4 + $0x78] sm:$0xff] %v7997
        %8030 = vst [vmem:[#allocation4 + $0x80] sm:$0xff] %v7998
        %8031 = vst [vmem:[#allocation4 + $0x88] sm:$0xff] %v7999
        %8032 = vst [vmem:[#allocation4 + $0x90] sm:$0xff] %v8000
        %8033 = vst [vmem:[#allocation4 + $0x98] sm:$0xff] %v8001
        %8034 = vst [vmem:[#allocation4 + $0xa0] sm:$0xff] %v8002
        %8035 = vst [vmem:[#allocation4 + $0xa8] sm:$0xff] %v8003
        %8036 = vst [vmem:[#allocation4 + $0xb0] sm:$0xff] %v8004
        %8037 = vst [vmem:[#allocation4 + $0xb8] sm:$0xff] %v8005
        %8038 = vst [vmem:[#allocation4 + $0xc0] sm:$0xff] %v8006
        %8039 = vst [vmem:[#allocation4 + $0xc8] sm:$0xff] %v8007
        %8040 = vst [vmem:[#allocation4 + $0xd0] sm:$0xff] %v8008
        %8041 = vst [vmem:[#allocation4 + $0xd8] sm:$0xff] %v8009
        %8042 = vst [vmem:[#allocation4 + $0xe0] sm:$0xff] %v8010
        %8043 = vst [vmem:[#allocation4 + $0xe8] sm:$0xff] %v8011
        %8044 = vst [vmem:[#allocation4 + $0xf0] sm:$0xff] %v8012
        %8045 = vst [vmem:[#allocation4 + $0xf8] sm:$0xff] %v8013
        %v8046 = vld [vmem:[#allocation4] sm:$0xff]
        %v8047 = vld [vmem:[#allocation4 + $0x8] sm:$0xff]
        %v8048 = vld [vmem:[#allocation4 + $0x10] sm:$0xff]
        %v8049 = vld [vmem:[#allocation4 + $0x18] sm:$0xff]
        %v8050 = vld [vmem:[#allocation4 + $0x20] sm:$0xff]
        %v8051 = vld [vmem:[#allocation4 + $0x28] sm:$0xff]
        %v8052 = vld [vmem:[#allocation4 + $0x30] sm:$0xff]
        %v8053 = vld [vmem:[#allocation4 + $0x38] sm:$0xff]
        %v8054 = vld [vmem:[#allocation4 + $0x40] sm:$0xff]
        %v8055 = vld [vmem:[#allocation4 + $0x48] sm:$0xff]
        %v8056 = vld [vmem:[#allocation4 + $0x50] sm:$0xff]
        %v8057 = vld [vmem:[#allocation4 + $0x58] sm:$0xff]
        %v8058 = vld [vmem:[#allocation4 + $0x60] sm:$0xff]
        %v8059 = vld [vmem:[#allocation4 + $0x68] sm:$0xff]
        %v8060 = vld [vmem:[#allocation4 + $0x70] sm:$0xff]
        %v8061 = vld [vmem:[#allocation4 + $0x78] sm:$0xff]
        %v8062 = vld [vmem:[#allocation4 + $0x80] sm:$0xff]
        %v8063 = vld [vmem:[#allocation4 + $0x88] sm:$0xff]
        %v8064 = vld [vmem:[#allocation4 + $0x90] sm:$0xff]
        %v8065 = vld [vmem:[#allocation4 + $0x98] sm:$0xff]
        %v8066 = vld [vmem:[#allocation4 + $0xa0] sm:$0xff]
        %v8067 = vld [vmem:[#allocation4 + $0xa8] sm:$0xff]
        %v8068 = vld [vmem:[#allocation4 + $0xb0] sm:$0xff]
        %v8069 = vld [vmem:[#allocation4 + $0xb8] sm:$0xff]
        %v8070 = vld [vmem:[#allocation4 + $0xc0] sm:$0xff]
        %v8071 = vld [vmem:[#allocation4 + $0xc8] sm:$0xff]
        %v8072 = vld [vmem:[#allocation4 + $0xd0] sm:$0xff]
        %v8073 = vld [vmem:[#allocation4 + $0xd8] sm:$0xff]
        %v8074 = vld [vmem:[#allocation4 + $0xe0] sm:$0xff]
        %v8075 = vld [vmem:[#allocation4 + $0xe8] sm:$0xff]
        %v8076 = vld [vmem:[#allocation4 + $0xf0] sm:$0xff]
        %v8077 = vld [vmem:[#allocation4 + $0xf8] sm:$0xff]
        %v8078 = vld [vmem:[%s237] sm:$0xff]
        %v8079 = vld [vmem:[%s237 + $0x8] sm:$0xff]
        %v8080 = vld [vmem:[%s237 + $0x10] sm:$0xff]
        %v8081 = vld [vmem:[%s237 + $0x18] sm:$0xff]
        %v8082 = vld [vmem:[%s237 + $0x20] sm:$0xff]
        %v8083 = vld [vmem:[%s237 + $0x28] sm:$0xff]
        %v8084 = vld [vmem:[%s237 + $0x30] sm:$0xff]
        %v8085 = vld [vmem:[%s237 + $0x38] sm:$0xff]
        %v8086 = vld [vmem:[%s237 + $0x40] sm:$0xff]
        %v8087 = vld [vmem:[%s237 + $0x48] sm:$0xff]
        %v8088 = vld [vmem:[%s237 + $0x50] sm:$0xff]
        %v8089 = vld [vmem:[%s237 + $0x58] sm:$0xff]
        %v8090 = vld [vmem:[%s237 + $0x60] sm:$0xff]
        %v8091 = vld [vmem:[%s237 + $0x68] sm:$0xff]
        %v8092 = vld [vmem:[%s237 + $0x70] sm:$0xff]
        %v8093 = vld [vmem:[%s237 + $0x78] sm:$0xff]
        %v8094 = vld [vmem:[%s237 + $0x80] sm:$0xff]
        %v8095 = vld [vmem:[%s237 + $0x88] sm:$0xff]
        %v8096 = vld [vmem:[%s237 + $0x90] sm:$0xff]
        %v8097 = vld [vmem:[%s237 + $0x98] sm:$0xff]
        %v8098 = vld [vmem:[%s237 + $0xa0] sm:$0xff]
        %v8099 = vld [vmem:[%s237 + $0xa8] sm:$0xff]
        %v8100 = vld [vmem:[%s237 + $0xb0] sm:$0xff]
        %v8101 = vld [vmem:[%s237 + $0xb8] sm:$0xff]
        %v8102 = vld [vmem:[%s237 + $0xc0] sm:$0xff]
        %v8103 = vld [vmem:[%s237 + $0xc8] sm:$0xff]
        %v8104 = vld [vmem:[%s237 + $0xd0] sm:$0xff]
        %v8105 = vld [vmem:[%s237 + $0xd8] sm:$0xff]
        %v8106 = vld [vmem:[%s237 + $0xe0] sm:$0xff]
        %v8107 = vld [vmem:[%s237 + $0xe8] sm:$0xff]
        %v8108 = vld [vmem:[%s237 + $0xf0] sm:$0xff]
        %v8109 = vld [vmem:[%s237 + $0xf8] sm:$0xff]
        %v8110 = vadd.f32 %v8046, %v8078
        %v8111 = vadd.f32 %v8047, %v8079
        %v8112 = vadd.f32 %v8048, %v8080
        %v8113 = vadd.f32 %v8049, %v8081
        %v8114 = vadd.f32 %v8050, %v8082
        %v8115 = vadd.f32 %v8051, %v8083
        %v8116 = vadd.f32 %v8052, %v8084
        %v8117 = vadd.f32 %v8053, %v8085
        %v8118 = vadd.f32 %v8054, %v8086
        %v8119 = vadd.f32 %v8055, %v8087
        %v8120 = vadd.f32 %v8056, %v8088
        %v8121 = vadd.f32 %v8057, %v8089
        %v8122 = vadd.f32 %v8058, %v8090
        %v8123 = vadd.f32 %v8059, %v8091
        %v8124 = vadd.f32 %v8060, %v8092
        %v8125 = vadd.f32 %v8061, %v8093
        %v8126 = vadd.f32 %v8062, %v8094
        %v8127 = vadd.f32 %v8063, %v8095
        %v8128 = vadd.f32 %v8064, %v8096
        %v8129 = vadd.f32 %v8065, %v8097
        %v8130 = vadd.f32 %v8066, %v8098
        %v8131 = vadd.f32 %v8067, %v8099
        %v8132 = vadd.f32 %v8068, %v8100
        %v8133 = vadd.f32 %v8069, %v8101
        %v8134 = vadd.f32 %v8070, %v8102
        %v8135 = vadd.f32 %v8071, %v8103
        %v8136 = vadd.f32 %v8072, %v8104
        %v8137 = vadd.f32 %v8073, %v8105
        %v8138 = vadd.f32 %v8074, %v8106
        %v8139 = vadd.f32 %v8075, %v8107
        %v8140 = vadd.f32 %v8076, %v8108
        %v8141 = vadd.f32 %v8077, %v8109
        %v8142 = vmax.f32 %v8110, 0.0
        %v8143 = vmax.f32 %v8111, 0.0
        %v8144 = vmax.f32 %v8112, 0.0
        %v8145 = vmax.f32 %v8113, 0.0
        %v8146 = vmax.f32 %v8114, 0.0
        %v8147 = vmax.f32 %v8115, 0.0
        %v8148 = vmax.f32 %v8116, 0.0
        %v8149 = vmax.f32 %v8117, 0.0
        %v8150 = vmax.f32 %v8118, 0.0
        %v8151 = vmax.f32 %v8119, 0.0
        %v8152 = vmax.f32 %v8120, 0.0
        %v8153 = vmax.f32 %v8121, 0.0
        %v8154 = vmax.f32 %v8122, 0.0
        %v8155 = vmax.f32 %v8123, 0.0
        %v8156 = vmax.f32 %v8124, 0.0
        %v8157 = vmax.f32 %v8125, 0.0
        %v8158 = vmax.f32 %v8126, 0.0
        %v8159 = vmax.f32 %v8127, 0.0
        %v8160 = vmax.f32 %v8128, 0.0
        %v8161 = vmax.f32 %v8129, 0.0
        %v8162 = vmax.f32 %v8130, 0.0
        %v8163 = vmax.f32 %v8131, 0.0
        %v8164 = vmax.f32 %v8132, 0.0
        %v8165 = vmax.f32 %v8133, 0.0
        %v8166 = vmax.f32 %v8134, 0.0
        %v8167 = vmax.f32 %v8135, 0.0
        %v8168 = vmax.f32 %v8136, 0.0
        %v8169 = vmax.f32 %v8137, 0.0
        %v8170 = vmax.f32 %v8138, 0.0
        %v8171 = vmax.f32 %v8139, 0.0
        %v8172 = vmax.f32 %v8140, 0.0
        %v8173 = vmax.f32 %v8141, 0.0
        %8174 = vst [vmem:[%s271] sm:$0xff] %v8142
        %8175 = vst [vmem:[%s271 + $0x8] sm:$0xff] %v8143
        %8176 = vst [vmem:[%s271 + $0x10] sm:$0xff] %v8144
        %8177 = vst [vmem:[%s271 + $0x18] sm:$0xff] %v8145
        %8178 = vst [vmem:[%s271 + $0x20] sm:$0xff] %v8146
        %8179 = vst [vmem:[%s271 + $0x28] sm:$0xff] %v8147
        %8180 = vst [vmem:[%s271 + $0x30] sm:$0xff] %v8148
        %8181 = vst [vmem:[%s271 + $0x38] sm:$0xff] %v8149
        %8182 = vst [vmem:[%s271 + $0x40] sm:$0xff] %v8150
        %8183 = vst [vmem:[%s271 + $0x48] sm:$0xff] %v8151
        %8184 = vst [vmem:[%s271 + $0x50] sm:$0xff] %v8152
        %8185 = vst [vmem:[%s271 + $0x58] sm:$0xff] %v8153
        %8186 = vst [vmem:[%s271 + $0x60] sm:$0xff] %v8154
        %8187 = vst [vmem:[%s271 + $0x68] sm:$0xff] %v8155
        %8188 = vst [vmem:[%s271 + $0x70] sm:$0xff] %v8156
        %8189 = vst [vmem:[%s271 + $0x78] sm:$0xff] %v8157
        %8190 = vst [vmem:[%s271 + $0x80] sm:$0xff] %v8158
        %8191 = vst [vmem:[%s271 + $0x88] sm:$0xff] %v8159
        %8192 = vst [vmem:[%s271 + $0x90] sm:$0xff] %v8160
        %8193 = vst [vmem:[%s271 + $0x98] sm:$0xff] %v8161
        %8194 = vst [vmem:[%s271 + $0xa0] sm:$0xff] %v8162
        %8195 = vst [vmem:[%s271 + $0xa8] sm:$0xff] %v8163
        %8196 = vst [vmem:[%s271 + $0xb0] sm:$0xff] %v8164
        %8197 = vst [vmem:[%s271 + $0xb8] sm:$0xff] %v8165
        %8198 = vst [vmem:[%s271 + $0xc0] sm:$0xff] %v8166
        %8199 = vst [vmem:[%s271 + $0xc8] sm:$0xff] %v8167
        %8200 = vst [vmem:[%s271 + $0xd0] sm:$0xff] %v8168
        %8201 = vst [vmem:[%s271 + $0xd8] sm:$0xff] %v8169
        %8202 = vst [vmem:[%s271 + $0xe0] sm:$0xff] %v8170
        %8203 = vst [vmem:[%s271 + $0xe8] sm:$0xff] %v8171
        %8204 = vst [vmem:[%s271 + $0xf0] sm:$0xff] %v8172
        %8205 = vst [vmem:[%s271 + $0xf8] sm:$0xff] %v8173
        %s8206 = sand.u32 %s141, 1
        %s8207 = scalar_lea.sflag [#allocation7], %s8206
        %s8208 = sand.u32 %s141, 1
        %s8209 = smul.addr %s8208, 256
        %s8210 = scalar_lea.vmem [#allocation11], %s8209
        // Predicated region
        $region53: #{tpu_custom_call.1} parent=39 // pred_check
          %p8211 = pneg %p151
        $region54: #{tpu_custom_call.1} parent=39 // pred_check_branch
          %8213 = sbr.rel (%p8211) target = $region56
        $region55: #{tpu_custom_call.1} parent=39 // pred_region
          %s8215 = ssub.s32 4096, 4096
          %8216 = vsyncadd %s8207, %s8215
          %s8217 = smul.addr %s23, 32
          %s8218 = smul.addr %s8217, 128
          %s8219 = scalar_lea.hbm %s5, %s8218
          %s8220 = sshll.u32 %s8210, 4
          %s8221 = int_to_ptr.vmem [resolvable:$true] %s8220
          %8226 = dma.vmem_to_hbm [thread:$0]  %s8221, 4096, %s8219, %s8207, 128, 128, 8
        $region56: #{tpu_custom_call.1} parent=39 // pred_fallthru
          _
      $region40: #{tpu_custom_call.1} parent=5 // pred_fallthru
        _
      %p8227 = scmp.le.s32.totalorder 2, %s18
      // Predicated region
      $region57: #{tpu_custom_call.1} parent=5 // pred_check
        %p8228 = pneg %p8227
      $region58: #{tpu_custom_call.1} parent=5 // pred_check_branch
        %8230 = sbr.rel (%p8228) target = $region60
      $region59: #{tpu_custom_call.1} parent=5 // pred_region
        %s8231 = ssub.s32 %s18, 2
        // Predicated region
        $region61: #{tpu_custom_call.1} parent=59 // pred_check
          %p8232 = pneg %p157
        $region62: #{tpu_custom_call.1} parent=59 // pred_check_branch
          %8234 = sbr.rel (%p8232) target = $region64
        $region63: #{tpu_custom_call.1} parent=59 // pred_region
          %s8235 = sand.u32 %s142, 1
          %s8236 = scalar_lea.sflag [#allocation7], %s8235
          %s8237 = sand.u32 %s142, 1
          %s8238 = smul.addr %s8237, 256
          %s8239 = scalar_lea.vmem [#allocation11], %s8238
          %8240 = dma.done %s8236, 4096
        $region64: #{tpu_custom_call.1} parent=59 // pred_fallthru
          _
      $region60: #{tpu_custom_call.1} parent=5 // pred_fallthru
        _
    $region6: #{tpu_custom_call.1} parent=1 // loop_footer
      %s22 = sadd.s32 1, %s18
    $region7: #{tpu_custom_call.1} parent=1 // loop_footer_branch
      %17 = sbr.rel target = $region3
    $region8: #{tpu_custom_call.1} parent=1 // loop_exit
      _
    %8241 = vsyncpa [#allocation6], 1
    %s8242 = scalar_lea.sflag [#allocation6], 1
    %8243 = vsyncpa %s8242, 1
    %8244 = vsyncpa [#allocation9], 1
    %8245 = vsyncpa [#allocation7], 1
    %s8246 = scalar_lea.sflag [#allocation7], 1
    %8247 = vsyncpa %s8246, 1

</llo_original>
